<compile_context>
chip_gen: v5e
topology: v5e:2x2
jax: 0.10.0
libtpu: 0.0.40
codegen_flags: <defaults>
</compile_context>

<pallas_src>
import numpy as np
import jax
import jax.numpy as jnp
from jax.experimental import pallas as pl
from jax.experimental.pallas import tpu as pltpu

EPS = 1e-5                  # matches nn.BatchNorm2d(eps=1e-05)
MXU_DTYPE = jnp.bfloat16    # matmul operand dtype (accumulation stays f32)


# --------------------------------------------------------------------------
# Batch-tile picker: largest divisor of N that keeps >= 2 grid steps (when N
# allows, so both v7x TensorCores get work) and fits the VMEM budget.
# --------------------------------------------------------------------------
def _pick_batch_tile(N, H, W, Cin, Cout, kh, kw, budget_bytes=20 << 20):
    ph, pw = kh // 2, kw // 2
    Cmax = max(Cin, Cout)
    KK = kh * kw
    for bt in range(N, 0, -1):
        if N % bt:
            continue
        if N >= 2 and bt != 1 and N // bt < 2:
            continue                      # keep >= 2 grid steps for 2-TC parts
        est = (2 * bt * H * W * Cin * 4                       # x block (dbl-buf)
               + 2 * bt * H * W * Cout * 4                    # out block (dbl-buf)
               + bt * (H + 2 * ph) * (W + 2 * pw) * Cmax * 4  # pad scratch (f32)
               + bt * H * W * KK * Cmax * 2)                  # im2col slab (bf16)
        if est <= budget_bytes:
            return bt
    return 1


# --------------------------------------------------------------------------
# Fused resdown kernel factory
# --------------------------------------------------------------------------
def _make_resdown_call(N, H, W, Cin, Cout, kh, kw, B):
    ph, pw = kh // 2, kw // 2
    Hp, Wp = H + 2 * ph, W + 2 * pw
    KK = kh * kw
    Cmax = max(Cin, Cout)
    ROWS = B * H * W

    def kernel(x_ref, bn_in_ref, bn_out_ref, bias_ref, w0_ref, wp_ref,
               w123_ref, o_ref, pad, slab):
        # Zero only the conv halo of the shared padded scratch (the interior is
        # overwritten by every conv).  Done every step: gating on program_id==0
        # is unsafe with a 'parallel' (core-sharded) batch axis.
        if ph:
            zr = jnp.zeros((B, ph, Wp, Cmax), jnp.float32)
            pad[:, 0:ph, :, :] = zr
            pad[:, Hp - ph:Hp, :, :] = zr
        if pw:
            zc = jnp.zeros((B, Hp, pw, Cmax), jnp.float32)
            pad[:, :, 0:pw, :] = zc
            pad[:, :, Wp - pw:Wp, :] = zc

        def conv_same(u, C, w_mat):
            # u: (ROWS, C) f32.  'same' conv as ONE matmul over an in-VMEM
            # im2col slab (bf16 MXU operands, f32 accumulation).
            pad[:, ph:ph + H, pw:pw + W, :C] = u.reshape(B, H, W, C)
            for t in range(KK):
                dy, dx = divmod(t, kw)
                slab[:, :, :, t * C:(t + 1) * C] = (
                    pad[:, dy:dy + H, dx:dx + W, :C].astype(MXU_DTYPE))
            lhs = slab[:, :, :, :KK * C].reshape(ROWS, KK * C)
            return jax.lax.dot_general(
                lhs, w_mat, (((1,), (0,)), ((), ())),
                preferred_element_type=jnp.float32)

        x2 = x_ref[...].reshape(ROWS, Cin)                       # f32

        # conv_0 : BN0 -> ReLU -> 3x3 conv  (its bias is folded into BN1's shift)
        u0 = jnp.maximum(x2 * bn_in_ref[0:1, :] + bn_in_ref[1:2, :], 0.0)
        t0 = conv_same(u0, Cin, w0_ref[...])

        # proj : BNp -> 1x1 conv            (its bias is pre-summed with b1)
        up = (x2 * bn_in_ref[2:3, :] + bn_in_ref[3:4, :]).astype(MXU_DTYPE)
        p = jax.lax.dot_general(up, wp_ref[...], (((1,), (0,)), ((), ())),
                                preferred_element_type=jnp.float32)

        # conv_1 ;  x1 = proj(x) + conv_1(conv_0(x))
        u1 = jnp.maximum(t0 * bn_out_ref[0:1, :] + bn_out_ref[1:2, :], 0.0)
        x1 = p + conv_same(u1, Cout, w123_ref[0]) + bias_ref[0:1, :]

        # conv_2                            (its bias is folded into BN3's shift)
        u2 = jnp.maximum(x1 * bn_out_ref[2:3, :] + bn_out_ref[3:4, :], 0.0)
        t2 = conv_same(u2, Cout, w123_ref[1])

        # conv_3 ;  out = x1 + conv_3(conv_2(x1))
        u3 = jnp.maximum(t2 * bn_out_ref[4:5, :] + bn_out_ref[5:6, :], 0.0)
        out = x1 + conv_same(u3, Cout, w123_ref[2]) + bias_ref[1:2, :]

        o_ref[...] = out.reshape(B, H, W, Cout)

    flops = 2 * N * H * W * (Cin * Cout * (KK + 1) + 3 * KK * Cout * Cout)
    bytes_accessed = (4 * N * H * W * (Cin + Cout)
                      + 2 * (KK * Cin * Cout + Cin * Cout + 3 * KK * Cout * Cout)
                      + 4 * (4 * Cin + 8 * Cout))

    vmem_est = (2 * B * H * W * Cin * 4 + 2 * B * H * W * Cout * 4
                + B * Hp * Wp * Cmax * 4 + B * H * W * KK * Cmax * 2
                + 4 * (KK * Cin * Cout + Cin * Cout + 3 * KK * Cout * Cout))
    vmem_limit = int(min(64 << 20, max(32 << 20, 2 * vmem_est)))

    return pl.pallas_call(
        kernel,
        out_shape=jax.ShapeDtypeStruct((N, H, W, Cout), jnp.float32),
        grid=(N // B,),
        in_specs=[
            pl.BlockSpec((B, H, W, Cin), lambda n: (n, 0, 0, 0)),     # x (NHWC)
            pl.BlockSpec((4, Cin), lambda n: (0, 0)),                 # folded BN (in-ch)
            pl.BlockSpec((6, Cout), lambda n: (0, 0)),                # folded BN (out-ch)
            pl.BlockSpec((2, Cout), lambda n: (0, 0)),                # residual biases
            pl.BlockSpec((KK * Cin, Cout), lambda n: (0, 0)),         # conv_0 weight (im2col)
            pl.BlockSpec((Cin, Cout), lambda n: (0, 0)),              # proj 1x1 weight
            pl.BlockSpec((3, KK * Cout, Cout), lambda n: (0, 0, 0)),  # conv_1..3 weights
        ],
        out_specs=pl.BlockSpec((B, H, W, Cout), lambda n: (n, 0, 0, 0)),
        scratch_shapes=[
            pltpu.VMEM((B, Hp, Wp, Cmax), jnp.float32),   # shared padded scratch
            pltpu.VMEM((B, H, W, KK * Cmax), MXU_DTYPE),  # im2col slab (bf16)
        ],
        compiler_params=pltpu.CompilerParams(
            dimension_semantics=("parallel",),
            vmem_limit_bytes=vmem_limit),
        cost_estimate=pl.CostEstimate(flops=int(flops), transcendentals=0,
                                      bytes_accessed=int(bytes_accessed)),
    )


# --------------------------------------------------------------------------
# resdown forward (NCHW in / NCHW out, matching the PyTorch module)
# --------------------------------------------------------------------------
def resdown_forward(params, x_nchw, *, batch_tile=None):
    x = jnp.transpose(x_nchw, (0, 2, 3, 1)).astype(jnp.float32)   # NHWC
    N, H, W, Cin = x.shape
    kh, kw, _, Cout = params["w0"].shape
    KK = kh * kw

    def fold(bn):
        gamma, beta, mean, var = bn
        s = gamma / jnp.sqrt(var + EPS)
        return s, beta - mean * s

    s0, h0 = fold(params["bn0"])
    sp, hp = fold(params["bnp"])
    s1, h1 = fold(params["bn1"])
    s2, h2 = fold(params["bn2"])
    s3, h3 = fold(params["bn3"])

    # Fold conv biases that are immediately re-normalised into the next BN
    # shift (b0 -> bn1, b2 -> bn3); pre-sum the two biases feeding x1.
    h1 = h1 + params["b0"] * s1
    h3 = h3 + params["b2"] * s3
    bn_in = jnp.stack([s0, h0, sp, hp]).astype(jnp.float32)              # (4, Cin)
    bn_out = jnp.stack([s1, h1, s2, h2, s3, h3]).astype(jnp.float32)     # (6, Cout)
    biases = jnp.stack([params["bp"] + params["b1"],
                        params["b3"]]).astype(jnp.float32)               # (2, Cout)

    # bf16 MXU operands; tap rows ordered (dy, dx, cin) to match the slab.
    w0m = params["w0"].reshape(KK * Cin, Cout).astype(MXU_DTYPE)
    wpm = params["wp"].reshape(Cin, Cout).astype(MXU_DTYPE)
    w123m = jnp.stack([params["w1"], params["w2"], params["w3"]]
                      ).reshape(3, KK * Cout, Cout).astype(MXU_DTYPE)

    B = batch_tile or _pick_batch_tile(N, H, W, Cin, Cout, kh, kw)
    assert N % B == 0, "batch tile must divide N"
    call = _make_resdown_call(N, H, W, Cin, Cout, kh, kw, B)
    out = call(x, bn_in, bn_out, biases, w0m, wpm, w123m)
    return jnp.transpose(out, (0, 3, 1, 2))


# --------------------------------------------------------------------------
# Pure-JAX reference (lax.conv, all-f32) for correctness checking
# --------------------------------------------------------------------------
def _conv_ref(u, w, b):
    return jax.lax.conv_general_dilated(
        u, w, window_strides=(1, 1), padding="SAME",
        dimension_numbers=("NHWC", "HWIO", "NHWC")) + b.reshape(1, 1, 1, -1)


def _bn_ref(u, bn):
    gamma, beta, mean, var = bn
    s = gamma / jnp.sqrt(var + EPS)
    return u * s + (beta - mean * s)


def resdown_reference(params, x_nchw):
    x = jnp.transpose(x_nchw, (0, 2, 3, 1))
    relu = lambda v: jnp.maximum(v, 0.0)
    t0 = _conv_ref(relu(_bn_ref(x, params["bn0"])), params["w0"], params["b0"])
    p = _conv_ref(_bn_ref(x, params["bnp"]), params["wp"], params["bp"])
    x1 = p + _conv_ref(relu(_bn_ref(t0, params["bn1"])), params["w1"], params["b1"])
    t2 = _conv_ref(relu(_bn_ref(x1, params["bn2"])), params["w2"], params["b2"])
    out = x1 + _conv_ref(relu(_bn_ref(t2, params["bn3"])), params["w3"], params["b3"])
    return jnp.transpose(out, (0, 3, 1, 2))


# --------------------------------------------------------------------------
# Deterministic parameter init (shapes from resdown.__init__)
# --------------------------------------------------------------------------
def init_params(key, in_ch, out_ch, sz):
    keys = iter(jax.random.split(key, 40))

    def conv_w(cin, cout, k):
        return 0.1 * jax.random.normal(next(keys), (k, k, cin, cout), jnp.float32)

    def bias(c):
        return 0.1 * jax.random.normal(next(keys), (c,), jnp.float32)

    def bn(c):
        gamma = 1.0 + 0.1 * jax.random.normal(next(keys), (c,), jnp.float32)
        beta = 0.1 * jax.random.normal(next(keys), (c,), jnp.float32)
        mean = 0.1 * jax.random.normal(next(keys), (c,), jnp.float32)
        var = 0.5 + jnp.abs(jax.random.normal(next(keys), (c,), jnp.float32))
        return (gamma, beta, mean, var)

    p = {}
    p["bn0"], p["w0"], p["b0"] = bn(in_ch), conv_w(in_ch, out_ch, sz), bias(out_ch)
    p["bnp"], p["wp"], p["bp"] = bn(in_ch), conv_w(in_ch, out_ch, 1), bias(out_ch)
    p["bn1"], p["w1"], p["b1"] = bn(out_ch), conv_w(out_ch, out_ch, sz), bias(out_ch)
    p["bn2"], p["w2"], p["b2"] = bn(out_ch), conv_w(out_ch, out_ch, sz), bias(out_ch)
    p["bn3"], p["w3"], p["b3"] = bn(out_ch), conv_w(out_ch, out_ch, sz), bias(out_ch)
    return p


if __name__ == "__main__":
    N, Cin, Cout, H, W, SZ = 2, 4, 8, 16, 16, 3
    key = jax.random.PRNGKey(0)
    k_p, k_x = jax.random.split(key, 2)

    params = init_params(k_p, Cin, Cout, SZ)
    x = jax.random.normal(k_x, (N, Cin, H, W), jnp.float32)   # NCHW like torch

    out = jax.block_until_ready(resdown_forward(params, x))
    ref = jax.block_until_ready(resdown_reference(params, x))
    # bf16 MXU operands (f32 accumulation) vs. an all-f32 lax.conv reference.
    np.testing.assert_allclose(np.asarray(out), np.asarray(ref),
                               rtol=3e-2, atol=3e-2)
    print("KERNEL_OK")
</pallas_src>

<mosaic_0001>
module attributes {stable_mosaic.version = 11 : i64} {
  func.func @kernel(%arg0: i32, %arg1: memref<1x16x16x4xf32, #tpu.memory_space<vmem>>, %arg2: memref<4x4xf32, #tpu.memory_space<vmem>>, %arg3: memref<6x8xf32, #tpu.memory_space<vmem>>, %arg4: memref<2x8xf32, #tpu.memory_space<vmem>>, %arg5: memref<36x8xbf16, #tpu.memory_space<vmem>>, %arg6: memref<4x8xbf16, #tpu.memory_space<vmem>>, %arg7: memref<3x72x8xbf16, #tpu.memory_space<vmem>>, %arg8: memref<1x16x16x8xf32, #tpu.memory_space<vmem>>, %arg9: memref<1x18x18x8xf32, #tpu.memory_space<vmem>>, %arg10: memref<1x16x16x72xbf16, #tpu.memory_space<vmem>>) attributes {dimension_semantics = [#tpu.dimension_semantics<parallel>], iteration_bounds = array<i64: 2>, scalar_prefetch = 0 : i64, scratch_operands = 2 : i64, tpu.core_type = #tpu.core_type<tc>, window_params = [{transform_indices = @transform_0, window_bounds = array<i64: 1, 16, 16, 4>}, {pipeline_mode = #tpu.pipeline_mode<synchronous>, transform_indices = @transform_1, window_bounds = array<i64: 4, 4>}, {pipeline_mode = #tpu.pipeline_mode<synchronous>, transform_indices = @transform_2, window_bounds = array<i64: 6, 8>}, {pipeline_mode = #tpu.pipeline_mode<synchronous>, transform_indices = @transform_3, window_bounds = array<i64: 2, 8>}, {pipeline_mode = #tpu.pipeline_mode<synchronous>, transform_indices = @transform_4, window_bounds = array<i64: 36, 8>}, {pipeline_mode = #tpu.pipeline_mode<synchronous>, transform_indices = @transform_5, window_bounds = array<i64: 4, 8>}, {pipeline_mode = #tpu.pipeline_mode<synchronous>, transform_indices = @transform_6, window_bounds = array<i64: 3, 72, 8>}, {transform_indices = @transform_7, window_bounds = array<i64: 1, 16, 16, 8>}]} {
    %cst = arith.constant 0.000000e+00 : f32
    %0 = vector.broadcast %cst : f32 to vector<1x1x18x8xf32>
    %c0 = arith.constant 0 : index
    %c0_0 = arith.constant 0 : index
    %c0_1 = arith.constant 0 : index
    %c0_2 = arith.constant 0 : index
    %1 = vector.load %arg9[%c0, %c0_0, %c0_1, %c0_2] : memref<1x18x18x8xf32, #tpu.memory_space<vmem>>, vector<1x1x18x8xf32>
    tpu.vector_store %arg9[%c0, %c0_0, %c0_1, %c0_2], %0 {strides = array<i32>} : memref<1x18x18x8xf32, #tpu.memory_space<vmem>>, vector<1x1x18x8xf32>,
    %c0_3 = arith.constant 0 : index
    %c17 = arith.constant 17 : index
    %c0_4 = arith.constant 0 : index
    %c0_5 = arith.constant 0 : index
    %2 = vector.load %arg9[%c0_3, %c17, %c0_4, %c0_5] : memref<1x18x18x8xf32, #tpu.memory_space<vmem>>, vector<1x1x18x8xf32>
    tpu.vector_store %arg9[%c0_3, %c17, %c0_4, %c0_5], %0 {strides = array<i32>} : memref<1x18x18x8xf32, #tpu.memory_space<vmem>>, vector<1x1x18x8xf32>,
    %cst_6 = arith.constant 0.000000e+00 : f32
    %3 = vector.broadcast %cst_6 : f32 to vector<1x18x1x8xf32>
    %c0_7 = arith.constant 0 : index
    %c0_8 = arith.constant 0 : index
    %c0_9 = arith.constant 0 : index
    %c0_10 = arith.constant 0 : index
    %4 = vector.load %arg9[%c0_7, %c0_8, %c0_9, %c0_10] : memref<1x18x18x8xf32, #tpu.memory_space<vmem>>, vector<1x18x1x8xf32>
    tpu.vector_store %arg9[%c0_7, %c0_8, %c0_9, %c0_10], %3 {strides = array<i32>} : memref<1x18x18x8xf32, #tpu.memory_space<vmem>>, vector<1x18x1x8xf32>,
    %c0_11 = arith.constant 0 : index
    %c0_12 = arith.constant 0 : index
    %c17_13 = arith.constant 17 : index
    %c0_14 = arith.constant 0 : index
    %5 = vector.load %arg9[%c0_11, %c0_12, %c17_13, %c0_14] : memref<1x18x18x8xf32, #tpu.memory_space<vmem>>, vector<1x18x1x8xf32>
    tpu.vector_store %arg9[%c0_11, %c0_12, %c17_13, %c0_14], %3 {strides = array<i32>} : memref<1x18x18x8xf32, #tpu.memory_space<vmem>>, vector<1x18x1x8xf32>,
    %c0_15 = arith.constant 0 : index
    %c0_16 = arith.constant 0 : index
    %c0_17 = arith.constant 0 : index
    %c0_18 = arith.constant 0 : index
    %6 = vector.load %arg1[%c0_15, %c0_16, %c0_17, %c0_18] : memref<1x16x16x4xf32, #tpu.memory_space<vmem>>, vector<1x16x16x4xf32>
    %7 = vector.shape_cast %6 : vector<1x16x16x4xf32> to vector<256x4xf32>
    %c0_19 = arith.constant 0 : index
    %c0_20 = arith.constant 0 : index
    %8 = vector.load %arg2[%c0_19, %c0_20] : memref<4x4xf32, #tpu.memory_space<vmem>>, vector<1x4xf32>
    %9 = vector.broadcast %8 : vector<1x4xf32> to vector<256x4xf32>
    %10 = arith.mulf %7, %9 : vector<256x4xf32>
    %c1 = arith.constant 1 : index
    %c0_21 = arith.constant 0 : index
    %11 = vector.load %arg2[%c1, %c0_21] : memref<4x4xf32, #tpu.memory_space<vmem>>, vector<1x4xf32>
    %12 = vector.broadcast %11 : vector<1x4xf32> to vector<256x4xf32>
    %13 = arith.addf %10, %12 : vector<256x4xf32>
    %cst_22 = arith.constant 0.000000e+00 : f32
    %14 = vector.broadcast %cst_22 : f32 to vector<256x4xf32>
    %15 = arith.maximumf %13, %14 : vector<256x4xf32>
    %c0_23 = arith.constant 0 : index
    %c0_24 = arith.constant 0 : index
    %16 = vector.load %arg5[%c0_23, %c0_24] : memref<36x8xbf16, #tpu.memory_space<vmem>>, vector<36x8xbf16>
    %17 = vector.shape_cast %15 : vector<256x4xf32> to vector<1x16x16x4xf32>
    %c0_25 = arith.constant 0 : index
    %c1_26 = arith.constant 1 : index
    %c1_27 = arith.constant 1 : index
    %c0_28 = arith.constant 0 : index
    %18 = vector.load %arg9[%c0_25, %c1_26, %c1_27, %c0_28] : memref<1x18x18x8xf32, #tpu.memory_space<vmem>>, vector<1x16x16x4xf32>
    tpu.vector_store %arg9[%c0_25, %c1_26, %c1_27, %c0_28], %17 {strides = array<i32>} : memref<1x18x18x8xf32, #tpu.memory_space<vmem>>, vector<1x16x16x4xf32>,
    %c0_29 = arith.constant 0 : index
    %c0_30 = arith.constant 0 : index
    %c0_31 = arith.constant 0 : index
    %c0_32 = arith.constant 0 : index
    %19 = vector.load %arg9[%c0_29, %c0_30, %c0_31, %c0_32] : memref<1x18x18x8xf32, #tpu.memory_space<vmem>>, vector<1x16x16x4xf32>
    %20 = arith.truncf %19 : vector<1x16x16x4xf32> to vector<1x16x16x4xbf16>
    %c0_33 = arith.constant 0 : index
    %c0_34 = arith.constant 0 : index
    %c0_35 = arith.constant 0 : index
    %c0_36 = arith.constant 0 : index
    %21 = vector.load %arg10[%c0_33, %c0_34, %c0_35, %c0_36] : memref<1x16x16x72xbf16, #tpu.memory_space<vmem>>, vector<1x16x16x4xbf16>
    tpu.vector_store %arg10[%c0_33, %c0_34, %c0_35, %c0_36], %20 {strides = array<i32>} : memref<1x16x16x72xbf16, #tpu.memory_space<vmem>>, vector<1x16x16x4xbf16>,
    %c0_37 = arith.constant 0 : index
    %c0_38 = arith.constant 0 : index
    %c1_39 = arith.constant 1 : index
    %c0_40 = arith.constant 0 : index
    %22 = vector.load %arg9[%c0_37, %c0_38, %c1_39, %c0_40] : memref<1x18x18x8xf32, #tpu.memory_space<vmem>>, vector<1x16x16x4xf32>
    %23 = arith.truncf %22 : vector<1x16x16x4xf32> to vector<1x16x16x4xbf16>
    %c0_41 = arith.constant 0 : index
    %c0_42 = arith.constant 0 : index
    %c0_43 = arith.constant 0 : index
    %c4 = arith.constant 4 : index
    %24 = vector.load %arg10[%c0_41, %c0_42, %c0_43, %c4] : memref<1x16x16x72xbf16, #tpu.memory_space<vmem>>, vector<1x16x16x4xbf16>
    tpu.vector_store %arg10[%c0_41, %c0_42, %c0_43, %c4], %23 {strides = array<i32>} : memref<1x16x16x72xbf16, #tpu.memory_space<vmem>>, vector<1x16x16x4xbf16>,
    %c0_44 = arith.constant 0 : index
    %c0_45 = arith.constant 0 : index
    %c2 = arith.constant 2 : index
    %c0_46 = arith.constant 0 : index
    %25 = vector.load %arg9[%c0_44, %c0_45, %c2, %c0_46] : memref<1x18x18x8xf32, #tpu.memory_space<vmem>>, vector<1x16x16x4xf32>
    %26 = arith.truncf %25 : vector<1x16x16x4xf32> to vector<1x16x16x4xbf16>
    %c0_47 = arith.constant 0 : index
    %c0_48 = arith.constant 0 : index
    %c0_49 = arith.constant 0 : index
    %c8 = arith.constant 8 : index
    %27 = vector.load %arg10[%c0_47, %c0_48, %c0_49, %c8] : memref<1x16x16x72xbf16, #tpu.memory_space<vmem>>, vector<1x16x16x4xbf16>
    tpu.vector_store %arg10[%c0_47, %c0_48, %c0_49, %c8], %26 {strides = array<i32>} : memref<1x16x16x72xbf16, #tpu.memory_space<vmem>>, vector<1x16x16x4xbf16>,
    %c0_50 = arith.constant 0 : index
    %c1_51 = arith.constant 1 : index
    %c0_52 = arith.constant 0 : index
    %c0_53 = arith.constant 0 : index
    %28 = vector.load %arg9[%c0_50, %c1_51, %c0_52, %c0_53] : memref<1x18x18x8xf32, #tpu.memory_space<vmem>>, vector<1x16x16x4xf32>
    %29 = arith.truncf %28 : vector<1x16x16x4xf32> to vector<1x16x16x4xbf16>
    %c0_54 = arith.constant 0 : index
    %c0_55 = arith.constant 0 : index
    %c0_56 = arith.constant 0 : index
    %c12 = arith.constant 12 : index
    %30 = vector.load %arg10[%c0_54, %c0_55, %c0_56, %c12] : memref<1x16x16x72xbf16, #tpu.memory_space<vmem>>, vector<1x16x16x4xbf16>
    tpu.vector_store %arg10[%c0_54, %c0_55, %c0_56, %c12], %29 {strides = array<i32>} : memref<1x16x16x72xbf16, #tpu.memory_space<vmem>>, vector<1x16x16x4xbf16>,
    %c0_57 = arith.constant 0 : index
    %c1_58 = arith.constant 1 : index
    %c1_59 = arith.constant 1 : index
    %c0_60 = arith.constant 0 : index
    %31 = vector.load %arg9[%c0_57, %c1_58, %c1_59, %c0_60] : memref<1x18x18x8xf32, #tpu.memory_space<vmem>>, vector<1x16x16x4xf32>
    %32 = arith.truncf %31 : vector<1x16x16x4xf32> to vector<1x16x16x4xbf16>
    %c0_61 = arith.constant 0 : index
    %c0_62 = arith.constant 0 : index
    %c0_63 = arith.constant 0 : index
    %c16 = arith.constant 16 : index
    %33 = vector.load %arg10[%c0_61, %c0_62, %c0_63, %c16] : memref<1x16x16x72xbf16, #tpu.memory_space<vmem>>, vector<1x16x16x4xbf16>
    tpu.vector_store %arg10[%c0_61, %c0_62, %c0_63, %c16], %32 {strides = array<i32>} : memref<1x16x16x72xbf16, #tpu.memory_space<vmem>>, vector<1x16x16x4xbf16>,
    %c0_64 = arith.constant 0 : index
    %c1_65 = arith.constant 1 : index
    %c2_66 = arith.constant 2 : index
    %c0_67 = arith.constant 0 : index
    %34 = vector.load %arg9[%c0_64, %c1_65, %c2_66, %c0_67] : memref<1x18x18x8xf32, #tpu.memory_space<vmem>>, vector<1x16x16x4xf32>
    %35 = arith.truncf %34 : vector<1x16x16x4xf32> to vector<1x16x16x4xbf16>
    %c0_68 = arith.constant 0 : index
    %c0_69 = arith.constant 0 : index
    %c0_70 = arith.constant 0 : index
    %c20 = arith.constant 20 : index
    %36 = vector.load %arg10[%c0_68, %c0_69, %c0_70, %c20] : memref<1x16x16x72xbf16, #tpu.memory_space<vmem>>, vector<1x16x16x4xbf16>
    tpu.vector_store %arg10[%c0_68, %c0_69, %c0_70, %c20], %35 {strides = array<i32>} : memref<1x16x16x72xbf16, #tpu.memory_space<vmem>>, vector<1x16x16x4xbf16>,
    %c0_71 = arith.constant 0 : index
    %c2_72 = arith.constant 2 : index
    %c0_73 = arith.constant 0 : index
    %c0_74 = arith.constant 0 : index
    %37 = vector.load %arg9[%c0_71, %c2_72, %c0_73, %c0_74] : memref<1x18x18x8xf32, #tpu.memory_space<vmem>>, vector<1x16x16x4xf32>
    %38 = arith.truncf %37 : vector<1x16x16x4xf32> to vector<1x16x16x4xbf16>
    %c0_75 = arith.constant 0 : index
    %c0_76 = arith.constant 0 : index
    %c0_77 = arith.constant 0 : index
    %c24 = arith.constant 24 : index
    %39 = vector.load %arg10[%c0_75, %c0_76, %c0_77, %c24] : memref<1x16x16x72xbf16, #tpu.memory_space<vmem>>, vector<1x16x16x4xbf16>
    tpu.vector_store %arg10[%c0_75, %c0_76, %c0_77, %c24], %38 {strides = array<i32>} : memref<1x16x16x72xbf16, #tpu.memory_space<vmem>>, vector<1x16x16x4xbf16>,
    %c0_78 = arith.constant 0 : index
    %c2_79 = arith.constant 2 : index
    %c1_80 = arith.constant 1 : index
    %c0_81 = arith.constant 0 : index
    %40 = vector.load %arg9[%c0_78, %c2_79, %c1_80, %c0_81] : memref<1x18x18x8xf32, #tpu.memory_space<vmem>>, vector<1x16x16x4xf32>
    %41 = arith.truncf %40 : vector<1x16x16x4xf32> to vector<1x16x16x4xbf16>
    %c0_82 = arith.constant 0 : index
    %c0_83 = arith.constant 0 : index
    %c0_84 = arith.constant 0 : index
    %c28 = arith.constant 28 : index
    %42 = vector.load %arg10[%c0_82, %c0_83, %c0_84, %c28] : memref<1x16x16x72xbf16, #tpu.memory_space<vmem>>, vector<1x16x16x4xbf16>
    tpu.vector_store %arg10[%c0_82, %c0_83, %c0_84, %c28], %41 {strides = array<i32>} : memref<1x16x16x72xbf16, #tpu.memory_space<vmem>>, vector<1x16x16x4xbf16>,
    %c0_85 = arith.constant 0 : index
    %c2_86 = arith.constant 2 : index
    %c2_87 = arith.constant 2 : index
    %c0_88 = arith.constant 0 : index
    %43 = vector.load %arg9[%c0_85, %c2_86, %c2_87, %c0_88] : memref<1x18x18x8xf32, #tpu.memory_space<vmem>>, vector<1x16x16x4xf32>
    %44 = arith.truncf %43 : vector<1x16x16x4xf32> to vector<1x16x16x4xbf16>
    %c0_89 = arith.constant 0 : index
    %c0_90 = arith.constant 0 : index
    %c0_91 = arith.constant 0 : index
    %c32 = arith.constant 32 : index
    %45 = vector.load %arg10[%c0_89, %c0_90, %c0_91, %c32] : memref<1x16x16x72xbf16, #tpu.memory_space<vmem>>, vector<1x16x16x4xbf16>
    tpu.vector_store %arg10[%c0_89, %c0_90, %c0_91, %c32], %44 {strides = array<i32>} : memref<1x16x16x72xbf16, #tpu.memory_space<vmem>>, vector<1x16x16x4xbf16>,
    %c0_92 = arith.constant 0 : index
    %c0_93 = arith.constant 0 : index
    %c0_94 = arith.constant 0 : index
    %c0_95 = arith.constant 0 : index
    %46 = vector.load %arg10[%c0_92, %c0_93, %c0_94, %c0_95] : memref<1x16x16x72xbf16, #tpu.memory_space<vmem>>, vector<1x16x16x36xbf16>
    %47 = vector.shape_cast %46 : vector<1x16x16x36xbf16> to vector<256x36xbf16>
    %cst_96 = arith.constant dense<0.000000e+00> : vector<256x8xf32>
    %48 = tpu.matmul %47, %16, %cst_96 {dimension_numbers = #tpu.dot_dimension_numbers<[1], [0], [0], [1], [0, 0, 1, 1], [], []>} : vector<256x36xbf16>, vector<36x8xbf16>, vector<256x8xf32> -> vector<256x8xf32>
    %c2_97 = arith.constant 2 : index
    %c0_98 = arith.constant 0 : index
    %49 = vector.load %arg2[%c2_97, %c0_98] : memref<4x4xf32, #tpu.memory_space<vmem>>, vector<1x4xf32>
    %50 = vector.broadcast %49 : vector<1x4xf32> to vector<256x4xf32>
    %51 = arith.mulf %7, %50 : vector<256x4xf32>
    %c3 = arith.constant 3 : index
    %c0_99 = arith.constant 0 : index
    %52 = vector.load %arg2[%c3, %c0_99] : memref<4x4xf32, #tpu.memory_space<vmem>>, vector<1x4xf32>
    %53 = vector.broadcast %52 : vector<1x4xf32> to vector<256x4xf32>
    %54 = arith.addf %51, %53 : vector<256x4xf32>
    %55 = arith.truncf %54 : vector<256x4xf32> to vector<256x4xbf16>
    %c0_100 = arith.constant 0 : index
    %c0_101 = arith.constant 0 : index
    %56 = vector.load %arg6[%c0_100, %c0_101] : memref<4x8xbf16, #tpu.memory_space<vmem>>, vector<4x8xbf16>
    %cst_102 = arith.constant dense<0.000000e+00> : vector<256x8xf32>
    %57 = tpu.matmul %55, %56, %cst_102 {dimension_numbers = #tpu.dot_dimension_numbers<[1], [0], [0], [1], [0, 0, 1, 1], [], []>} : vector<256x4xbf16>, vector<4x8xbf16>, vector<256x8xf32> -> vector<256x8xf32>
    %c0_103 = arith.constant 0 : index
    %c0_104 = arith.constant 0 : index
    %58 = vector.load %arg3[%c0_103, %c0_104] : memref<6x8xf32, #tpu.memory_space<vmem>>, vector<1x8xf32>
    %59 = vector.broadcast %58 : vector<1x8xf32> to vector<256x8xf32>
    %60 = arith.mulf %48, %59 : vector<256x8xf32>
    %c1_105 = arith.constant 1 : index
    %c0_106 = arith.constant 0 : index
    %61 = vector.load %arg3[%c1_105, %c0_106] : memref<6x8xf32, #tpu.memory_space<vmem>>, vector<1x8xf32>
    %62 = vector.broadcast %61 : vector<1x8xf32> to vector<256x8xf32>
    %63 = arith.addf %60, %62 : vector<256x8xf32>
    %cst_107 = arith.constant 0.000000e+00 : f32
    %64 = vector.broadcast %cst_107 : f32 to vector<256x8xf32>
    %65 = arith.maximumf %63, %64 : vector<256x8xf32>
    %c0_108 = arith.constant 0 : index
    %c0_109 = arith.constant 0 : index
    %c0_110 = arith.constant 0 : index
    %66 = vector.load %arg7[%c0_108, %c0_109, %c0_110] : memref<3x72x8xbf16, #tpu.memory_space<vmem>>, vector<1x72x8xbf16>
    %67 = vector.shape_cast %66 : vector<1x72x8xbf16> to vector<72x8xbf16>
    %68 = vector.shape_cast %65 : vector<256x8xf32> to vector<1x16x16x8xf32>
    %c0_111 = arith.constant 0 : index
    %c1_112 = arith.constant 1 : index
    %c1_113 = arith.constant 1 : index
    %c0_114 = arith.constant 0 : index
    %69 = vector.load %arg9[%c0_111, %c1_112, %c1_113, %c0_114] : memref<1x18x18x8xf32, #tpu.memory_space<vmem>>, vector<1x16x16x8xf32>
    tpu.vector_store %arg9[%c0_111, %c1_112, %c1_113, %c0_114], %68 {strides = array<i32>} : memref<1x18x18x8xf32, #tpu.memory_space<vmem>>, vector<1x16x16x8xf32>,
    %c0_115 = arith.constant 0 : index
    %c0_116 = arith.constant 0 : index
    %c0_117 = arith.constant 0 : index
    %c0_118 = arith.constant 0 : index
    %70 = vector.load %arg9[%c0_115, %c0_116, %c0_117, %c0_118] : memref<1x18x18x8xf32, #tpu.memory_space<vmem>>, vector<1x16x16x8xf32>
    %71 = arith.truncf %70 : vector<1x16x16x8xf32> to vector<1x16x16x8xbf16>
    %c0_119 = arith.constant 0 : index
    %c0_120 = arith.constant 0 : index
    %c0_121 = arith.constant 0 : index
    %c0_122 = arith.constant 0 : index
    %72 = vector.load %arg10[%c0_119, %c0_120, %c0_121, %c0_122] : memref<1x16x16x72xbf16, #tpu.memory_space<vmem>>, vector<1x16x16x8xbf16>
    tpu.vector_store %arg10[%c0_119, %c0_120, %c0_121, %c0_122], %71 {strides = array<i32>} : memref<1x16x16x72xbf16, #tpu.memory_space<vmem>>, vector<1x16x16x8xbf16>,
    %c0_123 = arith.constant 0 : index
    %c0_124 = arith.constant 0 : index
    %c1_125 = arith.constant 1 : index
    %c0_126 = arith.constant 0 : index
    %73 = vector.load %arg9[%c0_123, %c0_124, %c1_125, %c0_126] : memref<1x18x18x8xf32, #tpu.memory_space<vmem>>, vector<1x16x16x8xf32>
    %74 = arith.truncf %73 : vector<1x16x16x8xf32> to vector<1x16x16x8xbf16>
    %c0_127 = arith.constant 0 : index
    %c0_128 = arith.constant 0 : index
    %c0_129 = arith.constant 0 : index
    %c8_130 = arith.constant 8 : index
    %75 = vector.load %arg10[%c0_127, %c0_128, %c0_129, %c8_130] : memref<1x16x16x72xbf16, #tpu.memory_space<vmem>>, vector<1x16x16x8xbf16>
    tpu.vector_store %arg10[%c0_127, %c0_128, %c0_129, %c8_130], %74 {strides = array<i32>} : memref<1x16x16x72xbf16, #tpu.memory_space<vmem>>, vector<1x16x16x8xbf16>,
    %c0_131 = arith.constant 0 : index
    %c0_132 = arith.constant 0 : index
    %c2_133 = arith.constant 2 : index
    %c0_134 = arith.constant 0 : index
    %76 = vector.load %arg9[%c0_131, %c0_132, %c2_133, %c0_134] : memref<1x18x18x8xf32, #tpu.memory_space<vmem>>, vector<1x16x16x8xf32>
    %77 = arith.truncf %76 : vector<1x16x16x8xf32> to vector<1x16x16x8xbf16>
    %c0_135 = arith.constant 0 : index
    %c0_136 = arith.constant 0 : index
    %c0_137 = arith.constant 0 : index
    %c16_138 = arith.constant 16 : index
    %78 = vector.load %arg10[%c0_135, %c0_136, %c0_137, %c16_138] : memref<1x16x16x72xbf16, #tpu.memory_space<vmem>>, vector<1x16x16x8xbf16>
    tpu.vector_store %arg10[%c0_135, %c0_136, %c0_137, %c16_138], %77 {strides = array<i32>} : memref<1x16x16x72xbf16, #tpu.memory_space<vmem>>, vector<1x16x16x8xbf16>,
    %c0_139 = arith.constant 0 : index
    %c1_140 = arith.constant 1 : index
    %c0_141 = arith.constant 0 : index
    %c0_142 = arith.constant 0 : index
    %79 = vector.load %arg9[%c0_139, %c1_140, %c0_141, %c0_142] : memref<1x18x18x8xf32, #tpu.memory_space<vmem>>, vector<1x16x16x8xf32>
    %80 = arith.truncf %79 : vector<1x16x16x8xf32> to vector<1x16x16x8xbf16>
    %c0_143 = arith.constant 0 : index
    %c0_144 = arith.constant 0 : index
    %c0_145 = arith.constant 0 : index
    %c24_146 = arith.constant 24 : index
    %81 = vector.load %arg10[%c0_143, %c0_144, %c0_145, %c24_146] : memref<1x16x16x72xbf16, #tpu.memory_space<vmem>>, vector<1x16x16x8xbf16>
    tpu.vector_store %arg10[%c0_143, %c0_144, %c0_145, %c24_146], %80 {strides = array<i32>} : memref<1x16x16x72xbf16, #tpu.memory_space<vmem>>, vector<1x16x16x8xbf16>,
    %c0_147 = arith.constant 0 : index
    %c1_148 = arith.constant 1 : index
    %c1_149 = arith.constant 1 : index
    %c0_150 = arith.constant 0 : index
    %82 = vector.load %arg9[%c0_147, %c1_148, %c1_149, %c0_150] : memref<1x18x18x8xf32, #tpu.memory_space<vmem>>, vector<1x16x16x8xf32>
    %83 = arith.truncf %82 : vector<1x16x16x8xf32> to vector<1x16x16x8xbf16>
    %c0_151 = arith.constant 0 : index
    %c0_152 = arith.constant 0 : index
    %c0_153 = arith.constant 0 : index
    %c32_154 = arith.constant 32 : index
    %84 = vector.load %arg10[%c0_151, %c0_152, %c0_153, %c32_154] : memref<1x16x16x72xbf16, #tpu.memory_space<vmem>>, vector<1x16x16x8xbf16>
    tpu.vector_store %arg10[%c0_151, %c0_152, %c0_153, %c32_154], %83 {strides = array<i32>} : memref<1x16x16x72xbf16, #tpu.memory_space<vmem>>, vector<1x16x16x8xbf16>,
    %c0_155 = arith.constant 0 : index
    %c1_156 = arith.constant 1 : index
    %c2_157 = arith.constant 2 : index
    %c0_158 = arith.constant 0 : index
    %85 = vector.load %arg9[%c0_155, %c1_156, %c2_157, %c0_158] : memref<1x18x18x8xf32, #tpu.memory_space<vmem>>, vector<1x16x16x8xf32>
    %86 = arith.truncf %85 : vector<1x16x16x8xf32> to vector<1x16x16x8xbf16>
    %c0_159 = arith.constant 0 : index
    %c0_160 = arith.constant 0 : index
    %c0_161 = arith.constant 0 : index
    %c40 = arith.constant 40 : index
    %87 = vector.load %arg10[%c0_159, %c0_160, %c0_161, %c40] : memref<1x16x16x72xbf16, #tpu.memory_space<vmem>>, vector<1x16x16x8xbf16>
    tpu.vector_store %arg10[%c0_159, %c0_160, %c0_161, %c40], %86 {strides = array<i32>} : memref<1x16x16x72xbf16, #tpu.memory_space<vmem>>, vector<1x16x16x8xbf16>,
    %c0_162 = arith.constant 0 : index
    %c2_163 = arith.constant 2 : index
    %c0_164 = arith.constant 0 : index
    %c0_165 = arith.constant 0 : index
    %88 = vector.load %arg9[%c0_162, %c2_163, %c0_164, %c0_165] : memref<1x18x18x8xf32, #tpu.memory_space<vmem>>, vector<1x16x16x8xf32>
    %89 = arith.truncf %88 : vector<1x16x16x8xf32> to vector<1x16x16x8xbf16>
    %c0_166 = arith.constant 0 : index
    %c0_167 = arith.constant 0 : index
    %c0_168 = arith.constant 0 : index
    %c48 = arith.constant 48 : index
    %90 = vector.load %arg10[%c0_166, %c0_167, %c0_168, %c48] : memref<1x16x16x72xbf16, #tpu.memory_space<vmem>>, vector<1x16x16x8xbf16>
    tpu.vector_store %arg10[%c0_166, %c0_167, %c0_168, %c48], %89 {strides = array<i32>} : memref<1x16x16x72xbf16, #tpu.memory_space<vmem>>, vector<1x16x16x8xbf16>,
    %c0_169 = arith.constant 0 : index
    %c2_170 = arith.constant 2 : index
    %c1_171 = arith.constant 1 : index
    %c0_172 = arith.constant 0 : index
    %91 = vector.load %arg9[%c0_169, %c2_170, %c1_171, %c0_172] : memref<1x18x18x8xf32, #tpu.memory_space<vmem>>, vector<1x16x16x8xf32>
    %92 = arith.truncf %91 : vector<1x16x16x8xf32> to vector<1x16x16x8xbf16>
    %c0_173 = arith.constant 0 : index
    %c0_174 = arith.constant 0 : index
    %c0_175 = arith.constant 0 : index
    %c56 = arith.constant 56 : index
    %93 = vector.load %arg10[%c0_173, %c0_174, %c0_175, %c56] : memref<1x16x16x72xbf16, #tpu.memory_space<vmem>>, vector<1x16x16x8xbf16>
    tpu.vector_store %arg10[%c0_173, %c0_174, %c0_175, %c56], %92 {strides = array<i32>} : memref<1x16x16x72xbf16, #tpu.memory_space<vmem>>, vector<1x16x16x8xbf16>,
    %c0_176 = arith.constant 0 : index
    %c2_177 = arith.constant 2 : index
    %c2_178 = arith.constant 2 : index
    %c0_179 = arith.constant 0 : index
    %94 = vector.load %arg9[%c0_176, %c2_177, %c2_178, %c0_179] : memref<1x18x18x8xf32, #tpu.memory_space<vmem>>, vector<1x16x16x8xf32>
    %95 = arith.truncf %94 : vector<1x16x16x8xf32> to vector<1x16x16x8xbf16>
    %c0_180 = arith.constant 0 : index
    %c0_181 = arith.constant 0 : index
    %c0_182 = arith.constant 0 : index
    %c64 = arith.constant 64 : index
    %96 = vector.load %arg10[%c0_180, %c0_181, %c0_182, %c64] : memref<1x16x16x72xbf16, #tpu.memory_space<vmem>>, vector<1x16x16x8xbf16>
    tpu.vector_store %arg10[%c0_180, %c0_181, %c0_182, %c64], %95 {strides = array<i32>} : memref<1x16x16x72xbf16, #tpu.memory_space<vmem>>, vector<1x16x16x8xbf16>,
    %c0_183 = arith.constant 0 : index
    %c0_184 = arith.constant 0 : index
    %c0_185 = arith.constant 0 : index
    %c0_186 = arith.constant 0 : index
    %97 = vector.load %arg10[%c0_183, %c0_184, %c0_185, %c0_186] : memref<1x16x16x72xbf16, #tpu.memory_space<vmem>>, vector<1x16x16x72xbf16>
    %98 = vector.shape_cast %97 : vector<1x16x16x72xbf16> to vector<256x72xbf16>
    %cst_187 = arith.constant dense<0.000000e+00> : vector<256x8xf32>
    %99 = tpu.matmul %98, %67, %cst_187 {dimension_numbers = #tpu.dot_dimension_numbers<[1], [0], [0], [1], [0, 0, 1, 1], [], []>} : vector<256x72xbf16>, vector<72x8xbf16>, vector<256x8xf32> -> vector<256x8xf32>
    %100 = arith.addf %57, %99 : vector<256x8xf32>
    %c0_188 = arith.constant 0 : index
    %c0_189 = arith.constant 0 : index
    %101 = vector.load %arg4[%c0_188, %c0_189] : memref<2x8xf32, #tpu.memory_space<vmem>>, vector<1x8xf32>
    %102 = vector.broadcast %101 : vector<1x8xf32> to vector<256x8xf32>
    %103 = arith.addf %100, %102 : vector<256x8xf32>
    %c2_190 = arith.constant 2 : index
    %c0_191 = arith.constant 0 : index
    %104 = vector.load %arg3[%c2_190, %c0_191] : memref<6x8xf32, #tpu.memory_space<vmem>>, vector<1x8xf32>
    %105 = vector.broadcast %104 : vector<1x8xf32> to vector<256x8xf32>
    %106 = arith.mulf %103, %105 : vector<256x8xf32>
    %c3_192 = arith.constant 3 : index
    %c0_193 = arith.constant 0 : index
    %107 = vector.load %arg3[%c3_192, %c0_193] : memref<6x8xf32, #tpu.memory_space<vmem>>, vector<1x8xf32>
    %108 = vector.broadcast %107 : vector<1x8xf32> to vector<256x8xf32>
    %109 = arith.addf %106, %108 : vector<256x8xf32>
    %cst_194 = arith.constant 0.000000e+00 : f32
    %110 = vector.broadcast %cst_194 : f32 to vector<256x8xf32>
    %111 = arith.maximumf %109, %110 : vector<256x8xf32>
    %c1_195 = arith.constant 1 : index
    %c0_196 = arith.constant 0 : index
    %c0_197 = arith.constant 0 : index
    %112 = vector.load %arg7[%c1_195, %c0_196, %c0_197] : memref<3x72x8xbf16, #tpu.memory_space<vmem>>, vector<1x72x8xbf16>
    %113 = vector.shape_cast %112 : vector<1x72x8xbf16> to vector<72x8xbf16>
    %114 = vector.shape_cast %111 : vector<256x8xf32> to vector<1x16x16x8xf32>
    %c0_198 = arith.constant 0 : index
    %c1_199 = arith.constant 1 : index
    %c1_200 = arith.constant 1 : index
    %c0_201 = arith.constant 0 : index
    %115 = vector.load %arg9[%c0_198, %c1_199, %c1_200, %c0_201] : memref<1x18x18x8xf32, #tpu.memory_space<vmem>>, vector<1x16x16x8xf32>
    tpu.vector_store %arg9[%c0_198, %c1_199, %c1_200, %c0_201], %114 {strides = array<i32>} : memref<1x18x18x8xf32, #tpu.memory_space<vmem>>, vector<1x16x16x8xf32>,
    %c0_202 = arith.constant 0 : index
    %c0_203 = arith.constant 0 : index
    %c0_204 = arith.constant 0 : index
    %c0_205 = arith.constant 0 : index
    %116 = vector.load %arg9[%c0_202, %c0_203, %c0_204, %c0_205] : memref<1x18x18x8xf32, #tpu.memory_space<vmem>>, vector<1x16x16x8xf32>
    %117 = arith.truncf %116 : vector<1x16x16x8xf32> to vector<1x16x16x8xbf16>
    %c0_206 = arith.constant 0 : index
    %c0_207 = arith.constant 0 : index
    %c0_208 = arith.constant 0 : index
    %c0_209 = arith.constant 0 : index
    %118 = vector.load %arg10[%c0_206, %c0_207, %c0_208, %c0_209] : memref<1x16x16x72xbf16, #tpu.memory_space<vmem>>, vector<1x16x16x8xbf16>
    tpu.vector_store %arg10[%c0_206, %c0_207, %c0_208, %c0_209], %117 {strides = array<i32>} : memref<1x16x16x72xbf16, #tpu.memory_space<vmem>>, vector<1x16x16x8xbf16>,
    %c0_210 = arith.constant 0 : index
    %c0_211 = arith.constant 0 : index
    %c1_212 = arith.constant 1 : index
    %c0_213 = arith.constant 0 : index
    %119 = vector.load %arg9[%c0_210, %c0_211, %c1_212, %c0_213] : memref<1x18x18x8xf32, #tpu.memory_space<vmem>>, vector<1x16x16x8xf32>
    %120 = arith.truncf %119 : vector<1x16x16x8xf32> to vector<1x16x16x8xbf16>
    %c0_214 = arith.constant 0 : index
    %c0_215 = arith.constant 0 : index
    %c0_216 = arith.constant 0 : index
    %c8_217 = arith.constant 8 : index
    %121 = vector.load %arg10[%c0_214, %c0_215, %c0_216, %c8_217] : memref<1x16x16x72xbf16, #tpu.memory_space<vmem>>, vector<1x16x16x8xbf16>
    tpu.vector_store %arg10[%c0_214, %c0_215, %c0_216, %c8_217], %120 {strides = array<i32>} : memref<1x16x16x72xbf16, #tpu.memory_space<vmem>>, vector<1x16x16x8xbf16>,
    %c0_218 = arith.constant 0 : index
    %c0_219 = arith.constant 0 : index
    %c2_220 = arith.constant 2 : index
    %c0_221 = arith.constant 0 : index
    %122 = vector.load %arg9[%c0_218, %c0_219, %c2_220, %c0_221] : memref<1x18x18x8xf32, #tpu.memory_space<vmem>>, vector<1x16x16x8xf32>
    %123 = arith.truncf %122 : vector<1x16x16x8xf32> to vector<1x16x16x8xbf16>
    %c0_222 = arith.constant 0 : index
    %c0_223 = arith.constant 0 : index
    %c0_224 = arith.constant 0 : index
    %c16_225 = arith.constant 16 : index
    %124 = vector.load %arg10[%c0_222, %c0_223, %c0_224, %c16_225] : memref<1x16x16x72xbf16, #tpu.memory_space<vmem>>, vector<1x16x16x8xbf16>
    tpu.vector_store %arg10[%c0_222, %c0_223, %c0_224, %c16_225], %123 {strides = array<i32>} : memref<1x16x16x72xbf16, #tpu.memory_space<vmem>>, vector<1x16x16x8xbf16>,
    %c0_226 = arith.constant 0 : index
    %c1_227 = arith.constant 1 : index
    %c0_228 = arith.constant 0 : index
    %c0_229 = arith.constant 0 : index
    %125 = vector.load %arg9[%c0_226, %c1_227, %c0_228, %c0_229] : memref<1x18x18x8xf32, #tpu.memory_space<vmem>>, vector<1x16x16x8xf32>
    %126 = arith.truncf %125 : vector<1x16x16x8xf32> to vector<1x16x16x8xbf16>
    %c0_230 = arith.constant 0 : index
    %c0_231 = arith.constant 0 : index
    %c0_232 = arith.constant 0 : index
    %c24_233 = arith.constant 24 : index
    %127 = vector.load %arg10[%c0_230, %c0_231, %c0_232, %c24_233] : memref<1x16x16x72xbf16, #tpu.memory_space<vmem>>, vector<1x16x16x8xbf16>
    tpu.vector_store %arg10[%c0_230, %c0_231, %c0_232, %c24_233], %126 {strides = array<i32>} : memref<1x16x16x72xbf16, #tpu.memory_space<vmem>>, vector<1x16x16x8xbf16>,
    %c0_234 = arith.constant 0 : index
    %c1_235 = arith.constant 1 : index
    %c1_236 = arith.constant 1 : index
    %c0_237 = arith.constant 0 : index
    %128 = vector.load %arg9[%c0_234, %c1_235, %c1_236, %c0_237] : memref<1x18x18x8xf32, #tpu.memory_space<vmem>>, vector<1x16x16x8xf32>
    %129 = arith.truncf %128 : vector<1x16x16x8xf32> to vector<1x16x16x8xbf16>
    %c0_238 = arith.constant 0 : index
    %c0_239 = arith.constant 0 : index
    %c0_240 = arith.constant 0 : index
    %c32_241 = arith.constant 32 : index
    %130 = vector.load %arg10[%c0_238, %c0_239, %c0_240, %c32_241] : memref<1x16x16x72xbf16, #tpu.memory_space<vmem>>, vector<1x16x16x8xbf16>
    tpu.vector_store %arg10[%c0_238, %c0_239, %c0_240, %c32_241], %129 {strides = array<i32>} : memref<1x16x16x72xbf16, #tpu.memory_space<vmem>>, vector<1x16x16x8xbf16>,
    %c0_242 = arith.constant 0 : index
    %c1_243 = arith.constant 1 : index
    %c2_244 = arith.constant 2 : index
    %c0_245 = arith.constant 0 : index
    %131 = vector.load %arg9[%c0_242, %c1_243, %c2_244, %c0_245] : memref<1x18x18x8xf32, #tpu.memory_space<vmem>>, vector<1x16x16x8xf32>
    %132 = arith.truncf %131 : vector<1x16x16x8xf32> to vector<1x16x16x8xbf16>
    %c0_246 = arith.constant 0 : index
    %c0_247 = arith.constant 0 : index
    %c0_248 = arith.constant 0 : index
    %c40_249 = arith.constant 40 : index
    %133 = vector.load %arg10[%c0_246, %c0_247, %c0_248, %c40_249] : memref<1x16x16x72xbf16, #tpu.memory_space<vmem>>, vector<1x16x16x8xbf16>
    tpu.vector_store %arg10[%c0_246, %c0_247, %c0_248, %c40_249], %132 {strides = array<i32>} : memref<1x16x16x72xbf16, #tpu.memory_space<vmem>>, vector<1x16x16x8xbf16>,
    %c0_250 = arith.constant 0 : index
    %c2_251 = arith.constant 2 : index
    %c0_252 = arith.constant 0 : index
    %c0_253 = arith.constant 0 : index
    %134 = vector.load %arg9[%c0_250, %c2_251, %c0_252, %c0_253] : memref<1x18x18x8xf32, #tpu.memory_space<vmem>>, vector<1x16x16x8xf32>
    %135 = arith.truncf %134 : vector<1x16x16x8xf32> to vector<1x16x16x8xbf16>
    %c0_254 = arith.constant 0 : index
    %c0_255 = arith.constant 0 : index
    %c0_256 = arith.constant 0 : index
    %c48_257 = arith.constant 48 : index
    %136 = vector.load %arg10[%c0_254, %c0_255, %c0_256, %c48_257] : memref<1x16x16x72xbf16, #tpu.memory_space<vmem>>, vector<1x16x16x8xbf16>
    tpu.vector_store %arg10[%c0_254, %c0_255, %c0_256, %c48_257], %135 {strides = array<i32>} : memref<1x16x16x72xbf16, #tpu.memory_space<vmem>>, vector<1x16x16x8xbf16>,
    %c0_258 = arith.constant 0 : index
    %c2_259 = arith.constant 2 : index
    %c1_260 = arith.constant 1 : index
    %c0_261 = arith.constant 0 : index
    %137 = vector.load %arg9[%c0_258, %c2_259, %c1_260, %c0_261] : memref<1x18x18x8xf32, #tpu.memory_space<vmem>>, vector<1x16x16x8xf32>
    %138 = arith.truncf %137 : vector<1x16x16x8xf32> to vector<1x16x16x8xbf16>
    %c0_262 = arith.constant 0 : index
    %c0_263 = arith.constant 0 : index
    %c0_264 = arith.constant 0 : index
    %c56_265 = arith.constant 56 : index
    %139 = vector.load %arg10[%c0_262, %c0_263, %c0_264, %c56_265] : memref<1x16x16x72xbf16, #tpu.memory_space<vmem>>, vector<1x16x16x8xbf16>
    tpu.vector_store %arg10[%c0_262, %c0_263, %c0_264, %c56_265], %138 {strides = array<i32>} : memref<1x16x16x72xbf16, #tpu.memory_space<vmem>>, vector<1x16x16x8xbf16>,
    %c0_266 = arith.constant 0 : index
    %c2_267 = arith.constant 2 : index
    %c2_268 = arith.constant 2 : index
    %c0_269 = arith.constant 0 : index
    %140 = vector.load %arg9[%c0_266, %c2_267, %c2_268, %c0_269] : memref<1x18x18x8xf32, #tpu.memory_space<vmem>>, vector<1x16x16x8xf32>
    %141 = arith.truncf %140 : vector<1x16x16x8xf32> to vector<1x16x16x8xbf16>
    %c0_270 = arith.constant 0 : index
    %c0_271 = arith.constant 0 : index
    %c0_272 = arith.constant 0 : index
    %c64_273 = arith.constant 64 : index
    %142 = vector.load %arg10[%c0_270, %c0_271, %c0_272, %c64_273] : memref<1x16x16x72xbf16, #tpu.memory_space<vmem>>, vector<1x16x16x8xbf16>
    tpu.vector_store %arg10[%c0_270, %c0_271, %c0_272, %c64_273], %141 {strides = array<i32>} : memref<1x16x16x72xbf16, #tpu.memory_space<vmem>>, vector<1x16x16x8xbf16>,
    %c0_274 = arith.constant 0 : index
    %c0_275 = arith.constant 0 : index
    %c0_276 = arith.constant 0 : index
    %c0_277 = arith.constant 0 : index
    %143 = vector.load %arg10[%c0_274, %c0_275, %c0_276, %c0_277] : memref<1x16x16x72xbf16, #tpu.memory_space<vmem>>, vector<1x16x16x72xbf16>
    %144 = vector.shape_cast %143 : vector<1x16x16x72xbf16> to vector<256x72xbf16>
    %cst_278 = arith.constant dense<0.000000e+00> : vector<256x8xf32>
    %145 = tpu.matmul %144, %113, %cst_278 {dimension_numbers = #tpu.dot_dimension_numbers<[1], [0], [0], [1], [0, 0, 1, 1], [], []>} : vector<256x72xbf16>, vector<72x8xbf16>, vector<256x8xf32> -> vector<256x8xf32>
    %c4_279 = arith.constant 4 : index
    %c0_280 = arith.constant 0 : index
    %146 = vector.load %arg3[%c4_279, %c0_280] : memref<6x8xf32, #tpu.memory_space<vmem>>, vector<1x8xf32>
    %147 = vector.broadcast %146 : vector<1x8xf32> to vector<256x8xf32>
    %148 = arith.mulf %145, %147 : vector<256x8xf32>
    %c5 = arith.constant 5 : index
    %c0_281 = arith.constant 0 : index
    %149 = vector.load %arg3[%c5, %c0_281] : memref<6x8xf32, #tpu.memory_space<vmem>>, vector<1x8xf32>
    %150 = vector.broadcast %149 : vector<1x8xf32> to vector<256x8xf32>
    %151 = arith.addf %148, %150 : vector<256x8xf32>
    %cst_282 = arith.constant 0.000000e+00 : f32
    %152 = vector.broadcast %cst_282 : f32 to vector<256x8xf32>
    %153 = arith.maximumf %151, %152 : vector<256x8xf32>
    %c2_283 = arith.constant 2 : index
    %c0_284 = arith.constant 0 : index
    %c0_285 = arith.constant 0 : index
    %154 = vector.load %arg7[%c2_283, %c0_284, %c0_285] : memref<3x72x8xbf16, #tpu.memory_space<vmem>>, vector<1x72x8xbf16>
    %155 = vector.shape_cast %154 : vector<1x72x8xbf16> to vector<72x8xbf16>
    %156 = vector.shape_cast %153 : vector<256x8xf32> to vector<1x16x16x8xf32>
    %c0_286 = arith.constant 0 : index
    %c1_287 = arith.constant 1 : index
    %c1_288 = arith.constant 1 : index
    %c0_289 = arith.constant 0 : index
    %157 = vector.load %arg9[%c0_286, %c1_287, %c1_288, %c0_289] : memref<1x18x18x8xf32, #tpu.memory_space<vmem>>, vector<1x16x16x8xf32>
    tpu.vector_store %arg9[%c0_286, %c1_287, %c1_288, %c0_289], %156 {strides = array<i32>} : memref<1x18x18x8xf32, #tpu.memory_space<vmem>>, vector<1x16x16x8xf32>,
    %c0_290 = arith.constant 0 : index
    %c0_291 = arith.constant 0 : index
    %c0_292 = arith.constant 0 : index
    %c0_293 = arith.constant 0 : index
    %158 = vector.load %arg9[%c0_290, %c0_291, %c0_292, %c0_293] : memref<1x18x18x8xf32, #tpu.memory_space<vmem>>, vector<1x16x16x8xf32>
    %159 = arith.truncf %158 : vector<1x16x16x8xf32> to vector<1x16x16x8xbf16>
    %c0_294 = arith.constant 0 : index
    %c0_295 = arith.constant 0 : index
    %c0_296 = arith.constant 0 : index
    %c0_297 = arith.constant 0 : index
    %160 = vector.load %arg10[%c0_294, %c0_295, %c0_296, %c0_297] : memref<1x16x16x72xbf16, #tpu.memory_space<vmem>>, vector<1x16x16x8xbf16>
    tpu.vector_store %arg10[%c0_294, %c0_295, %c0_296, %c0_297], %159 {strides = array<i32>} : memref<1x16x16x72xbf16, #tpu.memory_space<vmem>>, vector<1x16x16x8xbf16>,
    %c0_298 = arith.constant 0 : index
    %c0_299 = arith.constant 0 : index
    %c1_300 = arith.constant 1 : index
    %c0_301 = arith.constant 0 : index
    %161 = vector.load %arg9[%c0_298, %c0_299, %c1_300, %c0_301] : memref<1x18x18x8xf32, #tpu.memory_space<vmem>>, vector<1x16x16x8xf32>
    %162 = arith.truncf %161 : vector<1x16x16x8xf32> to vector<1x16x16x8xbf16>
    %c0_302 = arith.constant 0 : index
    %c0_303 = arith.constant 0 : index
    %c0_304 = arith.constant 0 : index
    %c8_305 = arith.constant 8 : index
    %163 = vector.load %arg10[%c0_302, %c0_303, %c0_304, %c8_305] : memref<1x16x16x72xbf16, #tpu.memory_space<vmem>>, vector<1x16x16x8xbf16>
    tpu.vector_store %arg10[%c0_302, %c0_303, %c0_304, %c8_305], %162 {strides = array<i32>} : memref<1x16x16x72xbf16, #tpu.memory_space<vmem>>, vector<1x16x16x8xbf16>,
    %c0_306 = arith.constant 0 : index
    %c0_307 = arith.constant 0 : index
    %c2_308 = arith.constant 2 : index
    %c0_309 = arith.constant 0 : index
    %164 = vector.load %arg9[%c0_306, %c0_307, %c2_308, %c0_309] : memref<1x18x18x8xf32, #tpu.memory_space<vmem>>, vector<1x16x16x8xf32>
    %165 = arith.truncf %164 : vector<1x16x16x8xf32> to vector<1x16x16x8xbf16>
    %c0_310 = arith.constant 0 : index
    %c0_311 = arith.constant 0 : index
    %c0_312 = arith.constant 0 : index
    %c16_313 = arith.constant 16 : index
    %166 = vector.load %arg10[%c0_310, %c0_311, %c0_312, %c16_313] : memref<1x16x16x72xbf16, #tpu.memory_space<vmem>>, vector<1x16x16x8xbf16>
    tpu.vector_store %arg10[%c0_310, %c0_311, %c0_312, %c16_313], %165 {strides = array<i32>} : memref<1x16x16x72xbf16, #tpu.memory_space<vmem>>, vector<1x16x16x8xbf16>,
    %c0_314 = arith.constant 0 : index
    %c1_315 = arith.constant 1 : index
    %c0_316 = arith.constant 0 : index
    %c0_317 = arith.constant 0 : index
    %167 = vector.load %arg9[%c0_314, %c1_315, %c0_316, %c0_317] : memref<1x18x18x8xf32, #tpu.memory_space<vmem>>, vector<1x16x16x8xf32>
    %168 = arith.truncf %167 : vector<1x16x16x8xf32> to vector<1x16x16x8xbf16>
    %c0_318 = arith.constant 0 : index
    %c0_319 = arith.constant 0 : index
    %c0_320 = arith.constant 0 : index
    %c24_321 = arith.constant 24 : index
    %169 = vector.load %arg10[%c0_318, %c0_319, %c0_320, %c24_321] : memref<1x16x16x72xbf16, #tpu.memory_space<vmem>>, vector<1x16x16x8xbf16>
    tpu.vector_store %arg10[%c0_318, %c0_319, %c0_320, %c24_321], %168 {strides = array<i32>} : memref<1x16x16x72xbf16, #tpu.memory_space<vmem>>, vector<1x16x16x8xbf16>,
    %c0_322 = arith.constant 0 : index
    %c1_323 = arith.constant 1 : index
    %c1_324 = arith.constant 1 : index
    %c0_325 = arith.constant 0 : index
    %170 = vector.load %arg9[%c0_322, %c1_323, %c1_324, %c0_325] : memref<1x18x18x8xf32, #tpu.memory_space<vmem>>, vector<1x16x16x8xf32>
    %171 = arith.truncf %170 : vector<1x16x16x8xf32> to vector<1x16x16x8xbf16>
    %c0_326 = arith.constant 0 : index
    %c0_327 = arith.constant 0 : index
    %c0_328 = arith.constant 0 : index
    %c32_329 = arith.constant 32 : index
    %172 = vector.load %arg10[%c0_326, %c0_327, %c0_328, %c32_329] : memref<1x16x16x72xbf16, #tpu.memory_space<vmem>>, vector<1x16x16x8xbf16>
    tpu.vector_store %arg10[%c0_326, %c0_327, %c0_328, %c32_329], %171 {strides = array<i32>} : memref<1x16x16x72xbf16, #tpu.memory_space<vmem>>, vector<1x16x16x8xbf16>,
    %c0_330 = arith.constant 0 : index
    %c1_331 = arith.constant 1 : index
    %c2_332 = arith.constant 2 : index
    %c0_333 = arith.constant 0 : index
    %173 = vector.load %arg9[%c0_330, %c1_331, %c2_332, %c0_333] : memref<1x18x18x8xf32, #tpu.memory_space<vmem>>, vector<1x16x16x8xf32>
    %174 = arith.truncf %173 : vector<1x16x16x8xf32> to vector<1x16x16x8xbf16>
    %c0_334 = arith.constant 0 : index
    %c0_335 = arith.constant 0 : index
    %c0_336 = arith.constant 0 : index
    %c40_337 = arith.constant 40 : index
    %175 = vector.load %arg10[%c0_334, %c0_335, %c0_336, %c40_337] : memref<1x16x16x72xbf16, #tpu.memory_space<vmem>>, vector<1x16x16x8xbf16>
    tpu.vector_store %arg10[%c0_334, %c0_335, %c0_336, %c40_337], %174 {strides = array<i32>} : memref<1x16x16x72xbf16, #tpu.memory_space<vmem>>, vector<1x16x16x8xbf16>,
    %c0_338 = arith.constant 0 : index
    %c2_339 = arith.constant 2 : index
    %c0_340 = arith.constant 0 : index
    %c0_341 = arith.constant 0 : index
    %176 = vector.load %arg9[%c0_338, %c2_339, %c0_340, %c0_341] : memref<1x18x18x8xf32, #tpu.memory_space<vmem>>, vector<1x16x16x8xf32>
    %177 = arith.truncf %176 : vector<1x16x16x8xf32> to vector<1x16x16x8xbf16>
    %c0_342 = arith.constant 0 : index
    %c0_343 = arith.constant 0 : index
    %c0_344 = arith.constant 0 : index
    %c48_345 = arith.constant 48 : index
    %178 = vector.load %arg10[%c0_342, %c0_343, %c0_344, %c48_345] : memref<1x16x16x72xbf16, #tpu.memory_space<vmem>>, vector<1x16x16x8xbf16>
    tpu.vector_store %arg10[%c0_342, %c0_343, %c0_344, %c48_345], %177 {strides = array<i32>} : memref<1x16x16x72xbf16, #tpu.memory_space<vmem>>, vector<1x16x16x8xbf16>,
    %c0_346 = arith.constant 0 : index
    %c2_347 = arith.constant 2 : index
    %c1_348 = arith.constant 1 : index
    %c0_349 = arith.constant 0 : index
    %179 = vector.load %arg9[%c0_346, %c2_347, %c1_348, %c0_349] : memref<1x18x18x8xf32, #tpu.memory_space<vmem>>, vector<1x16x16x8xf32>
    %180 = arith.truncf %179 : vector<1x16x16x8xf32> to vector<1x16x16x8xbf16>
    %c0_350 = arith.constant 0 : index
    %c0_351 = arith.constant 0 : index
    %c0_352 = arith.constant 0 : index
    %c56_353 = arith.constant 56 : index
    %181 = vector.load %arg10[%c0_350, %c0_351, %c0_352, %c56_353] : memref<1x16x16x72xbf16, #tpu.memory_space<vmem>>, vector<1x16x16x8xbf16>
    tpu.vector_store %arg10[%c0_350, %c0_351, %c0_352, %c56_353], %180 {strides = array<i32>} : memref<1x16x16x72xbf16, #tpu.memory_space<vmem>>, vector<1x16x16x8xbf16>,
    %c0_354 = arith.constant 0 : index
    %c2_355 = arith.constant 2 : index
    %c2_356 = arith.constant 2 : index
    %c0_357 = arith.constant 0 : index
    %182 = vector.load %arg9[%c0_354, %c2_355, %c2_356, %c0_357] : memref<1x18x18x8xf32, #tpu.memory_space<vmem>>, vector<1x16x16x8xf32>
    %183 = arith.truncf %182 : vector<1x16x16x8xf32> to vector<1x16x16x8xbf16>
    %c0_358 = arith.constant 0 : index
    %c0_359 = arith.constant 0 : index
    %c0_360 = arith.constant 0 : index
    %c64_361 = arith.constant 64 : index
    %184 = vector.load %arg10[%c0_358, %c0_359, %c0_360, %c64_361] : memref<1x16x16x72xbf16, #tpu.memory_space<vmem>>, vector<1x16x16x8xbf16>
    tpu.vector_store %arg10[%c0_358, %c0_359, %c0_360, %c64_361], %183 {strides = array<i32>} : memref<1x16x16x72xbf16, #tpu.memory_space<vmem>>, vector<1x16x16x8xbf16>,
    %c0_362 = arith.constant 0 : index
    %c0_363 = arith.constant 0 : index
    %c0_364 = arith.constant 0 : index
    %c0_365 = arith.constant 0 : index
    %185 = vector.load %arg10[%c0_362, %c0_363, %c0_364, %c0_365] : memref<1x16x16x72xbf16, #tpu.memory_space<vmem>>, vector<1x16x16x72xbf16>
    %186 = vector.shape_cast %185 : vector<1x16x16x72xbf16> to vector<256x72xbf16>
    %cst_366 = arith.constant dense<0.000000e+00> : vector<256x8xf32>
    %187 = tpu.matmul %186, %155, %cst_366 {dimension_numbers = #tpu.dot_dimension_numbers<[1], [0], [0], [1], [0, 0, 1, 1], [], []>} : vector<256x72xbf16>, vector<72x8xbf16>, vector<256x8xf32> -> vector<256x8xf32>
    %188 = arith.addf %103, %187 : vector<256x8xf32>
    %c1_367 = arith.constant 1 : index
    %c0_368 = arith.constant 0 : index
    %189 = vector.load %arg4[%c1_367, %c0_368] : memref<2x8xf32, #tpu.memory_space<vmem>>, vector<1x8xf32>
    %190 = vector.broadcast %189 : vector<1x8xf32> to vector<256x8xf32>
    %191 = arith.addf %188, %190 : vector<256x8xf32>
    %192 = vector.shape_cast %191 : vector<256x8xf32> to vector<1x16x16x8xf32>
    %c0_369 = arith.constant 0 : index
    %c0_370 = arith.constant 0 : index
    %c0_371 = arith.constant 0 : index
    %c0_372 = arith.constant 0 : index
    %193 = vector.load %arg8[%c0_369, %c0_370, %c0_371, %c0_372] : memref<1x16x16x8xf32, #tpu.memory_space<vmem>>, vector<1x16x16x8xf32>
    tpu.vector_store %arg8[%c0_369, %c0_370, %c0_371, %c0_372], %192 {strides = array<i32>} : memref<1x16x16x8xf32, #tpu.memory_space<vmem>>, vector<1x16x16x8xf32>,
    return
  }
  func.func @transform_0(%arg0: i32) -> (i32, i32, i32, i32) {
    %c0_i32 = arith.constant 0 : i32
    %c0_i32_0 = arith.constant 0 : i32
    %c0_i32_1 = arith.constant 0 : i32
    %c0_i32_2 = arith.constant 0 : i32
    return %arg0, %c0_i32, %c0_i32_0, %c0_i32_1 : i32, i32, i32, i32
  }
  func.func @transform_1(%arg0: i32) -> (i32, i32) {
    %c0_i32 = arith.constant 0 : i32
    %c0_i32_0 = arith.constant 0 : i32
    %c0_i32_1 = arith.constant 0 : i32
    return %c0_i32, %c0_i32_0 : i32, i32
  }
  func.func @transform_2(%arg0: i32) -> (i32, i32) {
    %c0_i32 = arith.constant 0 : i32
    %c0_i32_0 = arith.constant 0 : i32
    %c0_i32_1 = arith.constant 0 : i32
    return %c0_i32, %c0_i32_0 : i32, i32
  }
  func.func @transform_3(%arg0: i32) -> (i32, i32) {
    %c0_i32 = arith.constant 0 : i32
    %c0_i32_0 = arith.constant 0 : i32
    %c0_i32_1 = arith.constant 0 : i32
    return %c0_i32, %c0_i32_0 : i32, i32
  }
  func.func @transform_4(%arg0: i32) -> (i32, i32) {
    %c0_i32 = arith.constant 0 : i32
    %c0_i32_0 = arith.constant 0 : i32
    %c0_i32_1 = arith.constant 0 : i32
    return %c0_i32, %c0_i32_0 : i32, i32
  }
  func.func @transform_5(%arg0: i32) -> (i32, i32) {
    %c0_i32 = arith.constant 0 : i32
    %c0_i32_0 = arith.constant 0 : i32
    %c0_i32_1 = arith.constant 0 : i32
    return %c0_i32, %c0_i32_0 : i32, i32
  }
  func.func @transform_6(%arg0: i32) -> (i32, i32, i32) {
    %c0_i32 = arith.constant 0 : i32
    %c0_i32_0 = arith.constant 0 : i32
    %c0_i32_1 = arith.constant 0 : i32
    %c0_i32_2 = arith.constant 0 : i32
    return %c0_i32, %c0_i32_0, %c0_i32_1 : i32, i32, i32
  }
  func.func @transform_7(%arg0: i32) -> (i32, i32, i32, i32) {
    %c0_i32 = arith.constant 0 : i32
    %c0_i32_0 = arith.constant 0 : i32
    %c0_i32_1 = arith.constant 0 : i32
    %c0_i32_2 = arith.constant 0 : i32
    return %arg0, %c0_i32, %c0_i32_0, %c0_i32_1 : i32, i32, i32, i32
  }
}

</mosaic_0001>

<llo_original>
// kernel: tpu_custom_call.1
$region0: #{tpu_custom_call.1}
  #allocation0 [shape = 'u32[]', space=smem, size = 0x4, offset = 0x4, fixed_abs, tag = 'smem constant byte address 0x4 - core index']
  #allocation1 [shape = 'u32[72,128]{1,0:T(1,128)}', space=vmem, size = 0x9000, scoped, tag = 'internal scratch']
  #allocation2 [shape = 'f32[1,18,18,8]{3,2,1,0:T(8,128)}', space=vmem, size = 0x36000, scoped, tag = 'scratch operand']
  #allocation3 [shape = 'bf16[1,16,16,72]{3,2,1,0:T(8,128)(2,1)}', space=vmem, size = 0x10000, scoped, tag = 'scratch operand']
  %s0 = inlined_call_operand.vmem [shape: f32[2,16,16,4], index: 0, kind: input, shape index: {}]
  %s1 = inlined_call_operand.vmem [shape: f32[4,4], index: 1, kind: input, shape index: {}]
  %s2 = inlined_call_operand.vmem [shape: f32[6,8], index: 2, kind: input, shape index: {}]
  %s3 = inlined_call_operand.vmem [shape: f32[2,8], index: 3, kind: input, shape index: {}]
  %s4 = inlined_call_operand.vmem [shape: bf16[36,8], index: 4, kind: input, shape index: {}]
  %s5 = inlined_call_operand.vmem [shape: bf16[4,8], index: 5, kind: input, shape index: {}]
  %s6 = inlined_call_operand.vmem [shape: bf16[3,72,8], index: 6, kind: input, shape index: {}]
  %s7 = inlined_call_operand.vmem [shape: f32[2,16,16,8], index: 7, kind: output, shape index: {}]
  %s8 = sld [smem:[#allocation0]]
  $region61: #{tpu_custom_call.1} parent=0
    _
  %s10 = ssub.s32 1, %s8
  %s11 = scalar_select 0, %s10, %s8
  loop: start=0, step=1, limit=4
  $region2: #{tpu_custom_call.1} parent=0 // loop_pre_header
    _
  $region3: #{tpu_custom_call.1} parent=0 // loop_header
    %s13 = sphi 0, %s17
    %p14 = scmp.ge.s32.totalorder %s13, 4
    %s23 = sphi 0, %s25
    %s26 = sphi 0, %s23
    %s27 = sphi 0, %s26
    %s43 = sphi 0, %s27
    %s47 = sphi 0, %s47
    %s49 = sphi 0, %s47
    %s50 = sphi 0, %s49
    %s64 = sphi 0, %s50
    %s68 = sphi 0, %s68
    %s70 = sphi 0, %s68
    %s71 = sphi 0, %s70
    %s85 = sphi 0, %s71
    %s89 = sphi 0, %s89
    %s91 = sphi 0, %s89
    %s92 = sphi 0, %s91
    %s106 = sphi 0, %s92
    %s110 = sphi 0, %s110
    %s112 = sphi 0, %s110
    %s113 = sphi 0, %s112
    %s127 = sphi 0, %s113
    %s131 = sphi 0, %s131
    %s133 = sphi 0, %s131
    %s134 = sphi 0, %s133
    %s148 = sphi 0, %s134
    %s152 = sphi 0, %s152
    %s154 = sphi 0, %s152
    %s155 = sphi 0, %s154
    %s169 = sphi 0, %s155
    %s175 = sphi 0, %s177
    %s178 = sphi 0, %s175
    %s179 = sphi 0, %s178
    %s195 = sphi 0, %s179
  $region4: #{tpu_custom_call.1} parent=0 // loop_header_branch
    %16 = sbr.rel (%p14) target = $region8
  $region5: #{tpu_custom_call.1} parent=0 // loop_body
    %s18 = ssub.s32 %s13, 1
    %s19 = ssub.s32 %s13, 2
    %s20 = sadd.s32 %s13, 1
    %s21 = ssub.s32 %s13, %s20
    %p22 = scmp.eq.s32.totalorder %s21, 0
    %s24 = sadd.s32 %s23, 1
    %s25 = scalar_select %p22, %s23, %s24
    %p28 = pneg %p22
    %p29 = scmp.eq.s32.totalorder %s13, 1
    %p30 = por %p28, %p29
    %p31 = scmp.ne.s32.totalorder %s23, %s26
    %p32 = scmp.eq.s32.totalorder %s13, 0
    %p33 = por %p31, %p32
    %p34 = scmp.ne.s32.totalorder %s23, %s26
    %p35 = scmp.eq.s32.totalorder %s18, 1
    %p36 = por %p34, %p35
    %p37 = scmp.ne.s32.totalorder %s26, %s27
    %p38 = scmp.eq.s32.totalorder %s18, 0
    %p39 = por %p37, %p38
    %p40 = scmp.ne.s32.totalorder %s26, %s27
    %p41 = scmp.eq.s32.totalorder %s19, 1
    %p42 = por %p40, %p41
    %p44 = scmp.ne.s32.totalorder %s27, %s43
    %p45 = scmp.eq.s32.totalorder %s19, 0
    %p46 = por %p44, %p45
    %s48 = sadd.s32 %s47, 1
    %p51 = scmp.eq.s32.totalorder %s13, 1
    %p52 = scmp.ne.s32.totalorder %s47, %s49
    %p53 = scmp.eq.s32.totalorder %s13, 0
    %p54 = por %p52, %p53
    %p55 = scmp.ne.s32.totalorder %s47, %s49
    %p56 = scmp.eq.s32.totalorder %s18, 1
    %p57 = por %p55, %p56
    %p58 = scmp.ne.s32.totalorder %s49, %s50
    %p59 = scmp.eq.s32.totalorder %s18, 0
    %p60 = por %p58, %p59
    %p61 = scmp.ne.s32.totalorder %s49, %s50
    %p62 = scmp.eq.s32.totalorder %s19, 1
    %p63 = por %p61, %p62
    %p65 = scmp.ne.s32.totalorder %s50, %s64
    %p66 = scmp.eq.s32.totalorder %s19, 0
    %p67 = por %p65, %p66
    %s69 = sadd.s32 %s68, 1
    %p72 = scmp.eq.s32.totalorder %s13, 1
    %p73 = scmp.ne.s32.totalorder %s68, %s70
    %p74 = scmp.eq.s32.totalorder %s13, 0
    %p75 = por %p73, %p74
    %p76 = scmp.ne.s32.totalorder %s68, %s70
    %p77 = scmp.eq.s32.totalorder %s18, 1
    %p78 = por %p76, %p77
    %p79 = scmp.ne.s32.totalorder %s70, %s71
    %p80 = scmp.eq.s32.totalorder %s18, 0
    %p81 = por %p79, %p80
    %p82 = scmp.ne.s32.totalorder %s70, %s71
    %p83 = scmp.eq.s32.totalorder %s19, 1
    %p84 = por %p82, %p83
    %p86 = scmp.ne.s32.totalorder %s71, %s85
    %p87 = scmp.eq.s32.totalorder %s19, 0
    %p88 = por %p86, %p87
    %s90 = sadd.s32 %s89, 1
    %p93 = scmp.eq.s32.totalorder %s13, 1
    %p94 = scmp.ne.s32.totalorder %s89, %s91
    %p95 = scmp.eq.s32.totalorder %s13, 0
    %p96 = por %p94, %p95
    %p97 = scmp.ne.s32.totalorder %s89, %s91
    %p98 = scmp.eq.s32.totalorder %s18, 1
    %p99 = por %p97, %p98
    %p100 = scmp.ne.s32.totalorder %s91, %s92
    %p101 = scmp.eq.s32.totalorder %s18, 0
    %p102 = por %p100, %p101
    %p103 = scmp.ne.s32.totalorder %s91, %s92
    %p104 = scmp.eq.s32.totalorder %s19, 1
    %p105 = por %p103, %p104
    %p107 = scmp.ne.s32.totalorder %s92, %s106
    %p108 = scmp.eq.s32.totalorder %s19, 0
    %p109 = por %p107, %p108
    %s111 = sadd.s32 %s110, 1
    %p114 = scmp.eq.s32.totalorder %s13, 1
    %p115 = scmp.ne.s32.totalorder %s110, %s112
    %p116 = scmp.eq.s32.totalorder %s13, 0
    %p117 = por %p115, %p116
    %p118 = scmp.ne.s32.totalorder %s110, %s112
    %p119 = scmp.eq.s32.totalorder %s18, 1
    %p120 = por %p118, %p119
    %p121 = scmp.ne.s32.totalorder %s112, %s113
    %p122 = scmp.eq.s32.totalorder %s18, 0
    %p123 = por %p121, %p122
    %p124 = scmp.ne.s32.totalorder %s112, %s113
    %p125 = scmp.eq.s32.totalorder %s19, 1
    %p126 = por %p124, %p125
    %p128 = scmp.ne.s32.totalorder %s113, %s127
    %p129 = scmp.eq.s32.totalorder %s19, 0
    %p130 = por %p128, %p129
    %s132 = sadd.s32 %s131, 1
    %p135 = scmp.eq.s32.totalorder %s13, 1
    %p136 = scmp.ne.s32.totalorder %s131, %s133
    %p137 = scmp.eq.s32.totalorder %s13, 0
    %p138 = por %p136, %p137
    %p139 = scmp.ne.s32.totalorder %s131, %s133
    %p140 = scmp.eq.s32.totalorder %s18, 1
    %p141 = por %p139, %p140
    %p142 = scmp.ne.s32.totalorder %s133, %s134
    %p143 = scmp.eq.s32.totalorder %s18, 0
    %p144 = por %p142, %p143
    %p145 = scmp.ne.s32.totalorder %s133, %s134
    %p146 = scmp.eq.s32.totalorder %s19, 1
    %p147 = por %p145, %p146
    %p149 = scmp.ne.s32.totalorder %s134, %s148
    %p150 = scmp.eq.s32.totalorder %s19, 0
    %p151 = por %p149, %p150
    %s153 = sadd.s32 %s152, 1
    %p156 = scmp.eq.s32.totalorder %s13, 1
    %p157 = scmp.ne.s32.totalorder %s152, %s154
    %p158 = scmp.eq.s32.totalorder %s13, 0
    %p159 = por %p157, %p158
    %p160 = scmp.ne.s32.totalorder %s152, %s154
    %p161 = scmp.eq.s32.totalorder %s18, 1
    %p162 = por %p160, %p161
    %p163 = scmp.ne.s32.totalorder %s154, %s155
    %p164 = scmp.eq.s32.totalorder %s18, 0
    %p165 = por %p163, %p164
    %p166 = scmp.ne.s32.totalorder %s154, %s155
    %p167 = scmp.eq.s32.totalorder %s19, 1
    %p168 = por %p166, %p167
    %p170 = scmp.ne.s32.totalorder %s155, %s169
    %p171 = scmp.eq.s32.totalorder %s19, 0
    %p172 = por %p170, %p171
    %s173 = ssub.s32 %s13, %s20
    %p174 = scmp.eq.s32.totalorder %s173, 0
    %s176 = sadd.s32 %s175, 1
    %s177 = scalar_select %p174, %s175, %s176
    %p180 = pneg %p174
    %p181 = scmp.eq.s32.totalorder %s13, 1
    %p182 = por %p180, %p181
    %p183 = scmp.ne.s32.totalorder %s175, %s178
    %p184 = scmp.eq.s32.totalorder %s13, 0
    %p185 = por %p183, %p184
    %p186 = scmp.ne.s32.totalorder %s175, %s178
    %p187 = scmp.eq.s32.totalorder %s18, 1
    %p188 = por %p186, %p187
    %p189 = scmp.ne.s32.totalorder %s178, %s179
    %p190 = scmp.eq.s32.totalorder %s18, 0
    %p191 = por %p189, %p190
    %p192 = scmp.ne.s32.totalorder %s178, %s179
    %p193 = scmp.eq.s32.totalorder %s19, 1
    %p194 = por %p192, %p193
    %p196 = scmp.ne.s32.totalorder %s179, %s195
    %p197 = scmp.eq.s32.totalorder %s19, 0
    %p198 = por %p196, %p197
    %p199 = scmp.le.s32.totalorder 1, %s13
    %p200 = scmp.lt.s32.totalorder %s13, 3
    %p201 = pnand %p199, %p200
    %p202 = pneg %p201
    // Predicated region
    $region9: #{tpu_custom_call.1} parent=5 // pred_check
      _
    $region10: #{tpu_custom_call.1} parent=5 // pred_check_branch
      %204 = sbr.rel (%p201) target = $region12
    $region11: #{tpu_custom_call.1} parent=5 // pred_region
      %s205 = ssub.s32 %s13, 1
      // Predicated region
      $region13: #{tpu_custom_call.1} parent=11 // pred_check
        %p206 = pneg %p60
      $region14: #{tpu_custom_call.1} parent=11 // pred_check_branch
        %208 = sbr.rel (%p206) target = $region16
      $region15: #{tpu_custom_call.1} parent=11 // pred_region
        _
      $region16: #{tpu_custom_call.1} parent=11 // pred_fallthru
        _
      // Predicated region
      $region17: #{tpu_custom_call.1} parent=11 // pred_check
        %p209 = pneg %p81
      $region18: #{tpu_custom_call.1} parent=11 // pred_check_branch
        %211 = sbr.rel (%p209) target = $region20
      $region19: #{tpu_custom_call.1} parent=11 // pred_region
        _
      $region20: #{tpu_custom_call.1} parent=11 // pred_fallthru
        _
      // Predicated region
      $region21: #{tpu_custom_call.1} parent=11 // pred_check
        %p212 = pneg %p102
      $region22: #{tpu_custom_call.1} parent=11 // pred_check_branch
        %214 = sbr.rel (%p212) target = $region24
      $region23: #{tpu_custom_call.1} parent=11 // pred_region
        _
      $region24: #{tpu_custom_call.1} parent=11 // pred_fallthru
        _
      // Predicated region
      $region25: #{tpu_custom_call.1} parent=11 // pred_check
        %p215 = pneg %p123
      $region26: #{tpu_custom_call.1} parent=11 // pred_check_branch
        %217 = sbr.rel (%p215) target = $region28
      $region27: #{tpu_custom_call.1} parent=11 // pred_region
        _
      $region28: #{tpu_custom_call.1} parent=11 // pred_fallthru
        _
      // Predicated region
      $region29: #{tpu_custom_call.1} parent=11 // pred_check
        %p218 = pneg %p144
      $region30: #{tpu_custom_call.1} parent=11 // pred_check_branch
        %220 = sbr.rel (%p218) target = $region32
      $region31: #{tpu_custom_call.1} parent=11 // pred_region
        _
      $region32: #{tpu_custom_call.1} parent=11 // pred_fallthru
        _
      // Predicated region
      $region33: #{tpu_custom_call.1} parent=11 // pred_check
        %p221 = pneg %p165
      $region34: #{tpu_custom_call.1} parent=11 // pred_check_branch
        %223 = sbr.rel (%p221) target = $region36
      $region35: #{tpu_custom_call.1} parent=11 // pred_region
        _
      $region36: #{tpu_custom_call.1} parent=11 // pred_fallthru
        _
    $region12: #{tpu_custom_call.1} parent=5 // pred_fallthru
      _
    %p224 = scmp.lt.s32.totalorder %s13, 2
    // Predicated region
    $region37: #{tpu_custom_call.1} parent=5 // pred_check
      %p225 = pneg %p224
    $region38: #{tpu_custom_call.1} parent=5 // pred_check_branch
      %227 = sbr.rel (%p225) target = $region40
    $region39: #{tpu_custom_call.1} parent=5 // pred_region
      // Predicated region
      $region41: #{tpu_custom_call.1} parent=39 // pred_check
        %p228 = pneg %p33
      $region42: #{tpu_custom_call.1} parent=39 // pred_check_branch
        %230 = sbr.rel (%p228) target = $region44
      $region43: #{tpu_custom_call.1} parent=39 // pred_region
        %p231 = scmp.lt.s32.totalorder %s13, 1
        %s232 = scalar_select %p231, %s13, 1
        %s233 = smul.addr %s232, 32
        %s234 = smul.addr %s233, 8
        %s235 = scalar_lea.vmem %s0, %s234
      $region44: #{tpu_custom_call.1} parent=39 // pred_fallthru
        _
    $region40: #{tpu_custom_call.1} parent=5 // pred_fallthru
      _
    %p236 = scmp.le.s32.totalorder 1, %s13
    %p237 = scmp.lt.s32.totalorder %s13, 3
    %p238 = pnand %p236, %p237
    %p239 = pneg %p238
    // Predicated region
    $region45: #{tpu_custom_call.1} parent=5 // pred_check
      _
    $region46: #{tpu_custom_call.1} parent=5 // pred_check_branch
      %241 = sbr.rel (%p238) target = $region48
    $region47: #{tpu_custom_call.1} parent=5 // pred_region
      %s242 = ssub.s32 %s13, 1
      %p243 = scmp.lt.s32.totalorder %s18, 1
      %s244 = scalar_select %p243, %s18, 1
      %s245 = smul.addr %s244, 32
      %s246 = smul.addr %s245, 8
      %s247 = scalar_lea.vmem %s0, %s246
      %p248 = pneg %p39
      %p249 = pneg %p36
      %p250 = pneg %p60
      %p251 = pneg %p57
      %p252 = pneg %p81
      %p253 = pneg %p78
      %p254 = pneg %p102
      %p255 = pneg %p99
      %p256 = pneg %p123
      %p257 = pneg %p120
      %p258 = pneg %p144
      %p259 = pneg %p141
      %p260 = pneg %p165
      %p261 = pneg %p162
      %p262 = pneg %p191
      %p263 = pneg %p188
      %p264 = scmp.lt.s32.totalorder %s18, 1
      %s265 = scalar_select %p264, %s18, 1
      %s266 = smul.addr %s265, 32
      %s267 = smul.addr %s266, 8
      %s268 = scalar_lea.vmem %s7, %s267
      %p269 = scmp.lt.s32.totalorder %s18, 1
      %s270 = scalar_select %p269, %s18, 1
      %s271 = smul.addr %s270, 32
      %s272 = smul.addr %s271, 8
      %s273 = scalar_lea.vmem %s0, %s272
      %p274 = scmp.lt.s32.totalorder %s18, 1
      %s275 = scalar_select %p274, %s18, 1
      %s276 = smul.addr %s275, 32
      %s277 = smul.addr %s276, 8
      %s278 = scalar_lea.vmem %s7, %s277
      %vm280 = vcmask 64512
      %281 = vst.msk [vmem:[#allocation2] sm:$0xff] %vm280, 0.0
      %282 = vst.msk [vmem:[#allocation2 + $0x8] sm:$0xff] %vm280, 0.0
      %vm283 = vcmask 58368
      %284 = vst.msk [vmem:[#allocation2 + $0x10] sm:$0x3] %vm283, 0.0
      %s285 = scalar_lea.vmem [#allocation2], 408
      %286 = vst.msk [vmem:[%s285] sm:$0xff] %vm280, 0.0
      %287 = vst.msk [vmem:[%s285 + $0x8] sm:$0xff] %vm280, 0.0
      %288 = vst.msk [vmem:[%s285 + $0x10] sm:$0x3] %vm283, 0.0
      %vm289 = vcmask 57344
      %290 = vst.msk [vmem:[#allocation2] sm:$0x1] %vm289, 0.0
      %291 = vst.msk [vmem:[#allocation2 + $0x18] sm:$0x1] %vm289, 0.0
      %292 = vst.msk [vmem:[#allocation2 + $0x30] sm:$0x1] %vm289, 0.0
      %293 = vst.msk [vmem:[#allocation2 + $0x48] sm:$0x1] %vm289, 0.0
      %294 = vst.msk [vmem:[#allocation2 + $0x60] sm:$0x1] %vm289, 0.0
      %295 = vst.msk [vmem:[#allocation2 + $0x78] sm:$0x1] %vm289, 0.0
      %296 = vst.msk [vmem:[#allocation2 + $0x90] sm:$0x1] %vm289, 0.0
      %297 = vst.msk [vmem:[#allocation2 + $0xa8] sm:$0x1] %vm289, 0.0
      %298 = vst.msk [vmem:[#allocation2 + $0xc0] sm:$0x1] %vm289, 0.0
      %299 = vst.msk [vmem:[#allocation2 + $0xd8] sm:$0x1] %vm289, 0.0
      %300 = vst.msk [vmem:[#allocation2 + $0xf0] sm:$0x1] %vm289, 0.0
      %301 = vst.msk [vmem:[#allocation2 + $0x108] sm:$0x1] %vm289, 0.0
      %302 = vst.msk [vmem:[#allocation2 + $0x120] sm:$0x1] %vm289, 0.0
      %303 = vst.msk [vmem:[#allocation2 + $0x138] sm:$0x1] %vm289, 0.0
      %304 = vst.msk [vmem:[#allocation2 + $0x150] sm:$0x1] %vm289, 0.0
      %305 = vst.msk [vmem:[#allocation2 + $0x168] sm:$0x1] %vm289, 0.0
      %306 = vst.msk [vmem:[#allocation2 + $0x180] sm:$0x1] %vm289, 0.0
      %307 = vst.msk [vmem:[#allocation2 + $0x198] sm:$0x1] %vm289, 0.0
      %308 = vst.msk [vmem:[#allocation2 + $0x11] sm:$0x1] %vm289, 0.0
      %309 = vst.msk [vmem:[#allocation2 + $0x29] sm:$0x1] %vm289, 0.0
      %310 = vst.msk [vmem:[#allocation2 + $0x41] sm:$0x1] %vm289, 0.0
      %311 = vst.msk [vmem:[#allocation2 + $0x59] sm:$0x1] %vm289, 0.0
      %312 = vst.msk [vmem:[#allocation2 + $0x71] sm:$0x1] %vm289, 0.0
      %313 = vst.msk [vmem:[#allocation2 + $0x89] sm:$0x1] %vm289, 0.0
      %314 = vst.msk [vmem:[#allocation2 + $0xa1] sm:$0x1] %vm289, 0.0
      %315 = vst.msk [vmem:[#allocation2 + $0xb9] sm:$0x1] %vm289, 0.0
      %316 = vst.msk [vmem:[#allocation2 + $0xd1] sm:$0x1] %vm289, 0.0
      %317 = vst.msk [vmem:[#allocation2 + $0xe9] sm:$0x1] %vm289, 0.0
      %318 = vst.msk [vmem:[#allocation2 + $0x101] sm:$0x1] %vm289, 0.0
      %319 = vst.msk [vmem:[#allocation2 + $0x119] sm:$0x1] %vm289, 0.0
      %320 = vst.msk [vmem:[#allocation2 + $0x131] sm:$0x1] %vm289, 0.0
      %321 = vst.msk [vmem:[#allocation2 + $0x149] sm:$0x1] %vm289, 0.0
      %322 = vst.msk [vmem:[#allocation2 + $0x161] sm:$0x1] %vm289, 0.0
      %323 = vst.msk [vmem:[#allocation2 + $0x179] sm:$0x1] %vm289, 0.0
      %324 = vst.msk [vmem:[#allocation2 + $0x191] sm:$0x1] %vm289, 0.0
      %325 = vst.msk [vmem:[#allocation2 + $0x1a9] sm:$0x1] %vm289, 0.0
      %v326 = vld [vmem:[%s273] sm:$0xff]
      %v327 = vld [vmem:[%s273 + $0x8] sm:$0xff]
      %v328 = vld [vmem:[%s273 + $0x10] sm:$0xff]
      %v329 = vld [vmem:[%s273 + $0x18] sm:$0xff]
      %v330 = vld [vmem:[%s273 + $0x20] sm:$0xff]
      %v331 = vld [vmem:[%s273 + $0x28] sm:$0xff]
      %v332 = vld [vmem:[%s273 + $0x30] sm:$0xff]
      %v333 = vld [vmem:[%s273 + $0x38] sm:$0xff]
      %v334 = vld [vmem:[%s273 + $0x40] sm:$0xff]
      %v335 = vld [vmem:[%s273 + $0x48] sm:$0xff]
      %v336 = vld [vmem:[%s273 + $0x50] sm:$0xff]
      %v337 = vld [vmem:[%s273 + $0x58] sm:$0xff]
      %v338 = vld [vmem:[%s273 + $0x60] sm:$0xff]
      %v339 = vld [vmem:[%s273 + $0x68] sm:$0xff]
      %v340 = vld [vmem:[%s273 + $0x70] sm:$0xff]
      %v341 = vld [vmem:[%s273 + $0x78] sm:$0xff]
      %v342 = vld [vmem:[%s273 + $0x80] sm:$0xff]
      %v343 = vld [vmem:[%s273 + $0x88] sm:$0xff]
      %v344 = vld [vmem:[%s273 + $0x90] sm:$0xff]
      %v345 = vld [vmem:[%s273 + $0x98] sm:$0xff]
      %v346 = vld [vmem:[%s273 + $0xa0] sm:$0xff]
      %v347 = vld [vmem:[%s273 + $0xa8] sm:$0xff]
      %v348 = vld [vmem:[%s273 + $0xb0] sm:$0xff]
      %v349 = vld [vmem:[%s273 + $0xb8] sm:$0xff]
      %v350 = vld [vmem:[%s273 + $0xc0] sm:$0xff]
      %v351 = vld [vmem:[%s273 + $0xc8] sm:$0xff]
      %v352 = vld [vmem:[%s273 + $0xd0] sm:$0xff]
      %v353 = vld [vmem:[%s273 + $0xd8] sm:$0xff]
      %v354 = vld [vmem:[%s273 + $0xe0] sm:$0xff]
      %v355 = vld [vmem:[%s273 + $0xe8] sm:$0xff]
      %v356 = vld [vmem:[%s273 + $0xf0] sm:$0xff]
      %v357 = vld [vmem:[%s273 + $0xf8] sm:$0xff]
      %v358 = vld [vmem:[%s1] sm:$0x1]
      %v359 = vperm.slane %v358, 0
      %v360 = vmul.f32 %v326, %v359
      %v361 = vmul.f32 %v327, %v359
      %v362 = vmul.f32 %v328, %v359
      %v363 = vmul.f32 %v329, %v359
      %v364 = vmul.f32 %v330, %v359
      %v365 = vmul.f32 %v331, %v359
      %v366 = vmul.f32 %v332, %v359
      %v367 = vmul.f32 %v333, %v359
      %v368 = vmul.f32 %v334, %v359
      %v369 = vmul.f32 %v335, %v359
      %v370 = vmul.f32 %v336, %v359
      %v371 = vmul.f32 %v337, %v359
      %v372 = vmul.f32 %v338, %v359
      %v373 = vmul.f32 %v339, %v359
      %v374 = vmul.f32 %v340, %v359
      %v375 = vmul.f32 %v341, %v359
      %v376 = vmul.f32 %v342, %v359
      %v377 = vmul.f32 %v343, %v359
      %v378 = vmul.f32 %v344, %v359
      %v379 = vmul.f32 %v345, %v359
      %v380 = vmul.f32 %v346, %v359
      %v381 = vmul.f32 %v347, %v359
      %v382 = vmul.f32 %v348, %v359
      %v383 = vmul.f32 %v349, %v359
      %v384 = vmul.f32 %v350, %v359
      %v385 = vmul.f32 %v351, %v359
      %v386 = vmul.f32 %v352, %v359
      %v387 = vmul.f32 %v353, %v359
      %v388 = vmul.f32 %v354, %v359
      %v389 = vmul.f32 %v355, %v359
      %v390 = vmul.f32 %v356, %v359
      %v391 = vmul.f32 %v357, %v359
      %v392 = vld [vmem:[%s1 + $0x1] sm:$0x1]
      %v393 = vperm.slane %v392, 0
      %v394 = vadd.f32 %v360, %v393
      %v395 = vadd.f32 %v361, %v393
      %v396 = vadd.f32 %v362, %v393
      %v397 = vadd.f32 %v363, %v393
      %v398 = vadd.f32 %v364, %v393
      %v399 = vadd.f32 %v365, %v393
      %v400 = vadd.f32 %v366, %v393
      %v401 = vadd.f32 %v367, %v393
      %v402 = vadd.f32 %v368, %v393
      %v403 = vadd.f32 %v369, %v393
      %v404 = vadd.f32 %v370, %v393
      %v405 = vadd.f32 %v371, %v393
      %v406 = vadd.f32 %v372, %v393
      %v407 = vadd.f32 %v373, %v393
      %v408 = vadd.f32 %v374, %v393
      %v409 = vadd.f32 %v375, %v393
      %v410 = vadd.f32 %v376, %v393
      %v411 = vadd.f32 %v377, %v393
      %v412 = vadd.f32 %v378, %v393
      %v413 = vadd.f32 %v379, %v393
      %v414 = vadd.f32 %v380, %v393
      %v415 = vadd.f32 %v381, %v393
      %v416 = vadd.f32 %v382, %v393
      %v417 = vadd.f32 %v383, %v393
      %v418 = vadd.f32 %v384, %v393
      %v419 = vadd.f32 %v385, %v393
      %v420 = vadd.f32 %v386, %v393
      %v421 = vadd.f32 %v387, %v393
      %v422 = vadd.f32 %v388, %v393
      %v423 = vadd.f32 %v389, %v393
      %v424 = vadd.f32 %v390, %v393
      %v425 = vadd.f32 %v391, %v393
      %v426 = vmax.f32 %v394, 0.0
      %v427 = vmax.f32 %v395, 0.0
      %v428 = vmax.f32 %v396, 0.0
      %v429 = vmax.f32 %v397, 0.0
      %v430 = vmax.f32 %v398, 0.0
      %v431 = vmax.f32 %v399, 0.0
      %v432 = vmax.f32 %v400, 0.0
      %v433 = vmax.f32 %v401, 0.0
      %v434 = vmax.f32 %v402, 0.0
      %v435 = vmax.f32 %v403, 0.0
      %v436 = vmax.f32 %v404, 0.0
      %v437 = vmax.f32 %v405, 0.0
      %v438 = vmax.f32 %v406, 0.0
      %v439 = vmax.f32 %v407, 0.0
      %v440 = vmax.f32 %v408, 0.0
      %v441 = vmax.f32 %v409, 0.0
      %v442 = vmax.f32 %v410, 0.0
      %v443 = vmax.f32 %v411, 0.0
      %v444 = vmax.f32 %v412, 0.0
      %v445 = vmax.f32 %v413, 0.0
      %v446 = vmax.f32 %v414, 0.0
      %v447 = vmax.f32 %v415, 0.0
      %v448 = vmax.f32 %v416, 0.0
      %v449 = vmax.f32 %v417, 0.0
      %v450 = vmax.f32 %v418, 0.0
      %v451 = vmax.f32 %v419, 0.0
      %v452 = vmax.f32 %v420, 0.0
      %v453 = vmax.f32 %v421, 0.0
      %v454 = vmax.f32 %v422, 0.0
      %v455 = vmax.f32 %v423, 0.0
      %v456 = vmax.f32 %v424, 0.0
      %v457 = vmax.f32 %v425, 0.0
      %v458 = vld [vmem:[%s4] sm:$0xf]
      %v459 = vld [vmem:[%s4 + $0x4] sm:$0xf]
      %v460 = vld [vmem:[%s4 + $0x8] sm:$0xf]
      %v461 = vld [vmem:[%s4 + $0xc] sm:$0xf]
      %v462 = vld [vmem:[%s4 + $0x10] sm:$0x3]
      %s463 = scalar_lea.vmem [#allocation2], 24
      %vm464 = vcmask 31744
      %465 = vst.msk [vmem:[%s463 + $0x1] sm:$0xff] %vm464, %v426
      %466 = vst.msk [vmem:[%s463 + $0x9] sm:$0xff] %vm464, %v427
      %467 = vst.msk [vmem:[%s463 + $0x19] sm:$0xff] %vm464, %v428
      %468 = vst.msk [vmem:[%s463 + $0x21] sm:$0xff] %vm464, %v429
      %469 = vst.msk [vmem:[%s463 + $0x31] sm:$0xff] %vm464, %v430
      %470 = vst.msk [vmem:[%s463 + $0x39] sm:$0xff] %vm464, %v431
      %471 = vst.msk [vmem:[%s463 + $0x49] sm:$0xff] %vm464, %v432
      %472 = vst.msk [vmem:[%s463 + $0x51] sm:$0xff] %vm464, %v433
      %473 = vst.msk [vmem:[%s463 + $0x61] sm:$0xff] %vm464, %v434
      %474 = vst.msk [vmem:[%s463 + $0x69] sm:$0xff] %vm464, %v435
      %475 = vst.msk [vmem:[%s463 + $0x79] sm:$0xff] %vm464, %v436
      %476 = vst.msk [vmem:[%s463 + $0x81] sm:$0xff] %vm464, %v437
      %477 = vst.msk [vmem:[%s463 + $0x91] sm:$0xff] %vm464, %v438
      %478 = vst.msk [vmem:[%s463 + $0x99] sm:$0xff] %vm464, %v439
      %479 = vst.msk [vmem:[%s463 + $0xa9] sm:$0xff] %vm464, %v440
      %480 = vst.msk [vmem:[%s463 + $0xb1] sm:$0xff] %vm464, %v441
      %481 = vst.msk [vmem:[%s463 + $0xc1] sm:$0xff] %vm464, %v442
      %482 = vst.msk [vmem:[%s463 + $0xc9] sm:$0xff] %vm464, %v443
      %483 = vst.msk [vmem:[%s463 + $0xd9] sm:$0xff] %vm464, %v444
      %484 = vst.msk [vmem:[%s463 + $0xe1] sm:$0xff] %vm464, %v445
      %485 = vst.msk [vmem:[%s463 + $0xf1] sm:$0xff] %vm464, %v446
      %486 = vst.msk [vmem:[%s463 + $0xf9] sm:$0xff] %vm464, %v447
      %487 = vst.msk [vmem:[%s463 + $0x109] sm:$0xff] %vm464, %v448
      %488 = vst.msk [vmem:[%s463 + $0x111] sm:$0xff] %vm464, %v449
      %489 = vst.msk [vmem:[%s463 + $0x121] sm:$0xff] %vm464, %v450
      %490 = vst.msk [vmem:[%s463 + $0x129] sm:$0xff] %vm464, %v451
      %491 = vst.msk [vmem:[%s463 + $0x139] sm:$0xff] %vm464, %v452
      %492 = vst.msk [vmem:[%s463 + $0x141] sm:$0xff] %vm464, %v453
      %493 = vst.msk [vmem:[%s463 + $0x151] sm:$0xff] %vm464, %v454
      %494 = vst.msk [vmem:[%s463 + $0x159] sm:$0xff] %vm464, %v455
      %495 = vst.msk [vmem:[%s463 + $0x169] sm:$0xff] %vm464, %v456
      %496 = vst.msk [vmem:[%s463 + $0x171] sm:$0xff] %vm464, %v457
      %v497 = vld [vmem:[#allocation2] sm:$0xff]
      %v498 = vld [vmem:[#allocation2 + $0x8] sm:$0xff]
      %v499 = vld [vmem:[#allocation2 + $0x18] sm:$0xff]
      %v500 = vld [vmem:[#allocation2 + $0x20] sm:$0xff]
      %v501 = vld [vmem:[#allocation2 + $0x30] sm:$0xff]
      %v502 = vld [vmem:[#allocation2 + $0x38] sm:$0xff]
      %v503 = vld [vmem:[#allocation2 + $0x48] sm:$0xff]
      %v504 = vld [vmem:[#allocation2 + $0x50] sm:$0xff]
      %v505 = vld [vmem:[#allocation2 + $0x60] sm:$0xff]
      %v506 = vld [vmem:[#allocation2 + $0x68] sm:$0xff]
      %v507 = vld [vmem:[#allocation2 + $0x78] sm:$0xff]
      %v508 = vld [vmem:[#allocation2 + $0x80] sm:$0xff]
      %v509 = vld [vmem:[#allocation2 + $0x90] sm:$0xff]
      %v510 = vld [vmem:[#allocation2 + $0x98] sm:$0xff]
      %v511 = vld [vmem:[#allocation2 + $0xa8] sm:$0xff]
      %v512 = vld [vmem:[#allocation2 + $0xb0] sm:$0xff]
      %v513 = vld [vmem:[#allocation2 + $0xc0] sm:$0xff]
      %v514 = vld [vmem:[#allocation2 + $0xc8] sm:$0xff]
      %v515 = vld [vmem:[#allocation2 + $0xd8] sm:$0xff]
      %v516 = vld [vmem:[#allocation2 + $0xe0] sm:$0xff]
      %v517 = vld [vmem:[#allocation2 + $0xf0] sm:$0xff]
      %v518 = vld [vmem:[#allocation2 + $0xf8] sm:$0xff]
      %v519 = vld [vmem:[#allocation2 + $0x108] sm:$0xff]
      %v520 = vld [vmem:[#allocation2 + $0x110] sm:$0xff]
      %v521 = vld [vmem:[#allocation2 + $0x120] sm:$0xff]
      %v522 = vld [vmem:[#allocation2 + $0x128] sm:$0xff]
      %v523 = vld [vmem:[#allocation2 + $0x138] sm:$0xff]
      %v524 = vld [vmem:[#allocation2 + $0x140] sm:$0xff]
      %v525 = vld [vmem:[#allocation2 + $0x150] sm:$0xff]
      %v526 = vld [vmem:[#allocation2 + $0x158] sm:$0xff]
      %v527 = vld [vmem:[#allocation2 + $0x168] sm:$0xff]
      %v528 = vld [vmem:[#allocation2 + $0x170] sm:$0xff]
      %v529 = vpack.c.bf16 %v497, %v497
      %v530 = vpack.c.bf16 %v498, %v498
      %v531 = vpack.c.bf16 %v499, %v499
      %v532 = vpack.c.bf16 %v500, %v500
      %v533 = vpack.c.bf16 %v501, %v501
      %v534 = vpack.c.bf16 %v502, %v502
      %v535 = vpack.c.bf16 %v503, %v503
      %v536 = vpack.c.bf16 %v504, %v504
      %v537 = vpack.c.bf16 %v505, %v505
      %v538 = vpack.c.bf16 %v506, %v506
      %v539 = vpack.c.bf16 %v507, %v507
      %v540 = vpack.c.bf16 %v508, %v508
      %v541 = vpack.c.bf16 %v509, %v509
      %v542 = vpack.c.bf16 %v510, %v510
      %v543 = vpack.c.bf16 %v511, %v511
      %v544 = vpack.c.bf16 %v512, %v512
      %v545 = vpack.c.bf16 %v513, %v513
      %v546 = vpack.c.bf16 %v514, %v514
      %v547 = vpack.c.bf16 %v515, %v515
      %v548 = vpack.c.bf16 %v516, %v516
      %v549 = vpack.c.bf16 %v517, %v517
      %v550 = vpack.c.bf16 %v518, %v518
      %v551 = vpack.c.bf16 %v519, %v519
      %v552 = vpack.c.bf16 %v520, %v520
      %v553 = vpack.c.bf16 %v521, %v521
      %v554 = vpack.c.bf16 %v522, %v522
      %v555 = vpack.c.bf16 %v523, %v523
      %v556 = vpack.c.bf16 %v524, %v524
      %v557 = vpack.c.bf16 %v525, %v525
      %v558 = vpack.c.bf16 %v526, %v526
      %v559 = vpack.c.bf16 %v527, %v527
      %v560 = vpack.c.bf16 %v528, %v528
      %vm561 = vcmask 27648
      %562 = vst.msk [vmem:[#allocation3] sm:$0xf] %vm561, %v529
      %563 = vst.msk [vmem:[#allocation3 + $0x4] sm:$0xf] %vm561, %v530
      %564 = vst.msk [vmem:[#allocation3 + $0x8] sm:$0xf] %vm561, %v531
      %565 = vst.msk [vmem:[#allocation3 + $0xc] sm:$0xf] %vm561, %v532
      %566 = vst.msk [vmem:[#allocation3 + $0x10] sm:$0xf] %vm561, %v533
      %567 = vst.msk [vmem:[#allocation3 + $0x14] sm:$0xf] %vm561, %v534
      %568 = vst.msk [vmem:[#allocation3 + $0x18] sm:$0xf] %vm561, %v535
      %569 = vst.msk [vmem:[#allocation3 + $0x1c] sm:$0xf] %vm561, %v536
      %570 = vst.msk [vmem:[#allocation3 + $0x20] sm:$0xf] %vm561, %v537
      %571 = vst.msk [vmem:[#allocation3 + $0x24] sm:$0xf] %vm561, %v538
      %572 = vst.msk [vmem:[#allocation3 + $0x28] sm:$0xf] %vm561, %v539
      %573 = vst.msk [vmem:[#allocation3 + $0x2c] sm:$0xf] %vm561, %v540
      %574 = vst.msk [vmem:[#allocation3 + $0x30] sm:$0xf] %vm561, %v541
      %575 = vst.msk [vmem:[#allocation3 + $0x34] sm:$0xf] %vm561, %v542
      %576 = vst.msk [vmem:[#allocation3 + $0x38] sm:$0xf] %vm561, %v543
      %577 = vst.msk [vmem:[#allocation3 + $0x3c] sm:$0xf] %vm561, %v544
      %578 = vst.msk [vmem:[#allocation3 + $0x40] sm:$0xf] %vm561, %v545
      %579 = vst.msk [vmem:[#allocation3 + $0x44] sm:$0xf] %vm561, %v546
      %580 = vst.msk [vmem:[#allocation3 + $0x48] sm:$0xf] %vm561, %v547
      %581 = vst.msk [vmem:[#allocation3 + $0x4c] sm:$0xf] %vm561, %v548
      %582 = vst.msk [vmem:[#allocation3 + $0x50] sm:$0xf] %vm561, %v549
      %583 = vst.msk [vmem:[#allocation3 + $0x54] sm:$0xf] %vm561, %v550
      %584 = vst.msk [vmem:[#allocation3 + $0x58] sm:$0xf] %vm561, %v551
      %585 = vst.msk [vmem:[#allocation3 + $0x5c] sm:$0xf] %vm561, %v552
      %586 = vst.msk [vmem:[#allocation3 + $0x60] sm:$0xf] %vm561, %v553
      %587 = vst.msk [vmem:[#allocation3 + $0x64] sm:$0xf] %vm561, %v554
      %588 = vst.msk [vmem:[#allocation3 + $0x68] sm:$0xf] %vm561, %v555
      %589 = vst.msk [vmem:[#allocation3 + $0x6c] sm:$0xf] %vm561, %v556
      %590 = vst.msk [vmem:[#allocation3 + $0x70] sm:$0xf] %vm561, %v557
      %591 = vst.msk [vmem:[#allocation3 + $0x74] sm:$0xf] %vm561, %v558
      %592 = vst.msk [vmem:[#allocation3 + $0x78] sm:$0xf] %vm561, %v559
      %593 = vst.msk [vmem:[#allocation3 + $0x7c] sm:$0xf] %vm561, %v560
      %v594 = vld [vmem:[#allocation2 + $0x1] sm:$0xff]
      %v595 = vld [vmem:[#allocation2 + $0x9] sm:$0xff]
      %v596 = vld [vmem:[#allocation2 + $0x19] sm:$0xff]
      %v597 = vld [vmem:[#allocation2 + $0x21] sm:$0xff]
      %v598 = vld [vmem:[#allocation2 + $0x31] sm:$0xff]
      %v599 = vld [vmem:[#allocation2 + $0x39] sm:$0xff]
      %v600 = vld [vmem:[#allocation2 + $0x49] sm:$0xff]
      %v601 = vld [vmem:[#allocation2 + $0x51] sm:$0xff]
      %v602 = vld [vmem:[#allocation2 + $0x61] sm:$0xff]
      %v603 = vld [vmem:[#allocation2 + $0x69] sm:$0xff]
      %v604 = vld [vmem:[#allocation2 + $0x79] sm:$0xff]
      %v605 = vld [vmem:[#allocation2 + $0x81] sm:$0xff]
      %v606 = vld [vmem:[#allocation2 + $0x91] sm:$0xff]
      %v607 = vld [vmem:[#allocation2 + $0x99] sm:$0xff]
      %v608 = vld [vmem:[#allocation2 + $0xa9] sm:$0xff]
      %v609 = vld [vmem:[#allocation2 + $0xb1] sm:$0xff]
      %v610 = vld [vmem:[#allocation2 + $0xc1] sm:$0xff]
      %v611 = vld [vmem:[#allocation2 + $0xc9] sm:$0xff]
      %v612 = vld [vmem:[#allocation2 + $0xd9] sm:$0xff]
      %v613 = vld [vmem:[#allocation2 + $0xe1] sm:$0xff]
      %v614 = vld [vmem:[#allocation2 + $0xf1] sm:$0xff]
      %v615 = vld [vmem:[#allocation2 + $0xf9] sm:$0xff]
      %v616 = vld [vmem:[#allocation2 + $0x109] sm:$0xff]
      %v617 = vld [vmem:[#allocation2 + $0x111] sm:$0xff]
      %v618 = vld [vmem:[#allocation2 + $0x121] sm:$0xff]
      %v619 = vld [vmem:[#allocation2 + $0x129] sm:$0xff]
      %v620 = vld [vmem:[#allocation2 + $0x139] sm:$0xff]
      %v621 = vld [vmem:[#allocation2 + $0x141] sm:$0xff]
      %v622 = vld [vmem:[#allocation2 + $0x151] sm:$0xff]
      %v623 = vld [vmem:[#allocation2 + $0x159] sm:$0xff]
      %v624 = vld [vmem:[#allocation2 + $0x169] sm:$0xff]
      %v625 = vld [vmem:[#allocation2 + $0x171] sm:$0xff]
      %v626 = vpack.c.bf16 %v594, %v594
      %v627 = vpack.c.bf16 %v595, %v595
      %v628 = vpack.c.bf16 %v596, %v596
      %v629 = vpack.c.bf16 %v597, %v597
      %v630 = vpack.c.bf16 %v598, %v598
      %v631 = vpack.c.bf16 %v599, %v599
      %v632 = vpack.c.bf16 %v600, %v600
      %v633 = vpack.c.bf16 %v601, %v601
      %v634 = vpack.c.bf16 %v602, %v602
      %v635 = vpack.c.bf16 %v603, %v603
      %v636 = vpack.c.bf16 %v604, %v604
      %v637 = vpack.c.bf16 %v605, %v605
      %v638 = vpack.c.bf16 %v606, %v606
      %v639 = vpack.c.bf16 %v607, %v607
      %v640 = vpack.c.bf16 %v608, %v608
      %v641 = vpack.c.bf16 %v609, %v609
      %v642 = vpack.c.bf16 %v610, %v610
      %v643 = vpack.c.bf16 %v611, %v611
      %v644 = vpack.c.bf16 %v612, %v612
      %v645 = vpack.c.bf16 %v613, %v613
      %v646 = vpack.c.bf16 %v614, %v614
      %v647 = vpack.c.bf16 %v615, %v615
      %v648 = vpack.c.bf16 %v616, %v616
      %v649 = vpack.c.bf16 %v617, %v617
      %v650 = vpack.c.bf16 %v618, %v618
      %v651 = vpack.c.bf16 %v619, %v619
      %v652 = vpack.c.bf16 %v620, %v620
      %v653 = vpack.c.bf16 %v621, %v621
      %v654 = vpack.c.bf16 %v622, %v622
      %v655 = vpack.c.bf16 %v623, %v623
      %v656 = vpack.c.bf16 %v624, %v624
      %v657 = vpack.c.bf16 %v625, %v625
      %690 = vrot.lane.b32.xlu0 %v626, 4
      %v691 = vpop.permute.xlu0 %690
      %692 = vrot.lane.b32.xlu0 %v627, 4
      %v693 = vpop.permute.xlu0 %692
      %694 = vrot.lane.b32.xlu0 %v628, 4
      %v695 = vpop.permute.xlu0 %694
      %696 = vrot.lane.b32.xlu0 %v629, 4
      %v697 = vpop.permute.xlu0 %696
      %698 = vrot.lane.b32.xlu0 %v630, 4
      %v699 = vpop.permute.xlu0 %698
      %700 = vrot.lane.b32.xlu0 %v631, 4
      %v701 = vpop.permute.xlu0 %700
      %702 = vrot.lane.b32.xlu0 %v632, 4
      %v703 = vpop.permute.xlu0 %702
      %704 = vrot.lane.b32.xlu0 %v633, 4
      %v705 = vpop.permute.xlu0 %704
      %706 = vrot.lane.b32.xlu0 %v634, 4
      %v707 = vpop.permute.xlu0 %706
      %708 = vrot.lane.b32.xlu0 %v635, 4
      %v709 = vpop.permute.xlu0 %708
      %710 = vrot.lane.b32.xlu0 %v636, 4
      %v711 = vpop.permute.xlu0 %710
      %712 = vrot.lane.b32.xlu0 %v637, 4
      %v713 = vpop.permute.xlu0 %712
      %714 = vrot.lane.b32.xlu0 %v638, 4
      %v715 = vpop.permute.xlu0 %714
      %716 = vrot.lane.b32.xlu0 %v639, 4
      %v717 = vpop.permute.xlu0 %716
      %718 = vrot.lane.b32.xlu0 %v640, 4
      %v719 = vpop.permute.xlu0 %718
      %720 = vrot.lane.b32.xlu0 %v641, 4
      %v721 = vpop.permute.xlu0 %720
      %722 = vrot.lane.b32.xlu0 %v642, 4
      %v723 = vpop.permute.xlu0 %722
      %724 = vrot.lane.b32.xlu0 %v643, 4
      %v725 = vpop.permute.xlu0 %724
      %726 = vrot.lane.b32.xlu0 %v644, 4
      %v727 = vpop.permute.xlu0 %726
      %728 = vrot.lane.b32.xlu0 %v645, 4
      %v729 = vpop.permute.xlu0 %728
      %730 = vrot.lane.b32.xlu0 %v646, 4
      %v731 = vpop.permute.xlu0 %730
      %732 = vrot.lane.b32.xlu0 %v647, 4
      %v733 = vpop.permute.xlu0 %732
      %734 = vrot.lane.b32.xlu0 %v648, 4
      %v735 = vpop.permute.xlu0 %734
      %736 = vrot.lane.b32.xlu0 %v649, 4
      %v737 = vpop.permute.xlu0 %736
      %738 = vrot.lane.b32.xlu0 %v650, 4
      %v739 = vpop.permute.xlu0 %738
      %740 = vrot.lane.b32.xlu0 %v651, 4
      %v741 = vpop.permute.xlu0 %740
      %742 = vrot.lane.b32.xlu0 %v652, 4
      %v743 = vpop.permute.xlu0 %742
      %744 = vrot.lane.b32.xlu0 %v653, 4
      %v745 = vpop.permute.xlu0 %744
      %746 = vrot.lane.b32.xlu0 %v654, 4
      %v747 = vpop.permute.xlu0 %746
      %748 = vrot.lane.b32.xlu0 %v655, 4
      %v749 = vpop.permute.xlu0 %748
      %750 = vrot.lane.b32.xlu0 %v656, 4
      %v751 = vpop.permute.xlu0 %750
      %752 = vrot.lane.b32.xlu0 %v657, 4
      %v753 = vpop.permute.xlu0 %752
      %vm786 = vcmask 60448
      %787 = vst.msk [vmem:[#allocation3] sm:$0xf] %vm786, %v691
      %788 = vst.msk [vmem:[#allocation3 + $0x4] sm:$0xf] %vm786, %v693
      %789 = vst.msk [vmem:[#allocation3 + $0x8] sm:$0xf] %vm786, %v695
      %790 = vst.msk [vmem:[#allocation3 + $0xc] sm:$0xf] %vm786, %v697
      %791 = vst.msk [vmem:[#allocation3 + $0x10] sm:$0xf] %vm786, %v699
      %792 = vst.msk [vmem:[#allocation3 + $0x14] sm:$0xf] %vm786, %v701
      %793 = vst.msk [vmem:[#allocation3 + $0x18] sm:$0xf] %vm786, %v703
      %794 = vst.msk [vmem:[#allocation3 + $0x1c] sm:$0xf] %vm786, %v705
      %795 = vst.msk [vmem:[#allocation3 + $0x20] sm:$0xf] %vm786, %v707
      %796 = vst.msk [vmem:[#allocation3 + $0x24] sm:$0xf] %vm786, %v709
      %797 = vst.msk [vmem:[#allocation3 + $0x28] sm:$0xf] %vm786, %v711
      %798 = vst.msk [vmem:[#allocation3 + $0x2c] sm:$0xf] %vm786, %v713
      %799 = vst.msk [vmem:[#allocation3 + $0x30] sm:$0xf] %vm786, %v715
      %800 = vst.msk [vmem:[#allocation3 + $0x34] sm:$0xf] %vm786, %v717
      %801 = vst.msk [vmem:[#allocation3 + $0x38] sm:$0xf] %vm786, %v719
      %802 = vst.msk [vmem:[#allocation3 + $0x3c] sm:$0xf] %vm786, %v721
      %803 = vst.msk [vmem:[#allocation3 + $0x40] sm:$0xf] %vm786, %v723
      %804 = vst.msk [vmem:[#allocation3 + $0x44] sm:$0xf] %vm786, %v725
      %805 = vst.msk [vmem:[#allocation3 + $0x48] sm:$0xf] %vm786, %v727
      %806 = vst.msk [vmem:[#allocation3 + $0x4c] sm:$0xf] %vm786, %v729
      %807 = vst.msk [vmem:[#allocation3 + $0x50] sm:$0xf] %vm786, %v731
      %808 = vst.msk [vmem:[#allocation3 + $0x54] sm:$0xf] %vm786, %v733
      %809 = vst.msk [vmem:[#allocation3 + $0x58] sm:$0xf] %vm786, %v735
      %810 = vst.msk [vmem:[#allocation3 + $0x5c] sm:$0xf] %vm786, %v737
      %811 = vst.msk [vmem:[#allocation3 + $0x60] sm:$0xf] %vm786, %v739
      %812 = vst.msk [vmem:[#allocation3 + $0x64] sm:$0xf] %vm786, %v741
      %813 = vst.msk [vmem:[#allocation3 + $0x68] sm:$0xf] %vm786, %v743
      %814 = vst.msk [vmem:[#allocation3 + $0x6c] sm:$0xf] %vm786, %v745
      %815 = vst.msk [vmem:[#allocation3 + $0x70] sm:$0xf] %vm786, %v747
      %816 = vst.msk [vmem:[#allocation3 + $0x74] sm:$0xf] %vm786, %v749
      %817 = vst.msk [vmem:[#allocation3 + $0x78] sm:$0xf] %vm786, %v751
      %818 = vst.msk [vmem:[#allocation3 + $0x7c] sm:$0xf] %vm786, %v753
      %v819 = vld [vmem:[#allocation2 + $0x2] sm:$0xff]
      %v820 = vld [vmem:[#allocation2 + $0xa] sm:$0xff]
      %v821 = vld [vmem:[#allocation2 + $0x1a] sm:$0xff]
      %v822 = vld [vmem:[#allocation2 + $0x22] sm:$0xff]
      %v823 = vld [vmem:[#allocation2 + $0x32] sm:$0xff]
      %v824 = vld [vmem:[#allocation2 + $0x3a] sm:$0xff]
      %v825 = vld [vmem:[#allocation2 + $0x4a] sm:$0xff]
      %v826 = vld [vmem:[#allocation2 + $0x52] sm:$0xff]
      %v827 = vld [vmem:[#allocation2 + $0x62] sm:$0xff]
      %v828 = vld [vmem:[#allocation2 + $0x6a] sm:$0xff]
      %v829 = vld [vmem:[#allocation2 + $0x7a] sm:$0xff]
      %v830 = vld [vmem:[#allocation2 + $0x82] sm:$0xff]
      %v831 = vld [vmem:[#allocation2 + $0x92] sm:$0xff]
      %v832 = vld [vmem:[#allocation2 + $0x9a] sm:$0xff]
      %v833 = vld [vmem:[#allocation2 + $0xaa] sm:$0xff]
      %v834 = vld [vmem:[#allocation2 + $0xb2] sm:$0xff]
      %v835 = vld [vmem:[#allocation2 + $0xc2] sm:$0xff]
      %v836 = vld [vmem:[#allocation2 + $0xca] sm:$0xff]
      %v837 = vld [vmem:[#allocation2 + $0xda] sm:$0xff]
      %v838 = vld [vmem:[#allocation2 + $0xe2] sm:$0xff]
      %v839 = vld [vmem:[#allocation2 + $0xf2] sm:$0xff]
      %v840 = vld [vmem:[#allocation2 + $0xfa] sm:$0xff]
      %v841 = vld [vmem:[#allocation2 + $0x10a] sm:$0xff]
      %v842 = vld [vmem:[#allocation2 + $0x112] sm:$0xff]
      %v843 = vld [vmem:[#allocation2 + $0x122] sm:$0xff]
      %v844 = vld [vmem:[#allocation2 + $0x12a] sm:$0xff]
      %v845 = vld [vmem:[#allocation2 + $0x13a] sm:$0xff]
      %v846 = vld [vmem:[#allocation2 + $0x142] sm:$0xff]
      %v847 = vld [vmem:[#allocation2 + $0x152] sm:$0xff]
      %v848 = vld [vmem:[#allocation2 + $0x15a] sm:$0xff]
      %v849 = vld [vmem:[#allocation2 + $0x16a] sm:$0xff]
      %v850 = vld [vmem:[#allocation2 + $0x172] sm:$0xff]
      %v851 = vpack.c.bf16 %v819, %v819
      %v852 = vpack.c.bf16 %v820, %v820
      %v853 = vpack.c.bf16 %v821, %v821
      %v854 = vpack.c.bf16 %v822, %v822
      %v855 = vpack.c.bf16 %v823, %v823
      %v856 = vpack.c.bf16 %v824, %v824
      %v857 = vpack.c.bf16 %v825, %v825
      %v858 = vpack.c.bf16 %v826, %v826
      %v859 = vpack.c.bf16 %v827, %v827
      %v860 = vpack.c.bf16 %v828, %v828
      %v861 = vpack.c.bf16 %v829, %v829
      %v862 = vpack.c.bf16 %v830, %v830
      %v863 = vpack.c.bf16 %v831, %v831
      %v864 = vpack.c.bf16 %v832, %v832
      %v865 = vpack.c.bf16 %v833, %v833
      %v866 = vpack.c.bf16 %v834, %v834
      %v867 = vpack.c.bf16 %v835, %v835
      %v868 = vpack.c.bf16 %v836, %v836
      %v869 = vpack.c.bf16 %v837, %v837
      %v870 = vpack.c.bf16 %v838, %v838
      %v871 = vpack.c.bf16 %v839, %v839
      %v872 = vpack.c.bf16 %v840, %v840
      %v873 = vpack.c.bf16 %v841, %v841
      %v874 = vpack.c.bf16 %v842, %v842
      %v875 = vpack.c.bf16 %v843, %v843
      %v876 = vpack.c.bf16 %v844, %v844
      %v877 = vpack.c.bf16 %v845, %v845
      %v878 = vpack.c.bf16 %v846, %v846
      %v879 = vpack.c.bf16 %v847, %v847
      %v880 = vpack.c.bf16 %v848, %v848
      %v881 = vpack.c.bf16 %v849, %v849
      %v882 = vpack.c.bf16 %v850, %v850
      %915 = vrot.lane.b32.xlu0 %v851, 8
      %v916 = vpop.permute.xlu0 %915
      %917 = vrot.lane.b32.xlu0 %v852, 8
      %v918 = vpop.permute.xlu0 %917
      %919 = vrot.lane.b32.xlu0 %v853, 8
      %v920 = vpop.permute.xlu0 %919
      %921 = vrot.lane.b32.xlu0 %v854, 8
      %v922 = vpop.permute.xlu0 %921
      %923 = vrot.lane.b32.xlu0 %v855, 8
      %v924 = vpop.permute.xlu0 %923
      %925 = vrot.lane.b32.xlu0 %v856, 8
      %v926 = vpop.permute.xlu0 %925
      %927 = vrot.lane.b32.xlu0 %v857, 8
      %v928 = vpop.permute.xlu0 %927
      %929 = vrot.lane.b32.xlu0 %v858, 8
      %v930 = vpop.permute.xlu0 %929
      %931 = vrot.lane.b32.xlu0 %v859, 8
      %v932 = vpop.permute.xlu0 %931
      %933 = vrot.lane.b32.xlu0 %v860, 8
      %v934 = vpop.permute.xlu0 %933
      %935 = vrot.lane.b32.xlu0 %v861, 8
      %v936 = vpop.permute.xlu0 %935
      %937 = vrot.lane.b32.xlu0 %v862, 8
      %v938 = vpop.permute.xlu0 %937
      %939 = vrot.lane.b32.xlu0 %v863, 8
      %v940 = vpop.permute.xlu0 %939
      %941 = vrot.lane.b32.xlu0 %v864, 8
      %v942 = vpop.permute.xlu0 %941
      %943 = vrot.lane.b32.xlu0 %v865, 8
      %v944 = vpop.permute.xlu0 %943
      %945 = vrot.lane.b32.xlu0 %v866, 8
      %v946 = vpop.permute.xlu0 %945
      %947 = vrot.lane.b32.xlu0 %v867, 8
      %v948 = vpop.permute.xlu0 %947
      %949 = vrot.lane.b32.xlu0 %v868, 8
      %v950 = vpop.permute.xlu0 %949
      %951 = vrot.lane.b32.xlu0 %v869, 8
      %v952 = vpop.permute.xlu0 %951
      %953 = vrot.lane.b32.xlu0 %v870, 8
      %v954 = vpop.permute.xlu0 %953
      %955 = vrot.lane.b32.xlu0 %v871, 8
      %v956 = vpop.permute.xlu0 %955
      %957 = vrot.lane.b32.xlu0 %v872, 8
      %v958 = vpop.permute.xlu0 %957
      %959 = vrot.lane.b32.xlu0 %v873, 8
      %v960 = vpop.permute.xlu0 %959
      %961 = vrot.lane.b32.xlu0 %v874, 8
      %v962 = vpop.permute.xlu0 %961
      %963 = vrot.lane.b32.xlu0 %v875, 8
      %v964 = vpop.permute.xlu0 %963
      %965 = vrot.lane.b32.xlu0 %v876, 8
      %v966 = vpop.permute.xlu0 %965
      %967 = vrot.lane.b32.xlu0 %v877, 8
      %v968 = vpop.permute.xlu0 %967
      %969 = vrot.lane.b32.xlu0 %v878, 8
      %v970 = vpop.permute.xlu0 %969
      %971 = vrot.lane.b32.xlu0 %v879, 8
      %v972 = vpop.permute.xlu0 %971
      %973 = vrot.lane.b32.xlu0 %v880, 8
      %v974 = vpop.permute.xlu0 %973
      %975 = vrot.lane.b32.xlu0 %v881, 8
      %v976 = vpop.permute.xlu0 %975
      %977 = vrot.lane.b32.xlu0 %v882, 8
      %v978 = vpop.permute.xlu0 %977
      %vm1011 = vcmask 93248
      %1012 = vst.msk [vmem:[#allocation3] sm:$0xf] %vm1011, %v916
      %1013 = vst.msk [vmem:[#allocation3 + $0x4] sm:$0xf] %vm1011, %v918
      %1014 = vst.msk [vmem:[#allocation3 + $0x8] sm:$0xf] %vm1011, %v920
      %1015 = vst.msk [vmem:[#allocation3 + $0xc] sm:$0xf] %vm1011, %v922
      %1016 = vst.msk [vmem:[#allocation3 + $0x10] sm:$0xf] %vm1011, %v924
      %1017 = vst.msk [vmem:[#allocation3 + $0x14] sm:$0xf] %vm1011, %v926
      %1018 = vst.msk [vmem:[#allocation3 + $0x18] sm:$0xf] %vm1011, %v928
      %1019 = vst.msk [vmem:[#allocation3 + $0x1c] sm:$0xf] %vm1011, %v930
      %1020 = vst.msk [vmem:[#allocation3 + $0x20] sm:$0xf] %vm1011, %v932
      %1021 = vst.msk [vmem:[#allocation3 + $0x24] sm:$0xf] %vm1011, %v934
      %1022 = vst.msk [vmem:[#allocation3 + $0x28] sm:$0xf] %vm1011, %v936
      %1023 = vst.msk [vmem:[#allocation3 + $0x2c] sm:$0xf] %vm1011, %v938
      %1024 = vst.msk [vmem:[#allocation3 + $0x30] sm:$0xf] %vm1011, %v940
      %1025 = vst.msk [vmem:[#allocation3 + $0x34] sm:$0xf] %vm1011, %v942
      %1026 = vst.msk [vmem:[#allocation3 + $0x38] sm:$0xf] %vm1011, %v944
      %1027 = vst.msk [vmem:[#allocation3 + $0x3c] sm:$0xf] %vm1011, %v946
      %1028 = vst.msk [vmem:[#allocation3 + $0x40] sm:$0xf] %vm1011, %v948
      %1029 = vst.msk [vmem:[#allocation3 + $0x44] sm:$0xf] %vm1011, %v950
      %1030 = vst.msk [vmem:[#allocation3 + $0x48] sm:$0xf] %vm1011, %v952
      %1031 = vst.msk [vmem:[#allocation3 + $0x4c] sm:$0xf] %vm1011, %v954
      %1032 = vst.msk [vmem:[#allocation3 + $0x50] sm:$0xf] %vm1011, %v956
      %1033 = vst.msk [vmem:[#allocation3 + $0x54] sm:$0xf] %vm1011, %v958
      %1034 = vst.msk [vmem:[#allocation3 + $0x58] sm:$0xf] %vm1011, %v960
      %1035 = vst.msk [vmem:[#allocation3 + $0x5c] sm:$0xf] %vm1011, %v962
      %1036 = vst.msk [vmem:[#allocation3 + $0x60] sm:$0xf] %vm1011, %v964
      %1037 = vst.msk [vmem:[#allocation3 + $0x64] sm:$0xf] %vm1011, %v966
      %1038 = vst.msk [vmem:[#allocation3 + $0x68] sm:$0xf] %vm1011, %v968
      %1039 = vst.msk [vmem:[#allocation3 + $0x6c] sm:$0xf] %vm1011, %v970
      %1040 = vst.msk [vmem:[#allocation3 + $0x70] sm:$0xf] %vm1011, %v972
      %1041 = vst.msk [vmem:[#allocation3 + $0x74] sm:$0xf] %vm1011, %v974
      %1042 = vst.msk [vmem:[#allocation3 + $0x78] sm:$0xf] %vm1011, %v976
      %1043 = vst.msk [vmem:[#allocation3 + $0x7c] sm:$0xf] %vm1011, %v978
      %v1044 = vld [vmem:[%s463] sm:$0xff]
      %v1045 = vld [vmem:[%s463 + $0x8] sm:$0xff]
      %v1046 = vld [vmem:[%s463 + $0x18] sm:$0xff]
      %v1047 = vld [vmem:[%s463 + $0x20] sm:$0xff]
      %v1048 = vld [vmem:[%s463 + $0x30] sm:$0xff]
      %v1049 = vld [vmem:[%s463 + $0x38] sm:$0xff]
      %v1050 = vld [vmem:[%s463 + $0x48] sm:$0xff]
      %v1051 = vld [vmem:[%s463 + $0x50] sm:$0xff]
      %v1052 = vld [vmem:[%s463 + $0x60] sm:$0xff]
      %v1053 = vld [vmem:[%s463 + $0x68] sm:$0xff]
      %v1054 = vld [vmem:[%s463 + $0x78] sm:$0xff]
      %v1055 = vld [vmem:[%s463 + $0x80] sm:$0xff]
      %v1056 = vld [vmem:[%s463 + $0x90] sm:$0xff]
      %v1057 = vld [vmem:[%s463 + $0x98] sm:$0xff]
      %v1058 = vld [vmem:[%s463 + $0xa8] sm:$0xff]
      %v1059 = vld [vmem:[%s463 + $0xb0] sm:$0xff]
      %v1060 = vld [vmem:[%s463 + $0xc0] sm:$0xff]
      %v1061 = vld [vmem:[%s463 + $0xc8] sm:$0xff]
      %v1062 = vld [vmem:[%s463 + $0xd8] sm:$0xff]
      %v1063 = vld [vmem:[%s463 + $0xe0] sm:$0xff]
      %v1064 = vld [vmem:[%s463 + $0xf0] sm:$0xff]
      %v1065 = vld [vmem:[%s463 + $0xf8] sm:$0xff]
      %v1066 = vld [vmem:[%s463 + $0x108] sm:$0xff]
      %v1067 = vld [vmem:[%s463 + $0x110] sm:$0xff]
      %v1068 = vld [vmem:[%s463 + $0x120] sm:$0xff]
      %v1069 = vld [vmem:[%s463 + $0x128] sm:$0xff]
      %v1070 = vld [vmem:[%s463 + $0x138] sm:$0xff]
      %v1071 = vld [vmem:[%s463 + $0x140] sm:$0xff]
      %v1072 = vld [vmem:[%s463 + $0x150] sm:$0xff]
      %v1073 = vld [vmem:[%s463 + $0x158] sm:$0xff]
      %v1074 = vld [vmem:[%s463 + $0x168] sm:$0xff]
      %v1075 = vld [vmem:[%s463 + $0x170] sm:$0xff]
      %v1076 = vpack.c.bf16 %v1044, %v1044
      %v1077 = vpack.c.bf16 %v1045, %v1045
      %v1078 = vpack.c.bf16 %v1046, %v1046
      %v1079 = vpack.c.bf16 %v1047, %v1047
      %v1080 = vpack.c.bf16 %v1048, %v1048
      %v1081 = vpack.c.bf16 %v1049, %v1049
      %v1082 = vpack.c.bf16 %v1050, %v1050
      %v1083 = vpack.c.bf16 %v1051, %v1051
      %v1084 = vpack.c.bf16 %v1052, %v1052
      %v1085 = vpack.c.bf16 %v1053, %v1053
      %v1086 = vpack.c.bf16 %v1054, %v1054
      %v1087 = vpack.c.bf16 %v1055, %v1055
      %v1088 = vpack.c.bf16 %v1056, %v1056
      %v1089 = vpack.c.bf16 %v1057, %v1057
      %v1090 = vpack.c.bf16 %v1058, %v1058
      %v1091 = vpack.c.bf16 %v1059, %v1059
      %v1092 = vpack.c.bf16 %v1060, %v1060
      %v1093 = vpack.c.bf16 %v1061, %v1061
      %v1094 = vpack.c.bf16 %v1062, %v1062
      %v1095 = vpack.c.bf16 %v1063, %v1063
      %v1096 = vpack.c.bf16 %v1064, %v1064
      %v1097 = vpack.c.bf16 %v1065, %v1065
      %v1098 = vpack.c.bf16 %v1066, %v1066
      %v1099 = vpack.c.bf16 %v1067, %v1067
      %v1100 = vpack.c.bf16 %v1068, %v1068
      %v1101 = vpack.c.bf16 %v1069, %v1069
      %v1102 = vpack.c.bf16 %v1070, %v1070
      %v1103 = vpack.c.bf16 %v1071, %v1071
      %v1104 = vpack.c.bf16 %v1072, %v1072
      %v1105 = vpack.c.bf16 %v1073, %v1073
      %v1106 = vpack.c.bf16 %v1074, %v1074
      %v1107 = vpack.c.bf16 %v1075, %v1075
      %1140 = vrot.lane.b32.xlu0 %v1076, 12
      %v1141 = vpop.permute.xlu0 %1140
      %1142 = vrot.lane.b32.xlu0 %v1077, 12
      %v1143 = vpop.permute.xlu0 %1142
      %1144 = vrot.lane.b32.xlu0 %v1078, 12
      %v1145 = vpop.permute.xlu0 %1144
      %1146 = vrot.lane.b32.xlu0 %v1079, 12
      %v1147 = vpop.permute.xlu0 %1146
      %1148 = vrot.lane.b32.xlu0 %v1080, 12
      %v1149 = vpop.permute.xlu0 %1148
      %1150 = vrot.lane.b32.xlu0 %v1081, 12
      %v1151 = vpop.permute.xlu0 %1150
      %1152 = vrot.lane.b32.xlu0 %v1082, 12
      %v1153 = vpop.permute.xlu0 %1152
      %1154 = vrot.lane.b32.xlu0 %v1083, 12
      %v1155 = vpop.permute.xlu0 %1154
      %1156 = vrot.lane.b32.xlu0 %v1084, 12
      %v1157 = vpop.permute.xlu0 %1156
      %1158 = vrot.lane.b32.xlu0 %v1085, 12
      %v1159 = vpop.permute.xlu0 %1158
      %1160 = vrot.lane.b32.xlu0 %v1086, 12
      %v1161 = vpop.permute.xlu0 %1160
      %1162 = vrot.lane.b32.xlu0 %v1087, 12
      %v1163 = vpop.permute.xlu0 %1162
      %1164 = vrot.lane.b32.xlu0 %v1088, 12
      %v1165 = vpop.permute.xlu0 %1164
      %1166 = vrot.lane.b32.xlu0 %v1089, 12
      %v1167 = vpop.permute.xlu0 %1166
      %1168 = vrot.lane.b32.xlu0 %v1090, 12
      %v1169 = vpop.permute.xlu0 %1168
      %1170 = vrot.lane.b32.xlu0 %v1091, 12
      %v1171 = vpop.permute.xlu0 %1170
      %1172 = vrot.lane.b32.xlu0 %v1092, 12
      %v1173 = vpop.permute.xlu0 %1172
      %1174 = vrot.lane.b32.xlu0 %v1093, 12
      %v1175 = vpop.permute.xlu0 %1174
      %1176 = vrot.lane.b32.xlu0 %v1094, 12
      %v1177 = vpop.permute.xlu0 %1176
      %1178 = vrot.lane.b32.xlu0 %v1095, 12
      %v1179 = vpop.permute.xlu0 %1178
      %1180 = vrot.lane.b32.xlu0 %v1096, 12
      %v1181 = vpop.permute.xlu0 %1180
      %1182 = vrot.lane.b32.xlu0 %v1097, 12
      %v1183 = vpop.permute.xlu0 %1182
      %1184 = vrot.lane.b32.xlu0 %v1098, 12
      %v1185 = vpop.permute.xlu0 %1184
      %1186 = vrot.lane.b32.xlu0 %v1099, 12
      %v1187 = vpop.permute.xlu0 %1186
      %1188 = vrot.lane.b32.xlu0 %v1100, 12
      %v1189 = vpop.permute.xlu0 %1188
      %1190 = vrot.lane.b32.xlu0 %v1101, 12
      %v1191 = vpop.permute.xlu0 %1190
      %1192 = vrot.lane.b32.xlu0 %v1102, 12
      %v1193 = vpop.permute.xlu0 %1192
      %1194 = vrot.lane.b32.xlu0 %v1103, 12
      %v1195 = vpop.permute.xlu0 %1194
      %1196 = vrot.lane.b32.xlu0 %v1104, 12
      %v1197 = vpop.permute.xlu0 %1196
      %1198 = vrot.lane.b32.xlu0 %v1105, 12
      %v1199 = vpop.permute.xlu0 %1198
      %1200 = vrot.lane.b32.xlu0 %v1106, 12
      %v1201 = vpop.permute.xlu0 %1200
      %1202 = vrot.lane.b32.xlu0 %v1107, 12
      %v1203 = vpop.permute.xlu0 %1202
      %vm1236 = vcmask 126048
      %1237 = vst.msk [vmem:[#allocation3] sm:$0xf] %vm1236, %v1141
      %1238 = vst.msk [vmem:[#allocation3 + $0x4] sm:$0xf] %vm1236, %v1143
      %1239 = vst.msk [vmem:[#allocation3 + $0x8] sm:$0xf] %vm1236, %v1145
      %1240 = vst.msk [vmem:[#allocation3 + $0xc] sm:$0xf] %vm1236, %v1147
      %1241 = vst.msk [vmem:[#allocation3 + $0x10] sm:$0xf] %vm1236, %v1149
      %1242 = vst.msk [vmem:[#allocation3 + $0x14] sm:$0xf] %vm1236, %v1151
      %1243 = vst.msk [vmem:[#allocation3 + $0x18] sm:$0xf] %vm1236, %v1153
      %1244 = vst.msk [vmem:[#allocation3 + $0x1c] sm:$0xf] %vm1236, %v1155
      %1245 = vst.msk [vmem:[#allocation3 + $0x20] sm:$0xf] %vm1236, %v1157
      %1246 = vst.msk [vmem:[#allocation3 + $0x24] sm:$0xf] %vm1236, %v1159
      %1247 = vst.msk [vmem:[#allocation3 + $0x28] sm:$0xf] %vm1236, %v1161
      %1248 = vst.msk [vmem:[#allocation3 + $0x2c] sm:$0xf] %vm1236, %v1163
      %1249 = vst.msk [vmem:[#allocation3 + $0x30] sm:$0xf] %vm1236, %v1165
      %1250 = vst.msk [vmem:[#allocation3 + $0x34] sm:$0xf] %vm1236, %v1167
      %1251 = vst.msk [vmem:[#allocation3 + $0x38] sm:$0xf] %vm1236, %v1169
      %1252 = vst.msk [vmem:[#allocation3 + $0x3c] sm:$0xf] %vm1236, %v1171
      %1253 = vst.msk [vmem:[#allocation3 + $0x40] sm:$0xf] %vm1236, %v1173
      %1254 = vst.msk [vmem:[#allocation3 + $0x44] sm:$0xf] %vm1236, %v1175
      %1255 = vst.msk [vmem:[#allocation3 + $0x48] sm:$0xf] %vm1236, %v1177
      %1256 = vst.msk [vmem:[#allocation3 + $0x4c] sm:$0xf] %vm1236, %v1179
      %1257 = vst.msk [vmem:[#allocation3 + $0x50] sm:$0xf] %vm1236, %v1181
      %1258 = vst.msk [vmem:[#allocation3 + $0x54] sm:$0xf] %vm1236, %v1183
      %1259 = vst.msk [vmem:[#allocation3 + $0x58] sm:$0xf] %vm1236, %v1185
      %1260 = vst.msk [vmem:[#allocation3 + $0x5c] sm:$0xf] %vm1236, %v1187
      %1261 = vst.msk [vmem:[#allocation3 + $0x60] sm:$0xf] %vm1236, %v1189
      %1262 = vst.msk [vmem:[#allocation3 + $0x64] sm:$0xf] %vm1236, %v1191
      %1263 = vst.msk [vmem:[#allocation3 + $0x68] sm:$0xf] %vm1236, %v1193
      %1264 = vst.msk [vmem:[#allocation3 + $0x6c] sm:$0xf] %vm1236, %v1195
      %1265 = vst.msk [vmem:[#allocation3 + $0x70] sm:$0xf] %vm1236, %v1197
      %1266 = vst.msk [vmem:[#allocation3 + $0x74] sm:$0xf] %vm1236, %v1199
      %1267 = vst.msk [vmem:[#allocation3 + $0x78] sm:$0xf] %vm1236, %v1201
      %1268 = vst.msk [vmem:[#allocation3 + $0x7c] sm:$0xf] %vm1236, %v1203
      %v1269 = vld [vmem:[%s463 + $0x1] sm:$0xff]
      %v1270 = vld [vmem:[%s463 + $0x9] sm:$0xff]
      %v1271 = vld [vmem:[%s463 + $0x19] sm:$0xff]
      %v1272 = vld [vmem:[%s463 + $0x21] sm:$0xff]
      %v1273 = vld [vmem:[%s463 + $0x31] sm:$0xff]
      %v1274 = vld [vmem:[%s463 + $0x39] sm:$0xff]
      %v1275 = vld [vmem:[%s463 + $0x49] sm:$0xff]
      %v1276 = vld [vmem:[%s463 + $0x51] sm:$0xff]
      %v1277 = vld [vmem:[%s463 + $0x61] sm:$0xff]
      %v1278 = vld [vmem:[%s463 + $0x69] sm:$0xff]
      %v1279 = vld [vmem:[%s463 + $0x79] sm:$0xff]
      %v1280 = vld [vmem:[%s463 + $0x81] sm:$0xff]
      %v1281 = vld [vmem:[%s463 + $0x91] sm:$0xff]
      %v1282 = vld [vmem:[%s463 + $0x99] sm:$0xff]
      %v1283 = vld [vmem:[%s463 + $0xa9] sm:$0xff]
      %v1284 = vld [vmem:[%s463 + $0xb1] sm:$0xff]
      %v1285 = vld [vmem:[%s463 + $0xc1] sm:$0xff]
      %v1286 = vld [vmem:[%s463 + $0xc9] sm:$0xff]
      %v1287 = vld [vmem:[%s463 + $0xd9] sm:$0xff]
      %v1288 = vld [vmem:[%s463 + $0xe1] sm:$0xff]
      %v1289 = vld [vmem:[%s463 + $0xf1] sm:$0xff]
      %v1290 = vld [vmem:[%s463 + $0xf9] sm:$0xff]
      %v1291 = vld [vmem:[%s463 + $0x109] sm:$0xff]
      %v1292 = vld [vmem:[%s463 + $0x111] sm:$0xff]
      %v1293 = vld [vmem:[%s463 + $0x121] sm:$0xff]
      %v1294 = vld [vmem:[%s463 + $0x129] sm:$0xff]
      %v1295 = vld [vmem:[%s463 + $0x139] sm:$0xff]
      %v1296 = vld [vmem:[%s463 + $0x141] sm:$0xff]
      %v1297 = vld [vmem:[%s463 + $0x151] sm:$0xff]
      %v1298 = vld [vmem:[%s463 + $0x159] sm:$0xff]
      %v1299 = vld [vmem:[%s463 + $0x169] sm:$0xff]
      %v1300 = vld [vmem:[%s463 + $0x171] sm:$0xff]
      %v1301 = vpack.c.bf16 %v1269, %v1269
      %v1302 = vpack.c.bf16 %v1270, %v1270
      %v1303 = vpack.c.bf16 %v1271, %v1271
      %v1304 = vpack.c.bf16 %v1272, %v1272
      %v1305 = vpack.c.bf16 %v1273, %v1273
      %v1306 = vpack.c.bf16 %v1274, %v1274
      %v1307 = vpack.c.bf16 %v1275, %v1275
      %v1308 = vpack.c.bf16 %v1276, %v1276
      %v1309 = vpack.c.bf16 %v1277, %v1277
      %v1310 = vpack.c.bf16 %v1278, %v1278
      %v1311 = vpack.c.bf16 %v1279, %v1279
      %v1312 = vpack.c.bf16 %v1280, %v1280
      %v1313 = vpack.c.bf16 %v1281, %v1281
      %v1314 = vpack.c.bf16 %v1282, %v1282
      %v1315 = vpack.c.bf16 %v1283, %v1283
      %v1316 = vpack.c.bf16 %v1284, %v1284
      %v1317 = vpack.c.bf16 %v1285, %v1285
      %v1318 = vpack.c.bf16 %v1286, %v1286
      %v1319 = vpack.c.bf16 %v1287, %v1287
      %v1320 = vpack.c.bf16 %v1288, %v1288
      %v1321 = vpack.c.bf16 %v1289, %v1289
      %v1322 = vpack.c.bf16 %v1290, %v1290
      %v1323 = vpack.c.bf16 %v1291, %v1291
      %v1324 = vpack.c.bf16 %v1292, %v1292
      %v1325 = vpack.c.bf16 %v1293, %v1293
      %v1326 = vpack.c.bf16 %v1294, %v1294
      %v1327 = vpack.c.bf16 %v1295, %v1295
      %v1328 = vpack.c.bf16 %v1296, %v1296
      %v1329 = vpack.c.bf16 %v1297, %v1297
      %v1330 = vpack.c.bf16 %v1298, %v1298
      %v1331 = vpack.c.bf16 %v1299, %v1299
      %v1332 = vpack.c.bf16 %v1300, %v1300
      %1365 = vrot.lane.b32.xlu0 %v1301, 16
      %v1366 = vpop.permute.xlu0 %1365
      %1367 = vrot.lane.b32.xlu0 %v1302, 16
      %v1368 = vpop.permute.xlu0 %1367
      %1369 = vrot.lane.b32.xlu0 %v1303, 16
      %v1370 = vpop.permute.xlu0 %1369
      %1371 = vrot.lane.b32.xlu0 %v1304, 16
      %v1372 = vpop.permute.xlu0 %1371
      %1373 = vrot.lane.b32.xlu0 %v1305, 16
      %v1374 = vpop.permute.xlu0 %1373
      %1375 = vrot.lane.b32.xlu0 %v1306, 16
      %v1376 = vpop.permute.xlu0 %1375
      %1377 = vrot.lane.b32.xlu0 %v1307, 16
      %v1378 = vpop.permute.xlu0 %1377
      %1379 = vrot.lane.b32.xlu0 %v1308, 16
      %v1380 = vpop.permute.xlu0 %1379
      %1381 = vrot.lane.b32.xlu0 %v1309, 16
      %v1382 = vpop.permute.xlu0 %1381
      %1383 = vrot.lane.b32.xlu0 %v1310, 16
      %v1384 = vpop.permute.xlu0 %1383
      %1385 = vrot.lane.b32.xlu0 %v1311, 16
      %v1386 = vpop.permute.xlu0 %1385
      %1387 = vrot.lane.b32.xlu0 %v1312, 16
      %v1388 = vpop.permute.xlu0 %1387
      %1389 = vrot.lane.b32.xlu0 %v1313, 16
      %v1390 = vpop.permute.xlu0 %1389
      %1391 = vrot.lane.b32.xlu0 %v1314, 16
      %v1392 = vpop.permute.xlu0 %1391
      %1393 = vrot.lane.b32.xlu0 %v1315, 16
      %v1394 = vpop.permute.xlu0 %1393
      %1395 = vrot.lane.b32.xlu0 %v1316, 16
      %v1396 = vpop.permute.xlu0 %1395
      %1397 = vrot.lane.b32.xlu0 %v1317, 16
      %v1398 = vpop.permute.xlu0 %1397
      %1399 = vrot.lane.b32.xlu0 %v1318, 16
      %v1400 = vpop.permute.xlu0 %1399
      %1401 = vrot.lane.b32.xlu0 %v1319, 16
      %v1402 = vpop.permute.xlu0 %1401
      %1403 = vrot.lane.b32.xlu0 %v1320, 16
      %v1404 = vpop.permute.xlu0 %1403
      %1405 = vrot.lane.b32.xlu0 %v1321, 16
      %v1406 = vpop.permute.xlu0 %1405
      %1407 = vrot.lane.b32.xlu0 %v1322, 16
      %v1408 = vpop.permute.xlu0 %1407
      %1409 = vrot.lane.b32.xlu0 %v1323, 16
      %v1410 = vpop.permute.xlu0 %1409
      %1411 = vrot.lane.b32.xlu0 %v1324, 16
      %v1412 = vpop.permute.xlu0 %1411
      %1413 = vrot.lane.b32.xlu0 %v1325, 16
      %v1414 = vpop.permute.xlu0 %1413
      %1415 = vrot.lane.b32.xlu0 %v1326, 16
      %v1416 = vpop.permute.xlu0 %1415
      %1417 = vrot.lane.b32.xlu0 %v1327, 16
      %v1418 = vpop.permute.xlu0 %1417
      %1419 = vrot.lane.b32.xlu0 %v1328, 16
      %v1420 = vpop.permute.xlu0 %1419
      %1421 = vrot.lane.b32.xlu0 %v1329, 16
      %v1422 = vpop.permute.xlu0 %1421
      %1423 = vrot.lane.b32.xlu0 %v1330, 16
      %v1424 = vpop.permute.xlu0 %1423
      %1425 = vrot.lane.b32.xlu0 %v1331, 16
      %v1426 = vpop.permute.xlu0 %1425
      %1427 = vrot.lane.b32.xlu0 %v1332, 16
      %v1428 = vpop.permute.xlu0 %1427
      %vm1461 = vcmask 158848
      %1462 = vst.msk [vmem:[#allocation3] sm:$0xf] %vm1461, %v1366
      %1463 = vst.msk [vmem:[#allocation3 + $0x4] sm:$0xf] %vm1461, %v1368
      %1464 = vst.msk [vmem:[#allocation3 + $0x8] sm:$0xf] %vm1461, %v1370
      %1465 = vst.msk [vmem:[#allocation3 + $0xc] sm:$0xf] %vm1461, %v1372
      %1466 = vst.msk [vmem:[#allocation3 + $0x10] sm:$0xf] %vm1461, %v1374
      %1467 = vst.msk [vmem:[#allocation3 + $0x14] sm:$0xf] %vm1461, %v1376
      %1468 = vst.msk [vmem:[#allocation3 + $0x18] sm:$0xf] %vm1461, %v1378
      %1469 = vst.msk [vmem:[#allocation3 + $0x1c] sm:$0xf] %vm1461, %v1380
      %1470 = vst.msk [vmem:[#allocation3 + $0x20] sm:$0xf] %vm1461, %v1382
      %1471 = vst.msk [vmem:[#allocation3 + $0x24] sm:$0xf] %vm1461, %v1384
      %1472 = vst.msk [vmem:[#allocation3 + $0x28] sm:$0xf] %vm1461, %v1386
      %1473 = vst.msk [vmem:[#allocation3 + $0x2c] sm:$0xf] %vm1461, %v1388
      %1474 = vst.msk [vmem:[#allocation3 + $0x30] sm:$0xf] %vm1461, %v1390
      %1475 = vst.msk [vmem:[#allocation3 + $0x34] sm:$0xf] %vm1461, %v1392
      %1476 = vst.msk [vmem:[#allocation3 + $0x38] sm:$0xf] %vm1461, %v1394
      %1477 = vst.msk [vmem:[#allocation3 + $0x3c] sm:$0xf] %vm1461, %v1396
      %1478 = vst.msk [vmem:[#allocation3 + $0x40] sm:$0xf] %vm1461, %v1398
      %1479 = vst.msk [vmem:[#allocation3 + $0x44] sm:$0xf] %vm1461, %v1400
      %1480 = vst.msk [vmem:[#allocation3 + $0x48] sm:$0xf] %vm1461, %v1402
      %1481 = vst.msk [vmem:[#allocation3 + $0x4c] sm:$0xf] %vm1461, %v1404
      %1482 = vst.msk [vmem:[#allocation3 + $0x50] sm:$0xf] %vm1461, %v1406
      %1483 = vst.msk [vmem:[#allocation3 + $0x54] sm:$0xf] %vm1461, %v1408
      %1484 = vst.msk [vmem:[#allocation3 + $0x58] sm:$0xf] %vm1461, %v1410
      %1485 = vst.msk [vmem:[#allocation3 + $0x5c] sm:$0xf] %vm1461, %v1412
      %1486 = vst.msk [vmem:[#allocation3 + $0x60] sm:$0xf] %vm1461, %v1414
      %1487 = vst.msk [vmem:[#allocation3 + $0x64] sm:$0xf] %vm1461, %v1416
      %1488 = vst.msk [vmem:[#allocation3 + $0x68] sm:$0xf] %vm1461, %v1418
      %1489 = vst.msk [vmem:[#allocation3 + $0x6c] sm:$0xf] %vm1461, %v1420
      %1490 = vst.msk [vmem:[#allocation3 + $0x70] sm:$0xf] %vm1461, %v1422
      %1491 = vst.msk [vmem:[#allocation3 + $0x74] sm:$0xf] %vm1461, %v1424
      %1492 = vst.msk [vmem:[#allocation3 + $0x78] sm:$0xf] %vm1461, %v1426
      %1493 = vst.msk [vmem:[#allocation3 + $0x7c] sm:$0xf] %vm1461, %v1428
      %v1494 = vld [vmem:[%s463 + $0x2] sm:$0xff]
      %v1495 = vld [vmem:[%s463 + $0xa] sm:$0xff]
      %v1496 = vld [vmem:[%s463 + $0x1a] sm:$0xff]
      %v1497 = vld [vmem:[%s463 + $0x22] sm:$0xff]
      %v1498 = vld [vmem:[%s463 + $0x32] sm:$0xff]
      %v1499 = vld [vmem:[%s463 + $0x3a] sm:$0xff]
      %v1500 = vld [vmem:[%s463 + $0x4a] sm:$0xff]
      %v1501 = vld [vmem:[%s463 + $0x52] sm:$0xff]
      %v1502 = vld [vmem:[%s463 + $0x62] sm:$0xff]
      %v1503 = vld [vmem:[%s463 + $0x6a] sm:$0xff]
      %v1504 = vld [vmem:[%s463 + $0x7a] sm:$0xff]
      %v1505 = vld [vmem:[%s463 + $0x82] sm:$0xff]
      %v1506 = vld [vmem:[%s463 + $0x92] sm:$0xff]
      %v1507 = vld [vmem:[%s463 + $0x9a] sm:$0xff]
      %v1508 = vld [vmem:[%s463 + $0xaa] sm:$0xff]
      %v1509 = vld [vmem:[%s463 + $0xb2] sm:$0xff]
      %v1510 = vld [vmem:[%s463 + $0xc2] sm:$0xff]
      %v1511 = vld [vmem:[%s463 + $0xca] sm:$0xff]
      %v1512 = vld [vmem:[%s463 + $0xda] sm:$0xff]
      %v1513 = vld [vmem:[%s463 + $0xe2] sm:$0xff]
      %v1514 = vld [vmem:[%s463 + $0xf2] sm:$0xff]
      %v1515 = vld [vmem:[%s463 + $0xfa] sm:$0xff]
      %v1516 = vld [vmem:[%s463 + $0x10a] sm:$0xff]
      %v1517 = vld [vmem:[%s463 + $0x112] sm:$0xff]
      %v1518 = vld [vmem:[%s463 + $0x122] sm:$0xff]
      %v1519 = vld [vmem:[%s463 + $0x12a] sm:$0xff]
      %v1520 = vld [vmem:[%s463 + $0x13a] sm:$0xff]
      %v1521 = vld [vmem:[%s463 + $0x142] sm:$0xff]
      %v1522 = vld [vmem:[%s463 + $0x152] sm:$0xff]
      %v1523 = vld [vmem:[%s463 + $0x15a] sm:$0xff]
      %v1524 = vld [vmem:[%s463 + $0x16a] sm:$0xff]
      %v1525 = vld [vmem:[%s463 + $0x172] sm:$0xff]
      %v1526 = vpack.c.bf16 %v1494, %v1494
      %v1527 = vpack.c.bf16 %v1495, %v1495
      %v1528 = vpack.c.bf16 %v1496, %v1496
      %v1529 = vpack.c.bf16 %v1497, %v1497
      %v1530 = vpack.c.bf16 %v1498, %v1498
      %v1531 = vpack.c.bf16 %v1499, %v1499
      %v1532 = vpack.c.bf16 %v1500, %v1500
      %v1533 = vpack.c.bf16 %v1501, %v1501
      %v1534 = vpack.c.bf16 %v1502, %v1502
      %v1535 = vpack.c.bf16 %v1503, %v1503
      %v1536 = vpack.c.bf16 %v1504, %v1504
      %v1537 = vpack.c.bf16 %v1505, %v1505
      %v1538 = vpack.c.bf16 %v1506, %v1506
      %v1539 = vpack.c.bf16 %v1507, %v1507
      %v1540 = vpack.c.bf16 %v1508, %v1508
      %v1541 = vpack.c.bf16 %v1509, %v1509
      %v1542 = vpack.c.bf16 %v1510, %v1510
      %v1543 = vpack.c.bf16 %v1511, %v1511
      %v1544 = vpack.c.bf16 %v1512, %v1512
      %v1545 = vpack.c.bf16 %v1513, %v1513
      %v1546 = vpack.c.bf16 %v1514, %v1514
      %v1547 = vpack.c.bf16 %v1515, %v1515
      %v1548 = vpack.c.bf16 %v1516, %v1516
      %v1549 = vpack.c.bf16 %v1517, %v1517
      %v1550 = vpack.c.bf16 %v1518, %v1518
      %v1551 = vpack.c.bf16 %v1519, %v1519
      %v1552 = vpack.c.bf16 %v1520, %v1520
      %v1553 = vpack.c.bf16 %v1521, %v1521
      %v1554 = vpack.c.bf16 %v1522, %v1522
      %v1555 = vpack.c.bf16 %v1523, %v1523
      %v1556 = vpack.c.bf16 %v1524, %v1524
      %v1557 = vpack.c.bf16 %v1525, %v1525
      %1590 = vrot.lane.b32.xlu0 %v1526, 20
      %v1591 = vpop.permute.xlu0 %1590
      %1592 = vrot.lane.b32.xlu0 %v1527, 20
      %v1593 = vpop.permute.xlu0 %1592
      %1594 = vrot.lane.b32.xlu0 %v1528, 20
      %v1595 = vpop.permute.xlu0 %1594
      %1596 = vrot.lane.b32.xlu0 %v1529, 20
      %v1597 = vpop.permute.xlu0 %1596
      %1598 = vrot.lane.b32.xlu0 %v1530, 20
      %v1599 = vpop.permute.xlu0 %1598
      %1600 = vrot.lane.b32.xlu0 %v1531, 20
      %v1601 = vpop.permute.xlu0 %1600
      %1602 = vrot.lane.b32.xlu0 %v1532, 20
      %v1603 = vpop.permute.xlu0 %1602
      %1604 = vrot.lane.b32.xlu0 %v1533, 20
      %v1605 = vpop.permute.xlu0 %1604
      %1606 = vrot.lane.b32.xlu0 %v1534, 20
      %v1607 = vpop.permute.xlu0 %1606
      %1608 = vrot.lane.b32.xlu0 %v1535, 20
      %v1609 = vpop.permute.xlu0 %1608
      %1610 = vrot.lane.b32.xlu0 %v1536, 20
      %v1611 = vpop.permute.xlu0 %1610
      %1612 = vrot.lane.b32.xlu0 %v1537, 20
      %v1613 = vpop.permute.xlu0 %1612
      %1614 = vrot.lane.b32.xlu0 %v1538, 20
      %v1615 = vpop.permute.xlu0 %1614
      %1616 = vrot.lane.b32.xlu0 %v1539, 20
      %v1617 = vpop.permute.xlu0 %1616
      %1618 = vrot.lane.b32.xlu0 %v1540, 20
      %v1619 = vpop.permute.xlu0 %1618
      %1620 = vrot.lane.b32.xlu0 %v1541, 20
      %v1621 = vpop.permute.xlu0 %1620
      %1622 = vrot.lane.b32.xlu0 %v1542, 20
      %v1623 = vpop.permute.xlu0 %1622
      %1624 = vrot.lane.b32.xlu0 %v1543, 20
      %v1625 = vpop.permute.xlu0 %1624
      %1626 = vrot.lane.b32.xlu0 %v1544, 20
      %v1627 = vpop.permute.xlu0 %1626
      %1628 = vrot.lane.b32.xlu0 %v1545, 20
      %v1629 = vpop.permute.xlu0 %1628
      %1630 = vrot.lane.b32.xlu0 %v1546, 20
      %v1631 = vpop.permute.xlu0 %1630
      %1632 = vrot.lane.b32.xlu0 %v1547, 20
      %v1633 = vpop.permute.xlu0 %1632
      %1634 = vrot.lane.b32.xlu0 %v1548, 20
      %v1635 = vpop.permute.xlu0 %1634
      %1636 = vrot.lane.b32.xlu0 %v1549, 20
      %v1637 = vpop.permute.xlu0 %1636
      %1638 = vrot.lane.b32.xlu0 %v1550, 20
      %v1639 = vpop.permute.xlu0 %1638
      %1640 = vrot.lane.b32.xlu0 %v1551, 20
      %v1641 = vpop.permute.xlu0 %1640
      %1642 = vrot.lane.b32.xlu0 %v1552, 20
      %v1643 = vpop.permute.xlu0 %1642
      %1644 = vrot.lane.b32.xlu0 %v1553, 20
      %v1645 = vpop.permute.xlu0 %1644
      %1646 = vrot.lane.b32.xlu0 %v1554, 20
      %v1647 = vpop.permute.xlu0 %1646
      %1648 = vrot.lane.b32.xlu0 %v1555, 20
      %v1649 = vpop.permute.xlu0 %1648
      %1650 = vrot.lane.b32.xlu0 %v1556, 20
      %v1651 = vpop.permute.xlu0 %1650
      %1652 = vrot.lane.b32.xlu0 %v1557, 20
      %v1653 = vpop.permute.xlu0 %1652
      %vm1686 = vcmask 191648
      %1687 = vst.msk [vmem:[#allocation3] sm:$0xf] %vm1686, %v1591
      %1688 = vst.msk [vmem:[#allocation3 + $0x4] sm:$0xf] %vm1686, %v1593
      %1689 = vst.msk [vmem:[#allocation3 + $0x8] sm:$0xf] %vm1686, %v1595
      %1690 = vst.msk [vmem:[#allocation3 + $0xc] sm:$0xf] %vm1686, %v1597
      %1691 = vst.msk [vmem:[#allocation3 + $0x10] sm:$0xf] %vm1686, %v1599
      %1692 = vst.msk [vmem:[#allocation3 + $0x14] sm:$0xf] %vm1686, %v1601
      %1693 = vst.msk [vmem:[#allocation3 + $0x18] sm:$0xf] %vm1686, %v1603
      %1694 = vst.msk [vmem:[#allocation3 + $0x1c] sm:$0xf] %vm1686, %v1605
      %1695 = vst.msk [vmem:[#allocation3 + $0x20] sm:$0xf] %vm1686, %v1607
      %1696 = vst.msk [vmem:[#allocation3 + $0x24] sm:$0xf] %vm1686, %v1609
      %1697 = vst.msk [vmem:[#allocation3 + $0x28] sm:$0xf] %vm1686, %v1611
      %1698 = vst.msk [vmem:[#allocation3 + $0x2c] sm:$0xf] %vm1686, %v1613
      %1699 = vst.msk [vmem:[#allocation3 + $0x30] sm:$0xf] %vm1686, %v1615
      %1700 = vst.msk [vmem:[#allocation3 + $0x34] sm:$0xf] %vm1686, %v1617
      %1701 = vst.msk [vmem:[#allocation3 + $0x38] sm:$0xf] %vm1686, %v1619
      %1702 = vst.msk [vmem:[#allocation3 + $0x3c] sm:$0xf] %vm1686, %v1621
      %1703 = vst.msk [vmem:[#allocation3 + $0x40] sm:$0xf] %vm1686, %v1623
      %1704 = vst.msk [vmem:[#allocation3 + $0x44] sm:$0xf] %vm1686, %v1625
      %1705 = vst.msk [vmem:[#allocation3 + $0x48] sm:$0xf] %vm1686, %v1627
      %1706 = vst.msk [vmem:[#allocation3 + $0x4c] sm:$0xf] %vm1686, %v1629
      %1707 = vst.msk [vmem:[#allocation3 + $0x50] sm:$0xf] %vm1686, %v1631
      %1708 = vst.msk [vmem:[#allocation3 + $0x54] sm:$0xf] %vm1686, %v1633
      %1709 = vst.msk [vmem:[#allocation3 + $0x58] sm:$0xf] %vm1686, %v1635
      %1710 = vst.msk [vmem:[#allocation3 + $0x5c] sm:$0xf] %vm1686, %v1637
      %1711 = vst.msk [vmem:[#allocation3 + $0x60] sm:$0xf] %vm1686, %v1639
      %1712 = vst.msk [vmem:[#allocation3 + $0x64] sm:$0xf] %vm1686, %v1641
      %1713 = vst.msk [vmem:[#allocation3 + $0x68] sm:$0xf] %vm1686, %v1643
      %1714 = vst.msk [vmem:[#allocation3 + $0x6c] sm:$0xf] %vm1686, %v1645
      %1715 = vst.msk [vmem:[#allocation3 + $0x70] sm:$0xf] %vm1686, %v1647
      %1716 = vst.msk [vmem:[#allocation3 + $0x74] sm:$0xf] %vm1686, %v1649
      %1717 = vst.msk [vmem:[#allocation3 + $0x78] sm:$0xf] %vm1686, %v1651
      %1718 = vst.msk [vmem:[#allocation3 + $0x7c] sm:$0xf] %vm1686, %v1653
      %s1719 = scalar_lea.vmem [#allocation2], 48
      %v1720 = vld [vmem:[%s1719] sm:$0xff]
      %v1721 = vld [vmem:[%s1719 + $0x8] sm:$0xff]
      %v1722 = vld [vmem:[%s1719 + $0x18] sm:$0xff]
      %v1723 = vld [vmem:[%s1719 + $0x20] sm:$0xff]
      %v1724 = vld [vmem:[%s1719 + $0x30] sm:$0xff]
      %v1725 = vld [vmem:[%s1719 + $0x38] sm:$0xff]
      %v1726 = vld [vmem:[%s1719 + $0x48] sm:$0xff]
      %v1727 = vld [vmem:[%s1719 + $0x50] sm:$0xff]
      %v1728 = vld [vmem:[%s1719 + $0x60] sm:$0xff]
      %v1729 = vld [vmem:[%s1719 + $0x68] sm:$0xff]
      %v1730 = vld [vmem:[%s1719 + $0x78] sm:$0xff]
      %v1731 = vld [vmem:[%s1719 + $0x80] sm:$0xff]
      %v1732 = vld [vmem:[%s1719 + $0x90] sm:$0xff]
      %v1733 = vld [vmem:[%s1719 + $0x98] sm:$0xff]
      %v1734 = vld [vmem:[%s1719 + $0xa8] sm:$0xff]
      %v1735 = vld [vmem:[%s1719 + $0xb0] sm:$0xff]
      %v1736 = vld [vmem:[%s1719 + $0xc0] sm:$0xff]
      %v1737 = vld [vmem:[%s1719 + $0xc8] sm:$0xff]
      %v1738 = vld [vmem:[%s1719 + $0xd8] sm:$0xff]
      %v1739 = vld [vmem:[%s1719 + $0xe0] sm:$0xff]
      %v1740 = vld [vmem:[%s1719 + $0xf0] sm:$0xff]
      %v1741 = vld [vmem:[%s1719 + $0xf8] sm:$0xff]
      %v1742 = vld [vmem:[%s1719 + $0x108] sm:$0xff]
      %v1743 = vld [vmem:[%s1719 + $0x110] sm:$0xff]
      %v1744 = vld [vmem:[%s1719 + $0x120] sm:$0xff]
      %v1745 = vld [vmem:[%s1719 + $0x128] sm:$0xff]
      %v1746 = vld [vmem:[%s1719 + $0x138] sm:$0xff]
      %v1747 = vld [vmem:[%s1719 + $0x140] sm:$0xff]
      %v1748 = vld [vmem:[%s1719 + $0x150] sm:$0xff]
      %v1749 = vld [vmem:[%s1719 + $0x158] sm:$0xff]
      %v1750 = vld [vmem:[%s1719 + $0x168] sm:$0xff]
      %v1751 = vld [vmem:[%s1719 + $0x170] sm:$0xff]
      %v1752 = vpack.c.bf16 %v1720, %v1720
      %v1753 = vpack.c.bf16 %v1721, %v1721
      %v1754 = vpack.c.bf16 %v1722, %v1722
      %v1755 = vpack.c.bf16 %v1723, %v1723
      %v1756 = vpack.c.bf16 %v1724, %v1724
      %v1757 = vpack.c.bf16 %v1725, %v1725
      %v1758 = vpack.c.bf16 %v1726, %v1726
      %v1759 = vpack.c.bf16 %v1727, %v1727
      %v1760 = vpack.c.bf16 %v1728, %v1728
      %v1761 = vpack.c.bf16 %v1729, %v1729
      %v1762 = vpack.c.bf16 %v1730, %v1730
      %v1763 = vpack.c.bf16 %v1731, %v1731
      %v1764 = vpack.c.bf16 %v1732, %v1732
      %v1765 = vpack.c.bf16 %v1733, %v1733
      %v1766 = vpack.c.bf16 %v1734, %v1734
      %v1767 = vpack.c.bf16 %v1735, %v1735
      %v1768 = vpack.c.bf16 %v1736, %v1736
      %v1769 = vpack.c.bf16 %v1737, %v1737
      %v1770 = vpack.c.bf16 %v1738, %v1738
      %v1771 = vpack.c.bf16 %v1739, %v1739
      %v1772 = vpack.c.bf16 %v1740, %v1740
      %v1773 = vpack.c.bf16 %v1741, %v1741
      %v1774 = vpack.c.bf16 %v1742, %v1742
      %v1775 = vpack.c.bf16 %v1743, %v1743
      %v1776 = vpack.c.bf16 %v1744, %v1744
      %v1777 = vpack.c.bf16 %v1745, %v1745
      %v1778 = vpack.c.bf16 %v1746, %v1746
      %v1779 = vpack.c.bf16 %v1747, %v1747
      %v1780 = vpack.c.bf16 %v1748, %v1748
      %v1781 = vpack.c.bf16 %v1749, %v1749
      %v1782 = vpack.c.bf16 %v1750, %v1750
      %v1783 = vpack.c.bf16 %v1751, %v1751
      %1816 = vrot.lane.b32.xlu0 %v1752, 24
      %v1817 = vpop.permute.xlu0 %1816
      %1818 = vrot.lane.b32.xlu0 %v1753, 24
      %v1819 = vpop.permute.xlu0 %1818
      %1820 = vrot.lane.b32.xlu0 %v1754, 24
      %v1821 = vpop.permute.xlu0 %1820
      %1822 = vrot.lane.b32.xlu0 %v1755, 24
      %v1823 = vpop.permute.xlu0 %1822
      %1824 = vrot.lane.b32.xlu0 %v1756, 24
      %v1825 = vpop.permute.xlu0 %1824
      %1826 = vrot.lane.b32.xlu0 %v1757, 24
      %v1827 = vpop.permute.xlu0 %1826
      %1828 = vrot.lane.b32.xlu0 %v1758, 24
      %v1829 = vpop.permute.xlu0 %1828
      %1830 = vrot.lane.b32.xlu0 %v1759, 24
      %v1831 = vpop.permute.xlu0 %1830
      %1832 = vrot.lane.b32.xlu0 %v1760, 24
      %v1833 = vpop.permute.xlu0 %1832
      %1834 = vrot.lane.b32.xlu0 %v1761, 24
      %v1835 = vpop.permute.xlu0 %1834
      %1836 = vrot.lane.b32.xlu0 %v1762, 24
      %v1837 = vpop.permute.xlu0 %1836
      %1838 = vrot.lane.b32.xlu0 %v1763, 24
      %v1839 = vpop.permute.xlu0 %1838
      %1840 = vrot.lane.b32.xlu0 %v1764, 24
      %v1841 = vpop.permute.xlu0 %1840
      %1842 = vrot.lane.b32.xlu0 %v1765, 24
      %v1843 = vpop.permute.xlu0 %1842
      %1844 = vrot.lane.b32.xlu0 %v1766, 24
      %v1845 = vpop.permute.xlu0 %1844
      %1846 = vrot.lane.b32.xlu0 %v1767, 24
      %v1847 = vpop.permute.xlu0 %1846
      %1848 = vrot.lane.b32.xlu0 %v1768, 24
      %v1849 = vpop.permute.xlu0 %1848
      %1850 = vrot.lane.b32.xlu0 %v1769, 24
      %v1851 = vpop.permute.xlu0 %1850
      %1852 = vrot.lane.b32.xlu0 %v1770, 24
      %v1853 = vpop.permute.xlu0 %1852
      %1854 = vrot.lane.b32.xlu0 %v1771, 24
      %v1855 = vpop.permute.xlu0 %1854
      %1856 = vrot.lane.b32.xlu0 %v1772, 24
      %v1857 = vpop.permute.xlu0 %1856
      %1858 = vrot.lane.b32.xlu0 %v1773, 24
      %v1859 = vpop.permute.xlu0 %1858
      %1860 = vrot.lane.b32.xlu0 %v1774, 24
      %v1861 = vpop.permute.xlu0 %1860
      %1862 = vrot.lane.b32.xlu0 %v1775, 24
      %v1863 = vpop.permute.xlu0 %1862
      %1864 = vrot.lane.b32.xlu0 %v1776, 24
      %v1865 = vpop.permute.xlu0 %1864
      %1866 = vrot.lane.b32.xlu0 %v1777, 24
      %v1867 = vpop.permute.xlu0 %1866
      %1868 = vrot.lane.b32.xlu0 %v1778, 24
      %v1869 = vpop.permute.xlu0 %1868
      %1870 = vrot.lane.b32.xlu0 %v1779, 24
      %v1871 = vpop.permute.xlu0 %1870
      %1872 = vrot.lane.b32.xlu0 %v1780, 24
      %v1873 = vpop.permute.xlu0 %1872
      %1874 = vrot.lane.b32.xlu0 %v1781, 24
      %v1875 = vpop.permute.xlu0 %1874
      %1876 = vrot.lane.b32.xlu0 %v1782, 24
      %v1877 = vpop.permute.xlu0 %1876
      %1878 = vrot.lane.b32.xlu0 %v1783, 24
      %v1879 = vpop.permute.xlu0 %1878
      %vm1912 = vcmask 224448
      %1913 = vst.msk [vmem:[#allocation3] sm:$0xf] %vm1912, %v1817
      %1914 = vst.msk [vmem:[#allocation3 + $0x4] sm:$0xf] %vm1912, %v1819
      %1915 = vst.msk [vmem:[#allocation3 + $0x8] sm:$0xf] %vm1912, %v1821
      %1916 = vst.msk [vmem:[#allocation3 + $0xc] sm:$0xf] %vm1912, %v1823
      %1917 = vst.msk [vmem:[#allocation3 + $0x10] sm:$0xf] %vm1912, %v1825
      %1918 = vst.msk [vmem:[#allocation3 + $0x14] sm:$0xf] %vm1912, %v1827
      %1919 = vst.msk [vmem:[#allocation3 + $0x18] sm:$0xf] %vm1912, %v1829
      %1920 = vst.msk [vmem:[#allocation3 + $0x1c] sm:$0xf] %vm1912, %v1831
      %1921 = vst.msk [vmem:[#allocation3 + $0x20] sm:$0xf] %vm1912, %v1833
      %1922 = vst.msk [vmem:[#allocation3 + $0x24] sm:$0xf] %vm1912, %v1835
      %1923 = vst.msk [vmem:[#allocation3 + $0x28] sm:$0xf] %vm1912, %v1837
      %1924 = vst.msk [vmem:[#allocation3 + $0x2c] sm:$0xf] %vm1912, %v1839
      %1925 = vst.msk [vmem:[#allocation3 + $0x30] sm:$0xf] %vm1912, %v1841
      %1926 = vst.msk [vmem:[#allocation3 + $0x34] sm:$0xf] %vm1912, %v1843
      %1927 = vst.msk [vmem:[#allocation3 + $0x38] sm:$0xf] %vm1912, %v1845
      %1928 = vst.msk [vmem:[#allocation3 + $0x3c] sm:$0xf] %vm1912, %v1847
      %1929 = vst.msk [vmem:[#allocation3 + $0x40] sm:$0xf] %vm1912, %v1849
      %1930 = vst.msk [vmem:[#allocation3 + $0x44] sm:$0xf] %vm1912, %v1851
      %1931 = vst.msk [vmem:[#allocation3 + $0x48] sm:$0xf] %vm1912, %v1853
      %1932 = vst.msk [vmem:[#allocation3 + $0x4c] sm:$0xf] %vm1912, %v1855
      %1933 = vst.msk [vmem:[#allocation3 + $0x50] sm:$0xf] %vm1912, %v1857
      %1934 = vst.msk [vmem:[#allocation3 + $0x54] sm:$0xf] %vm1912, %v1859
      %1935 = vst.msk [vmem:[#allocation3 + $0x58] sm:$0xf] %vm1912, %v1861
      %1936 = vst.msk [vmem:[#allocation3 + $0x5c] sm:$0xf] %vm1912, %v1863
      %1937 = vst.msk [vmem:[#allocation3 + $0x60] sm:$0xf] %vm1912, %v1865
      %1938 = vst.msk [vmem:[#allocation3 + $0x64] sm:$0xf] %vm1912, %v1867
      %1939 = vst.msk [vmem:[#allocation3 + $0x68] sm:$0xf] %vm1912, %v1869
      %1940 = vst.msk [vmem:[#allocation3 + $0x6c] sm:$0xf] %vm1912, %v1871
      %1941 = vst.msk [vmem:[#allocation3 + $0x70] sm:$0xf] %vm1912, %v1873
      %1942 = vst.msk [vmem:[#allocation3 + $0x74] sm:$0xf] %vm1912, %v1875
      %1943 = vst.msk [vmem:[#allocation3 + $0x78] sm:$0xf] %vm1912, %v1877
      %1944 = vst.msk [vmem:[#allocation3 + $0x7c] sm:$0xf] %vm1912, %v1879
      %v1945 = vld [vmem:[%s1719 + $0x1] sm:$0xff]
      %v1946 = vld [vmem:[%s1719 + $0x9] sm:$0xff]
      %v1947 = vld [vmem:[%s1719 + $0x19] sm:$0xff]
      %v1948 = vld [vmem:[%s1719 + $0x21] sm:$0xff]
      %v1949 = vld [vmem:[%s1719 + $0x31] sm:$0xff]
      %v1950 = vld [vmem:[%s1719 + $0x39] sm:$0xff]
      %v1951 = vld [vmem:[%s1719 + $0x49] sm:$0xff]
      %v1952 = vld [vmem:[%s1719 + $0x51] sm:$0xff]
      %v1953 = vld [vmem:[%s1719 + $0x61] sm:$0xff]
      %v1954 = vld [vmem:[%s1719 + $0x69] sm:$0xff]
      %v1955 = vld [vmem:[%s1719 + $0x79] sm:$0xff]
      %v1956 = vld [vmem:[%s1719 + $0x81] sm:$0xff]
      %v1957 = vld [vmem:[%s1719 + $0x91] sm:$0xff]
      %v1958 = vld [vmem:[%s1719 + $0x99] sm:$0xff]
      %v1959 = vld [vmem:[%s1719 + $0xa9] sm:$0xff]
      %v1960 = vld [vmem:[%s1719 + $0xb1] sm:$0xff]
      %v1961 = vld [vmem:[%s1719 + $0xc1] sm:$0xff]
      %v1962 = vld [vmem:[%s1719 + $0xc9] sm:$0xff]
      %v1963 = vld [vmem:[%s1719 + $0xd9] sm:$0xff]
      %v1964 = vld [vmem:[%s1719 + $0xe1] sm:$0xff]
      %v1965 = vld [vmem:[%s1719 + $0xf1] sm:$0xff]
      %v1966 = vld [vmem:[%s1719 + $0xf9] sm:$0xff]
      %v1967 = vld [vmem:[%s1719 + $0x109] sm:$0xff]
      %v1968 = vld [vmem:[%s1719 + $0x111] sm:$0xff]
      %v1969 = vld [vmem:[%s1719 + $0x121] sm:$0xff]
      %v1970 = vld [vmem:[%s1719 + $0x129] sm:$0xff]
      %v1971 = vld [vmem:[%s1719 + $0x139] sm:$0xff]
      %v1972 = vld [vmem:[%s1719 + $0x141] sm:$0xff]
      %v1973 = vld [vmem:[%s1719 + $0x151] sm:$0xff]
      %v1974 = vld [vmem:[%s1719 + $0x159] sm:$0xff]
      %v1975 = vld [vmem:[%s1719 + $0x169] sm:$0xff]
      %v1976 = vld [vmem:[%s1719 + $0x171] sm:$0xff]
      %v1977 = vpack.c.bf16 %v1945, %v1945
      %v1978 = vpack.c.bf16 %v1946, %v1946
      %v1979 = vpack.c.bf16 %v1947, %v1947
      %v1980 = vpack.c.bf16 %v1948, %v1948
      %v1981 = vpack.c.bf16 %v1949, %v1949
      %v1982 = vpack.c.bf16 %v1950, %v1950
      %v1983 = vpack.c.bf16 %v1951, %v1951
      %v1984 = vpack.c.bf16 %v1952, %v1952
      %v1985 = vpack.c.bf16 %v1953, %v1953
      %v1986 = vpack.c.bf16 %v1954, %v1954
      %v1987 = vpack.c.bf16 %v1955, %v1955
      %v1988 = vpack.c.bf16 %v1956, %v1956
      %v1989 = vpack.c.bf16 %v1957, %v1957
      %v1990 = vpack.c.bf16 %v1958, %v1958
      %v1991 = vpack.c.bf16 %v1959, %v1959
      %v1992 = vpack.c.bf16 %v1960, %v1960
      %v1993 = vpack.c.bf16 %v1961, %v1961
      %v1994 = vpack.c.bf16 %v1962, %v1962
      %v1995 = vpack.c.bf16 %v1963, %v1963
      %v1996 = vpack.c.bf16 %v1964, %v1964
      %v1997 = vpack.c.bf16 %v1965, %v1965
      %v1998 = vpack.c.bf16 %v1966, %v1966
      %v1999 = vpack.c.bf16 %v1967, %v1967
      %v2000 = vpack.c.bf16 %v1968, %v1968
      %v2001 = vpack.c.bf16 %v1969, %v1969
      %v2002 = vpack.c.bf16 %v1970, %v1970
      %v2003 = vpack.c.bf16 %v1971, %v1971
      %v2004 = vpack.c.bf16 %v1972, %v1972
      %v2005 = vpack.c.bf16 %v1973, %v1973
      %v2006 = vpack.c.bf16 %v1974, %v1974
      %v2007 = vpack.c.bf16 %v1975, %v1975
      %v2008 = vpack.c.bf16 %v1976, %v1976
      %2041 = vrot.lane.b32.xlu0 %v1977, 28
      %v2042 = vpop.permute.xlu0 %2041
      %2043 = vrot.lane.b32.xlu0 %v1978, 28
      %v2044 = vpop.permute.xlu0 %2043
      %2045 = vrot.lane.b32.xlu0 %v1979, 28
      %v2046 = vpop.permute.xlu0 %2045
      %2047 = vrot.lane.b32.xlu0 %v1980, 28
      %v2048 = vpop.permute.xlu0 %2047
      %2049 = vrot.lane.b32.xlu0 %v1981, 28
      %v2050 = vpop.permute.xlu0 %2049
      %2051 = vrot.lane.b32.xlu0 %v1982, 28
      %v2052 = vpop.permute.xlu0 %2051
      %2053 = vrot.lane.b32.xlu0 %v1983, 28
      %v2054 = vpop.permute.xlu0 %2053
      %2055 = vrot.lane.b32.xlu0 %v1984, 28
      %v2056 = vpop.permute.xlu0 %2055
      %2057 = vrot.lane.b32.xlu0 %v1985, 28
      %v2058 = vpop.permute.xlu0 %2057
      %2059 = vrot.lane.b32.xlu0 %v1986, 28
      %v2060 = vpop.permute.xlu0 %2059
      %2061 = vrot.lane.b32.xlu0 %v1987, 28
      %v2062 = vpop.permute.xlu0 %2061
      %2063 = vrot.lane.b32.xlu0 %v1988, 28
      %v2064 = vpop.permute.xlu0 %2063
      %2065 = vrot.lane.b32.xlu0 %v1989, 28
      %v2066 = vpop.permute.xlu0 %2065
      %2067 = vrot.lane.b32.xlu0 %v1990, 28
      %v2068 = vpop.permute.xlu0 %2067
      %2069 = vrot.lane.b32.xlu0 %v1991, 28
      %v2070 = vpop.permute.xlu0 %2069
      %2071 = vrot.lane.b32.xlu0 %v1992, 28
      %v2072 = vpop.permute.xlu0 %2071
      %2073 = vrot.lane.b32.xlu0 %v1993, 28
      %v2074 = vpop.permute.xlu0 %2073
      %2075 = vrot.lane.b32.xlu0 %v1994, 28
      %v2076 = vpop.permute.xlu0 %2075
      %2077 = vrot.lane.b32.xlu0 %v1995, 28
      %v2078 = vpop.permute.xlu0 %2077
      %2079 = vrot.lane.b32.xlu0 %v1996, 28
      %v2080 = vpop.permute.xlu0 %2079
      %2081 = vrot.lane.b32.xlu0 %v1997, 28
      %v2082 = vpop.permute.xlu0 %2081
      %2083 = vrot.lane.b32.xlu0 %v1998, 28
      %v2084 = vpop.permute.xlu0 %2083
      %2085 = vrot.lane.b32.xlu0 %v1999, 28
      %v2086 = vpop.permute.xlu0 %2085
      %2087 = vrot.lane.b32.xlu0 %v2000, 28
      %v2088 = vpop.permute.xlu0 %2087
      %2089 = vrot.lane.b32.xlu0 %v2001, 28
      %v2090 = vpop.permute.xlu0 %2089
      %2091 = vrot.lane.b32.xlu0 %v2002, 28
      %v2092 = vpop.permute.xlu0 %2091
      %2093 = vrot.lane.b32.xlu0 %v2003, 28
      %v2094 = vpop.permute.xlu0 %2093
      %2095 = vrot.lane.b32.xlu0 %v2004, 28
      %v2096 = vpop.permute.xlu0 %2095
      %2097 = vrot.lane.b32.xlu0 %v2005, 28
      %v2098 = vpop.permute.xlu0 %2097
      %2099 = vrot.lane.b32.xlu0 %v2006, 28
      %v2100 = vpop.permute.xlu0 %2099
      %2101 = vrot.lane.b32.xlu0 %v2007, 28
      %v2102 = vpop.permute.xlu0 %2101
      %2103 = vrot.lane.b32.xlu0 %v2008, 28
      %v2104 = vpop.permute.xlu0 %2103
      %vm2137 = vcmask 257248
      %2138 = vst.msk [vmem:[#allocation3] sm:$0xf] %vm2137, %v2042
      %2139 = vst.msk [vmem:[#allocation3 + $0x4] sm:$0xf] %vm2137, %v2044
      %2140 = vst.msk [vmem:[#allocation3 + $0x8] sm:$0xf] %vm2137, %v2046
      %2141 = vst.msk [vmem:[#allocation3 + $0xc] sm:$0xf] %vm2137, %v2048
      %2142 = vst.msk [vmem:[#allocation3 + $0x10] sm:$0xf] %vm2137, %v2050
      %2143 = vst.msk [vmem:[#allocation3 + $0x14] sm:$0xf] %vm2137, %v2052
      %2144 = vst.msk [vmem:[#allocation3 + $0x18] sm:$0xf] %vm2137, %v2054
      %2145 = vst.msk [vmem:[#allocation3 + $0x1c] sm:$0xf] %vm2137, %v2056
      %2146 = vst.msk [vmem:[#allocation3 + $0x20] sm:$0xf] %vm2137, %v2058
      %2147 = vst.msk [vmem:[#allocation3 + $0x24] sm:$0xf] %vm2137, %v2060
      %2148 = vst.msk [vmem:[#allocation3 + $0x28] sm:$0xf] %vm2137, %v2062
      %2149 = vst.msk [vmem:[#allocation3 + $0x2c] sm:$0xf] %vm2137, %v2064
      %2150 = vst.msk [vmem:[#allocation3 + $0x30] sm:$0xf] %vm2137, %v2066
      %2151 = vst.msk [vmem:[#allocation3 + $0x34] sm:$0xf] %vm2137, %v2068
      %2152 = vst.msk [vmem:[#allocation3 + $0x38] sm:$0xf] %vm2137, %v2070
      %2153 = vst.msk [vmem:[#allocation3 + $0x3c] sm:$0xf] %vm2137, %v2072
      %2154 = vst.msk [vmem:[#allocation3 + $0x40] sm:$0xf] %vm2137, %v2074
      %2155 = vst.msk [vmem:[#allocation3 + $0x44] sm:$0xf] %vm2137, %v2076
      %2156 = vst.msk [vmem:[#allocation3 + $0x48] sm:$0xf] %vm2137, %v2078
      %2157 = vst.msk [vmem:[#allocation3 + $0x4c] sm:$0xf] %vm2137, %v2080
      %2158 = vst.msk [vmem:[#allocation3 + $0x50] sm:$0xf] %vm2137, %v2082
      %2159 = vst.msk [vmem:[#allocation3 + $0x54] sm:$0xf] %vm2137, %v2084
      %2160 = vst.msk [vmem:[#allocation3 + $0x58] sm:$0xf] %vm2137, %v2086
      %2161 = vst.msk [vmem:[#allocation3 + $0x5c] sm:$0xf] %vm2137, %v2088
      %2162 = vst.msk [vmem:[#allocation3 + $0x60] sm:$0xf] %vm2137, %v2090
      %2163 = vst.msk [vmem:[#allocation3 + $0x64] sm:$0xf] %vm2137, %v2092
      %2164 = vst.msk [vmem:[#allocation3 + $0x68] sm:$0xf] %vm2137, %v2094
      %2165 = vst.msk [vmem:[#allocation3 + $0x6c] sm:$0xf] %vm2137, %v2096
      %2166 = vst.msk [vmem:[#allocation3 + $0x70] sm:$0xf] %vm2137, %v2098
      %2167 = vst.msk [vmem:[#allocation3 + $0x74] sm:$0xf] %vm2137, %v2100
      %2168 = vst.msk [vmem:[#allocation3 + $0x78] sm:$0xf] %vm2137, %v2102
      %2169 = vst.msk [vmem:[#allocation3 + $0x7c] sm:$0xf] %vm2137, %v2104
      %v2170 = vld [vmem:[%s1719 + $0x2] sm:$0xff]
      %v2171 = vld [vmem:[%s1719 + $0xa] sm:$0xff]
      %v2172 = vld [vmem:[%s1719 + $0x1a] sm:$0xff]
      %v2173 = vld [vmem:[%s1719 + $0x22] sm:$0xff]
      %v2174 = vld [vmem:[%s1719 + $0x32] sm:$0xff]
      %v2175 = vld [vmem:[%s1719 + $0x3a] sm:$0xff]
      %v2176 = vld [vmem:[%s1719 + $0x4a] sm:$0xff]
      %v2177 = vld [vmem:[%s1719 + $0x52] sm:$0xff]
      %v2178 = vld [vmem:[%s1719 + $0x62] sm:$0xff]
      %v2179 = vld [vmem:[%s1719 + $0x6a] sm:$0xff]
      %v2180 = vld [vmem:[%s1719 + $0x7a] sm:$0xff]
      %v2181 = vld [vmem:[%s1719 + $0x82] sm:$0xff]
      %v2182 = vld [vmem:[%s1719 + $0x92] sm:$0xff]
      %v2183 = vld [vmem:[%s1719 + $0x9a] sm:$0xff]
      %v2184 = vld [vmem:[%s1719 + $0xaa] sm:$0xff]
      %v2185 = vld [vmem:[%s1719 + $0xb2] sm:$0xff]
      %v2186 = vld [vmem:[%s1719 + $0xc2] sm:$0xff]
      %v2187 = vld [vmem:[%s1719 + $0xca] sm:$0xff]
      %v2188 = vld [vmem:[%s1719 + $0xda] sm:$0xff]
      %v2189 = vld [vmem:[%s1719 + $0xe2] sm:$0xff]
      %v2190 = vld [vmem:[%s1719 + $0xf2] sm:$0xff]
      %v2191 = vld [vmem:[%s1719 + $0xfa] sm:$0xff]
      %v2192 = vld [vmem:[%s1719 + $0x10a] sm:$0xff]
      %v2193 = vld [vmem:[%s1719 + $0x112] sm:$0xff]
      %v2194 = vld [vmem:[%s1719 + $0x122] sm:$0xff]
      %v2195 = vld [vmem:[%s1719 + $0x12a] sm:$0xff]
      %v2196 = vld [vmem:[%s1719 + $0x13a] sm:$0xff]
      %v2197 = vld [vmem:[%s1719 + $0x142] sm:$0xff]
      %v2198 = vld [vmem:[%s1719 + $0x152] sm:$0xff]
      %v2199 = vld [vmem:[%s1719 + $0x15a] sm:$0xff]
      %v2200 = vld [vmem:[%s1719 + $0x16a] sm:$0xff]
      %v2201 = vld [vmem:[%s1719 + $0x172] sm:$0xff]
      %v2202 = vpack.c.bf16 %v2170, %v2170
      %v2203 = vpack.c.bf16 %v2171, %v2171
      %v2204 = vpack.c.bf16 %v2172, %v2172
      %v2205 = vpack.c.bf16 %v2173, %v2173
      %v2206 = vpack.c.bf16 %v2174, %v2174
      %v2207 = vpack.c.bf16 %v2175, %v2175
      %v2208 = vpack.c.bf16 %v2176, %v2176
      %v2209 = vpack.c.bf16 %v2177, %v2177
      %v2210 = vpack.c.bf16 %v2178, %v2178
      %v2211 = vpack.c.bf16 %v2179, %v2179
      %v2212 = vpack.c.bf16 %v2180, %v2180
      %v2213 = vpack.c.bf16 %v2181, %v2181
      %v2214 = vpack.c.bf16 %v2182, %v2182
      %v2215 = vpack.c.bf16 %v2183, %v2183
      %v2216 = vpack.c.bf16 %v2184, %v2184
      %v2217 = vpack.c.bf16 %v2185, %v2185
      %v2218 = vpack.c.bf16 %v2186, %v2186
      %v2219 = vpack.c.bf16 %v2187, %v2187
      %v2220 = vpack.c.bf16 %v2188, %v2188
      %v2221 = vpack.c.bf16 %v2189, %v2189
      %v2222 = vpack.c.bf16 %v2190, %v2190
      %v2223 = vpack.c.bf16 %v2191, %v2191
      %v2224 = vpack.c.bf16 %v2192, %v2192
      %v2225 = vpack.c.bf16 %v2193, %v2193
      %v2226 = vpack.c.bf16 %v2194, %v2194
      %v2227 = vpack.c.bf16 %v2195, %v2195
      %v2228 = vpack.c.bf16 %v2196, %v2196
      %v2229 = vpack.c.bf16 %v2197, %v2197
      %v2230 = vpack.c.bf16 %v2198, %v2198
      %v2231 = vpack.c.bf16 %v2199, %v2199
      %v2232 = vpack.c.bf16 %v2200, %v2200
      %v2233 = vpack.c.bf16 %v2201, %v2201
      %2266 = vrot.lane.b32.xlu0 %v2202, 32
      %v2267 = vpop.permute.xlu0 %2266
      %2268 = vrot.lane.b32.xlu0 %v2203, 32
      %v2269 = vpop.permute.xlu0 %2268
      %2270 = vrot.lane.b32.xlu0 %v2204, 32
      %v2271 = vpop.permute.xlu0 %2270
      %2272 = vrot.lane.b32.xlu0 %v2205, 32
      %v2273 = vpop.permute.xlu0 %2272
      %2274 = vrot.lane.b32.xlu0 %v2206, 32
      %v2275 = vpop.permute.xlu0 %2274
      %2276 = vrot.lane.b32.xlu0 %v2207, 32
      %v2277 = vpop.permute.xlu0 %2276
      %2278 = vrot.lane.b32.xlu0 %v2208, 32
      %v2279 = vpop.permute.xlu0 %2278
      %2280 = vrot.lane.b32.xlu0 %v2209, 32
      %v2281 = vpop.permute.xlu0 %2280
      %2282 = vrot.lane.b32.xlu0 %v2210, 32
      %v2283 = vpop.permute.xlu0 %2282
      %2284 = vrot.lane.b32.xlu0 %v2211, 32
      %v2285 = vpop.permute.xlu0 %2284
      %2286 = vrot.lane.b32.xlu0 %v2212, 32
      %v2287 = vpop.permute.xlu0 %2286
      %2288 = vrot.lane.b32.xlu0 %v2213, 32
      %v2289 = vpop.permute.xlu0 %2288
      %2290 = vrot.lane.b32.xlu0 %v2214, 32
      %v2291 = vpop.permute.xlu0 %2290
      %2292 = vrot.lane.b32.xlu0 %v2215, 32
      %v2293 = vpop.permute.xlu0 %2292
      %2294 = vrot.lane.b32.xlu0 %v2216, 32
      %v2295 = vpop.permute.xlu0 %2294
      %2296 = vrot.lane.b32.xlu0 %v2217, 32
      %v2297 = vpop.permute.xlu0 %2296
      %2298 = vrot.lane.b32.xlu0 %v2218, 32
      %v2299 = vpop.permute.xlu0 %2298
      %2300 = vrot.lane.b32.xlu0 %v2219, 32
      %v2301 = vpop.permute.xlu0 %2300
      %2302 = vrot.lane.b32.xlu0 %v2220, 32
      %v2303 = vpop.permute.xlu0 %2302
      %2304 = vrot.lane.b32.xlu0 %v2221, 32
      %v2305 = vpop.permute.xlu0 %2304
      %2306 = vrot.lane.b32.xlu0 %v2222, 32
      %v2307 = vpop.permute.xlu0 %2306
      %2308 = vrot.lane.b32.xlu0 %v2223, 32
      %v2309 = vpop.permute.xlu0 %2308
      %2310 = vrot.lane.b32.xlu0 %v2224, 32
      %v2311 = vpop.permute.xlu0 %2310
      %2312 = vrot.lane.b32.xlu0 %v2225, 32
      %v2313 = vpop.permute.xlu0 %2312
      %2314 = vrot.lane.b32.xlu0 %v2226, 32
      %v2315 = vpop.permute.xlu0 %2314
      %2316 = vrot.lane.b32.xlu0 %v2227, 32
      %v2317 = vpop.permute.xlu0 %2316
      %2318 = vrot.lane.b32.xlu0 %v2228, 32
      %v2319 = vpop.permute.xlu0 %2318
      %2320 = vrot.lane.b32.xlu0 %v2229, 32
      %v2321 = vpop.permute.xlu0 %2320
      %2322 = vrot.lane.b32.xlu0 %v2230, 32
      %v2323 = vpop.permute.xlu0 %2322
      %2324 = vrot.lane.b32.xlu0 %v2231, 32
      %v2325 = vpop.permute.xlu0 %2324
      %2326 = vrot.lane.b32.xlu0 %v2232, 32
      %v2327 = vpop.permute.xlu0 %2326
      %2328 = vrot.lane.b32.xlu0 %v2233, 32
      %v2329 = vpop.permute.xlu0 %2328
      %vm2362 = vcmask 290048
      %2363 = vst.msk [vmem:[#allocation3] sm:$0xf] %vm2362, %v2267
      %2364 = vst.msk [vmem:[#allocation3 + $0x4] sm:$0xf] %vm2362, %v2269
      %2365 = vst.msk [vmem:[#allocation3 + $0x8] sm:$0xf] %vm2362, %v2271
      %2366 = vst.msk [vmem:[#allocation3 + $0xc] sm:$0xf] %vm2362, %v2273
      %2367 = vst.msk [vmem:[#allocation3 + $0x10] sm:$0xf] %vm2362, %v2275
      %2368 = vst.msk [vmem:[#allocation3 + $0x14] sm:$0xf] %vm2362, %v2277
      %2369 = vst.msk [vmem:[#allocation3 + $0x18] sm:$0xf] %vm2362, %v2279
      %2370 = vst.msk [vmem:[#allocation3 + $0x1c] sm:$0xf] %vm2362, %v2281
      %2371 = vst.msk [vmem:[#allocation3 + $0x20] sm:$0xf] %vm2362, %v2283
      %2372 = vst.msk [vmem:[#allocation3 + $0x24] sm:$0xf] %vm2362, %v2285
      %2373 = vst.msk [vmem:[#allocation3 + $0x28] sm:$0xf] %vm2362, %v2287
      %2374 = vst.msk [vmem:[#allocation3 + $0x2c] sm:$0xf] %vm2362, %v2289
      %2375 = vst.msk [vmem:[#allocation3 + $0x30] sm:$0xf] %vm2362, %v2291
      %2376 = vst.msk [vmem:[#allocation3 + $0x34] sm:$0xf] %vm2362, %v2293
      %2377 = vst.msk [vmem:[#allocation3 + $0x38] sm:$0xf] %vm2362, %v2295
      %2378 = vst.msk [vmem:[#allocation3 + $0x3c] sm:$0xf] %vm2362, %v2297
      %2379 = vst.msk [vmem:[#allocation3 + $0x40] sm:$0xf] %vm2362, %v2299
      %2380 = vst.msk [vmem:[#allocation3 + $0x44] sm:$0xf] %vm2362, %v2301
      %2381 = vst.msk [vmem:[#allocation3 + $0x48] sm:$0xf] %vm2362, %v2303
      %2382 = vst.msk [vmem:[#allocation3 + $0x4c] sm:$0xf] %vm2362, %v2305
      %2383 = vst.msk [vmem:[#allocation3 + $0x50] sm:$0xf] %vm2362, %v2307
      %2384 = vst.msk [vmem:[#allocation3 + $0x54] sm:$0xf] %vm2362, %v2309
      %2385 = vst.msk [vmem:[#allocation3 + $0x58] sm:$0xf] %vm2362, %v2311
      %2386 = vst.msk [vmem:[#allocation3 + $0x5c] sm:$0xf] %vm2362, %v2313
      %2387 = vst.msk [vmem:[#allocation3 + $0x60] sm:$0xf] %vm2362, %v2315
      %2388 = vst.msk [vmem:[#allocation3 + $0x64] sm:$0xf] %vm2362, %v2317
      %2389 = vst.msk [vmem:[#allocation3 + $0x68] sm:$0xf] %vm2362, %v2319
      %2390 = vst.msk [vmem:[#allocation3 + $0x6c] sm:$0xf] %vm2362, %v2321
      %2391 = vst.msk [vmem:[#allocation3 + $0x70] sm:$0xf] %vm2362, %v2323
      %2392 = vst.msk [vmem:[#allocation3 + $0x74] sm:$0xf] %vm2362, %v2325
      %2393 = vst.msk [vmem:[#allocation3 + $0x78] sm:$0xf] %vm2362, %v2327
      %2394 = vst.msk [vmem:[#allocation3 + $0x7c] sm:$0xf] %vm2362, %v2329
      %v2395 = vld [vmem:[#allocation3] sm:$0xf]
      %v2396 = vld [vmem:[#allocation3 + $0x4] sm:$0xf]
      %v2397 = vld [vmem:[#allocation3 + $0x8] sm:$0xf]
      %v2398 = vld [vmem:[#allocation3 + $0xc] sm:$0xf]
      %v2399 = vld [vmem:[#allocation3 + $0x10] sm:$0xf]
      %v2400 = vld [vmem:[#allocation3 + $0x14] sm:$0xf]
      %v2401 = vld [vmem:[#allocation3 + $0x18] sm:$0xf]
      %v2402 = vld [vmem:[#allocation3 + $0x1c] sm:$0xf]
      %v2403 = vld [vmem:[#allocation3 + $0x20] sm:$0xf]
      %v2404 = vld [vmem:[#allocation3 + $0x24] sm:$0xf]
      %v2405 = vld [vmem:[#allocation3 + $0x28] sm:$0xf]
      %v2406 = vld [vmem:[#allocation3 + $0x2c] sm:$0xf]
      %v2407 = vld [vmem:[#allocation3 + $0x30] sm:$0xf]
      %v2408 = vld [vmem:[#allocation3 + $0x34] sm:$0xf]
      %v2409 = vld [vmem:[#allocation3 + $0x38] sm:$0xf]
      %v2410 = vld [vmem:[#allocation3 + $0x3c] sm:$0xf]
      %v2411 = vld [vmem:[#allocation3 + $0x40] sm:$0xf]
      %v2412 = vld [vmem:[#allocation3 + $0x44] sm:$0xf]
      %v2413 = vld [vmem:[#allocation3 + $0x48] sm:$0xf]
      %v2414 = vld [vmem:[#allocation3 + $0x4c] sm:$0xf]
      %v2415 = vld [vmem:[#allocation3 + $0x50] sm:$0xf]
      %v2416 = vld [vmem:[#allocation3 + $0x54] sm:$0xf]
      %v2417 = vld [vmem:[#allocation3 + $0x58] sm:$0xf]
      %v2418 = vld [vmem:[#allocation3 + $0x5c] sm:$0xf]
      %v2419 = vld [vmem:[#allocation3 + $0x60] sm:$0xf]
      %v2420 = vld [vmem:[#allocation3 + $0x64] sm:$0xf]
      %v2421 = vld [vmem:[#allocation3 + $0x68] sm:$0xf]
      %v2422 = vld [vmem:[#allocation3 + $0x6c] sm:$0xf]
      %v2423 = vld [vmem:[#allocation3 + $0x70] sm:$0xf]
      %v2424 = vld [vmem:[#allocation3 + $0x74] sm:$0xf]
      %v2425 = vld [vmem:[#allocation3 + $0x78] sm:$0xf]
      %v2426 = vld [vmem:[#allocation3 + $0x7c] sm:$0xf]
      %v2459 = vunpack.c.l.b16 %v2395
      %v2460 = vunpack.c.l.b16 %v2396
      %v2461 = vunpack.c.l.b16 %v2397
      %v2462 = vunpack.c.l.b16 %v2398
      %v2463 = vunpack.c.l.b16 %v2399
      %v2464 = vunpack.c.l.b16 %v2400
      %v2465 = vunpack.c.l.b16 %v2401
      %v2466 = vunpack.c.l.b16 %v2402
      %v2467 = vunpack.c.l.b16 %v2403
      %v2468 = vunpack.c.l.b16 %v2404
      %v2469 = vunpack.c.l.b16 %v2405
      %v2470 = vunpack.c.l.b16 %v2406
      %v2471 = vunpack.c.l.b16 %v2407
      %v2472 = vunpack.c.l.b16 %v2408
      %v2473 = vunpack.c.l.b16 %v2409
      %v2474 = vunpack.c.l.b16 %v2410
      %v2475 = vunpack.c.l.b16 %v2411
      %v2476 = vunpack.c.l.b16 %v2412
      %v2477 = vunpack.c.l.b16 %v2413
      %v2478 = vunpack.c.l.b16 %v2414
      %v2479 = vunpack.c.l.b16 %v2415
      %v2480 = vunpack.c.l.b16 %v2416
      %v2481 = vunpack.c.l.b16 %v2417
      %v2482 = vunpack.c.l.b16 %v2418
      %v2483 = vunpack.c.l.b16 %v2419
      %v2484 = vunpack.c.l.b16 %v2420
      %v2485 = vunpack.c.l.b16 %v2421
      %v2486 = vunpack.c.l.b16 %v2422
      %v2487 = vunpack.c.l.b16 %v2423
      %v2488 = vunpack.c.l.b16 %v2424
      %v2489 = vunpack.c.l.b16 %v2425
      %v2490 = vunpack.c.l.b16 %v2426
      %v2491 = vpack.c.b16 %v2460, %v2459
      %v2492 = vpack.c.b16 %v2462, %v2461
      %v2493 = vpack.c.b16 %v2464, %v2463
      %v2494 = vpack.c.b16 %v2466, %v2465
      %v2495 = vpack.c.b16 %v2468, %v2467
      %v2496 = vpack.c.b16 %v2470, %v2469
      %v2497 = vpack.c.b16 %v2472, %v2471
      %v2498 = vpack.c.b16 %v2474, %v2473
      %v2499 = vpack.c.b16 %v2476, %v2475
      %v2500 = vpack.c.b16 %v2478, %v2477
      %v2501 = vpack.c.b16 %v2480, %v2479
      %v2502 = vpack.c.b16 %v2482, %v2481
      %v2503 = vpack.c.b16 %v2484, %v2483
      %v2504 = vpack.c.b16 %v2486, %v2485
      %v2505 = vpack.c.b16 %v2488, %v2487
      %v2506 = vpack.c.b16 %v2490, %v2489
      %v2512 = vunpack.c.l.b16 %v458
      %v2513 = vunpack.c.l.b16 %v459
      %v2514 = vunpack.c.l.b16 %v460
      %v2515 = vunpack.c.l.b16 %v461
      %v2516 = vunpack.c.l.b16 %v462
      %v2517 = vpack.c.b16 %v2513, %v2512
      %v2518 = vpack.c.b16 %v2515, %v2514
      %v2519 = vpack.c.b16 %v2516, %v2516
      %vm2522 = vcmask 293888
      %v2524 = vsel %vm2522, %v2491, 0
      %v2527 = vsel %vm2522, %v2492, 0
      %v2530 = vsel %vm2522, %v2493, 0
      %v2533 = vsel %vm2522, %v2494, 0
      %v2536 = vsel %vm2522, %v2495, 0
      %v2539 = vsel %vm2522, %v2496, 0
      %v2542 = vsel %vm2522, %v2497, 0
      %v2545 = vsel %vm2522, %v2498, 0
      %v2548 = vsel %vm2522, %v2499, 0
      %v2551 = vsel %vm2522, %v2500, 0
      %v2554 = vsel %vm2522, %v2501, 0
      %v2557 = vsel %vm2522, %v2502, 0
      %v2560 = vsel %vm2522, %v2503, 0
      %v2563 = vsel %vm2522, %v2504, 0
      %v2566 = vsel %vm2522, %v2505, 0
      %v2569 = vsel %vm2522, %v2506, 0
      %vm2571 = vcmask 1041408
      %v2573 = vsel %vm2571, %v2519, 0
      %2575 = vmatpush.bf16.msra.mxu0 0
      %2576 = vmatpush.bf16.msra.mxu0 0
      %2577 = vmatpush.bf16.msra.mxu0 0
      %2578 = vmatpush.bf16.msra.mxu0 0
      %2579 = vmatpush.bf16.msra.mxu0 0
      %2580 = vmatpush.bf16.msra.mxu0 %v2573
      %2581 = vmatpush.bf16.msra.mxu0 %v2518
      %2582 = vmatpush.bf16.msra.mxu0 %v2517
      %2583 = vmatmul.bf16.gmra.mxu0 %v2524
      %v2584 = vpop.f32.mrf.mxu0
      %v2585 = vadd.f32 0.0, %v2584
      %v2586 = vpop.f32.mrf.mxu0
      %v2587 = vadd.f32 0.0, %v2586
      %2588 = vmatmul.bf16.gmra.mxu0 %v2527
      %v2589 = vpop.f32.mrf.mxu0
      %v2590 = vadd.f32 0.0, %v2589
      %v2591 = vpop.f32.mrf.mxu0
      %v2592 = vadd.f32 0.0, %v2591
      %2593 = vmatmul.bf16.gmra.mxu0 %v2530
      %v2594 = vpop.f32.mrf.mxu0
      %v2595 = vadd.f32 0.0, %v2594
      %v2596 = vpop.f32.mrf.mxu0
      %v2597 = vadd.f32 0.0, %v2596
      %2598 = vmatmul.bf16.gmra.mxu0 %v2533
      %v2599 = vpop.f32.mrf.mxu0
      %v2600 = vadd.f32 0.0, %v2599
      %v2601 = vpop.f32.mrf.mxu0
      %v2602 = vadd.f32 0.0, %v2601
      %2603 = vmatmul.bf16.gmra.mxu0 %v2536
      %v2604 = vpop.f32.mrf.mxu0
      %v2605 = vadd.f32 0.0, %v2604
      %v2606 = vpop.f32.mrf.mxu0
      %v2607 = vadd.f32 0.0, %v2606
      %2608 = vmatmul.bf16.gmra.mxu0 %v2539
      %v2609 = vpop.f32.mrf.mxu0
      %v2610 = vadd.f32 0.0, %v2609
      %v2611 = vpop.f32.mrf.mxu0
      %v2612 = vadd.f32 0.0, %v2611
      %2613 = vmatmul.bf16.gmra.mxu0 %v2542
      %v2614 = vpop.f32.mrf.mxu0
      %v2615 = vadd.f32 0.0, %v2614
      %v2616 = vpop.f32.mrf.mxu0
      %v2617 = vadd.f32 0.0, %v2616
      %2618 = vmatmul.bf16.gmra.mxu0 %v2545
      %v2619 = vpop.f32.mrf.mxu0
      %v2620 = vadd.f32 0.0, %v2619
      %v2621 = vpop.f32.mrf.mxu0
      %v2622 = vadd.f32 0.0, %v2621
      %2623 = vmatmul.bf16.gmra.mxu0 %v2548
      %v2624 = vpop.f32.mrf.mxu0
      %v2625 = vadd.f32 0.0, %v2624
      %v2626 = vpop.f32.mrf.mxu0
      %v2627 = vadd.f32 0.0, %v2626
      %2628 = vmatmul.bf16.gmra.mxu0 %v2551
      %v2629 = vpop.f32.mrf.mxu0
      %v2630 = vadd.f32 0.0, %v2629
      %v2631 = vpop.f32.mrf.mxu0
      %v2632 = vadd.f32 0.0, %v2631
      %2633 = vmatmul.bf16.gmra.mxu0 %v2554
      %v2634 = vpop.f32.mrf.mxu0
      %v2635 = vadd.f32 0.0, %v2634
      %v2636 = vpop.f32.mrf.mxu0
      %v2637 = vadd.f32 0.0, %v2636
      %2638 = vmatmul.bf16.gmra.mxu0 %v2557
      %v2639 = vpop.f32.mrf.mxu0
      %v2640 = vadd.f32 0.0, %v2639
      %v2641 = vpop.f32.mrf.mxu0
      %v2642 = vadd.f32 0.0, %v2641
      %2643 = vmatmul.bf16.gmra.mxu0 %v2560
      %v2644 = vpop.f32.mrf.mxu0
      %v2645 = vadd.f32 0.0, %v2644
      %v2646 = vpop.f32.mrf.mxu0
      %v2647 = vadd.f32 0.0, %v2646
      %2648 = vmatmul.bf16.gmra.mxu0 %v2563
      %v2649 = vpop.f32.mrf.mxu0
      %v2650 = vadd.f32 0.0, %v2649
      %v2651 = vpop.f32.mrf.mxu0
      %v2652 = vadd.f32 0.0, %v2651
      %2653 = vmatmul.bf16.gmra.mxu0 %v2566
      %v2654 = vpop.f32.mrf.mxu0
      %v2655 = vadd.f32 0.0, %v2654
      %v2656 = vpop.f32.mrf.mxu0
      %v2657 = vadd.f32 0.0, %v2656
      %2658 = vmatmul.bf16.gmra.mxu0 %v2569
      %v2659 = vpop.f32.mrf.mxu0
      %v2660 = vadd.f32 0.0, %v2659
      %v2661 = vpop.f32.mrf.mxu0
      %v2662 = vadd.f32 0.0, %v2661
      %2663 = vdwg.mxu0
      %v2664 = vld [vmem:[%s1 + $0x2] sm:$0x1]
      %v2665 = vperm.slane %v2664, 0
      %v2666 = vmul.f32 %v326, %v2665
      %v2667 = vmul.f32 %v327, %v2665
      %v2668 = vmul.f32 %v328, %v2665
      %v2669 = vmul.f32 %v329, %v2665
      %v2670 = vmul.f32 %v330, %v2665
      %v2671 = vmul.f32 %v331, %v2665
      %v2672 = vmul.f32 %v332, %v2665
      %v2673 = vmul.f32 %v333, %v2665
      %v2674 = vmul.f32 %v334, %v2665
      %v2675 = vmul.f32 %v335, %v2665
      %v2676 = vmul.f32 %v336, %v2665
      %v2677 = vmul.f32 %v337, %v2665
      %v2678 = vmul.f32 %v338, %v2665
      %v2679 = vmul.f32 %v339, %v2665
      %v2680 = vmul.f32 %v340, %v2665
      %v2681 = vmul.f32 %v341, %v2665
      %v2682 = vmul.f32 %v342, %v2665
      %v2683 = vmul.f32 %v343, %v2665
      %v2684 = vmul.f32 %v344, %v2665
      %v2685 = vmul.f32 %v345, %v2665
      %v2686 = vmul.f32 %v346, %v2665
      %v2687 = vmul.f32 %v347, %v2665
      %v2688 = vmul.f32 %v348, %v2665
      %v2689 = vmul.f32 %v349, %v2665
      %v2690 = vmul.f32 %v350, %v2665
      %v2691 = vmul.f32 %v351, %v2665
      %v2692 = vmul.f32 %v352, %v2665
      %v2693 = vmul.f32 %v353, %v2665
      %v2694 = vmul.f32 %v354, %v2665
      %v2695 = vmul.f32 %v355, %v2665
      %v2696 = vmul.f32 %v356, %v2665
      %v2697 = vmul.f32 %v357, %v2665
      %v2698 = vld [vmem:[%s1 + $0x3] sm:$0x1]
      %v2699 = vperm.slane %v2698, 0
      %v2700 = vadd.f32 %v2666, %v2699
      %v2701 = vadd.f32 %v2667, %v2699
      %v2702 = vadd.f32 %v2668, %v2699
      %v2703 = vadd.f32 %v2669, %v2699
      %v2704 = vadd.f32 %v2670, %v2699
      %v2705 = vadd.f32 %v2671, %v2699
      %v2706 = vadd.f32 %v2672, %v2699
      %v2707 = vadd.f32 %v2673, %v2699
      %v2708 = vadd.f32 %v2674, %v2699
      %v2709 = vadd.f32 %v2675, %v2699
      %v2710 = vadd.f32 %v2676, %v2699
      %v2711 = vadd.f32 %v2677, %v2699
      %v2712 = vadd.f32 %v2678, %v2699
      %v2713 = vadd.f32 %v2679, %v2699
      %v2714 = vadd.f32 %v2680, %v2699
      %v2715 = vadd.f32 %v2681, %v2699
      %v2716 = vadd.f32 %v2682, %v2699
      %v2717 = vadd.f32 %v2683, %v2699
      %v2718 = vadd.f32 %v2684, %v2699
      %v2719 = vadd.f32 %v2685, %v2699
      %v2720 = vadd.f32 %v2686, %v2699
      %v2721 = vadd.f32 %v2687, %v2699
      %v2722 = vadd.f32 %v2688, %v2699
      %v2723 = vadd.f32 %v2689, %v2699
      %v2724 = vadd.f32 %v2690, %v2699
      %v2725 = vadd.f32 %v2691, %v2699
      %v2726 = vadd.f32 %v2692, %v2699
      %v2727 = vadd.f32 %v2693, %v2699
      %v2728 = vadd.f32 %v2694, %v2699
      %v2729 = vadd.f32 %v2695, %v2699
      %v2730 = vadd.f32 %v2696, %v2699
      %v2731 = vadd.f32 %v2697, %v2699
      %v2732 = vpack.c.bf16 %v2701, %v2700
      %v2733 = vpack.c.bf16 %v2703, %v2702
      %v2734 = vpack.c.bf16 %v2705, %v2704
      %v2735 = vpack.c.bf16 %v2707, %v2706
      %v2736 = vpack.c.bf16 %v2709, %v2708
      %v2737 = vpack.c.bf16 %v2711, %v2710
      %v2738 = vpack.c.bf16 %v2713, %v2712
      %v2739 = vpack.c.bf16 %v2715, %v2714
      %v2740 = vpack.c.bf16 %v2717, %v2716
      %v2741 = vpack.c.bf16 %v2719, %v2718
      %v2742 = vpack.c.bf16 %v2721, %v2720
      %v2743 = vpack.c.bf16 %v2723, %v2722
      %v2744 = vpack.c.bf16 %v2725, %v2724
      %v2745 = vpack.c.bf16 %v2727, %v2726
      %v2746 = vpack.c.bf16 %v2729, %v2728
      %v2747 = vpack.c.bf16 %v2731, %v2730
      %v2748 = vld [vmem:[%s5] sm:$0x3]
      %v2749 = vld [vmem:[%s2] sm:$0x1]
      %v2750 = vperm.slane %v2749, 0
      %v2751 = vmul.f32 %v2585, %v2750
      %v2752 = vmul.f32 %v2587, %v2750
      %v2753 = vmul.f32 %v2590, %v2750
      %v2754 = vmul.f32 %v2592, %v2750
      %v2755 = vmul.f32 %v2595, %v2750
      %v2756 = vmul.f32 %v2597, %v2750
      %v2757 = vmul.f32 %v2600, %v2750
      %v2758 = vmul.f32 %v2602, %v2750
      %v2759 = vmul.f32 %v2605, %v2750
      %v2760 = vmul.f32 %v2607, %v2750
      %v2761 = vmul.f32 %v2610, %v2750
      %v2762 = vmul.f32 %v2612, %v2750
      %v2763 = vmul.f32 %v2615, %v2750
      %v2764 = vmul.f32 %v2617, %v2750
      %v2765 = vmul.f32 %v2620, %v2750
      %v2766 = vmul.f32 %v2622, %v2750
      %v2767 = vmul.f32 %v2625, %v2750
      %v2768 = vmul.f32 %v2627, %v2750
      %v2769 = vmul.f32 %v2630, %v2750
      %v2770 = vmul.f32 %v2632, %v2750
      %v2771 = vmul.f32 %v2635, %v2750
      %v2772 = vmul.f32 %v2637, %v2750
      %v2773 = vmul.f32 %v2640, %v2750
      %v2774 = vmul.f32 %v2642, %v2750
      %v2775 = vmul.f32 %v2645, %v2750
      %v2776 = vmul.f32 %v2647, %v2750
      %v2777 = vmul.f32 %v2650, %v2750
      %v2778 = vmul.f32 %v2652, %v2750
      %v2779 = vmul.f32 %v2655, %v2750
      %v2780 = vmul.f32 %v2657, %v2750
      %v2781 = vmul.f32 %v2660, %v2750
      %v2782 = vmul.f32 %v2662, %v2750
      %v2783 = vld [vmem:[%s2 + $0x1] sm:$0x1]
      %v2784 = vperm.slane %v2783, 0
      %v2785 = vadd.f32 %v2751, %v2784
      %v2786 = vadd.f32 %v2752, %v2784
      %v2787 = vadd.f32 %v2753, %v2784
      %v2788 = vadd.f32 %v2754, %v2784
      %v2789 = vadd.f32 %v2755, %v2784
      %v2790 = vadd.f32 %v2756, %v2784
      %v2791 = vadd.f32 %v2757, %v2784
      %v2792 = vadd.f32 %v2758, %v2784
      %v2793 = vadd.f32 %v2759, %v2784
      %v2794 = vadd.f32 %v2760, %v2784
      %v2795 = vadd.f32 %v2761, %v2784
      %v2796 = vadd.f32 %v2762, %v2784
      %v2797 = vadd.f32 %v2763, %v2784
      %v2798 = vadd.f32 %v2764, %v2784
      %v2799 = vadd.f32 %v2765, %v2784
      %v2800 = vadd.f32 %v2766, %v2784
      %v2801 = vadd.f32 %v2767, %v2784
      %v2802 = vadd.f32 %v2768, %v2784
      %v2803 = vadd.f32 %v2769, %v2784
      %v2804 = vadd.f32 %v2770, %v2784
      %v2805 = vadd.f32 %v2771, %v2784
      %v2806 = vadd.f32 %v2772, %v2784
      %v2807 = vadd.f32 %v2773, %v2784
      %v2808 = vadd.f32 %v2774, %v2784
      %v2809 = vadd.f32 %v2775, %v2784
      %v2810 = vadd.f32 %v2776, %v2784
      %v2811 = vadd.f32 %v2777, %v2784
      %v2812 = vadd.f32 %v2778, %v2784
      %v2813 = vadd.f32 %v2779, %v2784
      %v2814 = vadd.f32 %v2780, %v2784
      %v2815 = vadd.f32 %v2781, %v2784
      %v2816 = vadd.f32 %v2782, %v2784
      %v2817 = vmax.f32 %v2785, 0.0
      %v2818 = vmax.f32 %v2786, 0.0
      %v2819 = vmax.f32 %v2787, 0.0
      %v2820 = vmax.f32 %v2788, 0.0
      %v2821 = vmax.f32 %v2789, 0.0
      %v2822 = vmax.f32 %v2790, 0.0
      %v2823 = vmax.f32 %v2791, 0.0
      %v2824 = vmax.f32 %v2792, 0.0
      %v2825 = vmax.f32 %v2793, 0.0
      %v2826 = vmax.f32 %v2794, 0.0
      %v2827 = vmax.f32 %v2795, 0.0
      %v2828 = vmax.f32 %v2796, 0.0
      %v2829 = vmax.f32 %v2797, 0.0
      %v2830 = vmax.f32 %v2798, 0.0
      %v2831 = vmax.f32 %v2799, 0.0
      %v2832 = vmax.f32 %v2800, 0.0
      %v2833 = vmax.f32 %v2801, 0.0
      %v2834 = vmax.f32 %v2802, 0.0
      %v2835 = vmax.f32 %v2803, 0.0
      %v2836 = vmax.f32 %v2804, 0.0
      %v2837 = vmax.f32 %v2805, 0.0
      %v2838 = vmax.f32 %v2806, 0.0
      %v2839 = vmax.f32 %v2807, 0.0
      %v2840 = vmax.f32 %v2808, 0.0
      %v2841 = vmax.f32 %v2809, 0.0
      %v2842 = vmax.f32 %v2810, 0.0
      %v2843 = vmax.f32 %v2811, 0.0
      %v2844 = vmax.f32 %v2812, 0.0
      %v2845 = vmax.f32 %v2813, 0.0
      %v2846 = vmax.f32 %v2814, 0.0
      %v2847 = vmax.f32 %v2815, 0.0
      %v2848 = vmax.f32 %v2816, 0.0
      %v2849 = vld [vmem:[%s6] sm:$0xf]
      %v2850 = vld [vmem:[%s6 + $0x4] sm:$0xf]
      %v2851 = vld [vmem:[%s6 + $0x8] sm:$0xf]
      %v2852 = vld [vmem:[%s6 + $0xc] sm:$0xf]
      %v2853 = vld [vmem:[%s6 + $0x10] sm:$0xf]
      %v2854 = vld [vmem:[%s6 + $0x14] sm:$0xf]
      %v2855 = vld [vmem:[%s6 + $0x18] sm:$0xf]
      %v2856 = vld [vmem:[%s6 + $0x1c] sm:$0xf]
      %v2857 = vld [vmem:[%s6 + $0x20] sm:$0xf]
      %2858 = vst.msk [vmem:[%s463 + $0x1] sm:$0xff] %vm280, %v2817
      %2859 = vst.msk [vmem:[%s463 + $0x9] sm:$0xff] %vm280, %v2818
      %2860 = vst.msk [vmem:[%s463 + $0x19] sm:$0xff] %vm280, %v2819
      %2861 = vst.msk [vmem:[%s463 + $0x21] sm:$0xff] %vm280, %v2820
      %2862 = vst.msk [vmem:[%s463 + $0x31] sm:$0xff] %vm280, %v2821
      %2863 = vst.msk [vmem:[%s463 + $0x39] sm:$0xff] %vm280, %v2822
      %2864 = vst.msk [vmem:[%s463 + $0x49] sm:$0xff] %vm280, %v2823
      %2865 = vst.msk [vmem:[%s463 + $0x51] sm:$0xff] %vm280, %v2824
      %2866 = vst.msk [vmem:[%s463 + $0x61] sm:$0xff] %vm280, %v2825
      %2867 = vst.msk [vmem:[%s463 + $0x69] sm:$0xff] %vm280, %v2826
      %2868 = vst.msk [vmem:[%s463 + $0x79] sm:$0xff] %vm280, %v2827
      %2869 = vst.msk [vmem:[%s463 + $0x81] sm:$0xff] %vm280, %v2828
      %2870 = vst.msk [vmem:[%s463 + $0x91] sm:$0xff] %vm280, %v2829
      %2871 = vst.msk [vmem:[%s463 + $0x99] sm:$0xff] %vm280, %v2830
      %2872 = vst.msk [vmem:[%s463 + $0xa9] sm:$0xff] %vm280, %v2831
      %2873 = vst.msk [vmem:[%s463 + $0xb1] sm:$0xff] %vm280, %v2832
      %2874 = vst.msk [vmem:[%s463 + $0xc1] sm:$0xff] %vm280, %v2833
      %2875 = vst.msk [vmem:[%s463 + $0xc9] sm:$0xff] %vm280, %v2834
      %2876 = vst.msk [vmem:[%s463 + $0xd9] sm:$0xff] %vm280, %v2835
      %2877 = vst.msk [vmem:[%s463 + $0xe1] sm:$0xff] %vm280, %v2836
      %2878 = vst.msk [vmem:[%s463 + $0xf1] sm:$0xff] %vm280, %v2837
      %2879 = vst.msk [vmem:[%s463 + $0xf9] sm:$0xff] %vm280, %v2838
      %2880 = vst.msk [vmem:[%s463 + $0x109] sm:$0xff] %vm280, %v2839
      %2881 = vst.msk [vmem:[%s463 + $0x111] sm:$0xff] %vm280, %v2840
      %2882 = vst.msk [vmem:[%s463 + $0x121] sm:$0xff] %vm280, %v2841
      %2883 = vst.msk [vmem:[%s463 + $0x129] sm:$0xff] %vm280, %v2842
      %2884 = vst.msk [vmem:[%s463 + $0x139] sm:$0xff] %vm280, %v2843
      %2885 = vst.msk [vmem:[%s463 + $0x141] sm:$0xff] %vm280, %v2844
      %2886 = vst.msk [vmem:[%s463 + $0x151] sm:$0xff] %vm280, %v2845
      %2887 = vst.msk [vmem:[%s463 + $0x159] sm:$0xff] %vm280, %v2846
      %2888 = vst.msk [vmem:[%s463 + $0x169] sm:$0xff] %vm280, %v2847
      %2889 = vst.msk [vmem:[%s463 + $0x171] sm:$0xff] %vm280, %v2848
      %v2890 = vld [vmem:[#allocation2] sm:$0xff]
      %v2891 = vld [vmem:[#allocation2 + $0x8] sm:$0xff]
      %v2892 = vld [vmem:[#allocation2 + $0x18] sm:$0xff]
      %v2893 = vld [vmem:[#allocation2 + $0x20] sm:$0xff]
      %v2894 = vld [vmem:[#allocation2 + $0x30] sm:$0xff]
      %v2895 = vld [vmem:[#allocation2 + $0x38] sm:$0xff]
      %v2896 = vld [vmem:[#allocation2 + $0x48] sm:$0xff]
      %v2897 = vld [vmem:[#allocation2 + $0x50] sm:$0xff]
      %v2898 = vld [vmem:[#allocation2 + $0x60] sm:$0xff]
      %v2899 = vld [vmem:[#allocation2 + $0x68] sm:$0xff]
      %v2900 = vld [vmem:[#allocation2 + $0x78] sm:$0xff]
      %v2901 = vld [vmem:[#allocation2 + $0x80] sm:$0xff]
      %v2902 = vld [vmem:[#allocation2 + $0x90] sm:$0xff]
      %v2903 = vld [vmem:[#allocation2 + $0x98] sm:$0xff]
      %v2904 = vld [vmem:[#allocation2 + $0xa8] sm:$0xff]
      %v2905 = vld [vmem:[#allocation2 + $0xb0] sm:$0xff]
      %v2906 = vld [vmem:[#allocation2 + $0xc0] sm:$0xff]
      %v2907 = vld [vmem:[#allocation2 + $0xc8] sm:$0xff]
      %v2908 = vld [vmem:[#allocation2 + $0xd8] sm:$0xff]
      %v2909 = vld [vmem:[#allocation2 + $0xe0] sm:$0xff]
      %v2910 = vld [vmem:[#allocation2 + $0xf0] sm:$0xff]
      %v2911 = vld [vmem:[#allocation2 + $0xf8] sm:$0xff]
      %v2912 = vld [vmem:[#allocation2 + $0x108] sm:$0xff]
      %v2913 = vld [vmem:[#allocation2 + $0x110] sm:$0xff]
      %v2914 = vld [vmem:[#allocation2 + $0x120] sm:$0xff]
      %v2915 = vld [vmem:[#allocation2 + $0x128] sm:$0xff]
      %v2916 = vld [vmem:[#allocation2 + $0x138] sm:$0xff]
      %v2917 = vld [vmem:[#allocation2 + $0x140] sm:$0xff]
      %v2918 = vld [vmem:[#allocation2 + $0x150] sm:$0xff]
      %v2919 = vld [vmem:[#allocation2 + $0x158] sm:$0xff]
      %v2920 = vld [vmem:[#allocation2 + $0x168] sm:$0xff]
      %v2921 = vld [vmem:[#allocation2 + $0x170] sm:$0xff]
      %v2922 = vpack.c.bf16 %v2890, %v2890
      %v2923 = vpack.c.bf16 %v2891, %v2891
      %v2924 = vpack.c.bf16 %v2892, %v2892
      %v2925 = vpack.c.bf16 %v2893, %v2893
      %v2926 = vpack.c.bf16 %v2894, %v2894
      %v2927 = vpack.c.bf16 %v2895, %v2895
      %v2928 = vpack.c.bf16 %v2896, %v2896
      %v2929 = vpack.c.bf16 %v2897, %v2897
      %v2930 = vpack.c.bf16 %v2898, %v2898
      %v2931 = vpack.c.bf16 %v2899, %v2899
      %v2932 = vpack.c.bf16 %v2900, %v2900
      %v2933 = vpack.c.bf16 %v2901, %v2901
      %v2934 = vpack.c.bf16 %v2902, %v2902
      %v2935 = vpack.c.bf16 %v2903, %v2903
      %v2936 = vpack.c.bf16 %v2904, %v2904
      %v2937 = vpack.c.bf16 %v2905, %v2905
      %v2938 = vpack.c.bf16 %v2906, %v2906
      %v2939 = vpack.c.bf16 %v2907, %v2907
      %v2940 = vpack.c.bf16 %v2908, %v2908
      %v2941 = vpack.c.bf16 %v2909, %v2909
      %v2942 = vpack.c.bf16 %v2910, %v2910
      %v2943 = vpack.c.bf16 %v2911, %v2911
      %v2944 = vpack.c.bf16 %v2912, %v2912
      %v2945 = vpack.c.bf16 %v2913, %v2913
      %v2946 = vpack.c.bf16 %v2914, %v2914
      %v2947 = vpack.c.bf16 %v2915, %v2915
      %v2948 = vpack.c.bf16 %v2916, %v2916
      %v2949 = vpack.c.bf16 %v2917, %v2917
      %v2950 = vpack.c.bf16 %v2918, %v2918
      %v2951 = vpack.c.bf16 %v2919, %v2919
      %v2952 = vpack.c.bf16 %v2920, %v2920
      %v2953 = vpack.c.bf16 %v2921, %v2921
      %vm2954 = vcmask 60416
      %2955 = vst.msk [vmem:[#allocation3] sm:$0xf] %vm2954, %v2922
      %2956 = vst.msk [vmem:[#allocation3 + $0x4] sm:$0xf] %vm2954, %v2923
      %2957 = vst.msk [vmem:[#allocation3 + $0x8] sm:$0xf] %vm2954, %v2924
      %2958 = vst.msk [vmem:[#allocation3 + $0xc] sm:$0xf] %vm2954, %v2925
      %2959 = vst.msk [vmem:[#allocation3 + $0x10] sm:$0xf] %vm2954, %v2926
      %2960 = vst.msk [vmem:[#allocation3 + $0x14] sm:$0xf] %vm2954, %v2927
      %2961 = vst.msk [vmem:[#allocation3 + $0x18] sm:$0xf] %vm2954, %v2928
      %2962 = vst.msk [vmem:[#allocation3 + $0x1c] sm:$0xf] %vm2954, %v2929
      %2963 = vst.msk [vmem:[#allocation3 + $0x20] sm:$0xf] %vm2954, %v2930
      %2964 = vst.msk [vmem:[#allocation3 + $0x24] sm:$0xf] %vm2954, %v2931
      %2965 = vst.msk [vmem:[#allocation3 + $0x28] sm:$0xf] %vm2954, %v2932
      %2966 = vst.msk [vmem:[#allocation3 + $0x2c] sm:$0xf] %vm2954, %v2933
      %2967 = vst.msk [vmem:[#allocation3 + $0x30] sm:$0xf] %vm2954, %v2934
      %2968 = vst.msk [vmem:[#allocation3 + $0x34] sm:$0xf] %vm2954, %v2935
      %2969 = vst.msk [vmem:[#allocation3 + $0x38] sm:$0xf] %vm2954, %v2936
      %2970 = vst.msk [vmem:[#allocation3 + $0x3c] sm:$0xf] %vm2954, %v2937
      %2971 = vst.msk [vmem:[#allocation3 + $0x40] sm:$0xf] %vm2954, %v2938
      %2972 = vst.msk [vmem:[#allocation3 + $0x44] sm:$0xf] %vm2954, %v2939
      %2973 = vst.msk [vmem:[#allocation3 + $0x48] sm:$0xf] %vm2954, %v2940
      %2974 = vst.msk [vmem:[#allocation3 + $0x4c] sm:$0xf] %vm2954, %v2941
      %2975 = vst.msk [vmem:[#allocation3 + $0x50] sm:$0xf] %vm2954, %v2942
      %2976 = vst.msk [vmem:[#allocation3 + $0x54] sm:$0xf] %vm2954, %v2943
      %2977 = vst.msk [vmem:[#allocation3 + $0x58] sm:$0xf] %vm2954, %v2944
      %2978 = vst.msk [vmem:[#allocation3 + $0x5c] sm:$0xf] %vm2954, %v2945
      %2979 = vst.msk [vmem:[#allocation3 + $0x60] sm:$0xf] %vm2954, %v2946
      %2980 = vst.msk [vmem:[#allocation3 + $0x64] sm:$0xf] %vm2954, %v2947
      %2981 = vst.msk [vmem:[#allocation3 + $0x68] sm:$0xf] %vm2954, %v2948
      %2982 = vst.msk [vmem:[#allocation3 + $0x6c] sm:$0xf] %vm2954, %v2949
      %2983 = vst.msk [vmem:[#allocation3 + $0x70] sm:$0xf] %vm2954, %v2950
      %2984 = vst.msk [vmem:[#allocation3 + $0x74] sm:$0xf] %vm2954, %v2951
      %2985 = vst.msk [vmem:[#allocation3 + $0x78] sm:$0xf] %vm2954, %v2952
      %2986 = vst.msk [vmem:[#allocation3 + $0x7c] sm:$0xf] %vm2954, %v2953
      %v2987 = vld [vmem:[#allocation2 + $0x1] sm:$0xff]
      %v2988 = vld [vmem:[#allocation2 + $0x9] sm:$0xff]
      %v2989 = vld [vmem:[#allocation2 + $0x19] sm:$0xff]
      %v2990 = vld [vmem:[#allocation2 + $0x21] sm:$0xff]
      %v2991 = vld [vmem:[#allocation2 + $0x31] sm:$0xff]
      %v2992 = vld [vmem:[#allocation2 + $0x39] sm:$0xff]
      %v2993 = vld [vmem:[#allocation2 + $0x49] sm:$0xff]
      %v2994 = vld [vmem:[#allocation2 + $0x51] sm:$0xff]
      %v2995 = vld [vmem:[#allocation2 + $0x61] sm:$0xff]
      %v2996 = vld [vmem:[#allocation2 + $0x69] sm:$0xff]
      %v2997 = vld [vmem:[#allocation2 + $0x79] sm:$0xff]
      %v2998 = vld [vmem:[#allocation2 + $0x81] sm:$0xff]
      %v2999 = vld [vmem:[#allocation2 + $0x91] sm:$0xff]
      %v3000 = vld [vmem:[#allocation2 + $0x99] sm:$0xff]
      %v3001 = vld [vmem:[#allocation2 + $0xa9] sm:$0xff]
      %v3002 = vld [vmem:[#allocation2 + $0xb1] sm:$0xff]
      %v3003 = vld [vmem:[#allocation2 + $0xc1] sm:$0xff]
      %v3004 = vld [vmem:[#allocation2 + $0xc9] sm:$0xff]
      %v3005 = vld [vmem:[#allocation2 + $0xd9] sm:$0xff]
      %v3006 = vld [vmem:[#allocation2 + $0xe1] sm:$0xff]
      %v3007 = vld [vmem:[#allocation2 + $0xf1] sm:$0xff]
      %v3008 = vld [vmem:[#allocation2 + $0xf9] sm:$0xff]
      %v3009 = vld [vmem:[#allocation2 + $0x109] sm:$0xff]
      %v3010 = vld [vmem:[#allocation2 + $0x111] sm:$0xff]
      %v3011 = vld [vmem:[#allocation2 + $0x121] sm:$0xff]
      %v3012 = vld [vmem:[#allocation2 + $0x129] sm:$0xff]
      %v3013 = vld [vmem:[#allocation2 + $0x139] sm:$0xff]
      %v3014 = vld [vmem:[#allocation2 + $0x141] sm:$0xff]
      %v3015 = vld [vmem:[#allocation2 + $0x151] sm:$0xff]
      %v3016 = vld [vmem:[#allocation2 + $0x159] sm:$0xff]
      %v3017 = vld [vmem:[#allocation2 + $0x169] sm:$0xff]
      %v3018 = vld [vmem:[#allocation2 + $0x171] sm:$0xff]
      %v3019 = vpack.c.bf16 %v2987, %v2987
      %v3020 = vpack.c.bf16 %v2988, %v2988
      %v3021 = vpack.c.bf16 %v2989, %v2989
      %v3022 = vpack.c.bf16 %v2990, %v2990
      %v3023 = vpack.c.bf16 %v2991, %v2991
      %v3024 = vpack.c.bf16 %v2992, %v2992
      %v3025 = vpack.c.bf16 %v2993, %v2993
      %v3026 = vpack.c.bf16 %v2994, %v2994
      %v3027 = vpack.c.bf16 %v2995, %v2995
      %v3028 = vpack.c.bf16 %v2996, %v2996
      %v3029 = vpack.c.bf16 %v2997, %v2997
      %v3030 = vpack.c.bf16 %v2998, %v2998
      %v3031 = vpack.c.bf16 %v2999, %v2999
      %v3032 = vpack.c.bf16 %v3000, %v3000
      %v3033 = vpack.c.bf16 %v3001, %v3001
      %v3034 = vpack.c.bf16 %v3002, %v3002
      %v3035 = vpack.c.bf16 %v3003, %v3003
      %v3036 = vpack.c.bf16 %v3004, %v3004
      %v3037 = vpack.c.bf16 %v3005, %v3005
      %v3038 = vpack.c.bf16 %v3006, %v3006
      %v3039 = vpack.c.bf16 %v3007, %v3007
      %v3040 = vpack.c.bf16 %v3008, %v3008
      %v3041 = vpack.c.bf16 %v3009, %v3009
      %v3042 = vpack.c.bf16 %v3010, %v3010
      %v3043 = vpack.c.bf16 %v3011, %v3011
      %v3044 = vpack.c.bf16 %v3012, %v3012
      %v3045 = vpack.c.bf16 %v3013, %v3013
      %v3046 = vpack.c.bf16 %v3014, %v3014
      %v3047 = vpack.c.bf16 %v3015, %v3015
      %v3048 = vpack.c.bf16 %v3016, %v3016
      %v3049 = vpack.c.bf16 %v3017, %v3017
      %v3050 = vpack.c.bf16 %v3018, %v3018
      %3083 = vrot.lane.b32.xlu0 %v3019, 8
      %v3084 = vpop.permute.xlu0 %3083
      %3085 = vrot.lane.b32.xlu0 %v3020, 8
      %v3086 = vpop.permute.xlu0 %3085
      %3087 = vrot.lane.b32.xlu0 %v3021, 8
      %v3088 = vpop.permute.xlu0 %3087
      %3089 = vrot.lane.b32.xlu0 %v3022, 8
      %v3090 = vpop.permute.xlu0 %3089
      %3091 = vrot.lane.b32.xlu0 %v3023, 8
      %v3092 = vpop.permute.xlu0 %3091
      %3093 = vrot.lane.b32.xlu0 %v3024, 8
      %v3094 = vpop.permute.xlu0 %3093
      %3095 = vrot.lane.b32.xlu0 %v3025, 8
      %v3096 = vpop.permute.xlu0 %3095
      %3097 = vrot.lane.b32.xlu0 %v3026, 8
      %v3098 = vpop.permute.xlu0 %3097
      %3099 = vrot.lane.b32.xlu0 %v3027, 8
      %v3100 = vpop.permute.xlu0 %3099
      %3101 = vrot.lane.b32.xlu0 %v3028, 8
      %v3102 = vpop.permute.xlu0 %3101
      %3103 = vrot.lane.b32.xlu0 %v3029, 8
      %v3104 = vpop.permute.xlu0 %3103
      %3105 = vrot.lane.b32.xlu0 %v3030, 8
      %v3106 = vpop.permute.xlu0 %3105
      %3107 = vrot.lane.b32.xlu0 %v3031, 8
      %v3108 = vpop.permute.xlu0 %3107
      %3109 = vrot.lane.b32.xlu0 %v3032, 8
      %v3110 = vpop.permute.xlu0 %3109
      %3111 = vrot.lane.b32.xlu0 %v3033, 8
      %v3112 = vpop.permute.xlu0 %3111
      %3113 = vrot.lane.b32.xlu0 %v3034, 8
      %v3114 = vpop.permute.xlu0 %3113
      %3115 = vrot.lane.b32.xlu0 %v3035, 8
      %v3116 = vpop.permute.xlu0 %3115
      %3117 = vrot.lane.b32.xlu0 %v3036, 8
      %v3118 = vpop.permute.xlu0 %3117
      %3119 = vrot.lane.b32.xlu0 %v3037, 8
      %v3120 = vpop.permute.xlu0 %3119
      %3121 = vrot.lane.b32.xlu0 %v3038, 8
      %v3122 = vpop.permute.xlu0 %3121
      %3123 = vrot.lane.b32.xlu0 %v3039, 8
      %v3124 = vpop.permute.xlu0 %3123
      %3125 = vrot.lane.b32.xlu0 %v3040, 8
      %v3126 = vpop.permute.xlu0 %3125
      %3127 = vrot.lane.b32.xlu0 %v3041, 8
      %v3128 = vpop.permute.xlu0 %3127
      %3129 = vrot.lane.b32.xlu0 %v3042, 8
      %v3130 = vpop.permute.xlu0 %3129
      %3131 = vrot.lane.b32.xlu0 %v3043, 8
      %v3132 = vpop.permute.xlu0 %3131
      %3133 = vrot.lane.b32.xlu0 %v3044, 8
      %v3134 = vpop.permute.xlu0 %3133
      %3135 = vrot.lane.b32.xlu0 %v3045, 8
      %v3136 = vpop.permute.xlu0 %3135
      %3137 = vrot.lane.b32.xlu0 %v3046, 8
      %v3138 = vpop.permute.xlu0 %3137
      %3139 = vrot.lane.b32.xlu0 %v3047, 8
      %v3140 = vpop.permute.xlu0 %3139
      %3141 = vrot.lane.b32.xlu0 %v3048, 8
      %v3142 = vpop.permute.xlu0 %3141
      %3143 = vrot.lane.b32.xlu0 %v3049, 8
      %v3144 = vpop.permute.xlu0 %3143
      %3145 = vrot.lane.b32.xlu0 %v3050, 8
      %v3146 = vpop.permute.xlu0 %3145
      %vm3179 = vcmask 126016
      %3180 = vst.msk [vmem:[#allocation3] sm:$0xf] %vm3179, %v3084
      %3181 = vst.msk [vmem:[#allocation3 + $0x4] sm:$0xf] %vm3179, %v3086
      %3182 = vst.msk [vmem:[#allocation3 + $0x8] sm:$0xf] %vm3179, %v3088
      %3183 = vst.msk [vmem:[#allocation3 + $0xc] sm:$0xf] %vm3179, %v3090
      %3184 = vst.msk [vmem:[#allocation3 + $0x10] sm:$0xf] %vm3179, %v3092
      %3185 = vst.msk [vmem:[#allocation3 + $0x14] sm:$0xf] %vm3179, %v3094
      %3186 = vst.msk [vmem:[#allocation3 + $0x18] sm:$0xf] %vm3179, %v3096
      %3187 = vst.msk [vmem:[#allocation3 + $0x1c] sm:$0xf] %vm3179, %v3098
      %3188 = vst.msk [vmem:[#allocation3 + $0x20] sm:$0xf] %vm3179, %v3100
      %3189 = vst.msk [vmem:[#allocation3 + $0x24] sm:$0xf] %vm3179, %v3102
      %3190 = vst.msk [vmem:[#allocation3 + $0x28] sm:$0xf] %vm3179, %v3104
      %3191 = vst.msk [vmem:[#allocation3 + $0x2c] sm:$0xf] %vm3179, %v3106
      %3192 = vst.msk [vmem:[#allocation3 + $0x30] sm:$0xf] %vm3179, %v3108
      %3193 = vst.msk [vmem:[#allocation3 + $0x34] sm:$0xf] %vm3179, %v3110
      %3194 = vst.msk [vmem:[#allocation3 + $0x38] sm:$0xf] %vm3179, %v3112
      %3195 = vst.msk [vmem:[#allocation3 + $0x3c] sm:$0xf] %vm3179, %v3114
      %3196 = vst.msk [vmem:[#allocation3 + $0x40] sm:$0xf] %vm3179, %v3116
      %3197 = vst.msk [vmem:[#allocation3 + $0x44] sm:$0xf] %vm3179, %v3118
      %3198 = vst.msk [vmem:[#allocation3 + $0x48] sm:$0xf] %vm3179, %v3120
      %3199 = vst.msk [vmem:[#allocation3 + $0x4c] sm:$0xf] %vm3179, %v3122
      %3200 = vst.msk [vmem:[#allocation3 + $0x50] sm:$0xf] %vm3179, %v3124
      %3201 = vst.msk [vmem:[#allocation3 + $0x54] sm:$0xf] %vm3179, %v3126
      %3202 = vst.msk [vmem:[#allocation3 + $0x58] sm:$0xf] %vm3179, %v3128
      %3203 = vst.msk [vmem:[#allocation3 + $0x5c] sm:$0xf] %vm3179, %v3130
      %3204 = vst.msk [vmem:[#allocation3 + $0x60] sm:$0xf] %vm3179, %v3132
      %3205 = vst.msk [vmem:[#allocation3 + $0x64] sm:$0xf] %vm3179, %v3134
      %3206 = vst.msk [vmem:[#allocation3 + $0x68] sm:$0xf] %vm3179, %v3136
      %3207 = vst.msk [vmem:[#allocation3 + $0x6c] sm:$0xf] %vm3179, %v3138
      %3208 = vst.msk [vmem:[#allocation3 + $0x70] sm:$0xf] %vm3179, %v3140
      %3209 = vst.msk [vmem:[#allocation3 + $0x74] sm:$0xf] %vm3179, %v3142
      %3210 = vst.msk [vmem:[#allocation3 + $0x78] sm:$0xf] %vm3179, %v3144
      %3211 = vst.msk [vmem:[#allocation3 + $0x7c] sm:$0xf] %vm3179, %v3146
      %v3212 = vld [vmem:[#allocation2 + $0x2] sm:$0xff]
      %v3213 = vld [vmem:[#allocation2 + $0xa] sm:$0xff]
      %v3214 = vld [vmem:[#allocation2 + $0x1a] sm:$0xff]
      %v3215 = vld [vmem:[#allocation2 + $0x22] sm:$0xff]
      %v3216 = vld [vmem:[#allocation2 + $0x32] sm:$0xff]
      %v3217 = vld [vmem:[#allocation2 + $0x3a] sm:$0xff]
      %v3218 = vld [vmem:[#allocation2 + $0x4a] sm:$0xff]
      %v3219 = vld [vmem:[#allocation2 + $0x52] sm:$0xff]
      %v3220 = vld [vmem:[#allocation2 + $0x62] sm:$0xff]
      %v3221 = vld [vmem:[#allocation2 + $0x6a] sm:$0xff]
      %v3222 = vld [vmem:[#allocation2 + $0x7a] sm:$0xff]
      %v3223 = vld [vmem:[#allocation2 + $0x82] sm:$0xff]
      %v3224 = vld [vmem:[#allocation2 + $0x92] sm:$0xff]
      %v3225 = vld [vmem:[#allocation2 + $0x9a] sm:$0xff]
      %v3226 = vld [vmem:[#allocation2 + $0xaa] sm:$0xff]
      %v3227 = vld [vmem:[#allocation2 + $0xb2] sm:$0xff]
      %v3228 = vld [vmem:[#allocation2 + $0xc2] sm:$0xff]
      %v3229 = vld [vmem:[#allocation2 + $0xca] sm:$0xff]
      %v3230 = vld [vmem:[#allocation2 + $0xda] sm:$0xff]
      %v3231 = vld [vmem:[#allocation2 + $0xe2] sm:$0xff]
      %v3232 = vld [vmem:[#allocation2 + $0xf2] sm:$0xff]
      %v3233 = vld [vmem:[#allocation2 + $0xfa] sm:$0xff]
      %v3234 = vld [vmem:[#allocation2 + $0x10a] sm:$0xff]
      %v3235 = vld [vmem:[#allocation2 + $0x112] sm:$0xff]
      %v3236 = vld [vmem:[#allocation2 + $0x122] sm:$0xff]
      %v3237 = vld [vmem:[#allocation2 + $0x12a] sm:$0xff]
      %v3238 = vld [vmem:[#allocation2 + $0x13a] sm:$0xff]
      %v3239 = vld [vmem:[#allocation2 + $0x142] sm:$0xff]
      %v3240 = vld [vmem:[#allocation2 + $0x152] sm:$0xff]
      %v3241 = vld [vmem:[#allocation2 + $0x15a] sm:$0xff]
      %v3242 = vld [vmem:[#allocation2 + $0x16a] sm:$0xff]
      %v3243 = vld [vmem:[#allocation2 + $0x172] sm:$0xff]
      %v3244 = vpack.c.bf16 %v3212, %v3212
      %v3245 = vpack.c.bf16 %v3213, %v3213
      %v3246 = vpack.c.bf16 %v3214, %v3214
      %v3247 = vpack.c.bf16 %v3215, %v3215
      %v3248 = vpack.c.bf16 %v3216, %v3216
      %v3249 = vpack.c.bf16 %v3217, %v3217
      %v3250 = vpack.c.bf16 %v3218, %v3218
      %v3251 = vpack.c.bf16 %v3219, %v3219
      %v3252 = vpack.c.bf16 %v3220, %v3220
      %v3253 = vpack.c.bf16 %v3221, %v3221
      %v3254 = vpack.c.bf16 %v3222, %v3222
      %v3255 = vpack.c.bf16 %v3223, %v3223
      %v3256 = vpack.c.bf16 %v3224, %v3224
      %v3257 = vpack.c.bf16 %v3225, %v3225
      %v3258 = vpack.c.bf16 %v3226, %v3226
      %v3259 = vpack.c.bf16 %v3227, %v3227
      %v3260 = vpack.c.bf16 %v3228, %v3228
      %v3261 = vpack.c.bf16 %v3229, %v3229
      %v3262 = vpack.c.bf16 %v3230, %v3230
      %v3263 = vpack.c.bf16 %v3231, %v3231
      %v3264 = vpack.c.bf16 %v3232, %v3232
      %v3265 = vpack.c.bf16 %v3233, %v3233
      %v3266 = vpack.c.bf16 %v3234, %v3234
      %v3267 = vpack.c.bf16 %v3235, %v3235
      %v3268 = vpack.c.bf16 %v3236, %v3236
      %v3269 = vpack.c.bf16 %v3237, %v3237
      %v3270 = vpack.c.bf16 %v3238, %v3238
      %v3271 = vpack.c.bf16 %v3239, %v3239
      %v3272 = vpack.c.bf16 %v3240, %v3240
      %v3273 = vpack.c.bf16 %v3241, %v3241
      %v3274 = vpack.c.bf16 %v3242, %v3242
      %v3275 = vpack.c.bf16 %v3243, %v3243
      %3308 = vrot.lane.b32.xlu0 %v3244, 16
      %v3309 = vpop.permute.xlu0 %3308
      %3310 = vrot.lane.b32.xlu0 %v3245, 16
      %v3311 = vpop.permute.xlu0 %3310
      %3312 = vrot.lane.b32.xlu0 %v3246, 16
      %v3313 = vpop.permute.xlu0 %3312
      %3314 = vrot.lane.b32.xlu0 %v3247, 16
      %v3315 = vpop.permute.xlu0 %3314
      %3316 = vrot.lane.b32.xlu0 %v3248, 16
      %v3317 = vpop.permute.xlu0 %3316
      %3318 = vrot.lane.b32.xlu0 %v3249, 16
      %v3319 = vpop.permute.xlu0 %3318
      %3320 = vrot.lane.b32.xlu0 %v3250, 16
      %v3321 = vpop.permute.xlu0 %3320
      %3322 = vrot.lane.b32.xlu0 %v3251, 16
      %v3323 = vpop.permute.xlu0 %3322
      %3324 = vrot.lane.b32.xlu0 %v3252, 16
      %v3325 = vpop.permute.xlu0 %3324
      %3326 = vrot.lane.b32.xlu0 %v3253, 16
      %v3327 = vpop.permute.xlu0 %3326
      %3328 = vrot.lane.b32.xlu0 %v3254, 16
      %v3329 = vpop.permute.xlu0 %3328
      %3330 = vrot.lane.b32.xlu0 %v3255, 16
      %v3331 = vpop.permute.xlu0 %3330
      %3332 = vrot.lane.b32.xlu0 %v3256, 16
      %v3333 = vpop.permute.xlu0 %3332
      %3334 = vrot.lane.b32.xlu0 %v3257, 16
      %v3335 = vpop.permute.xlu0 %3334
      %3336 = vrot.lane.b32.xlu0 %v3258, 16
      %v3337 = vpop.permute.xlu0 %3336
      %3338 = vrot.lane.b32.xlu0 %v3259, 16
      %v3339 = vpop.permute.xlu0 %3338
      %3340 = vrot.lane.b32.xlu0 %v3260, 16
      %v3341 = vpop.permute.xlu0 %3340
      %3342 = vrot.lane.b32.xlu0 %v3261, 16
      %v3343 = vpop.permute.xlu0 %3342
      %3344 = vrot.lane.b32.xlu0 %v3262, 16
      %v3345 = vpop.permute.xlu0 %3344
      %3346 = vrot.lane.b32.xlu0 %v3263, 16
      %v3347 = vpop.permute.xlu0 %3346
      %3348 = vrot.lane.b32.xlu0 %v3264, 16
      %v3349 = vpop.permute.xlu0 %3348
      %3350 = vrot.lane.b32.xlu0 %v3265, 16
      %v3351 = vpop.permute.xlu0 %3350
      %3352 = vrot.lane.b32.xlu0 %v3266, 16
      %v3353 = vpop.permute.xlu0 %3352
      %3354 = vrot.lane.b32.xlu0 %v3267, 16
      %v3355 = vpop.permute.xlu0 %3354
      %3356 = vrot.lane.b32.xlu0 %v3268, 16
      %v3357 = vpop.permute.xlu0 %3356
      %3358 = vrot.lane.b32.xlu0 %v3269, 16
      %v3359 = vpop.permute.xlu0 %3358
      %3360 = vrot.lane.b32.xlu0 %v3270, 16
      %v3361 = vpop.permute.xlu0 %3360
      %3362 = vrot.lane.b32.xlu0 %v3271, 16
      %v3363 = vpop.permute.xlu0 %3362
      %3364 = vrot.lane.b32.xlu0 %v3272, 16
      %v3365 = vpop.permute.xlu0 %3364
      %3366 = vrot.lane.b32.xlu0 %v3273, 16
      %v3367 = vpop.permute.xlu0 %3366
      %3368 = vrot.lane.b32.xlu0 %v3274, 16
      %v3369 = vpop.permute.xlu0 %3368
      %3370 = vrot.lane.b32.xlu0 %v3275, 16
      %v3371 = vpop.permute.xlu0 %3370
      %vm3404 = vcmask 191616
      %3405 = vst.msk [vmem:[#allocation3] sm:$0xf] %vm3404, %v3309
      %3406 = vst.msk [vmem:[#allocation3 + $0x4] sm:$0xf] %vm3404, %v3311
      %3407 = vst.msk [vmem:[#allocation3 + $0x8] sm:$0xf] %vm3404, %v3313
      %3408 = vst.msk [vmem:[#allocation3 + $0xc] sm:$0xf] %vm3404, %v3315
      %3409 = vst.msk [vmem:[#allocation3 + $0x10] sm:$0xf] %vm3404, %v3317
      %3410 = vst.msk [vmem:[#allocation3 + $0x14] sm:$0xf] %vm3404, %v3319
      %3411 = vst.msk [vmem:[#allocation3 + $0x18] sm:$0xf] %vm3404, %v3321
      %3412 = vst.msk [vmem:[#allocation3 + $0x1c] sm:$0xf] %vm3404, %v3323
      %3413 = vst.msk [vmem:[#allocation3 + $0x20] sm:$0xf] %vm3404, %v3325
      %3414 = vst.msk [vmem:[#allocation3 + $0x24] sm:$0xf] %vm3404, %v3327
      %3415 = vst.msk [vmem:[#allocation3 + $0x28] sm:$0xf] %vm3404, %v3329
      %3416 = vst.msk [vmem:[#allocation3 + $0x2c] sm:$0xf] %vm3404, %v3331
      %3417 = vst.msk [vmem:[#allocation3 + $0x30] sm:$0xf] %vm3404, %v3333
      %3418 = vst.msk [vmem:[#allocation3 + $0x34] sm:$0xf] %vm3404, %v3335
      %3419 = vst.msk [vmem:[#allocation3 + $0x38] sm:$0xf] %vm3404, %v3337
      %3420 = vst.msk [vmem:[#allocation3 + $0x3c] sm:$0xf] %vm3404, %v3339
      %3421 = vst.msk [vmem:[#allocation3 + $0x40] sm:$0xf] %vm3404, %v3341
      %3422 = vst.msk [vmem:[#allocation3 + $0x44] sm:$0xf] %vm3404, %v3343
      %3423 = vst.msk [vmem:[#allocation3 + $0x48] sm:$0xf] %vm3404, %v3345
      %3424 = vst.msk [vmem:[#allocation3 + $0x4c] sm:$0xf] %vm3404, %v3347
      %3425 = vst.msk [vmem:[#allocation3 + $0x50] sm:$0xf] %vm3404, %v3349
      %3426 = vst.msk [vmem:[#allocation3 + $0x54] sm:$0xf] %vm3404, %v3351
      %3427 = vst.msk [vmem:[#allocation3 + $0x58] sm:$0xf] %vm3404, %v3353
      %3428 = vst.msk [vmem:[#allocation3 + $0x5c] sm:$0xf] %vm3404, %v3355
      %3429 = vst.msk [vmem:[#allocation3 + $0x60] sm:$0xf] %vm3404, %v3357
      %3430 = vst.msk [vmem:[#allocation3 + $0x64] sm:$0xf] %vm3404, %v3359
      %3431 = vst.msk [vmem:[#allocation3 + $0x68] sm:$0xf] %vm3404, %v3361
      %3432 = vst.msk [vmem:[#allocation3 + $0x6c] sm:$0xf] %vm3404, %v3363
      %3433 = vst.msk [vmem:[#allocation3 + $0x70] sm:$0xf] %vm3404, %v3365
      %3434 = vst.msk [vmem:[#allocation3 + $0x74] sm:$0xf] %vm3404, %v3367
      %3435 = vst.msk [vmem:[#allocation3 + $0x78] sm:$0xf] %vm3404, %v3369
      %3436 = vst.msk [vmem:[#allocation3 + $0x7c] sm:$0xf] %vm3404, %v3371
      %v3437 = vld [vmem:[%s463] sm:$0xff]
      %v3438 = vld [vmem:[%s463 + $0x8] sm:$0xff]
      %v3439 = vld [vmem:[%s463 + $0x18] sm:$0xff]
      %v3440 = vld [vmem:[%s463 + $0x20] sm:$0xff]
      %v3441 = vld [vmem:[%s463 + $0x30] sm:$0xff]
      %v3442 = vld [vmem:[%s463 + $0x38] sm:$0xff]
      %v3443 = vld [vmem:[%s463 + $0x48] sm:$0xff]
      %v3444 = vld [vmem:[%s463 + $0x50] sm:$0xff]
      %v3445 = vld [vmem:[%s463 + $0x60] sm:$0xff]
      %v3446 = vld [vmem:[%s463 + $0x68] sm:$0xff]
      %v3447 = vld [vmem:[%s463 + $0x78] sm:$0xff]
      %v3448 = vld [vmem:[%s463 + $0x80] sm:$0xff]
      %v3449 = vld [vmem:[%s463 + $0x90] sm:$0xff]
      %v3450 = vld [vmem:[%s463 + $0x98] sm:$0xff]
      %v3451 = vld [vmem:[%s463 + $0xa8] sm:$0xff]
      %v3452 = vld [vmem:[%s463 + $0xb0] sm:$0xff]
      %v3453 = vld [vmem:[%s463 + $0xc0] sm:$0xff]
      %v3454 = vld [vmem:[%s463 + $0xc8] sm:$0xff]
      %v3455 = vld [vmem:[%s463 + $0xd8] sm:$0xff]
      %v3456 = vld [vmem:[%s463 + $0xe0] sm:$0xff]
      %v3457 = vld [vmem:[%s463 + $0xf0] sm:$0xff]
      %v3458 = vld [vmem:[%s463 + $0xf8] sm:$0xff]
      %v3459 = vld [vmem:[%s463 + $0x108] sm:$0xff]
      %v3460 = vld [vmem:[%s463 + $0x110] sm:$0xff]
      %v3461 = vld [vmem:[%s463 + $0x120] sm:$0xff]
      %v3462 = vld [vmem:[%s463 + $0x128] sm:$0xff]
      %v3463 = vld [vmem:[%s463 + $0x138] sm:$0xff]
      %v3464 = vld [vmem:[%s463 + $0x140] sm:$0xff]
      %v3465 = vld [vmem:[%s463 + $0x150] sm:$0xff]
      %v3466 = vld [vmem:[%s463 + $0x158] sm:$0xff]
      %v3467 = vld [vmem:[%s463 + $0x168] sm:$0xff]
      %v3468 = vld [vmem:[%s463 + $0x170] sm:$0xff]
      %v3469 = vpack.c.bf16 %v3437, %v3437
      %v3470 = vpack.c.bf16 %v3438, %v3438
      %v3471 = vpack.c.bf16 %v3439, %v3439
      %v3472 = vpack.c.bf16 %v3440, %v3440
      %v3473 = vpack.c.bf16 %v3441, %v3441
      %v3474 = vpack.c.bf16 %v3442, %v3442
      %v3475 = vpack.c.bf16 %v3443, %v3443
      %v3476 = vpack.c.bf16 %v3444, %v3444
      %v3477 = vpack.c.bf16 %v3445, %v3445
      %v3478 = vpack.c.bf16 %v3446, %v3446
      %v3479 = vpack.c.bf16 %v3447, %v3447
      %v3480 = vpack.c.bf16 %v3448, %v3448
      %v3481 = vpack.c.bf16 %v3449, %v3449
      %v3482 = vpack.c.bf16 %v3450, %v3450
      %v3483 = vpack.c.bf16 %v3451, %v3451
      %v3484 = vpack.c.bf16 %v3452, %v3452
      %v3485 = vpack.c.bf16 %v3453, %v3453
      %v3486 = vpack.c.bf16 %v3454, %v3454
      %v3487 = vpack.c.bf16 %v3455, %v3455
      %v3488 = vpack.c.bf16 %v3456, %v3456
      %v3489 = vpack.c.bf16 %v3457, %v3457
      %v3490 = vpack.c.bf16 %v3458, %v3458
      %v3491 = vpack.c.bf16 %v3459, %v3459
      %v3492 = vpack.c.bf16 %v3460, %v3460
      %v3493 = vpack.c.bf16 %v3461, %v3461
      %v3494 = vpack.c.bf16 %v3462, %v3462
      %v3495 = vpack.c.bf16 %v3463, %v3463
      %v3496 = vpack.c.bf16 %v3464, %v3464
      %v3497 = vpack.c.bf16 %v3465, %v3465
      %v3498 = vpack.c.bf16 %v3466, %v3466
      %v3499 = vpack.c.bf16 %v3467, %v3467
      %v3500 = vpack.c.bf16 %v3468, %v3468
      %3533 = vrot.lane.b32.xlu0 %v3469, 24
      %v3534 = vpop.permute.xlu0 %3533
      %3535 = vrot.lane.b32.xlu0 %v3470, 24
      %v3536 = vpop.permute.xlu0 %3535
      %3537 = vrot.lane.b32.xlu0 %v3471, 24
      %v3538 = vpop.permute.xlu0 %3537
      %3539 = vrot.lane.b32.xlu0 %v3472, 24
      %v3540 = vpop.permute.xlu0 %3539
      %3541 = vrot.lane.b32.xlu0 %v3473, 24
      %v3542 = vpop.permute.xlu0 %3541
      %3543 = vrot.lane.b32.xlu0 %v3474, 24
      %v3544 = vpop.permute.xlu0 %3543
      %3545 = vrot.lane.b32.xlu0 %v3475, 24
      %v3546 = vpop.permute.xlu0 %3545
      %3547 = vrot.lane.b32.xlu0 %v3476, 24
      %v3548 = vpop.permute.xlu0 %3547
      %3549 = vrot.lane.b32.xlu0 %v3477, 24
      %v3550 = vpop.permute.xlu0 %3549
      %3551 = vrot.lane.b32.xlu0 %v3478, 24
      %v3552 = vpop.permute.xlu0 %3551
      %3553 = vrot.lane.b32.xlu0 %v3479, 24
      %v3554 = vpop.permute.xlu0 %3553
      %3555 = vrot.lane.b32.xlu0 %v3480, 24
      %v3556 = vpop.permute.xlu0 %3555
      %3557 = vrot.lane.b32.xlu0 %v3481, 24
      %v3558 = vpop.permute.xlu0 %3557
      %3559 = vrot.lane.b32.xlu0 %v3482, 24
      %v3560 = vpop.permute.xlu0 %3559
      %3561 = vrot.lane.b32.xlu0 %v3483, 24
      %v3562 = vpop.permute.xlu0 %3561
      %3563 = vrot.lane.b32.xlu0 %v3484, 24
      %v3564 = vpop.permute.xlu0 %3563
      %3565 = vrot.lane.b32.xlu0 %v3485, 24
      %v3566 = vpop.permute.xlu0 %3565
      %3567 = vrot.lane.b32.xlu0 %v3486, 24
      %v3568 = vpop.permute.xlu0 %3567
      %3569 = vrot.lane.b32.xlu0 %v3487, 24
      %v3570 = vpop.permute.xlu0 %3569
      %3571 = vrot.lane.b32.xlu0 %v3488, 24
      %v3572 = vpop.permute.xlu0 %3571
      %3573 = vrot.lane.b32.xlu0 %v3489, 24
      %v3574 = vpop.permute.xlu0 %3573
      %3575 = vrot.lane.b32.xlu0 %v3490, 24
      %v3576 = vpop.permute.xlu0 %3575
      %3577 = vrot.lane.b32.xlu0 %v3491, 24
      %v3578 = vpop.permute.xlu0 %3577
      %3579 = vrot.lane.b32.xlu0 %v3492, 24
      %v3580 = vpop.permute.xlu0 %3579
      %3581 = vrot.lane.b32.xlu0 %v3493, 24
      %v3582 = vpop.permute.xlu0 %3581
      %3583 = vrot.lane.b32.xlu0 %v3494, 24
      %v3584 = vpop.permute.xlu0 %3583
      %3585 = vrot.lane.b32.xlu0 %v3495, 24
      %v3586 = vpop.permute.xlu0 %3585
      %3587 = vrot.lane.b32.xlu0 %v3496, 24
      %v3588 = vpop.permute.xlu0 %3587
      %3589 = vrot.lane.b32.xlu0 %v3497, 24
      %v3590 = vpop.permute.xlu0 %3589
      %3591 = vrot.lane.b32.xlu0 %v3498, 24
      %v3592 = vpop.permute.xlu0 %3591
      %3593 = vrot.lane.b32.xlu0 %v3499, 24
      %v3594 = vpop.permute.xlu0 %3593
      %3595 = vrot.lane.b32.xlu0 %v3500, 24
      %v3596 = vpop.permute.xlu0 %3595
      %vm3629 = vcmask 257216
      %3630 = vst.msk [vmem:[#allocation3] sm:$0xf] %vm3629, %v3534
      %3631 = vst.msk [vmem:[#allocation3 + $0x4] sm:$0xf] %vm3629, %v3536
      %3632 = vst.msk [vmem:[#allocation3 + $0x8] sm:$0xf] %vm3629, %v3538
      %3633 = vst.msk [vmem:[#allocation3 + $0xc] sm:$0xf] %vm3629, %v3540
      %3634 = vst.msk [vmem:[#allocation3 + $0x10] sm:$0xf] %vm3629, %v3542
      %3635 = vst.msk [vmem:[#allocation3 + $0x14] sm:$0xf] %vm3629, %v3544
      %3636 = vst.msk [vmem:[#allocation3 + $0x18] sm:$0xf] %vm3629, %v3546
      %3637 = vst.msk [vmem:[#allocation3 + $0x1c] sm:$0xf] %vm3629, %v3548
      %3638 = vst.msk [vmem:[#allocation3 + $0x20] sm:$0xf] %vm3629, %v3550
      %3639 = vst.msk [vmem:[#allocation3 + $0x24] sm:$0xf] %vm3629, %v3552
      %3640 = vst.msk [vmem:[#allocation3 + $0x28] sm:$0xf] %vm3629, %v3554
      %3641 = vst.msk [vmem:[#allocation3 + $0x2c] sm:$0xf] %vm3629, %v3556
      %3642 = vst.msk [vmem:[#allocation3 + $0x30] sm:$0xf] %vm3629, %v3558
      %3643 = vst.msk [vmem:[#allocation3 + $0x34] sm:$0xf] %vm3629, %v3560
      %3644 = vst.msk [vmem:[#allocation3 + $0x38] sm:$0xf] %vm3629, %v3562
      %3645 = vst.msk [vmem:[#allocation3 + $0x3c] sm:$0xf] %vm3629, %v3564
      %3646 = vst.msk [vmem:[#allocation3 + $0x40] sm:$0xf] %vm3629, %v3566
      %3647 = vst.msk [vmem:[#allocation3 + $0x44] sm:$0xf] %vm3629, %v3568
      %3648 = vst.msk [vmem:[#allocation3 + $0x48] sm:$0xf] %vm3629, %v3570
      %3649 = vst.msk [vmem:[#allocation3 + $0x4c] sm:$0xf] %vm3629, %v3572
      %3650 = vst.msk [vmem:[#allocation3 + $0x50] sm:$0xf] %vm3629, %v3574
      %3651 = vst.msk [vmem:[#allocation3 + $0x54] sm:$0xf] %vm3629, %v3576
      %3652 = vst.msk [vmem:[#allocation3 + $0x58] sm:$0xf] %vm3629, %v3578
      %3653 = vst.msk [vmem:[#allocation3 + $0x5c] sm:$0xf] %vm3629, %v3580
      %3654 = vst.msk [vmem:[#allocation3 + $0x60] sm:$0xf] %vm3629, %v3582
      %3655 = vst.msk [vmem:[#allocation3 + $0x64] sm:$0xf] %vm3629, %v3584
      %3656 = vst.msk [vmem:[#allocation3 + $0x68] sm:$0xf] %vm3629, %v3586
      %3657 = vst.msk [vmem:[#allocation3 + $0x6c] sm:$0xf] %vm3629, %v3588
      %3658 = vst.msk [vmem:[#allocation3 + $0x70] sm:$0xf] %vm3629, %v3590
      %3659 = vst.msk [vmem:[#allocation3 + $0x74] sm:$0xf] %vm3629, %v3592
      %3660 = vst.msk [vmem:[#allocation3 + $0x78] sm:$0xf] %vm3629, %v3594
      %3661 = vst.msk [vmem:[#allocation3 + $0x7c] sm:$0xf] %vm3629, %v3596
      %v3662 = vld [vmem:[%s463 + $0x1] sm:$0xff]
      %v3663 = vld [vmem:[%s463 + $0x9] sm:$0xff]
      %v3664 = vld [vmem:[%s463 + $0x19] sm:$0xff]
      %v3665 = vld [vmem:[%s463 + $0x21] sm:$0xff]
      %v3666 = vld [vmem:[%s463 + $0x31] sm:$0xff]
      %v3667 = vld [vmem:[%s463 + $0x39] sm:$0xff]
      %v3668 = vld [vmem:[%s463 + $0x49] sm:$0xff]
      %v3669 = vld [vmem:[%s463 + $0x51] sm:$0xff]
      %v3670 = vld [vmem:[%s463 + $0x61] sm:$0xff]
      %v3671 = vld [vmem:[%s463 + $0x69] sm:$0xff]
      %v3672 = vld [vmem:[%s463 + $0x79] sm:$0xff]
      %v3673 = vld [vmem:[%s463 + $0x81] sm:$0xff]
      %v3674 = vld [vmem:[%s463 + $0x91] sm:$0xff]
      %v3675 = vld [vmem:[%s463 + $0x99] sm:$0xff]
      %v3676 = vld [vmem:[%s463 + $0xa9] sm:$0xff]
      %v3677 = vld [vmem:[%s463 + $0xb1] sm:$0xff]
      %v3678 = vld [vmem:[%s463 + $0xc1] sm:$0xff]
      %v3679 = vld [vmem:[%s463 + $0xc9] sm:$0xff]
      %v3680 = vld [vmem:[%s463 + $0xd9] sm:$0xff]
      %v3681 = vld [vmem:[%s463 + $0xe1] sm:$0xff]
      %v3682 = vld [vmem:[%s463 + $0xf1] sm:$0xff]
      %v3683 = vld [vmem:[%s463 + $0xf9] sm:$0xff]
      %v3684 = vld [vmem:[%s463 + $0x109] sm:$0xff]
      %v3685 = vld [vmem:[%s463 + $0x111] sm:$0xff]
      %v3686 = vld [vmem:[%s463 + $0x121] sm:$0xff]
      %v3687 = vld [vmem:[%s463 + $0x129] sm:$0xff]
      %v3688 = vld [vmem:[%s463 + $0x139] sm:$0xff]
      %v3689 = vld [vmem:[%s463 + $0x141] sm:$0xff]
      %v3690 = vld [vmem:[%s463 + $0x151] sm:$0xff]
      %v3691 = vld [vmem:[%s463 + $0x159] sm:$0xff]
      %v3692 = vld [vmem:[%s463 + $0x169] sm:$0xff]
      %v3693 = vld [vmem:[%s463 + $0x171] sm:$0xff]
      %v3694 = vpack.c.bf16 %v3662, %v3662
      %v3695 = vpack.c.bf16 %v3663, %v3663
      %v3696 = vpack.c.bf16 %v3664, %v3664
      %v3697 = vpack.c.bf16 %v3665, %v3665
      %v3698 = vpack.c.bf16 %v3666, %v3666
      %v3699 = vpack.c.bf16 %v3667, %v3667
      %v3700 = vpack.c.bf16 %v3668, %v3668
      %v3701 = vpack.c.bf16 %v3669, %v3669
      %v3702 = vpack.c.bf16 %v3670, %v3670
      %v3703 = vpack.c.bf16 %v3671, %v3671
      %v3704 = vpack.c.bf16 %v3672, %v3672
      %v3705 = vpack.c.bf16 %v3673, %v3673
      %v3706 = vpack.c.bf16 %v3674, %v3674
      %v3707 = vpack.c.bf16 %v3675, %v3675
      %v3708 = vpack.c.bf16 %v3676, %v3676
      %v3709 = vpack.c.bf16 %v3677, %v3677
      %v3710 = vpack.c.bf16 %v3678, %v3678
      %v3711 = vpack.c.bf16 %v3679, %v3679
      %v3712 = vpack.c.bf16 %v3680, %v3680
      %v3713 = vpack.c.bf16 %v3681, %v3681
      %v3714 = vpack.c.bf16 %v3682, %v3682
      %v3715 = vpack.c.bf16 %v3683, %v3683
      %v3716 = vpack.c.bf16 %v3684, %v3684
      %v3717 = vpack.c.bf16 %v3685, %v3685
      %v3718 = vpack.c.bf16 %v3686, %v3686
      %v3719 = vpack.c.bf16 %v3687, %v3687
      %v3720 = vpack.c.bf16 %v3688, %v3688
      %v3721 = vpack.c.bf16 %v3689, %v3689
      %v3722 = vpack.c.bf16 %v3690, %v3690
      %v3723 = vpack.c.bf16 %v3691, %v3691
      %v3724 = vpack.c.bf16 %v3692, %v3692
      %v3725 = vpack.c.bf16 %v3693, %v3693
      %3758 = vrot.lane.b32.xlu0 %v3694, 32
      %v3759 = vpop.permute.xlu0 %3758
      %3760 = vrot.lane.b32.xlu0 %v3695, 32
      %v3761 = vpop.permute.xlu0 %3760
      %3762 = vrot.lane.b32.xlu0 %v3696, 32
      %v3763 = vpop.permute.xlu0 %3762
      %3764 = vrot.lane.b32.xlu0 %v3697, 32
      %v3765 = vpop.permute.xlu0 %3764
      %3766 = vrot.lane.b32.xlu0 %v3698, 32
      %v3767 = vpop.permute.xlu0 %3766
      %3768 = vrot.lane.b32.xlu0 %v3699, 32
      %v3769 = vpop.permute.xlu0 %3768
      %3770 = vrot.lane.b32.xlu0 %v3700, 32
      %v3771 = vpop.permute.xlu0 %3770
      %3772 = vrot.lane.b32.xlu0 %v3701, 32
      %v3773 = vpop.permute.xlu0 %3772
      %3774 = vrot.lane.b32.xlu0 %v3702, 32
      %v3775 = vpop.permute.xlu0 %3774
      %3776 = vrot.lane.b32.xlu0 %v3703, 32
      %v3777 = vpop.permute.xlu0 %3776
      %3778 = vrot.lane.b32.xlu0 %v3704, 32
      %v3779 = vpop.permute.xlu0 %3778
      %3780 = vrot.lane.b32.xlu0 %v3705, 32
      %v3781 = vpop.permute.xlu0 %3780
      %3782 = vrot.lane.b32.xlu0 %v3706, 32
      %v3783 = vpop.permute.xlu0 %3782
      %3784 = vrot.lane.b32.xlu0 %v3707, 32
      %v3785 = vpop.permute.xlu0 %3784
      %3786 = vrot.lane.b32.xlu0 %v3708, 32
      %v3787 = vpop.permute.xlu0 %3786
      %3788 = vrot.lane.b32.xlu0 %v3709, 32
      %v3789 = vpop.permute.xlu0 %3788
      %3790 = vrot.lane.b32.xlu0 %v3710, 32
      %v3791 = vpop.permute.xlu0 %3790
      %3792 = vrot.lane.b32.xlu0 %v3711, 32
      %v3793 = vpop.permute.xlu0 %3792
      %3794 = vrot.lane.b32.xlu0 %v3712, 32
      %v3795 = vpop.permute.xlu0 %3794
      %3796 = vrot.lane.b32.xlu0 %v3713, 32
      %v3797 = vpop.permute.xlu0 %3796
      %3798 = vrot.lane.b32.xlu0 %v3714, 32
      %v3799 = vpop.permute.xlu0 %3798
      %3800 = vrot.lane.b32.xlu0 %v3715, 32
      %v3801 = vpop.permute.xlu0 %3800
      %3802 = vrot.lane.b32.xlu0 %v3716, 32
      %v3803 = vpop.permute.xlu0 %3802
      %3804 = vrot.lane.b32.xlu0 %v3717, 32
      %v3805 = vpop.permute.xlu0 %3804
      %3806 = vrot.lane.b32.xlu0 %v3718, 32
      %v3807 = vpop.permute.xlu0 %3806
      %3808 = vrot.lane.b32.xlu0 %v3719, 32
      %v3809 = vpop.permute.xlu0 %3808
      %3810 = vrot.lane.b32.xlu0 %v3720, 32
      %v3811 = vpop.permute.xlu0 %3810
      %3812 = vrot.lane.b32.xlu0 %v3721, 32
      %v3813 = vpop.permute.xlu0 %3812
      %3814 = vrot.lane.b32.xlu0 %v3722, 32
      %v3815 = vpop.permute.xlu0 %3814
      %3816 = vrot.lane.b32.xlu0 %v3723, 32
      %v3817 = vpop.permute.xlu0 %3816
      %3818 = vrot.lane.b32.xlu0 %v3724, 32
      %v3819 = vpop.permute.xlu0 %3818
      %3820 = vrot.lane.b32.xlu0 %v3725, 32
      %v3821 = vpop.permute.xlu0 %3820
      %vm3854 = vcmask 322816
      %3855 = vst.msk [vmem:[#allocation3] sm:$0xf] %vm3854, %v3759
      %3856 = vst.msk [vmem:[#allocation3 + $0x4] sm:$0xf] %vm3854, %v3761
      %3857 = vst.msk [vmem:[#allocation3 + $0x8] sm:$0xf] %vm3854, %v3763
      %3858 = vst.msk [vmem:[#allocation3 + $0xc] sm:$0xf] %vm3854, %v3765
      %3859 = vst.msk [vmem:[#allocation3 + $0x10] sm:$0xf] %vm3854, %v3767
      %3860 = vst.msk [vmem:[#allocation3 + $0x14] sm:$0xf] %vm3854, %v3769
      %3861 = vst.msk [vmem:[#allocation3 + $0x18] sm:$0xf] %vm3854, %v3771
      %3862 = vst.msk [vmem:[#allocation3 + $0x1c] sm:$0xf] %vm3854, %v3773
      %3863 = vst.msk [vmem:[#allocation3 + $0x20] sm:$0xf] %vm3854, %v3775
      %3864 = vst.msk [vmem:[#allocation3 + $0x24] sm:$0xf] %vm3854, %v3777
      %3865 = vst.msk [vmem:[#allocation3 + $0x28] sm:$0xf] %vm3854, %v3779
      %3866 = vst.msk [vmem:[#allocation3 + $0x2c] sm:$0xf] %vm3854, %v3781
      %3867 = vst.msk [vmem:[#allocation3 + $0x30] sm:$0xf] %vm3854, %v3783
      %3868 = vst.msk [vmem:[#allocation3 + $0x34] sm:$0xf] %vm3854, %v3785
      %3869 = vst.msk [vmem:[#allocation3 + $0x38] sm:$0xf] %vm3854, %v3787
      %3870 = vst.msk [vmem:[#allocation3 + $0x3c] sm:$0xf] %vm3854, %v3789
      %3871 = vst.msk [vmem:[#allocation3 + $0x40] sm:$0xf] %vm3854, %v3791
      %3872 = vst.msk [vmem:[#allocation3 + $0x44] sm:$0xf] %vm3854, %v3793
      %3873 = vst.msk [vmem:[#allocation3 + $0x48] sm:$0xf] %vm3854, %v3795
      %3874 = vst.msk [vmem:[#allocation3 + $0x4c] sm:$0xf] %vm3854, %v3797
      %3875 = vst.msk [vmem:[#allocation3 + $0x50] sm:$0xf] %vm3854, %v3799
      %3876 = vst.msk [vmem:[#allocation3 + $0x54] sm:$0xf] %vm3854, %v3801
      %3877 = vst.msk [vmem:[#allocation3 + $0x58] sm:$0xf] %vm3854, %v3803
      %3878 = vst.msk [vmem:[#allocation3 + $0x5c] sm:$0xf] %vm3854, %v3805
      %3879 = vst.msk [vmem:[#allocation3 + $0x60] sm:$0xf] %vm3854, %v3807
      %3880 = vst.msk [vmem:[#allocation3 + $0x64] sm:$0xf] %vm3854, %v3809
      %3881 = vst.msk [vmem:[#allocation3 + $0x68] sm:$0xf] %vm3854, %v3811
      %3882 = vst.msk [vmem:[#allocation3 + $0x6c] sm:$0xf] %vm3854, %v3813
      %3883 = vst.msk [vmem:[#allocation3 + $0x70] sm:$0xf] %vm3854, %v3815
      %3884 = vst.msk [vmem:[#allocation3 + $0x74] sm:$0xf] %vm3854, %v3817
      %3885 = vst.msk [vmem:[#allocation3 + $0x78] sm:$0xf] %vm3854, %v3819
      %3886 = vst.msk [vmem:[#allocation3 + $0x7c] sm:$0xf] %vm3854, %v3821
      %v3887 = vld [vmem:[%s463 + $0x2] sm:$0xff]
      %v3888 = vld [vmem:[%s463 + $0xa] sm:$0xff]
      %v3889 = vld [vmem:[%s463 + $0x1a] sm:$0xff]
      %v3890 = vld [vmem:[%s463 + $0x22] sm:$0xff]
      %v3891 = vld [vmem:[%s463 + $0x32] sm:$0xff]
      %v3892 = vld [vmem:[%s463 + $0x3a] sm:$0xff]
      %v3893 = vld [vmem:[%s463 + $0x4a] sm:$0xff]
      %v3894 = vld [vmem:[%s463 + $0x52] sm:$0xff]
      %v3895 = vld [vmem:[%s463 + $0x62] sm:$0xff]
      %v3896 = vld [vmem:[%s463 + $0x6a] sm:$0xff]
      %v3897 = vld [vmem:[%s463 + $0x7a] sm:$0xff]
      %v3898 = vld [vmem:[%s463 + $0x82] sm:$0xff]
      %v3899 = vld [vmem:[%s463 + $0x92] sm:$0xff]
      %v3900 = vld [vmem:[%s463 + $0x9a] sm:$0xff]
      %v3901 = vld [vmem:[%s463 + $0xaa] sm:$0xff]
      %v3902 = vld [vmem:[%s463 + $0xb2] sm:$0xff]
      %v3903 = vld [vmem:[%s463 + $0xc2] sm:$0xff]
      %v3904 = vld [vmem:[%s463 + $0xca] sm:$0xff]
      %v3905 = vld [vmem:[%s463 + $0xda] sm:$0xff]
      %v3906 = vld [vmem:[%s463 + $0xe2] sm:$0xff]
      %v3907 = vld [vmem:[%s463 + $0xf2] sm:$0xff]
      %v3908 = vld [vmem:[%s463 + $0xfa] sm:$0xff]
      %v3909 = vld [vmem:[%s463 + $0x10a] sm:$0xff]
      %v3910 = vld [vmem:[%s463 + $0x112] sm:$0xff]
      %v3911 = vld [vmem:[%s463 + $0x122] sm:$0xff]
      %v3912 = vld [vmem:[%s463 + $0x12a] sm:$0xff]
      %v3913 = vld [vmem:[%s463 + $0x13a] sm:$0xff]
      %v3914 = vld [vmem:[%s463 + $0x142] sm:$0xff]
      %v3915 = vld [vmem:[%s463 + $0x152] sm:$0xff]
      %v3916 = vld [vmem:[%s463 + $0x15a] sm:$0xff]
      %v3917 = vld [vmem:[%s463 + $0x16a] sm:$0xff]
      %v3918 = vld [vmem:[%s463 + $0x172] sm:$0xff]
      %v3919 = vpack.c.bf16 %v3887, %v3887
      %v3920 = vpack.c.bf16 %v3888, %v3888
      %v3921 = vpack.c.bf16 %v3889, %v3889
      %v3922 = vpack.c.bf16 %v3890, %v3890
      %v3923 = vpack.c.bf16 %v3891, %v3891
      %v3924 = vpack.c.bf16 %v3892, %v3892
      %v3925 = vpack.c.bf16 %v3893, %v3893
      %v3926 = vpack.c.bf16 %v3894, %v3894
      %v3927 = vpack.c.bf16 %v3895, %v3895
      %v3928 = vpack.c.bf16 %v3896, %v3896
      %v3929 = vpack.c.bf16 %v3897, %v3897
      %v3930 = vpack.c.bf16 %v3898, %v3898
      %v3931 = vpack.c.bf16 %v3899, %v3899
      %v3932 = vpack.c.bf16 %v3900, %v3900
      %v3933 = vpack.c.bf16 %v3901, %v3901
      %v3934 = vpack.c.bf16 %v3902, %v3902
      %v3935 = vpack.c.bf16 %v3903, %v3903
      %v3936 = vpack.c.bf16 %v3904, %v3904
      %v3937 = vpack.c.bf16 %v3905, %v3905
      %v3938 = vpack.c.bf16 %v3906, %v3906
      %v3939 = vpack.c.bf16 %v3907, %v3907
      %v3940 = vpack.c.bf16 %v3908, %v3908
      %v3941 = vpack.c.bf16 %v3909, %v3909
      %v3942 = vpack.c.bf16 %v3910, %v3910
      %v3943 = vpack.c.bf16 %v3911, %v3911
      %v3944 = vpack.c.bf16 %v3912, %v3912
      %v3945 = vpack.c.bf16 %v3913, %v3913
      %v3946 = vpack.c.bf16 %v3914, %v3914
      %v3947 = vpack.c.bf16 %v3915, %v3915
      %v3948 = vpack.c.bf16 %v3916, %v3916
      %v3949 = vpack.c.bf16 %v3917, %v3917
      %v3950 = vpack.c.bf16 %v3918, %v3918
      %3983 = vrot.lane.b32.xlu0 %v3919, 40
      %v3984 = vpop.permute.xlu0 %3983
      %3985 = vrot.lane.b32.xlu0 %v3920, 40
      %v3986 = vpop.permute.xlu0 %3985
      %3987 = vrot.lane.b32.xlu0 %v3921, 40
      %v3988 = vpop.permute.xlu0 %3987
      %3989 = vrot.lane.b32.xlu0 %v3922, 40
      %v3990 = vpop.permute.xlu0 %3989
      %3991 = vrot.lane.b32.xlu0 %v3923, 40
      %v3992 = vpop.permute.xlu0 %3991
      %3993 = vrot.lane.b32.xlu0 %v3924, 40
      %v3994 = vpop.permute.xlu0 %3993
      %3995 = vrot.lane.b32.xlu0 %v3925, 40
      %v3996 = vpop.permute.xlu0 %3995
      %3997 = vrot.lane.b32.xlu0 %v3926, 40
      %v3998 = vpop.permute.xlu0 %3997
      %3999 = vrot.lane.b32.xlu0 %v3927, 40
      %v4000 = vpop.permute.xlu0 %3999
      %4001 = vrot.lane.b32.xlu0 %v3928, 40
      %v4002 = vpop.permute.xlu0 %4001
      %4003 = vrot.lane.b32.xlu0 %v3929, 40
      %v4004 = vpop.permute.xlu0 %4003
      %4005 = vrot.lane.b32.xlu0 %v3930, 40
      %v4006 = vpop.permute.xlu0 %4005
      %4007 = vrot.lane.b32.xlu0 %v3931, 40
      %v4008 = vpop.permute.xlu0 %4007
      %4009 = vrot.lane.b32.xlu0 %v3932, 40
      %v4010 = vpop.permute.xlu0 %4009
      %4011 = vrot.lane.b32.xlu0 %v3933, 40
      %v4012 = vpop.permute.xlu0 %4011
      %4013 = vrot.lane.b32.xlu0 %v3934, 40
      %v4014 = vpop.permute.xlu0 %4013
      %4015 = vrot.lane.b32.xlu0 %v3935, 40
      %v4016 = vpop.permute.xlu0 %4015
      %4017 = vrot.lane.b32.xlu0 %v3936, 40
      %v4018 = vpop.permute.xlu0 %4017
      %4019 = vrot.lane.b32.xlu0 %v3937, 40
      %v4020 = vpop.permute.xlu0 %4019
      %4021 = vrot.lane.b32.xlu0 %v3938, 40
      %v4022 = vpop.permute.xlu0 %4021
      %4023 = vrot.lane.b32.xlu0 %v3939, 40
      %v4024 = vpop.permute.xlu0 %4023
      %4025 = vrot.lane.b32.xlu0 %v3940, 40
      %v4026 = vpop.permute.xlu0 %4025
      %4027 = vrot.lane.b32.xlu0 %v3941, 40
      %v4028 = vpop.permute.xlu0 %4027
      %4029 = vrot.lane.b32.xlu0 %v3942, 40
      %v4030 = vpop.permute.xlu0 %4029
      %4031 = vrot.lane.b32.xlu0 %v3943, 40
      %v4032 = vpop.permute.xlu0 %4031
      %4033 = vrot.lane.b32.xlu0 %v3944, 40
      %v4034 = vpop.permute.xlu0 %4033
      %4035 = vrot.lane.b32.xlu0 %v3945, 40
      %v4036 = vpop.permute.xlu0 %4035
      %4037 = vrot.lane.b32.xlu0 %v3946, 40
      %v4038 = vpop.permute.xlu0 %4037
      %4039 = vrot.lane.b32.xlu0 %v3947, 40
      %v4040 = vpop.permute.xlu0 %4039
      %4041 = vrot.lane.b32.xlu0 %v3948, 40
      %v4042 = vpop.permute.xlu0 %4041
      %4043 = vrot.lane.b32.xlu0 %v3949, 40
      %v4044 = vpop.permute.xlu0 %4043
      %4045 = vrot.lane.b32.xlu0 %v3950, 40
      %v4046 = vpop.permute.xlu0 %4045
      %vm4079 = vcmask 388416
      %4080 = vst.msk [vmem:[#allocation3] sm:$0xf] %vm4079, %v3984
      %4081 = vst.msk [vmem:[#allocation3 + $0x4] sm:$0xf] %vm4079, %v3986
      %4082 = vst.msk [vmem:[#allocation3 + $0x8] sm:$0xf] %vm4079, %v3988
      %4083 = vst.msk [vmem:[#allocation3 + $0xc] sm:$0xf] %vm4079, %v3990
      %4084 = vst.msk [vmem:[#allocation3 + $0x10] sm:$0xf] %vm4079, %v3992
      %4085 = vst.msk [vmem:[#allocation3 + $0x14] sm:$0xf] %vm4079, %v3994
      %4086 = vst.msk [vmem:[#allocation3 + $0x18] sm:$0xf] %vm4079, %v3996
      %4087 = vst.msk [vmem:[#allocation3 + $0x1c] sm:$0xf] %vm4079, %v3998
      %4088 = vst.msk [vmem:[#allocation3 + $0x20] sm:$0xf] %vm4079, %v4000
      %4089 = vst.msk [vmem:[#allocation3 + $0x24] sm:$0xf] %vm4079, %v4002
      %4090 = vst.msk [vmem:[#allocation3 + $0x28] sm:$0xf] %vm4079, %v4004
      %4091 = vst.msk [vmem:[#allocation3 + $0x2c] sm:$0xf] %vm4079, %v4006
      %4092 = vst.msk [vmem:[#allocation3 + $0x30] sm:$0xf] %vm4079, %v4008
      %4093 = vst.msk [vmem:[#allocation3 + $0x34] sm:$0xf] %vm4079, %v4010
      %4094 = vst.msk [vmem:[#allocation3 + $0x38] sm:$0xf] %vm4079, %v4012
      %4095 = vst.msk [vmem:[#allocation3 + $0x3c] sm:$0xf] %vm4079, %v4014
      %4096 = vst.msk [vmem:[#allocation3 + $0x40] sm:$0xf] %vm4079, %v4016
      %4097 = vst.msk [vmem:[#allocation3 + $0x44] sm:$0xf] %vm4079, %v4018
      %4098 = vst.msk [vmem:[#allocation3 + $0x48] sm:$0xf] %vm4079, %v4020
      %4099 = vst.msk [vmem:[#allocation3 + $0x4c] sm:$0xf] %vm4079, %v4022
      %4100 = vst.msk [vmem:[#allocation3 + $0x50] sm:$0xf] %vm4079, %v4024
      %4101 = vst.msk [vmem:[#allocation3 + $0x54] sm:$0xf] %vm4079, %v4026
      %4102 = vst.msk [vmem:[#allocation3 + $0x58] sm:$0xf] %vm4079, %v4028
      %4103 = vst.msk [vmem:[#allocation3 + $0x5c] sm:$0xf] %vm4079, %v4030
      %4104 = vst.msk [vmem:[#allocation3 + $0x60] sm:$0xf] %vm4079, %v4032
      %4105 = vst.msk [vmem:[#allocation3 + $0x64] sm:$0xf] %vm4079, %v4034
      %4106 = vst.msk [vmem:[#allocation3 + $0x68] sm:$0xf] %vm4079, %v4036
      %4107 = vst.msk [vmem:[#allocation3 + $0x6c] sm:$0xf] %vm4079, %v4038
      %4108 = vst.msk [vmem:[#allocation3 + $0x70] sm:$0xf] %vm4079, %v4040
      %4109 = vst.msk [vmem:[#allocation3 + $0x74] sm:$0xf] %vm4079, %v4042
      %4110 = vst.msk [vmem:[#allocation3 + $0x78] sm:$0xf] %vm4079, %v4044
      %4111 = vst.msk [vmem:[#allocation3 + $0x7c] sm:$0xf] %vm4079, %v4046
      %v4112 = vld [vmem:[%s1719] sm:$0xff]
      %v4113 = vld [vmem:[%s1719 + $0x8] sm:$0xff]
      %v4114 = vld [vmem:[%s1719 + $0x18] sm:$0xff]
      %v4115 = vld [vmem:[%s1719 + $0x20] sm:$0xff]
      %v4116 = vld [vmem:[%s1719 + $0x30] sm:$0xff]
      %v4117 = vld [vmem:[%s1719 + $0x38] sm:$0xff]
      %v4118 = vld [vmem:[%s1719 + $0x48] sm:$0xff]
      %v4119 = vld [vmem:[%s1719 + $0x50] sm:$0xff]
      %v4120 = vld [vmem:[%s1719 + $0x60] sm:$0xff]
      %v4121 = vld [vmem:[%s1719 + $0x68] sm:$0xff]
      %v4122 = vld [vmem:[%s1719 + $0x78] sm:$0xff]
      %v4123 = vld [vmem:[%s1719 + $0x80] sm:$0xff]
      %v4124 = vld [vmem:[%s1719 + $0x90] sm:$0xff]
      %v4125 = vld [vmem:[%s1719 + $0x98] sm:$0xff]
      %v4126 = vld [vmem:[%s1719 + $0xa8] sm:$0xff]
      %v4127 = vld [vmem:[%s1719 + $0xb0] sm:$0xff]
      %v4128 = vld [vmem:[%s1719 + $0xc0] sm:$0xff]
      %v4129 = vld [vmem:[%s1719 + $0xc8] sm:$0xff]
      %v4130 = vld [vmem:[%s1719 + $0xd8] sm:$0xff]
      %v4131 = vld [vmem:[%s1719 + $0xe0] sm:$0xff]
      %v4132 = vld [vmem:[%s1719 + $0xf0] sm:$0xff]
      %v4133 = vld [vmem:[%s1719 + $0xf8] sm:$0xff]
      %v4134 = vld [vmem:[%s1719 + $0x108] sm:$0xff]
      %v4135 = vld [vmem:[%s1719 + $0x110] sm:$0xff]
      %v4136 = vld [vmem:[%s1719 + $0x120] sm:$0xff]
      %v4137 = vld [vmem:[%s1719 + $0x128] sm:$0xff]
      %v4138 = vld [vmem:[%s1719 + $0x138] sm:$0xff]
      %v4139 = vld [vmem:[%s1719 + $0x140] sm:$0xff]
      %v4140 = vld [vmem:[%s1719 + $0x150] sm:$0xff]
      %v4141 = vld [vmem:[%s1719 + $0x158] sm:$0xff]
      %v4142 = vld [vmem:[%s1719 + $0x168] sm:$0xff]
      %v4143 = vld [vmem:[%s1719 + $0x170] sm:$0xff]
      %v4144 = vpack.c.bf16 %v4112, %v4112
      %v4145 = vpack.c.bf16 %v4113, %v4113
      %v4146 = vpack.c.bf16 %v4114, %v4114
      %v4147 = vpack.c.bf16 %v4115, %v4115
      %v4148 = vpack.c.bf16 %v4116, %v4116
      %v4149 = vpack.c.bf16 %v4117, %v4117
      %v4150 = vpack.c.bf16 %v4118, %v4118
      %v4151 = vpack.c.bf16 %v4119, %v4119
      %v4152 = vpack.c.bf16 %v4120, %v4120
      %v4153 = vpack.c.bf16 %v4121, %v4121
      %v4154 = vpack.c.bf16 %v4122, %v4122
      %v4155 = vpack.c.bf16 %v4123, %v4123
      %v4156 = vpack.c.bf16 %v4124, %v4124
      %v4157 = vpack.c.bf16 %v4125, %v4125
      %v4158 = vpack.c.bf16 %v4126, %v4126
      %v4159 = vpack.c.bf16 %v4127, %v4127
      %v4160 = vpack.c.bf16 %v4128, %v4128
      %v4161 = vpack.c.bf16 %v4129, %v4129
      %v4162 = vpack.c.bf16 %v4130, %v4130
      %v4163 = vpack.c.bf16 %v4131, %v4131
      %v4164 = vpack.c.bf16 %v4132, %v4132
      %v4165 = vpack.c.bf16 %v4133, %v4133
      %v4166 = vpack.c.bf16 %v4134, %v4134
      %v4167 = vpack.c.bf16 %v4135, %v4135
      %v4168 = vpack.c.bf16 %v4136, %v4136
      %v4169 = vpack.c.bf16 %v4137, %v4137
      %v4170 = vpack.c.bf16 %v4138, %v4138
      %v4171 = vpack.c.bf16 %v4139, %v4139
      %v4172 = vpack.c.bf16 %v4140, %v4140
      %v4173 = vpack.c.bf16 %v4141, %v4141
      %v4174 = vpack.c.bf16 %v4142, %v4142
      %v4175 = vpack.c.bf16 %v4143, %v4143
      %4208 = vrot.lane.b32.xlu0 %v4144, 48
      %v4209 = vpop.permute.xlu0 %4208
      %4210 = vrot.lane.b32.xlu0 %v4145, 48
      %v4211 = vpop.permute.xlu0 %4210
      %4212 = vrot.lane.b32.xlu0 %v4146, 48
      %v4213 = vpop.permute.xlu0 %4212
      %4214 = vrot.lane.b32.xlu0 %v4147, 48
      %v4215 = vpop.permute.xlu0 %4214
      %4216 = vrot.lane.b32.xlu0 %v4148, 48
      %v4217 = vpop.permute.xlu0 %4216
      %4218 = vrot.lane.b32.xlu0 %v4149, 48
      %v4219 = vpop.permute.xlu0 %4218
      %4220 = vrot.lane.b32.xlu0 %v4150, 48
      %v4221 = vpop.permute.xlu0 %4220
      %4222 = vrot.lane.b32.xlu0 %v4151, 48
      %v4223 = vpop.permute.xlu0 %4222
      %4224 = vrot.lane.b32.xlu0 %v4152, 48
      %v4225 = vpop.permute.xlu0 %4224
      %4226 = vrot.lane.b32.xlu0 %v4153, 48
      %v4227 = vpop.permute.xlu0 %4226
      %4228 = vrot.lane.b32.xlu0 %v4154, 48
      %v4229 = vpop.permute.xlu0 %4228
      %4230 = vrot.lane.b32.xlu0 %v4155, 48
      %v4231 = vpop.permute.xlu0 %4230
      %4232 = vrot.lane.b32.xlu0 %v4156, 48
      %v4233 = vpop.permute.xlu0 %4232
      %4234 = vrot.lane.b32.xlu0 %v4157, 48
      %v4235 = vpop.permute.xlu0 %4234
      %4236 = vrot.lane.b32.xlu0 %v4158, 48
      %v4237 = vpop.permute.xlu0 %4236
      %4238 = vrot.lane.b32.xlu0 %v4159, 48
      %v4239 = vpop.permute.xlu0 %4238
      %4240 = vrot.lane.b32.xlu0 %v4160, 48
      %v4241 = vpop.permute.xlu0 %4240
      %4242 = vrot.lane.b32.xlu0 %v4161, 48
      %v4243 = vpop.permute.xlu0 %4242
      %4244 = vrot.lane.b32.xlu0 %v4162, 48
      %v4245 = vpop.permute.xlu0 %4244
      %4246 = vrot.lane.b32.xlu0 %v4163, 48
      %v4247 = vpop.permute.xlu0 %4246
      %4248 = vrot.lane.b32.xlu0 %v4164, 48
      %v4249 = vpop.permute.xlu0 %4248
      %4250 = vrot.lane.b32.xlu0 %v4165, 48
      %v4251 = vpop.permute.xlu0 %4250
      %4252 = vrot.lane.b32.xlu0 %v4166, 48
      %v4253 = vpop.permute.xlu0 %4252
      %4254 = vrot.lane.b32.xlu0 %v4167, 48
      %v4255 = vpop.permute.xlu0 %4254
      %4256 = vrot.lane.b32.xlu0 %v4168, 48
      %v4257 = vpop.permute.xlu0 %4256
      %4258 = vrot.lane.b32.xlu0 %v4169, 48
      %v4259 = vpop.permute.xlu0 %4258
      %4260 = vrot.lane.b32.xlu0 %v4170, 48
      %v4261 = vpop.permute.xlu0 %4260
      %4262 = vrot.lane.b32.xlu0 %v4171, 48
      %v4263 = vpop.permute.xlu0 %4262
      %4264 = vrot.lane.b32.xlu0 %v4172, 48
      %v4265 = vpop.permute.xlu0 %4264
      %4266 = vrot.lane.b32.xlu0 %v4173, 48
      %v4267 = vpop.permute.xlu0 %4266
      %4268 = vrot.lane.b32.xlu0 %v4174, 48
      %v4269 = vpop.permute.xlu0 %4268
      %4270 = vrot.lane.b32.xlu0 %v4175, 48
      %v4271 = vpop.permute.xlu0 %4270
      %vm4304 = vcmask 454016
      %4305 = vst.msk [vmem:[#allocation3] sm:$0xf] %vm4304, %v4209
      %4306 = vst.msk [vmem:[#allocation3 + $0x4] sm:$0xf] %vm4304, %v4211
      %4307 = vst.msk [vmem:[#allocation3 + $0x8] sm:$0xf] %vm4304, %v4213
      %4308 = vst.msk [vmem:[#allocation3 + $0xc] sm:$0xf] %vm4304, %v4215
      %4309 = vst.msk [vmem:[#allocation3 + $0x10] sm:$0xf] %vm4304, %v4217
      %4310 = vst.msk [vmem:[#allocation3 + $0x14] sm:$0xf] %vm4304, %v4219
      %4311 = vst.msk [vmem:[#allocation3 + $0x18] sm:$0xf] %vm4304, %v4221
      %4312 = vst.msk [vmem:[#allocation3 + $0x1c] sm:$0xf] %vm4304, %v4223
      %4313 = vst.msk [vmem:[#allocation3 + $0x20] sm:$0xf] %vm4304, %v4225
      %4314 = vst.msk [vmem:[#allocation3 + $0x24] sm:$0xf] %vm4304, %v4227
      %4315 = vst.msk [vmem:[#allocation3 + $0x28] sm:$0xf] %vm4304, %v4229
      %4316 = vst.msk [vmem:[#allocation3 + $0x2c] sm:$0xf] %vm4304, %v4231
      %4317 = vst.msk [vmem:[#allocation3 + $0x30] sm:$0xf] %vm4304, %v4233
      %4318 = vst.msk [vmem:[#allocation3 + $0x34] sm:$0xf] %vm4304, %v4235
      %4319 = vst.msk [vmem:[#allocation3 + $0x38] sm:$0xf] %vm4304, %v4237
      %4320 = vst.msk [vmem:[#allocation3 + $0x3c] sm:$0xf] %vm4304, %v4239
      %4321 = vst.msk [vmem:[#allocation3 + $0x40] sm:$0xf] %vm4304, %v4241
      %4322 = vst.msk [vmem:[#allocation3 + $0x44] sm:$0xf] %vm4304, %v4243
      %4323 = vst.msk [vmem:[#allocation3 + $0x48] sm:$0xf] %vm4304, %v4245
      %4324 = vst.msk [vmem:[#allocation3 + $0x4c] sm:$0xf] %vm4304, %v4247
      %4325 = vst.msk [vmem:[#allocation3 + $0x50] sm:$0xf] %vm4304, %v4249
      %4326 = vst.msk [vmem:[#allocation3 + $0x54] sm:$0xf] %vm4304, %v4251
      %4327 = vst.msk [vmem:[#allocation3 + $0x58] sm:$0xf] %vm4304, %v4253
      %4328 = vst.msk [vmem:[#allocation3 + $0x5c] sm:$0xf] %vm4304, %v4255
      %4329 = vst.msk [vmem:[#allocation3 + $0x60] sm:$0xf] %vm4304, %v4257
      %4330 = vst.msk [vmem:[#allocation3 + $0x64] sm:$0xf] %vm4304, %v4259
      %4331 = vst.msk [vmem:[#allocation3 + $0x68] sm:$0xf] %vm4304, %v4261
      %4332 = vst.msk [vmem:[#allocation3 + $0x6c] sm:$0xf] %vm4304, %v4263
      %4333 = vst.msk [vmem:[#allocation3 + $0x70] sm:$0xf] %vm4304, %v4265
      %4334 = vst.msk [vmem:[#allocation3 + $0x74] sm:$0xf] %vm4304, %v4267
      %4335 = vst.msk [vmem:[#allocation3 + $0x78] sm:$0xf] %vm4304, %v4269
      %4336 = vst.msk [vmem:[#allocation3 + $0x7c] sm:$0xf] %vm4304, %v4271
      %v4337 = vld [vmem:[%s1719 + $0x1] sm:$0xff]
      %v4338 = vld [vmem:[%s1719 + $0x9] sm:$0xff]
      %v4339 = vld [vmem:[%s1719 + $0x19] sm:$0xff]
      %v4340 = vld [vmem:[%s1719 + $0x21] sm:$0xff]
      %v4341 = vld [vmem:[%s1719 + $0x31] sm:$0xff]
      %v4342 = vld [vmem:[%s1719 + $0x39] sm:$0xff]
      %v4343 = vld [vmem:[%s1719 + $0x49] sm:$0xff]
      %v4344 = vld [vmem:[%s1719 + $0x51] sm:$0xff]
      %v4345 = vld [vmem:[%s1719 + $0x61] sm:$0xff]
      %v4346 = vld [vmem:[%s1719 + $0x69] sm:$0xff]
      %v4347 = vld [vmem:[%s1719 + $0x79] sm:$0xff]
      %v4348 = vld [vmem:[%s1719 + $0x81] sm:$0xff]
      %v4349 = vld [vmem:[%s1719 + $0x91] sm:$0xff]
      %v4350 = vld [vmem:[%s1719 + $0x99] sm:$0xff]
      %v4351 = vld [vmem:[%s1719 + $0xa9] sm:$0xff]
      %v4352 = vld [vmem:[%s1719 + $0xb1] sm:$0xff]
      %v4353 = vld [vmem:[%s1719 + $0xc1] sm:$0xff]
      %v4354 = vld [vmem:[%s1719 + $0xc9] sm:$0xff]
      %v4355 = vld [vmem:[%s1719 + $0xd9] sm:$0xff]
      %v4356 = vld [vmem:[%s1719 + $0xe1] sm:$0xff]
      %v4357 = vld [vmem:[%s1719 + $0xf1] sm:$0xff]
      %v4358 = vld [vmem:[%s1719 + $0xf9] sm:$0xff]
      %v4359 = vld [vmem:[%s1719 + $0x109] sm:$0xff]
      %v4360 = vld [vmem:[%s1719 + $0x111] sm:$0xff]
      %v4361 = vld [vmem:[%s1719 + $0x121] sm:$0xff]
      %v4362 = vld [vmem:[%s1719 + $0x129] sm:$0xff]
      %v4363 = vld [vmem:[%s1719 + $0x139] sm:$0xff]
      %v4364 = vld [vmem:[%s1719 + $0x141] sm:$0xff]
      %v4365 = vld [vmem:[%s1719 + $0x151] sm:$0xff]
      %v4366 = vld [vmem:[%s1719 + $0x159] sm:$0xff]
      %v4367 = vld [vmem:[%s1719 + $0x169] sm:$0xff]
      %v4368 = vld [vmem:[%s1719 + $0x171] sm:$0xff]
      %v4369 = vpack.c.bf16 %v4337, %v4337
      %v4370 = vpack.c.bf16 %v4338, %v4338
      %v4371 = vpack.c.bf16 %v4339, %v4339
      %v4372 = vpack.c.bf16 %v4340, %v4340
      %v4373 = vpack.c.bf16 %v4341, %v4341
      %v4374 = vpack.c.bf16 %v4342, %v4342
      %v4375 = vpack.c.bf16 %v4343, %v4343
      %v4376 = vpack.c.bf16 %v4344, %v4344
      %v4377 = vpack.c.bf16 %v4345, %v4345
      %v4378 = vpack.c.bf16 %v4346, %v4346
      %v4379 = vpack.c.bf16 %v4347, %v4347
      %v4380 = vpack.c.bf16 %v4348, %v4348
      %v4381 = vpack.c.bf16 %v4349, %v4349
      %v4382 = vpack.c.bf16 %v4350, %v4350
      %v4383 = vpack.c.bf16 %v4351, %v4351
      %v4384 = vpack.c.bf16 %v4352, %v4352
      %v4385 = vpack.c.bf16 %v4353, %v4353
      %v4386 = vpack.c.bf16 %v4354, %v4354
      %v4387 = vpack.c.bf16 %v4355, %v4355
      %v4388 = vpack.c.bf16 %v4356, %v4356
      %v4389 = vpack.c.bf16 %v4357, %v4357
      %v4390 = vpack.c.bf16 %v4358, %v4358
      %v4391 = vpack.c.bf16 %v4359, %v4359
      %v4392 = vpack.c.bf16 %v4360, %v4360
      %v4393 = vpack.c.bf16 %v4361, %v4361
      %v4394 = vpack.c.bf16 %v4362, %v4362
      %v4395 = vpack.c.bf16 %v4363, %v4363
      %v4396 = vpack.c.bf16 %v4364, %v4364
      %v4397 = vpack.c.bf16 %v4365, %v4365
      %v4398 = vpack.c.bf16 %v4366, %v4366
      %v4399 = vpack.c.bf16 %v4367, %v4367
      %v4400 = vpack.c.bf16 %v4368, %v4368
      %4433 = vrot.lane.b32.xlu0 %v4369, 56
      %v4434 = vpop.permute.xlu0 %4433
      %4435 = vrot.lane.b32.xlu0 %v4370, 56
      %v4436 = vpop.permute.xlu0 %4435
      %4437 = vrot.lane.b32.xlu0 %v4371, 56
      %v4438 = vpop.permute.xlu0 %4437
      %4439 = vrot.lane.b32.xlu0 %v4372, 56
      %v4440 = vpop.permute.xlu0 %4439
      %4441 = vrot.lane.b32.xlu0 %v4373, 56
      %v4442 = vpop.permute.xlu0 %4441
      %4443 = vrot.lane.b32.xlu0 %v4374, 56
      %v4444 = vpop.permute.xlu0 %4443
      %4445 = vrot.lane.b32.xlu0 %v4375, 56
      %v4446 = vpop.permute.xlu0 %4445
      %4447 = vrot.lane.b32.xlu0 %v4376, 56
      %v4448 = vpop.permute.xlu0 %4447
      %4449 = vrot.lane.b32.xlu0 %v4377, 56
      %v4450 = vpop.permute.xlu0 %4449
      %4451 = vrot.lane.b32.xlu0 %v4378, 56
      %v4452 = vpop.permute.xlu0 %4451
      %4453 = vrot.lane.b32.xlu0 %v4379, 56
      %v4454 = vpop.permute.xlu0 %4453
      %4455 = vrot.lane.b32.xlu0 %v4380, 56
      %v4456 = vpop.permute.xlu0 %4455
      %4457 = vrot.lane.b32.xlu0 %v4381, 56
      %v4458 = vpop.permute.xlu0 %4457
      %4459 = vrot.lane.b32.xlu0 %v4382, 56
      %v4460 = vpop.permute.xlu0 %4459
      %4461 = vrot.lane.b32.xlu0 %v4383, 56
      %v4462 = vpop.permute.xlu0 %4461
      %4463 = vrot.lane.b32.xlu0 %v4384, 56
      %v4464 = vpop.permute.xlu0 %4463
      %4465 = vrot.lane.b32.xlu0 %v4385, 56
      %v4466 = vpop.permute.xlu0 %4465
      %4467 = vrot.lane.b32.xlu0 %v4386, 56
      %v4468 = vpop.permute.xlu0 %4467
      %4469 = vrot.lane.b32.xlu0 %v4387, 56
      %v4470 = vpop.permute.xlu0 %4469
      %4471 = vrot.lane.b32.xlu0 %v4388, 56
      %v4472 = vpop.permute.xlu0 %4471
      %4473 = vrot.lane.b32.xlu0 %v4389, 56
      %v4474 = vpop.permute.xlu0 %4473
      %4475 = vrot.lane.b32.xlu0 %v4390, 56
      %v4476 = vpop.permute.xlu0 %4475
      %4477 = vrot.lane.b32.xlu0 %v4391, 56
      %v4478 = vpop.permute.xlu0 %4477
      %4479 = vrot.lane.b32.xlu0 %v4392, 56
      %v4480 = vpop.permute.xlu0 %4479
      %4481 = vrot.lane.b32.xlu0 %v4393, 56
      %v4482 = vpop.permute.xlu0 %4481
      %4483 = vrot.lane.b32.xlu0 %v4394, 56
      %v4484 = vpop.permute.xlu0 %4483
      %4485 = vrot.lane.b32.xlu0 %v4395, 56
      %v4486 = vpop.permute.xlu0 %4485
      %4487 = vrot.lane.b32.xlu0 %v4396, 56
      %v4488 = vpop.permute.xlu0 %4487
      %4489 = vrot.lane.b32.xlu0 %v4397, 56
      %v4490 = vpop.permute.xlu0 %4489
      %4491 = vrot.lane.b32.xlu0 %v4398, 56
      %v4492 = vpop.permute.xlu0 %4491
      %4493 = vrot.lane.b32.xlu0 %v4399, 56
      %v4494 = vpop.permute.xlu0 %4493
      %4495 = vrot.lane.b32.xlu0 %v4400, 56
      %v4496 = vpop.permute.xlu0 %4495
      %vm4529 = vcmask 519616
      %4530 = vst.msk [vmem:[#allocation3] sm:$0xf] %vm4529, %v4434
      %4531 = vst.msk [vmem:[#allocation3 + $0x4] sm:$0xf] %vm4529, %v4436
      %4532 = vst.msk [vmem:[#allocation3 + $0x8] sm:$0xf] %vm4529, %v4438
      %4533 = vst.msk [vmem:[#allocation3 + $0xc] sm:$0xf] %vm4529, %v4440
      %4534 = vst.msk [vmem:[#allocation3 + $0x10] sm:$0xf] %vm4529, %v4442
      %4535 = vst.msk [vmem:[#allocation3 + $0x14] sm:$0xf] %vm4529, %v4444
      %4536 = vst.msk [vmem:[#allocation3 + $0x18] sm:$0xf] %vm4529, %v4446
      %4537 = vst.msk [vmem:[#allocation3 + $0x1c] sm:$0xf] %vm4529, %v4448
      %4538 = vst.msk [vmem:[#allocation3 + $0x20] sm:$0xf] %vm4529, %v4450
      %4539 = vst.msk [vmem:[#allocation3 + $0x24] sm:$0xf] %vm4529, %v4452
      %4540 = vst.msk [vmem:[#allocation3 + $0x28] sm:$0xf] %vm4529, %v4454
      %4541 = vst.msk [vmem:[#allocation3 + $0x2c] sm:$0xf] %vm4529, %v4456
      %4542 = vst.msk [vmem:[#allocation3 + $0x30] sm:$0xf] %vm4529, %v4458
      %4543 = vst.msk [vmem:[#allocation3 + $0x34] sm:$0xf] %vm4529, %v4460
      %4544 = vst.msk [vmem:[#allocation3 + $0x38] sm:$0xf] %vm4529, %v4462
      %4545 = vst.msk [vmem:[#allocation3 + $0x3c] sm:$0xf] %vm4529, %v4464
      %4546 = vst.msk [vmem:[#allocation3 + $0x40] sm:$0xf] %vm4529, %v4466
      %4547 = vst.msk [vmem:[#allocation3 + $0x44] sm:$0xf] %vm4529, %v4468
      %4548 = vst.msk [vmem:[#allocation3 + $0x48] sm:$0xf] %vm4529, %v4470
      %4549 = vst.msk [vmem:[#allocation3 + $0x4c] sm:$0xf] %vm4529, %v4472
      %4550 = vst.msk [vmem:[#allocation3 + $0x50] sm:$0xf] %vm4529, %v4474
      %4551 = vst.msk [vmem:[#allocation3 + $0x54] sm:$0xf] %vm4529, %v4476
      %4552 = vst.msk [vmem:[#allocation3 + $0x58] sm:$0xf] %vm4529, %v4478
      %4553 = vst.msk [vmem:[#allocation3 + $0x5c] sm:$0xf] %vm4529, %v4480
      %4554 = vst.msk [vmem:[#allocation3 + $0x60] sm:$0xf] %vm4529, %v4482
      %4555 = vst.msk [vmem:[#allocation3 + $0x64] sm:$0xf] %vm4529, %v4484
      %4556 = vst.msk [vmem:[#allocation3 + $0x68] sm:$0xf] %vm4529, %v4486
      %4557 = vst.msk [vmem:[#allocation3 + $0x6c] sm:$0xf] %vm4529, %v4488
      %4558 = vst.msk [vmem:[#allocation3 + $0x70] sm:$0xf] %vm4529, %v4490
      %4559 = vst.msk [vmem:[#allocation3 + $0x74] sm:$0xf] %vm4529, %v4492
      %4560 = vst.msk [vmem:[#allocation3 + $0x78] sm:$0xf] %vm4529, %v4494
      %4561 = vst.msk [vmem:[#allocation3 + $0x7c] sm:$0xf] %vm4529, %v4496
      %v4562 = vld [vmem:[%s1719 + $0x2] sm:$0xff]
      %v4563 = vld [vmem:[%s1719 + $0xa] sm:$0xff]
      %v4564 = vld [vmem:[%s1719 + $0x1a] sm:$0xff]
      %v4565 = vld [vmem:[%s1719 + $0x22] sm:$0xff]
      %v4566 = vld [vmem:[%s1719 + $0x32] sm:$0xff]
      %v4567 = vld [vmem:[%s1719 + $0x3a] sm:$0xff]
      %v4568 = vld [vmem:[%s1719 + $0x4a] sm:$0xff]
      %v4569 = vld [vmem:[%s1719 + $0x52] sm:$0xff]
      %v4570 = vld [vmem:[%s1719 + $0x62] sm:$0xff]
      %v4571 = vld [vmem:[%s1719 + $0x6a] sm:$0xff]
      %v4572 = vld [vmem:[%s1719 + $0x7a] sm:$0xff]
      %v4573 = vld [vmem:[%s1719 + $0x82] sm:$0xff]
      %v4574 = vld [vmem:[%s1719 + $0x92] sm:$0xff]
      %v4575 = vld [vmem:[%s1719 + $0x9a] sm:$0xff]
      %v4576 = vld [vmem:[%s1719 + $0xaa] sm:$0xff]
      %v4577 = vld [vmem:[%s1719 + $0xb2] sm:$0xff]
      %v4578 = vld [vmem:[%s1719 + $0xc2] sm:$0xff]
      %v4579 = vld [vmem:[%s1719 + $0xca] sm:$0xff]
      %v4580 = vld [vmem:[%s1719 + $0xda] sm:$0xff]
      %v4581 = vld [vmem:[%s1719 + $0xe2] sm:$0xff]
      %v4582 = vld [vmem:[%s1719 + $0xf2] sm:$0xff]
      %v4583 = vld [vmem:[%s1719 + $0xfa] sm:$0xff]
      %v4584 = vld [vmem:[%s1719 + $0x10a] sm:$0xff]
      %v4585 = vld [vmem:[%s1719 + $0x112] sm:$0xff]
      %v4586 = vld [vmem:[%s1719 + $0x122] sm:$0xff]
      %v4587 = vld [vmem:[%s1719 + $0x12a] sm:$0xff]
      %v4588 = vld [vmem:[%s1719 + $0x13a] sm:$0xff]
      %v4589 = vld [vmem:[%s1719 + $0x142] sm:$0xff]
      %v4590 = vld [vmem:[%s1719 + $0x152] sm:$0xff]
      %v4591 = vld [vmem:[%s1719 + $0x15a] sm:$0xff]
      %v4592 = vld [vmem:[%s1719 + $0x16a] sm:$0xff]
      %v4593 = vld [vmem:[%s1719 + $0x172] sm:$0xff]
      %v4594 = vpack.c.bf16 %v4562, %v4562
      %v4595 = vpack.c.bf16 %v4563, %v4563
      %v4596 = vpack.c.bf16 %v4564, %v4564
      %v4597 = vpack.c.bf16 %v4565, %v4565
      %v4598 = vpack.c.bf16 %v4566, %v4566
      %v4599 = vpack.c.bf16 %v4567, %v4567
      %v4600 = vpack.c.bf16 %v4568, %v4568
      %v4601 = vpack.c.bf16 %v4569, %v4569
      %v4602 = vpack.c.bf16 %v4570, %v4570
      %v4603 = vpack.c.bf16 %v4571, %v4571
      %v4604 = vpack.c.bf16 %v4572, %v4572
      %v4605 = vpack.c.bf16 %v4573, %v4573
      %v4606 = vpack.c.bf16 %v4574, %v4574
      %v4607 = vpack.c.bf16 %v4575, %v4575
      %v4608 = vpack.c.bf16 %v4576, %v4576
      %v4609 = vpack.c.bf16 %v4577, %v4577
      %v4610 = vpack.c.bf16 %v4578, %v4578
      %v4611 = vpack.c.bf16 %v4579, %v4579
      %v4612 = vpack.c.bf16 %v4580, %v4580
      %v4613 = vpack.c.bf16 %v4581, %v4581
      %v4614 = vpack.c.bf16 %v4582, %v4582
      %v4615 = vpack.c.bf16 %v4583, %v4583
      %v4616 = vpack.c.bf16 %v4584, %v4584
      %v4617 = vpack.c.bf16 %v4585, %v4585
      %v4618 = vpack.c.bf16 %v4586, %v4586
      %v4619 = vpack.c.bf16 %v4587, %v4587
      %v4620 = vpack.c.bf16 %v4588, %v4588
      %v4621 = vpack.c.bf16 %v4589, %v4589
      %v4622 = vpack.c.bf16 %v4590, %v4590
      %v4623 = vpack.c.bf16 %v4591, %v4591
      %v4624 = vpack.c.bf16 %v4592, %v4592
      %v4625 = vpack.c.bf16 %v4593, %v4593
      %4658 = vrot.lane.b32.xlu0 %v4594, 64
      %v4659 = vpop.permute.xlu0 %4658
      %4660 = vrot.lane.b32.xlu0 %v4595, 64
      %v4661 = vpop.permute.xlu0 %4660
      %4662 = vrot.lane.b32.xlu0 %v4596, 64
      %v4663 = vpop.permute.xlu0 %4662
      %4664 = vrot.lane.b32.xlu0 %v4597, 64
      %v4665 = vpop.permute.xlu0 %4664
      %4666 = vrot.lane.b32.xlu0 %v4598, 64
      %v4667 = vpop.permute.xlu0 %4666
      %4668 = vrot.lane.b32.xlu0 %v4599, 64
      %v4669 = vpop.permute.xlu0 %4668
      %4670 = vrot.lane.b32.xlu0 %v4600, 64
      %v4671 = vpop.permute.xlu0 %4670
      %4672 = vrot.lane.b32.xlu0 %v4601, 64
      %v4673 = vpop.permute.xlu0 %4672
      %4674 = vrot.lane.b32.xlu0 %v4602, 64
      %v4675 = vpop.permute.xlu0 %4674
      %4676 = vrot.lane.b32.xlu0 %v4603, 64
      %v4677 = vpop.permute.xlu0 %4676
      %4678 = vrot.lane.b32.xlu0 %v4604, 64
      %v4679 = vpop.permute.xlu0 %4678
      %4680 = vrot.lane.b32.xlu0 %v4605, 64
      %v4681 = vpop.permute.xlu0 %4680
      %4682 = vrot.lane.b32.xlu0 %v4606, 64
      %v4683 = vpop.permute.xlu0 %4682
      %4684 = vrot.lane.b32.xlu0 %v4607, 64
      %v4685 = vpop.permute.xlu0 %4684
      %4686 = vrot.lane.b32.xlu0 %v4608, 64
      %v4687 = vpop.permute.xlu0 %4686
      %4688 = vrot.lane.b32.xlu0 %v4609, 64
      %v4689 = vpop.permute.xlu0 %4688
      %4690 = vrot.lane.b32.xlu0 %v4610, 64
      %v4691 = vpop.permute.xlu0 %4690
      %4692 = vrot.lane.b32.xlu0 %v4611, 64
      %v4693 = vpop.permute.xlu0 %4692
      %4694 = vrot.lane.b32.xlu0 %v4612, 64
      %v4695 = vpop.permute.xlu0 %4694
      %4696 = vrot.lane.b32.xlu0 %v4613, 64
      %v4697 = vpop.permute.xlu0 %4696
      %4698 = vrot.lane.b32.xlu0 %v4614, 64
      %v4699 = vpop.permute.xlu0 %4698
      %4700 = vrot.lane.b32.xlu0 %v4615, 64
      %v4701 = vpop.permute.xlu0 %4700
      %4702 = vrot.lane.b32.xlu0 %v4616, 64
      %v4703 = vpop.permute.xlu0 %4702
      %4704 = vrot.lane.b32.xlu0 %v4617, 64
      %v4705 = vpop.permute.xlu0 %4704
      %4706 = vrot.lane.b32.xlu0 %v4618, 64
      %v4707 = vpop.permute.xlu0 %4706
      %4708 = vrot.lane.b32.xlu0 %v4619, 64
      %v4709 = vpop.permute.xlu0 %4708
      %4710 = vrot.lane.b32.xlu0 %v4620, 64
      %v4711 = vpop.permute.xlu0 %4710
      %4712 = vrot.lane.b32.xlu0 %v4621, 64
      %v4713 = vpop.permute.xlu0 %4712
      %4714 = vrot.lane.b32.xlu0 %v4622, 64
      %v4715 = vpop.permute.xlu0 %4714
      %4716 = vrot.lane.b32.xlu0 %v4623, 64
      %v4717 = vpop.permute.xlu0 %4716
      %4718 = vrot.lane.b32.xlu0 %v4624, 64
      %v4719 = vpop.permute.xlu0 %4718
      %4720 = vrot.lane.b32.xlu0 %v4625, 64
      %v4721 = vpop.permute.xlu0 %4720
      %vm4754 = vcmask 585216
      %4755 = vst.msk [vmem:[#allocation3] sm:$0xf] %vm4754, %v4659
      %4756 = vst.msk [vmem:[#allocation3 + $0x4] sm:$0xf] %vm4754, %v4661
      %4757 = vst.msk [vmem:[#allocation3 + $0x8] sm:$0xf] %vm4754, %v4663
      %4758 = vst.msk [vmem:[#allocation3 + $0xc] sm:$0xf] %vm4754, %v4665
      %4759 = vst.msk [vmem:[#allocation3 + $0x10] sm:$0xf] %vm4754, %v4667
      %4760 = vst.msk [vmem:[#allocation3 + $0x14] sm:$0xf] %vm4754, %v4669
      %4761 = vst.msk [vmem:[#allocation3 + $0x18] sm:$0xf] %vm4754, %v4671
      %4762 = vst.msk [vmem:[#allocation3 + $0x1c] sm:$0xf] %vm4754, %v4673
      %4763 = vst.msk [vmem:[#allocation3 + $0x20] sm:$0xf] %vm4754, %v4675
      %4764 = vst.msk [vmem:[#allocation3 + $0x24] sm:$0xf] %vm4754, %v4677
      %4765 = vst.msk [vmem:[#allocation3 + $0x28] sm:$0xf] %vm4754, %v4679
      %4766 = vst.msk [vmem:[#allocation3 + $0x2c] sm:$0xf] %vm4754, %v4681
      %4767 = vst.msk [vmem:[#allocation3 + $0x30] sm:$0xf] %vm4754, %v4683
      %4768 = vst.msk [vmem:[#allocation3 + $0x34] sm:$0xf] %vm4754, %v4685
      %4769 = vst.msk [vmem:[#allocation3 + $0x38] sm:$0xf] %vm4754, %v4687
      %4770 = vst.msk [vmem:[#allocation3 + $0x3c] sm:$0xf] %vm4754, %v4689
      %4771 = vst.msk [vmem:[#allocation3 + $0x40] sm:$0xf] %vm4754, %v4691
      %4772 = vst.msk [vmem:[#allocation3 + $0x44] sm:$0xf] %vm4754, %v4693
      %4773 = vst.msk [vmem:[#allocation3 + $0x48] sm:$0xf] %vm4754, %v4695
      %4774 = vst.msk [vmem:[#allocation3 + $0x4c] sm:$0xf] %vm4754, %v4697
      %4775 = vst.msk [vmem:[#allocation3 + $0x50] sm:$0xf] %vm4754, %v4699
      %4776 = vst.msk [vmem:[#allocation3 + $0x54] sm:$0xf] %vm4754, %v4701
      %4777 = vst.msk [vmem:[#allocation3 + $0x58] sm:$0xf] %vm4754, %v4703
      %4778 = vst.msk [vmem:[#allocation3 + $0x5c] sm:$0xf] %vm4754, %v4705
      %4779 = vst.msk [vmem:[#allocation3 + $0x60] sm:$0xf] %vm4754, %v4707
      %4780 = vst.msk [vmem:[#allocation3 + $0x64] sm:$0xf] %vm4754, %v4709
      %4781 = vst.msk [vmem:[#allocation3 + $0x68] sm:$0xf] %vm4754, %v4711
      %4782 = vst.msk [vmem:[#allocation3 + $0x6c] sm:$0xf] %vm4754, %v4713
      %4783 = vst.msk [vmem:[#allocation3 + $0x70] sm:$0xf] %vm4754, %v4715
      %4784 = vst.msk [vmem:[#allocation3 + $0x74] sm:$0xf] %vm4754, %v4717
      %4785 = vst.msk [vmem:[#allocation3 + $0x78] sm:$0xf] %vm4754, %v4719
      %4786 = vst.msk [vmem:[#allocation3 + $0x7c] sm:$0xf] %vm4754, %v4721
      %v4787 = vld [vmem:[#allocation3] sm:$0xf]
      %v4788 = vld [vmem:[#allocation3 + $0x4] sm:$0xf]
      %v4789 = vld [vmem:[#allocation3 + $0x8] sm:$0xf]
      %v4790 = vld [vmem:[#allocation3 + $0xc] sm:$0xf]
      %v4791 = vld [vmem:[#allocation3 + $0x10] sm:$0xf]
      %v4792 = vld [vmem:[#allocation3 + $0x14] sm:$0xf]
      %v4793 = vld [vmem:[#allocation3 + $0x18] sm:$0xf]
      %v4794 = vld [vmem:[#allocation3 + $0x1c] sm:$0xf]
      %v4795 = vld [vmem:[#allocation3 + $0x20] sm:$0xf]
      %v4796 = vld [vmem:[#allocation3 + $0x24] sm:$0xf]
      %v4797 = vld [vmem:[#allocation3 + $0x28] sm:$0xf]
      %v4798 = vld [vmem:[#allocation3 + $0x2c] sm:$0xf]
      %v4799 = vld [vmem:[#allocation3 + $0x30] sm:$0xf]
      %v4800 = vld [vmem:[#allocation3 + $0x34] sm:$0xf]
      %v4801 = vld [vmem:[#allocation3 + $0x38] sm:$0xf]
      %v4802 = vld [vmem:[#allocation3 + $0x3c] sm:$0xf]
      %v4803 = vld [vmem:[#allocation3 + $0x40] sm:$0xf]
      %v4804 = vld [vmem:[#allocation3 + $0x44] sm:$0xf]
      %v4805 = vld [vmem:[#allocation3 + $0x48] sm:$0xf]
      %v4806 = vld [vmem:[#allocation3 + $0x4c] sm:$0xf]
      %v4807 = vld [vmem:[#allocation3 + $0x50] sm:$0xf]
      %v4808 = vld [vmem:[#allocation3 + $0x54] sm:$0xf]
      %v4809 = vld [vmem:[#allocation3 + $0x58] sm:$0xf]
      %v4810 = vld [vmem:[#allocation3 + $0x5c] sm:$0xf]
      %v4811 = vld [vmem:[#allocation3 + $0x60] sm:$0xf]
      %v4812 = vld [vmem:[#allocation3 + $0x64] sm:$0xf]
      %v4813 = vld [vmem:[#allocation3 + $0x68] sm:$0xf]
      %v4814 = vld [vmem:[#allocation3 + $0x6c] sm:$0xf]
      %v4815 = vld [vmem:[#allocation3 + $0x70] sm:$0xf]
      %v4816 = vld [vmem:[#allocation3 + $0x74] sm:$0xf]
      %v4817 = vld [vmem:[#allocation3 + $0x78] sm:$0xf]
      %v4818 = vld [vmem:[#allocation3 + $0x7c] sm:$0xf]
      %v4851 = vunpack.c.l.b16 %v4787
      %v4852 = vunpack.c.l.b16 %v4788
      %v4853 = vunpack.c.l.b16 %v4789
      %v4854 = vunpack.c.l.b16 %v4790
      %v4855 = vunpack.c.l.b16 %v4791
      %v4856 = vunpack.c.l.b16 %v4792
      %v4857 = vunpack.c.l.b16 %v4793
      %v4858 = vunpack.c.l.b16 %v4794
      %v4859 = vunpack.c.l.b16 %v4795
      %v4860 = vunpack.c.l.b16 %v4796
      %v4861 = vunpack.c.l.b16 %v4797
      %v4862 = vunpack.c.l.b16 %v4798
      %v4863 = vunpack.c.l.b16 %v4799
      %v4864 = vunpack.c.l.b16 %v4800
      %v4865 = vunpack.c.l.b16 %v4801
      %v4866 = vunpack.c.l.b16 %v4802
      %v4867 = vunpack.c.l.b16 %v4803
      %v4868 = vunpack.c.l.b16 %v4804
      %v4869 = vunpack.c.l.b16 %v4805
      %v4870 = vunpack.c.l.b16 %v4806
      %v4871 = vunpack.c.l.b16 %v4807
      %v4872 = vunpack.c.l.b16 %v4808
      %v4873 = vunpack.c.l.b16 %v4809
      %v4874 = vunpack.c.l.b16 %v4810
      %v4875 = vunpack.c.l.b16 %v4811
      %v4876 = vunpack.c.l.b16 %v4812
      %v4877 = vunpack.c.l.b16 %v4813
      %v4878 = vunpack.c.l.b16 %v4814
      %v4879 = vunpack.c.l.b16 %v4815
      %v4880 = vunpack.c.l.b16 %v4816
      %v4881 = vunpack.c.l.b16 %v4817
      %v4882 = vunpack.c.l.b16 %v4818
      %v4883 = vpack.c.b16 %v4852, %v4851
      %v4884 = vpack.c.b16 %v4854, %v4853
      %v4885 = vpack.c.b16 %v4856, %v4855
      %v4886 = vpack.c.b16 %v4858, %v4857
      %v4887 = vpack.c.b16 %v4860, %v4859
      %v4888 = vpack.c.b16 %v4862, %v4861
      %v4889 = vpack.c.b16 %v4864, %v4863
      %v4890 = vpack.c.b16 %v4866, %v4865
      %v4891 = vpack.c.b16 %v4868, %v4867
      %v4892 = vpack.c.b16 %v4870, %v4869
      %v4893 = vpack.c.b16 %v4872, %v4871
      %v4894 = vpack.c.b16 %v4874, %v4873
      %v4895 = vpack.c.b16 %v4876, %v4875
      %v4896 = vpack.c.b16 %v4878, %v4877
      %v4897 = vpack.c.b16 %v4880, %v4879
      %v4898 = vpack.c.b16 %v4882, %v4881
      %v4908 = vunpack.c.l.b16 %v2849
      %v4909 = vunpack.c.l.b16 %v2850
      %v4910 = vunpack.c.l.b16 %v2851
      %v4911 = vunpack.c.l.b16 %v2852
      %v4912 = vunpack.c.l.b16 %v2853
      %v4913 = vunpack.c.l.b16 %v2854
      %v4914 = vunpack.c.l.b16 %v2855
      %v4915 = vunpack.c.l.b16 %v2856
      %v4916 = vunpack.c.l.b16 %v2857
      %v4917 = vpack.c.b16 %v4909, %v4908
      %v4918 = vpack.c.b16 %v4911, %v4910
      %v4919 = vpack.c.b16 %v4913, %v4912
      %v4920 = vpack.c.b16 %v4915, %v4914
      %v4921 = vpack.c.b16 %v4916, %v4916
      %vm4926 = vcmask 588800
      %v4928 = vsel %vm4926, %v4883, 0
      %v4931 = vsel %vm4926, %v4884, 0
      %v4934 = vsel %vm4926, %v4885, 0
      %v4937 = vsel %vm4926, %v4886, 0
      %v4940 = vsel %vm4926, %v4887, 0
      %v4943 = vsel %vm4926, %v4888, 0
      %v4946 = vsel %vm4926, %v4889, 0
      %v4949 = vsel %vm4926, %v4890, 0
      %v4952 = vsel %vm4926, %v4891, 0
      %v4955 = vsel %vm4926, %v4892, 0
      %v4958 = vsel %vm4926, %v4893, 0
      %v4961 = vsel %vm4926, %v4894, 0
      %v4964 = vsel %vm4926, %v4895, 0
      %v4967 = vsel %vm4926, %v4896, 0
      %v4970 = vsel %vm4926, %v4897, 0
      %v4973 = vsel %vm4926, %v4898, 0
      %vm4975 = vcmask 1043456
      %v4977 = vsel %vm4975, %v4921, 0
      %4979 = vmatpush.bf16.msra.mxu0 0
      %4980 = vmatpush.bf16.msra.mxu0 0
      %4981 = vmatpush.bf16.msra.mxu0 0
      %4982 = vmatpush.bf16.msra.mxu0 %v4977
      %4983 = vmatpush.bf16.msra.mxu0 %v4920
      %4984 = vmatpush.bf16.msra.mxu0 %v4919
      %4985 = vmatpush.bf16.msra.mxu0 %v4918
      %4986 = vmatpush.bf16.msra.mxu0 %v4917
      %4987 = vmatmul.bf16.gmra.mxu0 %v4928
      %v4988 = vpop.f32.mrf.mxu0
      %v4989 = vadd.f32 0.0, %v4988
      %v4990 = vpop.f32.mrf.mxu0
      %v4991 = vadd.f32 0.0, %v4990
      %4992 = vmatmul.bf16.gmra.mxu0 %v4931
      %v4993 = vpop.f32.mrf.mxu0
      %v4994 = vadd.f32 0.0, %v4993
      %v4995 = vpop.f32.mrf.mxu0
      %v4996 = vadd.f32 0.0, %v4995
      %4997 = vmatmul.bf16.gmra.mxu0 %v4934
      %v4998 = vpop.f32.mrf.mxu0
      %v4999 = vadd.f32 0.0, %v4998
      %v5000 = vpop.f32.mrf.mxu0
      %v5001 = vadd.f32 0.0, %v5000
      %5002 = vmatmul.bf16.gmra.mxu0 %v4937
      %v5003 = vpop.f32.mrf.mxu0
      %v5004 = vadd.f32 0.0, %v5003
      %v5005 = vpop.f32.mrf.mxu0
      %v5006 = vadd.f32 0.0, %v5005
      %5007 = vmatmul.bf16.gmra.mxu0 %v4940
      %v5008 = vpop.f32.mrf.mxu0
      %v5009 = vadd.f32 0.0, %v5008
      %v5010 = vpop.f32.mrf.mxu0
      %v5011 = vadd.f32 0.0, %v5010
      %5012 = vmatmul.bf16.gmra.mxu0 %v4943
      %v5013 = vpop.f32.mrf.mxu0
      %v5014 = vadd.f32 0.0, %v5013
      %v5015 = vpop.f32.mrf.mxu0
      %v5016 = vadd.f32 0.0, %v5015
      %5017 = vmatmul.bf16.gmra.mxu0 %v4946
      %v5018 = vpop.f32.mrf.mxu0
      %v5019 = vadd.f32 0.0, %v5018
      %v5020 = vpop.f32.mrf.mxu0
      %v5021 = vadd.f32 0.0, %v5020
      %5022 = vmatmul.bf16.gmra.mxu0 %v4949
      %v5023 = vpop.f32.mrf.mxu0
      %v5024 = vadd.f32 0.0, %v5023
      %v5025 = vpop.f32.mrf.mxu0
      %v5026 = vadd.f32 0.0, %v5025
      %5027 = vmatmul.bf16.gmra.mxu0 %v4952
      %v5028 = vpop.f32.mrf.mxu0
      %v5029 = vadd.f32 0.0, %v5028
      %v5030 = vpop.f32.mrf.mxu0
      %v5031 = vadd.f32 0.0, %v5030
      %5032 = vmatmul.bf16.gmra.mxu0 %v4955
      %v5033 = vpop.f32.mrf.mxu0
      %v5034 = vadd.f32 0.0, %v5033
      %v5035 = vpop.f32.mrf.mxu0
      %v5036 = vadd.f32 0.0, %v5035
      %5037 = vmatmul.bf16.gmra.mxu0 %v4958
      %v5038 = vpop.f32.mrf.mxu0
      %v5039 = vadd.f32 0.0, %v5038
      %v5040 = vpop.f32.mrf.mxu0
      %v5041 = vadd.f32 0.0, %v5040
      %5042 = vmatmul.bf16.gmra.mxu0 %v4961
      %v5043 = vpop.f32.mrf.mxu0
      %v5044 = vadd.f32 0.0, %v5043
      %v5045 = vpop.f32.mrf.mxu0
      %v5046 = vadd.f32 0.0, %v5045
      %5047 = vmatmul.bf16.gmra.mxu0 %v4964
      %v5048 = vpop.f32.mrf.mxu0
      %v5049 = vadd.f32 0.0, %v5048
      %v5050 = vpop.f32.mrf.mxu0
      %v5051 = vadd.f32 0.0, %v5050
      %5052 = vmatmul.bf16.gmra.mxu0 %v4967
      %v5053 = vpop.f32.mrf.mxu0
      %v5054 = vadd.f32 0.0, %v5053
      %v5055 = vpop.f32.mrf.mxu0
      %v5056 = vadd.f32 0.0, %v5055
      %5057 = vmatmul.bf16.gmra.mxu0 %v4970
      %v5058 = vpop.f32.mrf.mxu0
      %v5059 = vadd.f32 0.0, %v5058
      %v5060 = vpop.f32.mrf.mxu0
      %v5061 = vadd.f32 0.0, %v5060
      %5062 = vmatmul.bf16.gmra.mxu0 %v4973
      %v5063 = vpop.f32.mrf.mxu0
      %v5064 = vadd.f32 0.0, %v5063
      %v5065 = vpop.f32.mrf.mxu0
      %v5066 = vadd.f32 0.0, %v5065
      %5067 = vdwg.mxu0
      %v5069 = vsel %vm464, %v2732, 0
      %v5072 = vsel %vm464, %v2733, 0
      %v5075 = vsel %vm464, %v2734, 0
      %v5078 = vsel %vm464, %v2735, 0
      %v5081 = vsel %vm464, %v2736, 0
      %v5084 = vsel %vm464, %v2737, 0
      %v5087 = vsel %vm464, %v2738, 0
      %v5090 = vsel %vm464, %v2739, 0
      %v5093 = vsel %vm464, %v2740, 0
      %v5096 = vsel %vm464, %v2741, 0
      %v5099 = vsel %vm464, %v2742, 0
      %v5102 = vsel %vm464, %v2743, 0
      %v5105 = vsel %vm464, %v2744, 0
      %v5108 = vsel %vm464, %v2745, 0
      %v5111 = vsel %vm464, %v2746, 0
      %v5114 = vsel %vm464, %v2747, 0
      %v5117 = vsel %vm2571, %v2748, 0
      %5119 = vmatpush.bf16.msra.mxu0 0
      %5120 = vmatpush.bf16.msra.mxu0 0
      %5121 = vmatpush.bf16.msra.mxu0 0
      %5122 = vmatpush.bf16.msra.mxu0 0
      %5123 = vmatpush.bf16.msra.mxu0 0
      %5124 = vmatpush.bf16.msra.mxu0 0
      %5125 = vmatpush.bf16.msra.mxu0 0
      %5126 = vmatpush.bf16.msra.mxu0 %v5117
      %5127 = vmatmul.bf16.gmra.mxu0 %v5069
      %v5128 = vpop.f32.mrf.mxu0
      %v5129 = vadd.f32 %v4989, %v5128
      %v5130 = vpop.f32.mrf.mxu0
      %v5131 = vadd.f32 %v4991, %v5130
      %5132 = vmatmul.bf16.gmra.mxu0 %v5072
      %v5133 = vpop.f32.mrf.mxu0
      %v5134 = vadd.f32 %v4994, %v5133
      %v5135 = vpop.f32.mrf.mxu0
      %v5136 = vadd.f32 %v4996, %v5135
      %5137 = vmatmul.bf16.gmra.mxu0 %v5075
      %v5138 = vpop.f32.mrf.mxu0
      %v5139 = vadd.f32 %v4999, %v5138
      %v5140 = vpop.f32.mrf.mxu0
      %v5141 = vadd.f32 %v5001, %v5140
      %5142 = vmatmul.bf16.gmra.mxu0 %v5078
      %v5143 = vpop.f32.mrf.mxu0
      %v5144 = vadd.f32 %v5004, %v5143
      %v5145 = vpop.f32.mrf.mxu0
      %v5146 = vadd.f32 %v5006, %v5145
      %5147 = vmatmul.bf16.gmra.mxu0 %v5081
      %v5148 = vpop.f32.mrf.mxu0
      %v5149 = vadd.f32 %v5009, %v5148
      %v5150 = vpop.f32.mrf.mxu0
      %v5151 = vadd.f32 %v5011, %v5150
      %5152 = vmatmul.bf16.gmra.mxu0 %v5084
      %v5153 = vpop.f32.mrf.mxu0
      %v5154 = vadd.f32 %v5014, %v5153
      %v5155 = vpop.f32.mrf.mxu0
      %v5156 = vadd.f32 %v5016, %v5155
      %5157 = vmatmul.bf16.gmra.mxu0 %v5087
      %v5158 = vpop.f32.mrf.mxu0
      %v5159 = vadd.f32 %v5019, %v5158
      %v5160 = vpop.f32.mrf.mxu0
      %v5161 = vadd.f32 %v5021, %v5160
      %5162 = vmatmul.bf16.gmra.mxu0 %v5090
      %v5163 = vpop.f32.mrf.mxu0
      %v5164 = vadd.f32 %v5024, %v5163
      %v5165 = vpop.f32.mrf.mxu0
      %v5166 = vadd.f32 %v5026, %v5165
      %5167 = vmatmul.bf16.gmra.mxu0 %v5093
      %v5168 = vpop.f32.mrf.mxu0
      %v5169 = vadd.f32 %v5029, %v5168
      %v5170 = vpop.f32.mrf.mxu0
      %v5171 = vadd.f32 %v5031, %v5170
      %5172 = vmatmul.bf16.gmra.mxu0 %v5096
      %v5173 = vpop.f32.mrf.mxu0
      %v5174 = vadd.f32 %v5034, %v5173
      %v5175 = vpop.f32.mrf.mxu0
      %v5176 = vadd.f32 %v5036, %v5175
      %5177 = vmatmul.bf16.gmra.mxu0 %v5099
      %v5178 = vpop.f32.mrf.mxu0
      %v5179 = vadd.f32 %v5039, %v5178
      %v5180 = vpop.f32.mrf.mxu0
      %v5181 = vadd.f32 %v5041, %v5180
      %5182 = vmatmul.bf16.gmra.mxu0 %v5102
      %v5183 = vpop.f32.mrf.mxu0
      %v5184 = vadd.f32 %v5044, %v5183
      %v5185 = vpop.f32.mrf.mxu0
      %v5186 = vadd.f32 %v5046, %v5185
      %5187 = vmatmul.bf16.gmra.mxu0 %v5105
      %v5188 = vpop.f32.mrf.mxu0
      %v5189 = vadd.f32 %v5049, %v5188
      %v5190 = vpop.f32.mrf.mxu0
      %v5191 = vadd.f32 %v5051, %v5190
      %5192 = vmatmul.bf16.gmra.mxu0 %v5108
      %v5193 = vpop.f32.mrf.mxu0
      %v5194 = vadd.f32 %v5054, %v5193
      %v5195 = vpop.f32.mrf.mxu0
      %v5196 = vadd.f32 %v5056, %v5195
      %5197 = vmatmul.bf16.gmra.mxu0 %v5111
      %v5198 = vpop.f32.mrf.mxu0
      %v5199 = vadd.f32 %v5059, %v5198
      %v5200 = vpop.f32.mrf.mxu0
      %v5201 = vadd.f32 %v5061, %v5200
      %5202 = vmatmul.bf16.gmra.mxu0 %v5114
      %v5203 = vpop.f32.mrf.mxu0
      %v5204 = vadd.f32 %v5064, %v5203
      %v5205 = vpop.f32.mrf.mxu0
      %v5206 = vadd.f32 %v5066, %v5205
      %5207 = vdwg.mxu0
      %v5208 = vld [vmem:[%s3] sm:$0x1]
      %v5209 = vperm.slane %v5208, 0
      %v5210 = vadd.f32 %v5129, %v5209
      %v5211 = vadd.f32 %v5131, %v5209
      %v5212 = vadd.f32 %v5134, %v5209
      %v5213 = vadd.f32 %v5136, %v5209
      %v5214 = vadd.f32 %v5139, %v5209
      %v5215 = vadd.f32 %v5141, %v5209
      %v5216 = vadd.f32 %v5144, %v5209
      %v5217 = vadd.f32 %v5146, %v5209
      %v5218 = vadd.f32 %v5149, %v5209
      %v5219 = vadd.f32 %v5151, %v5209
      %v5220 = vadd.f32 %v5154, %v5209
      %v5221 = vadd.f32 %v5156, %v5209
      %v5222 = vadd.f32 %v5159, %v5209
      %v5223 = vadd.f32 %v5161, %v5209
      %v5224 = vadd.f32 %v5164, %v5209
      %v5225 = vadd.f32 %v5166, %v5209
      %v5226 = vadd.f32 %v5169, %v5209
      %v5227 = vadd.f32 %v5171, %v5209
      %v5228 = vadd.f32 %v5174, %v5209
      %v5229 = vadd.f32 %v5176, %v5209
      %v5230 = vadd.f32 %v5179, %v5209
      %v5231 = vadd.f32 %v5181, %v5209
      %v5232 = vadd.f32 %v5184, %v5209
      %v5233 = vadd.f32 %v5186, %v5209
      %v5234 = vadd.f32 %v5189, %v5209
      %v5235 = vadd.f32 %v5191, %v5209
      %v5236 = vadd.f32 %v5194, %v5209
      %v5237 = vadd.f32 %v5196, %v5209
      %v5238 = vadd.f32 %v5199, %v5209
      %v5239 = vadd.f32 %v5201, %v5209
      %v5240 = vadd.f32 %v5204, %v5209
      %v5241 = vadd.f32 %v5206, %v5209
      %v5242 = vld [vmem:[%s2 + $0x2] sm:$0x1]
      %v5243 = vperm.slane %v5242, 0
      %v5244 = vmul.f32 %v5210, %v5243
      %v5245 = vmul.f32 %v5211, %v5243
      %v5246 = vmul.f32 %v5212, %v5243
      %v5247 = vmul.f32 %v5213, %v5243
      %v5248 = vmul.f32 %v5214, %v5243
      %v5249 = vmul.f32 %v5215, %v5243
      %v5250 = vmul.f32 %v5216, %v5243
      %v5251 = vmul.f32 %v5217, %v5243
      %v5252 = vmul.f32 %v5218, %v5243
      %v5253 = vmul.f32 %v5219, %v5243
      %v5254 = vmul.f32 %v5220, %v5243
      %v5255 = vmul.f32 %v5221, %v5243
      %v5256 = vmul.f32 %v5222, %v5243
      %v5257 = vmul.f32 %v5223, %v5243
      %v5258 = vmul.f32 %v5224, %v5243
      %v5259 = vmul.f32 %v5225, %v5243
      %v5260 = vmul.f32 %v5226, %v5243
      %v5261 = vmul.f32 %v5227, %v5243
      %v5262 = vmul.f32 %v5228, %v5243
      %v5263 = vmul.f32 %v5229, %v5243
      %v5264 = vmul.f32 %v5230, %v5243
      %v5265 = vmul.f32 %v5231, %v5243
      %v5266 = vmul.f32 %v5232, %v5243
      %v5267 = vmul.f32 %v5233, %v5243
      %v5268 = vmul.f32 %v5234, %v5243
      %v5269 = vmul.f32 %v5235, %v5243
      %v5270 = vmul.f32 %v5236, %v5243
      %v5271 = vmul.f32 %v5237, %v5243
      %v5272 = vmul.f32 %v5238, %v5243
      %v5273 = vmul.f32 %v5239, %v5243
      %v5274 = vmul.f32 %v5240, %v5243
      %v5275 = vmul.f32 %v5241, %v5243
      %v5276 = vld [vmem:[%s2 + $0x3] sm:$0x1]
      %v5277 = vperm.slane %v5276, 0
      %v5278 = vadd.f32 %v5244, %v5277
      %v5279 = vadd.f32 %v5245, %v5277
      %v5280 = vadd.f32 %v5246, %v5277
      %v5281 = vadd.f32 %v5247, %v5277
      %v5282 = vadd.f32 %v5248, %v5277
      %v5283 = vadd.f32 %v5249, %v5277
      %v5284 = vadd.f32 %v5250, %v5277
      %v5285 = vadd.f32 %v5251, %v5277
      %v5286 = vadd.f32 %v5252, %v5277
      %v5287 = vadd.f32 %v5253, %v5277
      %v5288 = vadd.f32 %v5254, %v5277
      %v5289 = vadd.f32 %v5255, %v5277
      %v5290 = vadd.f32 %v5256, %v5277
      %v5291 = vadd.f32 %v5257, %v5277
      %v5292 = vadd.f32 %v5258, %v5277
      %v5293 = vadd.f32 %v5259, %v5277
      %v5294 = vadd.f32 %v5260, %v5277
      %v5295 = vadd.f32 %v5261, %v5277
      %v5296 = vadd.f32 %v5262, %v5277
      %v5297 = vadd.f32 %v5263, %v5277
      %v5298 = vadd.f32 %v5264, %v5277
      %v5299 = vadd.f32 %v5265, %v5277
      %v5300 = vadd.f32 %v5266, %v5277
      %v5301 = vadd.f32 %v5267, %v5277
      %v5302 = vadd.f32 %v5268, %v5277
      %v5303 = vadd.f32 %v5269, %v5277
      %v5304 = vadd.f32 %v5270, %v5277
      %v5305 = vadd.f32 %v5271, %v5277
      %v5306 = vadd.f32 %v5272, %v5277
      %v5307 = vadd.f32 %v5273, %v5277
      %v5308 = vadd.f32 %v5274, %v5277
      %v5309 = vadd.f32 %v5275, %v5277
      %v5310 = vmax.f32 %v5278, 0.0
      %v5311 = vmax.f32 %v5279, 0.0
      %v5312 = vmax.f32 %v5280, 0.0
      %v5313 = vmax.f32 %v5281, 0.0
      %v5314 = vmax.f32 %v5282, 0.0
      %v5315 = vmax.f32 %v5283, 0.0
      %v5316 = vmax.f32 %v5284, 0.0
      %v5317 = vmax.f32 %v5285, 0.0
      %v5318 = vmax.f32 %v5286, 0.0
      %v5319 = vmax.f32 %v5287, 0.0
      %v5320 = vmax.f32 %v5288, 0.0
      %v5321 = vmax.f32 %v5289, 0.0
      %v5322 = vmax.f32 %v5290, 0.0
      %v5323 = vmax.f32 %v5291, 0.0
      %v5324 = vmax.f32 %v5292, 0.0
      %v5325 = vmax.f32 %v5293, 0.0
      %v5326 = vmax.f32 %v5294, 0.0
      %v5327 = vmax.f32 %v5295, 0.0
      %v5328 = vmax.f32 %v5296, 0.0
      %v5329 = vmax.f32 %v5297, 0.0
      %v5330 = vmax.f32 %v5298, 0.0
      %v5331 = vmax.f32 %v5299, 0.0
      %v5332 = vmax.f32 %v5300, 0.0
      %v5333 = vmax.f32 %v5301, 0.0
      %v5334 = vmax.f32 %v5302, 0.0
      %v5335 = vmax.f32 %v5303, 0.0
      %v5336 = vmax.f32 %v5304, 0.0
      %v5337 = vmax.f32 %v5305, 0.0
      %v5338 = vmax.f32 %v5306, 0.0
      %v5339 = vmax.f32 %v5307, 0.0
      %v5340 = vmax.f32 %v5308, 0.0
      %v5341 = vmax.f32 %v5309, 0.0
      %s5342 = scalar_lea.vmem %s6, 36
      %v5343 = vld [vmem:[%s5342] sm:$0xf]
      %v5344 = vld [vmem:[%s5342 + $0x4] sm:$0xf]
      %v5345 = vld [vmem:[%s5342 + $0x8] sm:$0xf]
      %v5346 = vld [vmem:[%s5342 + $0xc] sm:$0xf]
      %v5347 = vld [vmem:[%s5342 + $0x10] sm:$0xf]
      %v5348 = vld [vmem:[%s5342 + $0x14] sm:$0xf]
      %v5349 = vld [vmem:[%s5342 + $0x18] sm:$0xf]
      %v5350 = vld [vmem:[%s5342 + $0x1c] sm:$0xf]
      %v5351 = vld [vmem:[%s5342 + $0x20] sm:$0xf]
      %5352 = vst.msk [vmem:[%s463 + $0x1] sm:$0xff] %vm280, %v5310
      %5353 = vst.msk [vmem:[%s463 + $0x9] sm:$0xff] %vm280, %v5311
      %5354 = vst.msk [vmem:[%s463 + $0x19] sm:$0xff] %vm280, %v5312
      %5355 = vst.msk [vmem:[%s463 + $0x21] sm:$0xff] %vm280, %v5313
      %5356 = vst.msk [vmem:[%s463 + $0x31] sm:$0xff] %vm280, %v5314
      %5357 = vst.msk [vmem:[%s463 + $0x39] sm:$0xff] %vm280, %v5315
      %5358 = vst.msk [vmem:[%s463 + $0x49] sm:$0xff] %vm280, %v5316
      %5359 = vst.msk [vmem:[%s463 + $0x51] sm:$0xff] %vm280, %v5317
      %5360 = vst.msk [vmem:[%s463 + $0x61] sm:$0xff] %vm280, %v5318
      %5361 = vst.msk [vmem:[%s463 + $0x69] sm:$0xff] %vm280, %v5319
      %5362 = vst.msk [vmem:[%s463 + $0x79] sm:$0xff] %vm280, %v5320
      %5363 = vst.msk [vmem:[%s463 + $0x81] sm:$0xff] %vm280, %v5321
      %5364 = vst.msk [vmem:[%s463 + $0x91] sm:$0xff] %vm280, %v5322
      %5365 = vst.msk [vmem:[%s463 + $0x99] sm:$0xff] %vm280, %v5323
      %5366 = vst.msk [vmem:[%s463 + $0xa9] sm:$0xff] %vm280, %v5324
      %5367 = vst.msk [vmem:[%s463 + $0xb1] sm:$0xff] %vm280, %v5325
      %5368 = vst.msk [vmem:[%s463 + $0xc1] sm:$0xff] %vm280, %v5326
      %5369 = vst.msk [vmem:[%s463 + $0xc9] sm:$0xff] %vm280, %v5327
      %5370 = vst.msk [vmem:[%s463 + $0xd9] sm:$0xff] %vm280, %v5328
      %5371 = vst.msk [vmem:[%s463 + $0xe1] sm:$0xff] %vm280, %v5329
      %5372 = vst.msk [vmem:[%s463 + $0xf1] sm:$0xff] %vm280, %v5330
      %5373 = vst.msk [vmem:[%s463 + $0xf9] sm:$0xff] %vm280, %v5331
      %5374 = vst.msk [vmem:[%s463 + $0x109] sm:$0xff] %vm280, %v5332
      %5375 = vst.msk [vmem:[%s463 + $0x111] sm:$0xff] %vm280, %v5333
      %5376 = vst.msk [vmem:[%s463 + $0x121] sm:$0xff] %vm280, %v5334
      %5377 = vst.msk [vmem:[%s463 + $0x129] sm:$0xff] %vm280, %v5335
      %5378 = vst.msk [vmem:[%s463 + $0x139] sm:$0xff] %vm280, %v5336
      %5379 = vst.msk [vmem:[%s463 + $0x141] sm:$0xff] %vm280, %v5337
      %5380 = vst.msk [vmem:[%s463 + $0x151] sm:$0xff] %vm280, %v5338
      %5381 = vst.msk [vmem:[%s463 + $0x159] sm:$0xff] %vm280, %v5339
      %5382 = vst.msk [vmem:[%s463 + $0x169] sm:$0xff] %vm280, %v5340
      %5383 = vst.msk [vmem:[%s463 + $0x171] sm:$0xff] %vm280, %v5341
      %v5384 = vld [vmem:[#allocation2] sm:$0xff]
      %v5385 = vld [vmem:[#allocation2 + $0x8] sm:$0xff]
      %v5386 = vld [vmem:[#allocation2 + $0x18] sm:$0xff]
      %v5387 = vld [vmem:[#allocation2 + $0x20] sm:$0xff]
      %v5388 = vld [vmem:[#allocation2 + $0x30] sm:$0xff]
      %v5389 = vld [vmem:[#allocation2 + $0x38] sm:$0xff]
      %v5390 = vld [vmem:[#allocation2 + $0x48] sm:$0xff]
      %v5391 = vld [vmem:[#allocation2 + $0x50] sm:$0xff]
      %v5392 = vld [vmem:[#allocation2 + $0x60] sm:$0xff]
      %v5393 = vld [vmem:[#allocation2 + $0x68] sm:$0xff]
      %v5394 = vld [vmem:[#allocation2 + $0x78] sm:$0xff]
      %v5395 = vld [vmem:[#allocation2 + $0x80] sm:$0xff]
      %v5396 = vld [vmem:[#allocation2 + $0x90] sm:$0xff]
      %v5397 = vld [vmem:[#allocation2 + $0x98] sm:$0xff]
      %v5398 = vld [vmem:[#allocation2 + $0xa8] sm:$0xff]
      %v5399 = vld [vmem:[#allocation2 + $0xb0] sm:$0xff]
      %v5400 = vld [vmem:[#allocation2 + $0xc0] sm:$0xff]
      %v5401 = vld [vmem:[#allocation2 + $0xc8] sm:$0xff]
      %v5402 = vld [vmem:[#allocation2 + $0xd8] sm:$0xff]
      %v5403 = vld [vmem:[#allocation2 + $0xe0] sm:$0xff]
      %v5404 = vld [vmem:[#allocation2 + $0xf0] sm:$0xff]
      %v5405 = vld [vmem:[#allocation2 + $0xf8] sm:$0xff]
      %v5406 = vld [vmem:[#allocation2 + $0x108] sm:$0xff]
      %v5407 = vld [vmem:[#allocation2 + $0x110] sm:$0xff]
      %v5408 = vld [vmem:[#allocation2 + $0x120] sm:$0xff]
      %v5409 = vld [vmem:[#allocation2 + $0x128] sm:$0xff]
      %v5410 = vld [vmem:[#allocation2 + $0x138] sm:$0xff]
      %v5411 = vld [vmem:[#allocation2 + $0x140] sm:$0xff]
      %v5412 = vld [vmem:[#allocation2 + $0x150] sm:$0xff]
      %v5413 = vld [vmem:[#allocation2 + $0x158] sm:$0xff]
      %v5414 = vld [vmem:[#allocation2 + $0x168] sm:$0xff]
      %v5415 = vld [vmem:[#allocation2 + $0x170] sm:$0xff]
      %v5416 = vpack.c.bf16 %v5384, %v5384
      %v5417 = vpack.c.bf16 %v5385, %v5385
      %v5418 = vpack.c.bf16 %v5386, %v5386
      %v5419 = vpack.c.bf16 %v5387, %v5387
      %v5420 = vpack.c.bf16 %v5388, %v5388
      %v5421 = vpack.c.bf16 %v5389, %v5389
      %v5422 = vpack.c.bf16 %v5390, %v5390
      %v5423 = vpack.c.bf16 %v5391, %v5391
      %v5424 = vpack.c.bf16 %v5392, %v5392
      %v5425 = vpack.c.bf16 %v5393, %v5393
      %v5426 = vpack.c.bf16 %v5394, %v5394
      %v5427 = vpack.c.bf16 %v5395, %v5395
      %v5428 = vpack.c.bf16 %v5396, %v5396
      %v5429 = vpack.c.bf16 %v5397, %v5397
      %v5430 = vpack.c.bf16 %v5398, %v5398
      %v5431 = vpack.c.bf16 %v5399, %v5399
      %v5432 = vpack.c.bf16 %v5400, %v5400
      %v5433 = vpack.c.bf16 %v5401, %v5401
      %v5434 = vpack.c.bf16 %v5402, %v5402
      %v5435 = vpack.c.bf16 %v5403, %v5403
      %v5436 = vpack.c.bf16 %v5404, %v5404
      %v5437 = vpack.c.bf16 %v5405, %v5405
      %v5438 = vpack.c.bf16 %v5406, %v5406
      %v5439 = vpack.c.bf16 %v5407, %v5407
      %v5440 = vpack.c.bf16 %v5408, %v5408
      %v5441 = vpack.c.bf16 %v5409, %v5409
      %v5442 = vpack.c.bf16 %v5410, %v5410
      %v5443 = vpack.c.bf16 %v5411, %v5411
      %v5444 = vpack.c.bf16 %v5412, %v5412
      %v5445 = vpack.c.bf16 %v5413, %v5413
      %v5446 = vpack.c.bf16 %v5414, %v5414
      %v5447 = vpack.c.bf16 %v5415, %v5415
      %5448 = vst.msk [vmem:[#allocation3] sm:$0xf] %vm2954, %v5416
      %5449 = vst.msk [vmem:[#allocation3 + $0x4] sm:$0xf] %vm2954, %v5417
      %5450 = vst.msk [vmem:[#allocation3 + $0x8] sm:$0xf] %vm2954, %v5418
      %5451 = vst.msk [vmem:[#allocation3 + $0xc] sm:$0xf] %vm2954, %v5419
      %5452 = vst.msk [vmem:[#allocation3 + $0x10] sm:$0xf] %vm2954, %v5420
      %5453 = vst.msk [vmem:[#allocation3 + $0x14] sm:$0xf] %vm2954, %v5421
      %5454 = vst.msk [vmem:[#allocation3 + $0x18] sm:$0xf] %vm2954, %v5422
      %5455 = vst.msk [vmem:[#allocation3 + $0x1c] sm:$0xf] %vm2954, %v5423
      %5456 = vst.msk [vmem:[#allocation3 + $0x20] sm:$0xf] %vm2954, %v5424
      %5457 = vst.msk [vmem:[#allocation3 + $0x24] sm:$0xf] %vm2954, %v5425
      %5458 = vst.msk [vmem:[#allocation3 + $0x28] sm:$0xf] %vm2954, %v5426
      %5459 = vst.msk [vmem:[#allocation3 + $0x2c] sm:$0xf] %vm2954, %v5427
      %5460 = vst.msk [vmem:[#allocation3 + $0x30] sm:$0xf] %vm2954, %v5428
      %5461 = vst.msk [vmem:[#allocation3 + $0x34] sm:$0xf] %vm2954, %v5429
      %5462 = vst.msk [vmem:[#allocation3 + $0x38] sm:$0xf] %vm2954, %v5430
      %5463 = vst.msk [vmem:[#allocation3 + $0x3c] sm:$0xf] %vm2954, %v5431
      %5464 = vst.msk [vmem:[#allocation3 + $0x40] sm:$0xf] %vm2954, %v5432
      %5465 = vst.msk [vmem:[#allocation3 + $0x44] sm:$0xf] %vm2954, %v5433
      %5466 = vst.msk [vmem:[#allocation3 + $0x48] sm:$0xf] %vm2954, %v5434
      %5467 = vst.msk [vmem:[#allocation3 + $0x4c] sm:$0xf] %vm2954, %v5435
      %5468 = vst.msk [vmem:[#allocation3 + $0x50] sm:$0xf] %vm2954, %v5436
      %5469 = vst.msk [vmem:[#allocation3 + $0x54] sm:$0xf] %vm2954, %v5437
      %5470 = vst.msk [vmem:[#allocation3 + $0x58] sm:$0xf] %vm2954, %v5438
      %5471 = vst.msk [vmem:[#allocation3 + $0x5c] sm:$0xf] %vm2954, %v5439
      %5472 = vst.msk [vmem:[#allocation3 + $0x60] sm:$0xf] %vm2954, %v5440
      %5473 = vst.msk [vmem:[#allocation3 + $0x64] sm:$0xf] %vm2954, %v5441
      %5474 = vst.msk [vmem:[#allocation3 + $0x68] sm:$0xf] %vm2954, %v5442
      %5475 = vst.msk [vmem:[#allocation3 + $0x6c] sm:$0xf] %vm2954, %v5443
      %5476 = vst.msk [vmem:[#allocation3 + $0x70] sm:$0xf] %vm2954, %v5444
      %5477 = vst.msk [vmem:[#allocation3 + $0x74] sm:$0xf] %vm2954, %v5445
      %5478 = vst.msk [vmem:[#allocation3 + $0x78] sm:$0xf] %vm2954, %v5446
      %5479 = vst.msk [vmem:[#allocation3 + $0x7c] sm:$0xf] %vm2954, %v5447
      %v5480 = vld [vmem:[#allocation2 + $0x1] sm:$0xff]
      %v5481 = vld [vmem:[#allocation2 + $0x9] sm:$0xff]
      %v5482 = vld [vmem:[#allocation2 + $0x19] sm:$0xff]
      %v5483 = vld [vmem:[#allocation2 + $0x21] sm:$0xff]
      %v5484 = vld [vmem:[#allocation2 + $0x31] sm:$0xff]
      %v5485 = vld [vmem:[#allocation2 + $0x39] sm:$0xff]
      %v5486 = vld [vmem:[#allocation2 + $0x49] sm:$0xff]
      %v5487 = vld [vmem:[#allocation2 + $0x51] sm:$0xff]
      %v5488 = vld [vmem:[#allocation2 + $0x61] sm:$0xff]
      %v5489 = vld [vmem:[#allocation2 + $0x69] sm:$0xff]
      %v5490 = vld [vmem:[#allocation2 + $0x79] sm:$0xff]
      %v5491 = vld [vmem:[#allocation2 + $0x81] sm:$0xff]
      %v5492 = vld [vmem:[#allocation2 + $0x91] sm:$0xff]
      %v5493 = vld [vmem:[#allocation2 + $0x99] sm:$0xff]
      %v5494 = vld [vmem:[#allocation2 + $0xa9] sm:$0xff]
      %v5495 = vld [vmem:[#allocation2 + $0xb1] sm:$0xff]
      %v5496 = vld [vmem:[#allocation2 + $0xc1] sm:$0xff]
      %v5497 = vld [vmem:[#allocation2 + $0xc9] sm:$0xff]
      %v5498 = vld [vmem:[#allocation2 + $0xd9] sm:$0xff]
      %v5499 = vld [vmem:[#allocation2 + $0xe1] sm:$0xff]
      %v5500 = vld [vmem:[#allocation2 + $0xf1] sm:$0xff]
      %v5501 = vld [vmem:[#allocation2 + $0xf9] sm:$0xff]
      %v5502 = vld [vmem:[#allocation2 + $0x109] sm:$0xff]
      %v5503 = vld [vmem:[#allocation2 + $0x111] sm:$0xff]
      %v5504 = vld [vmem:[#allocation2 + $0x121] sm:$0xff]
      %v5505 = vld [vmem:[#allocation2 + $0x129] sm:$0xff]
      %v5506 = vld [vmem:[#allocation2 + $0x139] sm:$0xff]
      %v5507 = vld [vmem:[#allocation2 + $0x141] sm:$0xff]
      %v5508 = vld [vmem:[#allocation2 + $0x151] sm:$0xff]
      %v5509 = vld [vmem:[#allocation2 + $0x159] sm:$0xff]
      %v5510 = vld [vmem:[#allocation2 + $0x169] sm:$0xff]
      %v5511 = vld [vmem:[#allocation2 + $0x171] sm:$0xff]
      %v5512 = vpack.c.bf16 %v5480, %v5480
      %v5513 = vpack.c.bf16 %v5481, %v5481
      %v5514 = vpack.c.bf16 %v5482, %v5482
      %v5515 = vpack.c.bf16 %v5483, %v5483
      %v5516 = vpack.c.bf16 %v5484, %v5484
      %v5517 = vpack.c.bf16 %v5485, %v5485
      %v5518 = vpack.c.bf16 %v5486, %v5486
      %v5519 = vpack.c.bf16 %v5487, %v5487
      %v5520 = vpack.c.bf16 %v5488, %v5488
      %v5521 = vpack.c.bf16 %v5489, %v5489
      %v5522 = vpack.c.bf16 %v5490, %v5490
      %v5523 = vpack.c.bf16 %v5491, %v5491
      %v5524 = vpack.c.bf16 %v5492, %v5492
      %v5525 = vpack.c.bf16 %v5493, %v5493
      %v5526 = vpack.c.bf16 %v5494, %v5494
      %v5527 = vpack.c.bf16 %v5495, %v5495
      %v5528 = vpack.c.bf16 %v5496, %v5496
      %v5529 = vpack.c.bf16 %v5497, %v5497
      %v5530 = vpack.c.bf16 %v5498, %v5498
      %v5531 = vpack.c.bf16 %v5499, %v5499
      %v5532 = vpack.c.bf16 %v5500, %v5500
      %v5533 = vpack.c.bf16 %v5501, %v5501
      %v5534 = vpack.c.bf16 %v5502, %v5502
      %v5535 = vpack.c.bf16 %v5503, %v5503
      %v5536 = vpack.c.bf16 %v5504, %v5504
      %v5537 = vpack.c.bf16 %v5505, %v5505
      %v5538 = vpack.c.bf16 %v5506, %v5506
      %v5539 = vpack.c.bf16 %v5507, %v5507
      %v5540 = vpack.c.bf16 %v5508, %v5508
      %v5541 = vpack.c.bf16 %v5509, %v5509
      %v5542 = vpack.c.bf16 %v5510, %v5510
      %v5543 = vpack.c.bf16 %v5511, %v5511
      %5576 = vrot.lane.b32.xlu0 %v5512, 8
      %v5577 = vpop.permute.xlu0 %5576
      %5578 = vrot.lane.b32.xlu0 %v5513, 8
      %v5579 = vpop.permute.xlu0 %5578
      %5580 = vrot.lane.b32.xlu0 %v5514, 8
      %v5581 = vpop.permute.xlu0 %5580
      %5582 = vrot.lane.b32.xlu0 %v5515, 8
      %v5583 = vpop.permute.xlu0 %5582
      %5584 = vrot.lane.b32.xlu0 %v5516, 8
      %v5585 = vpop.permute.xlu0 %5584
      %5586 = vrot.lane.b32.xlu0 %v5517, 8
      %v5587 = vpop.permute.xlu0 %5586
      %5588 = vrot.lane.b32.xlu0 %v5518, 8
      %v5589 = vpop.permute.xlu0 %5588
      %5590 = vrot.lane.b32.xlu0 %v5519, 8
      %v5591 = vpop.permute.xlu0 %5590
      %5592 = vrot.lane.b32.xlu0 %v5520, 8
      %v5593 = vpop.permute.xlu0 %5592
      %5594 = vrot.lane.b32.xlu0 %v5521, 8
      %v5595 = vpop.permute.xlu0 %5594
      %5596 = vrot.lane.b32.xlu0 %v5522, 8
      %v5597 = vpop.permute.xlu0 %5596
      %5598 = vrot.lane.b32.xlu0 %v5523, 8
      %v5599 = vpop.permute.xlu0 %5598
      %5600 = vrot.lane.b32.xlu0 %v5524, 8
      %v5601 = vpop.permute.xlu0 %5600
      %5602 = vrot.lane.b32.xlu0 %v5525, 8
      %v5603 = vpop.permute.xlu0 %5602
      %5604 = vrot.lane.b32.xlu0 %v5526, 8
      %v5605 = vpop.permute.xlu0 %5604
      %5606 = vrot.lane.b32.xlu0 %v5527, 8
      %v5607 = vpop.permute.xlu0 %5606
      %5608 = vrot.lane.b32.xlu0 %v5528, 8
      %v5609 = vpop.permute.xlu0 %5608
      %5610 = vrot.lane.b32.xlu0 %v5529, 8
      %v5611 = vpop.permute.xlu0 %5610
      %5612 = vrot.lane.b32.xlu0 %v5530, 8
      %v5613 = vpop.permute.xlu0 %5612
      %5614 = vrot.lane.b32.xlu0 %v5531, 8
      %v5615 = vpop.permute.xlu0 %5614
      %5616 = vrot.lane.b32.xlu0 %v5532, 8
      %v5617 = vpop.permute.xlu0 %5616
      %5618 = vrot.lane.b32.xlu0 %v5533, 8
      %v5619 = vpop.permute.xlu0 %5618
      %5620 = vrot.lane.b32.xlu0 %v5534, 8
      %v5621 = vpop.permute.xlu0 %5620
      %5622 = vrot.lane.b32.xlu0 %v5535, 8
      %v5623 = vpop.permute.xlu0 %5622
      %5624 = vrot.lane.b32.xlu0 %v5536, 8
      %v5625 = vpop.permute.xlu0 %5624
      %5626 = vrot.lane.b32.xlu0 %v5537, 8
      %v5627 = vpop.permute.xlu0 %5626
      %5628 = vrot.lane.b32.xlu0 %v5538, 8
      %v5629 = vpop.permute.xlu0 %5628
      %5630 = vrot.lane.b32.xlu0 %v5539, 8
      %v5631 = vpop.permute.xlu0 %5630
      %5632 = vrot.lane.b32.xlu0 %v5540, 8
      %v5633 = vpop.permute.xlu0 %5632
      %5634 = vrot.lane.b32.xlu0 %v5541, 8
      %v5635 = vpop.permute.xlu0 %5634
      %5636 = vrot.lane.b32.xlu0 %v5542, 8
      %v5637 = vpop.permute.xlu0 %5636
      %5638 = vrot.lane.b32.xlu0 %v5543, 8
      %v5639 = vpop.permute.xlu0 %5638
      %5672 = vst.msk [vmem:[#allocation3] sm:$0xf] %vm3179, %v5577
      %5673 = vst.msk [vmem:[#allocation3 + $0x4] sm:$0xf] %vm3179, %v5579
      %5674 = vst.msk [vmem:[#allocation3 + $0x8] sm:$0xf] %vm3179, %v5581
      %5675 = vst.msk [vmem:[#allocation3 + $0xc] sm:$0xf] %vm3179, %v5583
      %5676 = vst.msk [vmem:[#allocation3 + $0x10] sm:$0xf] %vm3179, %v5585
      %5677 = vst.msk [vmem:[#allocation3 + $0x14] sm:$0xf] %vm3179, %v5587
      %5678 = vst.msk [vmem:[#allocation3 + $0x18] sm:$0xf] %vm3179, %v5589
      %5679 = vst.msk [vmem:[#allocation3 + $0x1c] sm:$0xf] %vm3179, %v5591
      %5680 = vst.msk [vmem:[#allocation3 + $0x20] sm:$0xf] %vm3179, %v5593
      %5681 = vst.msk [vmem:[#allocation3 + $0x24] sm:$0xf] %vm3179, %v5595
      %5682 = vst.msk [vmem:[#allocation3 + $0x28] sm:$0xf] %vm3179, %v5597
      %5683 = vst.msk [vmem:[#allocation3 + $0x2c] sm:$0xf] %vm3179, %v5599
      %5684 = vst.msk [vmem:[#allocation3 + $0x30] sm:$0xf] %vm3179, %v5601
      %5685 = vst.msk [vmem:[#allocation3 + $0x34] sm:$0xf] %vm3179, %v5603
      %5686 = vst.msk [vmem:[#allocation3 + $0x38] sm:$0xf] %vm3179, %v5605
      %5687 = vst.msk [vmem:[#allocation3 + $0x3c] sm:$0xf] %vm3179, %v5607
      %5688 = vst.msk [vmem:[#allocation3 + $0x40] sm:$0xf] %vm3179, %v5609
      %5689 = vst.msk [vmem:[#allocation3 + $0x44] sm:$0xf] %vm3179, %v5611
      %5690 = vst.msk [vmem:[#allocation3 + $0x48] sm:$0xf] %vm3179, %v5613
      %5691 = vst.msk [vmem:[#allocation3 + $0x4c] sm:$0xf] %vm3179, %v5615
      %5692 = vst.msk [vmem:[#allocation3 + $0x50] sm:$0xf] %vm3179, %v5617
      %5693 = vst.msk [vmem:[#allocation3 + $0x54] sm:$0xf] %vm3179, %v5619
      %5694 = vst.msk [vmem:[#allocation3 + $0x58] sm:$0xf] %vm3179, %v5621
      %5695 = vst.msk [vmem:[#allocation3 + $0x5c] sm:$0xf] %vm3179, %v5623
      %5696 = vst.msk [vmem:[#allocation3 + $0x60] sm:$0xf] %vm3179, %v5625
      %5697 = vst.msk [vmem:[#allocation3 + $0x64] sm:$0xf] %vm3179, %v5627
      %5698 = vst.msk [vmem:[#allocation3 + $0x68] sm:$0xf] %vm3179, %v5629
      %5699 = vst.msk [vmem:[#allocation3 + $0x6c] sm:$0xf] %vm3179, %v5631
      %5700 = vst.msk [vmem:[#allocation3 + $0x70] sm:$0xf] %vm3179, %v5633
      %5701 = vst.msk [vmem:[#allocation3 + $0x74] sm:$0xf] %vm3179, %v5635
      %5702 = vst.msk [vmem:[#allocation3 + $0x78] sm:$0xf] %vm3179, %v5637
      %5703 = vst.msk [vmem:[#allocation3 + $0x7c] sm:$0xf] %vm3179, %v5639
      %v5704 = vld [vmem:[#allocation2 + $0x2] sm:$0xff]
      %v5705 = vld [vmem:[#allocation2 + $0xa] sm:$0xff]
      %v5706 = vld [vmem:[#allocation2 + $0x1a] sm:$0xff]
      %v5707 = vld [vmem:[#allocation2 + $0x22] sm:$0xff]
      %v5708 = vld [vmem:[#allocation2 + $0x32] sm:$0xff]
      %v5709 = vld [vmem:[#allocation2 + $0x3a] sm:$0xff]
      %v5710 = vld [vmem:[#allocation2 + $0x4a] sm:$0xff]
      %v5711 = vld [vmem:[#allocation2 + $0x52] sm:$0xff]
      %v5712 = vld [vmem:[#allocation2 + $0x62] sm:$0xff]
      %v5713 = vld [vmem:[#allocation2 + $0x6a] sm:$0xff]
      %v5714 = vld [vmem:[#allocation2 + $0x7a] sm:$0xff]
      %v5715 = vld [vmem:[#allocation2 + $0x82] sm:$0xff]
      %v5716 = vld [vmem:[#allocation2 + $0x92] sm:$0xff]
      %v5717 = vld [vmem:[#allocation2 + $0x9a] sm:$0xff]
      %v5718 = vld [vmem:[#allocation2 + $0xaa] sm:$0xff]
      %v5719 = vld [vmem:[#allocation2 + $0xb2] sm:$0xff]
      %v5720 = vld [vmem:[#allocation2 + $0xc2] sm:$0xff]
      %v5721 = vld [vmem:[#allocation2 + $0xca] sm:$0xff]
      %v5722 = vld [vmem:[#allocation2 + $0xda] sm:$0xff]
      %v5723 = vld [vmem:[#allocation2 + $0xe2] sm:$0xff]
      %v5724 = vld [vmem:[#allocation2 + $0xf2] sm:$0xff]
      %v5725 = vld [vmem:[#allocation2 + $0xfa] sm:$0xff]
      %v5726 = vld [vmem:[#allocation2 + $0x10a] sm:$0xff]
      %v5727 = vld [vmem:[#allocation2 + $0x112] sm:$0xff]
      %v5728 = vld [vmem:[#allocation2 + $0x122] sm:$0xff]
      %v5729 = vld [vmem:[#allocation2 + $0x12a] sm:$0xff]
      %v5730 = vld [vmem:[#allocation2 + $0x13a] sm:$0xff]
      %v5731 = vld [vmem:[#allocation2 + $0x142] sm:$0xff]
      %v5732 = vld [vmem:[#allocation2 + $0x152] sm:$0xff]
      %v5733 = vld [vmem:[#allocation2 + $0x15a] sm:$0xff]
      %v5734 = vld [vmem:[#allocation2 + $0x16a] sm:$0xff]
      %v5735 = vld [vmem:[#allocation2 + $0x172] sm:$0xff]
      %v5736 = vpack.c.bf16 %v5704, %v5704
      %v5737 = vpack.c.bf16 %v5705, %v5705
      %v5738 = vpack.c.bf16 %v5706, %v5706
      %v5739 = vpack.c.bf16 %v5707, %v5707
      %v5740 = vpack.c.bf16 %v5708, %v5708
      %v5741 = vpack.c.bf16 %v5709, %v5709
      %v5742 = vpack.c.bf16 %v5710, %v5710
      %v5743 = vpack.c.bf16 %v5711, %v5711
      %v5744 = vpack.c.bf16 %v5712, %v5712
      %v5745 = vpack.c.bf16 %v5713, %v5713
      %v5746 = vpack.c.bf16 %v5714, %v5714
      %v5747 = vpack.c.bf16 %v5715, %v5715
      %v5748 = vpack.c.bf16 %v5716, %v5716
      %v5749 = vpack.c.bf16 %v5717, %v5717
      %v5750 = vpack.c.bf16 %v5718, %v5718
      %v5751 = vpack.c.bf16 %v5719, %v5719
      %v5752 = vpack.c.bf16 %v5720, %v5720
      %v5753 = vpack.c.bf16 %v5721, %v5721
      %v5754 = vpack.c.bf16 %v5722, %v5722
      %v5755 = vpack.c.bf16 %v5723, %v5723
      %v5756 = vpack.c.bf16 %v5724, %v5724
      %v5757 = vpack.c.bf16 %v5725, %v5725
      %v5758 = vpack.c.bf16 %v5726, %v5726
      %v5759 = vpack.c.bf16 %v5727, %v5727
      %v5760 = vpack.c.bf16 %v5728, %v5728
      %v5761 = vpack.c.bf16 %v5729, %v5729
      %v5762 = vpack.c.bf16 %v5730, %v5730
      %v5763 = vpack.c.bf16 %v5731, %v5731
      %v5764 = vpack.c.bf16 %v5732, %v5732
      %v5765 = vpack.c.bf16 %v5733, %v5733
      %v5766 = vpack.c.bf16 %v5734, %v5734
      %v5767 = vpack.c.bf16 %v5735, %v5735
      %5800 = vrot.lane.b32.xlu0 %v5736, 16
      %v5801 = vpop.permute.xlu0 %5800
      %5802 = vrot.lane.b32.xlu0 %v5737, 16
      %v5803 = vpop.permute.xlu0 %5802
      %5804 = vrot.lane.b32.xlu0 %v5738, 16
      %v5805 = vpop.permute.xlu0 %5804
      %5806 = vrot.lane.b32.xlu0 %v5739, 16
      %v5807 = vpop.permute.xlu0 %5806
      %5808 = vrot.lane.b32.xlu0 %v5740, 16
      %v5809 = vpop.permute.xlu0 %5808
      %5810 = vrot.lane.b32.xlu0 %v5741, 16
      %v5811 = vpop.permute.xlu0 %5810
      %5812 = vrot.lane.b32.xlu0 %v5742, 16
      %v5813 = vpop.permute.xlu0 %5812
      %5814 = vrot.lane.b32.xlu0 %v5743, 16
      %v5815 = vpop.permute.xlu0 %5814
      %5816 = vrot.lane.b32.xlu0 %v5744, 16
      %v5817 = vpop.permute.xlu0 %5816
      %5818 = vrot.lane.b32.xlu0 %v5745, 16
      %v5819 = vpop.permute.xlu0 %5818
      %5820 = vrot.lane.b32.xlu0 %v5746, 16
      %v5821 = vpop.permute.xlu0 %5820
      %5822 = vrot.lane.b32.xlu0 %v5747, 16
      %v5823 = vpop.permute.xlu0 %5822
      %5824 = vrot.lane.b32.xlu0 %v5748, 16
      %v5825 = vpop.permute.xlu0 %5824
      %5826 = vrot.lane.b32.xlu0 %v5749, 16
      %v5827 = vpop.permute.xlu0 %5826
      %5828 = vrot.lane.b32.xlu0 %v5750, 16
      %v5829 = vpop.permute.xlu0 %5828
      %5830 = vrot.lane.b32.xlu0 %v5751, 16
      %v5831 = vpop.permute.xlu0 %5830
      %5832 = vrot.lane.b32.xlu0 %v5752, 16
      %v5833 = vpop.permute.xlu0 %5832
      %5834 = vrot.lane.b32.xlu0 %v5753, 16
      %v5835 = vpop.permute.xlu0 %5834
      %5836 = vrot.lane.b32.xlu0 %v5754, 16
      %v5837 = vpop.permute.xlu0 %5836
      %5838 = vrot.lane.b32.xlu0 %v5755, 16
      %v5839 = vpop.permute.xlu0 %5838
      %5840 = vrot.lane.b32.xlu0 %v5756, 16
      %v5841 = vpop.permute.xlu0 %5840
      %5842 = vrot.lane.b32.xlu0 %v5757, 16
      %v5843 = vpop.permute.xlu0 %5842
      %5844 = vrot.lane.b32.xlu0 %v5758, 16
      %v5845 = vpop.permute.xlu0 %5844
      %5846 = vrot.lane.b32.xlu0 %v5759, 16
      %v5847 = vpop.permute.xlu0 %5846
      %5848 = vrot.lane.b32.xlu0 %v5760, 16
      %v5849 = vpop.permute.xlu0 %5848
      %5850 = vrot.lane.b32.xlu0 %v5761, 16
      %v5851 = vpop.permute.xlu0 %5850
      %5852 = vrot.lane.b32.xlu0 %v5762, 16
      %v5853 = vpop.permute.xlu0 %5852
      %5854 = vrot.lane.b32.xlu0 %v5763, 16
      %v5855 = vpop.permute.xlu0 %5854
      %5856 = vrot.lane.b32.xlu0 %v5764, 16
      %v5857 = vpop.permute.xlu0 %5856
      %5858 = vrot.lane.b32.xlu0 %v5765, 16
      %v5859 = vpop.permute.xlu0 %5858
      %5860 = vrot.lane.b32.xlu0 %v5766, 16
      %v5861 = vpop.permute.xlu0 %5860
      %5862 = vrot.lane.b32.xlu0 %v5767, 16
      %v5863 = vpop.permute.xlu0 %5862
      %5896 = vst.msk [vmem:[#allocation3] sm:$0xf] %vm3404, %v5801
      %5897 = vst.msk [vmem:[#allocation3 + $0x4] sm:$0xf] %vm3404, %v5803
      %5898 = vst.msk [vmem:[#allocation3 + $0x8] sm:$0xf] %vm3404, %v5805
      %5899 = vst.msk [vmem:[#allocation3 + $0xc] sm:$0xf] %vm3404, %v5807
      %5900 = vst.msk [vmem:[#allocation3 + $0x10] sm:$0xf] %vm3404, %v5809
      %5901 = vst.msk [vmem:[#allocation3 + $0x14] sm:$0xf] %vm3404, %v5811
      %5902 = vst.msk [vmem:[#allocation3 + $0x18] sm:$0xf] %vm3404, %v5813
      %5903 = vst.msk [vmem:[#allocation3 + $0x1c] sm:$0xf] %vm3404, %v5815
      %5904 = vst.msk [vmem:[#allocation3 + $0x20] sm:$0xf] %vm3404, %v5817
      %5905 = vst.msk [vmem:[#allocation3 + $0x24] sm:$0xf] %vm3404, %v5819
      %5906 = vst.msk [vmem:[#allocation3 + $0x28] sm:$0xf] %vm3404, %v5821
      %5907 = vst.msk [vmem:[#allocation3 + $0x2c] sm:$0xf] %vm3404, %v5823
      %5908 = vst.msk [vmem:[#allocation3 + $0x30] sm:$0xf] %vm3404, %v5825
      %5909 = vst.msk [vmem:[#allocation3 + $0x34] sm:$0xf] %vm3404, %v5827
      %5910 = vst.msk [vmem:[#allocation3 + $0x38] sm:$0xf] %vm3404, %v5829
      %5911 = vst.msk [vmem:[#allocation3 + $0x3c] sm:$0xf] %vm3404, %v5831
      %5912 = vst.msk [vmem:[#allocation3 + $0x40] sm:$0xf] %vm3404, %v5833
      %5913 = vst.msk [vmem:[#allocation3 + $0x44] sm:$0xf] %vm3404, %v5835
      %5914 = vst.msk [vmem:[#allocation3 + $0x48] sm:$0xf] %vm3404, %v5837
      %5915 = vst.msk [vmem:[#allocation3 + $0x4c] sm:$0xf] %vm3404, %v5839
      %5916 = vst.msk [vmem:[#allocation3 + $0x50] sm:$0xf] %vm3404, %v5841
      %5917 = vst.msk [vmem:[#allocation3 + $0x54] sm:$0xf] %vm3404, %v5843
      %5918 = vst.msk [vmem:[#allocation3 + $0x58] sm:$0xf] %vm3404, %v5845
      %5919 = vst.msk [vmem:[#allocation3 + $0x5c] sm:$0xf] %vm3404, %v5847
      %5920 = vst.msk [vmem:[#allocation3 + $0x60] sm:$0xf] %vm3404, %v5849
      %5921 = vst.msk [vmem:[#allocation3 + $0x64] sm:$0xf] %vm3404, %v5851
      %5922 = vst.msk [vmem:[#allocation3 + $0x68] sm:$0xf] %vm3404, %v5853
      %5923 = vst.msk [vmem:[#allocation3 + $0x6c] sm:$0xf] %vm3404, %v5855
      %5924 = vst.msk [vmem:[#allocation3 + $0x70] sm:$0xf] %vm3404, %v5857
      %5925 = vst.msk [vmem:[#allocation3 + $0x74] sm:$0xf] %vm3404, %v5859
      %5926 = vst.msk [vmem:[#allocation3 + $0x78] sm:$0xf] %vm3404, %v5861
      %5927 = vst.msk [vmem:[#allocation3 + $0x7c] sm:$0xf] %vm3404, %v5863
      %v5928 = vld [vmem:[%s463] sm:$0xff]
      %v5929 = vld [vmem:[%s463 + $0x8] sm:$0xff]
      %v5930 = vld [vmem:[%s463 + $0x18] sm:$0xff]
      %v5931 = vld [vmem:[%s463 + $0x20] sm:$0xff]
      %v5932 = vld [vmem:[%s463 + $0x30] sm:$0xff]
      %v5933 = vld [vmem:[%s463 + $0x38] sm:$0xff]
      %v5934 = vld [vmem:[%s463 + $0x48] sm:$0xff]
      %v5935 = vld [vmem:[%s463 + $0x50] sm:$0xff]
      %v5936 = vld [vmem:[%s463 + $0x60] sm:$0xff]
      %v5937 = vld [vmem:[%s463 + $0x68] sm:$0xff]
      %v5938 = vld [vmem:[%s463 + $0x78] sm:$0xff]
      %v5939 = vld [vmem:[%s463 + $0x80] sm:$0xff]
      %v5940 = vld [vmem:[%s463 + $0x90] sm:$0xff]
      %v5941 = vld [vmem:[%s463 + $0x98] sm:$0xff]
      %v5942 = vld [vmem:[%s463 + $0xa8] sm:$0xff]
      %v5943 = vld [vmem:[%s463 + $0xb0] sm:$0xff]
      %v5944 = vld [vmem:[%s463 + $0xc0] sm:$0xff]
      %v5945 = vld [vmem:[%s463 + $0xc8] sm:$0xff]
      %v5946 = vld [vmem:[%s463 + $0xd8] sm:$0xff]
      %v5947 = vld [vmem:[%s463 + $0xe0] sm:$0xff]
      %v5948 = vld [vmem:[%s463 + $0xf0] sm:$0xff]
      %v5949 = vld [vmem:[%s463 + $0xf8] sm:$0xff]
      %v5950 = vld [vmem:[%s463 + $0x108] sm:$0xff]
      %v5951 = vld [vmem:[%s463 + $0x110] sm:$0xff]
      %v5952 = vld [vmem:[%s463 + $0x120] sm:$0xff]
      %v5953 = vld [vmem:[%s463 + $0x128] sm:$0xff]
      %v5954 = vld [vmem:[%s463 + $0x138] sm:$0xff]
      %v5955 = vld [vmem:[%s463 + $0x140] sm:$0xff]
      %v5956 = vld [vmem:[%s463 + $0x150] sm:$0xff]
      %v5957 = vld [vmem:[%s463 + $0x158] sm:$0xff]
      %v5958 = vld [vmem:[%s463 + $0x168] sm:$0xff]
      %v5959 = vld [vmem:[%s463 + $0x170] sm:$0xff]
      %v5960 = vpack.c.bf16 %v5928, %v5928
      %v5961 = vpack.c.bf16 %v5929, %v5929
      %v5962 = vpack.c.bf16 %v5930, %v5930
      %v5963 = vpack.c.bf16 %v5931, %v5931
      %v5964 = vpack.c.bf16 %v5932, %v5932
      %v5965 = vpack.c.bf16 %v5933, %v5933
      %v5966 = vpack.c.bf16 %v5934, %v5934
      %v5967 = vpack.c.bf16 %v5935, %v5935
      %v5968 = vpack.c.bf16 %v5936, %v5936
      %v5969 = vpack.c.bf16 %v5937, %v5937
      %v5970 = vpack.c.bf16 %v5938, %v5938
      %v5971 = vpack.c.bf16 %v5939, %v5939
      %v5972 = vpack.c.bf16 %v5940, %v5940
      %v5973 = vpack.c.bf16 %v5941, %v5941
      %v5974 = vpack.c.bf16 %v5942, %v5942
      %v5975 = vpack.c.bf16 %v5943, %v5943
      %v5976 = vpack.c.bf16 %v5944, %v5944
      %v5977 = vpack.c.bf16 %v5945, %v5945
      %v5978 = vpack.c.bf16 %v5946, %v5946
      %v5979 = vpack.c.bf16 %v5947, %v5947
      %v5980 = vpack.c.bf16 %v5948, %v5948
      %v5981 = vpack.c.bf16 %v5949, %v5949
      %v5982 = vpack.c.bf16 %v5950, %v5950
      %v5983 = vpack.c.bf16 %v5951, %v5951
      %v5984 = vpack.c.bf16 %v5952, %v5952
      %v5985 = vpack.c.bf16 %v5953, %v5953
      %v5986 = vpack.c.bf16 %v5954, %v5954
      %v5987 = vpack.c.bf16 %v5955, %v5955
      %v5988 = vpack.c.bf16 %v5956, %v5956
      %v5989 = vpack.c.bf16 %v5957, %v5957
      %v5990 = vpack.c.bf16 %v5958, %v5958
      %v5991 = vpack.c.bf16 %v5959, %v5959
      %6024 = vrot.lane.b32.xlu0 %v5960, 24
      %v6025 = vpop.permute.xlu0 %6024
      %6026 = vrot.lane.b32.xlu0 %v5961, 24
      %v6027 = vpop.permute.xlu0 %6026
      %6028 = vrot.lane.b32.xlu0 %v5962, 24
      %v6029 = vpop.permute.xlu0 %6028
      %6030 = vrot.lane.b32.xlu0 %v5963, 24
      %v6031 = vpop.permute.xlu0 %6030
      %6032 = vrot.lane.b32.xlu0 %v5964, 24
      %v6033 = vpop.permute.xlu0 %6032
      %6034 = vrot.lane.b32.xlu0 %v5965, 24
      %v6035 = vpop.permute.xlu0 %6034
      %6036 = vrot.lane.b32.xlu0 %v5966, 24
      %v6037 = vpop.permute.xlu0 %6036
      %6038 = vrot.lane.b32.xlu0 %v5967, 24
      %v6039 = vpop.permute.xlu0 %6038
      %6040 = vrot.lane.b32.xlu0 %v5968, 24
      %v6041 = vpop.permute.xlu0 %6040
      %6042 = vrot.lane.b32.xlu0 %v5969, 24
      %v6043 = vpop.permute.xlu0 %6042
      %6044 = vrot.lane.b32.xlu0 %v5970, 24
      %v6045 = vpop.permute.xlu0 %6044
      %6046 = vrot.lane.b32.xlu0 %v5971, 24
      %v6047 = vpop.permute.xlu0 %6046
      %6048 = vrot.lane.b32.xlu0 %v5972, 24
      %v6049 = vpop.permute.xlu0 %6048
      %6050 = vrot.lane.b32.xlu0 %v5973, 24
      %v6051 = vpop.permute.xlu0 %6050
      %6052 = vrot.lane.b32.xlu0 %v5974, 24
      %v6053 = vpop.permute.xlu0 %6052
      %6054 = vrot.lane.b32.xlu0 %v5975, 24
      %v6055 = vpop.permute.xlu0 %6054
      %6056 = vrot.lane.b32.xlu0 %v5976, 24
      %v6057 = vpop.permute.xlu0 %6056
      %6058 = vrot.lane.b32.xlu0 %v5977, 24
      %v6059 = vpop.permute.xlu0 %6058
      %6060 = vrot.lane.b32.xlu0 %v5978, 24
      %v6061 = vpop.permute.xlu0 %6060
      %6062 = vrot.lane.b32.xlu0 %v5979, 24
      %v6063 = vpop.permute.xlu0 %6062
      %6064 = vrot.lane.b32.xlu0 %v5980, 24
      %v6065 = vpop.permute.xlu0 %6064
      %6066 = vrot.lane.b32.xlu0 %v5981, 24
      %v6067 = vpop.permute.xlu0 %6066
      %6068 = vrot.lane.b32.xlu0 %v5982, 24
      %v6069 = vpop.permute.xlu0 %6068
      %6070 = vrot.lane.b32.xlu0 %v5983, 24
      %v6071 = vpop.permute.xlu0 %6070
      %6072 = vrot.lane.b32.xlu0 %v5984, 24
      %v6073 = vpop.permute.xlu0 %6072
      %6074 = vrot.lane.b32.xlu0 %v5985, 24
      %v6075 = vpop.permute.xlu0 %6074
      %6076 = vrot.lane.b32.xlu0 %v5986, 24
      %v6077 = vpop.permute.xlu0 %6076
      %6078 = vrot.lane.b32.xlu0 %v5987, 24
      %v6079 = vpop.permute.xlu0 %6078
      %6080 = vrot.lane.b32.xlu0 %v5988, 24
      %v6081 = vpop.permute.xlu0 %6080
      %6082 = vrot.lane.b32.xlu0 %v5989, 24
      %v6083 = vpop.permute.xlu0 %6082
      %6084 = vrot.lane.b32.xlu0 %v5990, 24
      %v6085 = vpop.permute.xlu0 %6084
      %6086 = vrot.lane.b32.xlu0 %v5991, 24
      %v6087 = vpop.permute.xlu0 %6086
      %6120 = vst.msk [vmem:[#allocation3] sm:$0xf] %vm3629, %v6025
      %6121 = vst.msk [vmem:[#allocation3 + $0x4] sm:$0xf] %vm3629, %v6027
      %6122 = vst.msk [vmem:[#allocation3 + $0x8] sm:$0xf] %vm3629, %v6029
      %6123 = vst.msk [vmem:[#allocation3 + $0xc] sm:$0xf] %vm3629, %v6031
      %6124 = vst.msk [vmem:[#allocation3 + $0x10] sm:$0xf] %vm3629, %v6033
      %6125 = vst.msk [vmem:[#allocation3 + $0x14] sm:$0xf] %vm3629, %v6035
      %6126 = vst.msk [vmem:[#allocation3 + $0x18] sm:$0xf] %vm3629, %v6037
      %6127 = vst.msk [vmem:[#allocation3 + $0x1c] sm:$0xf] %vm3629, %v6039
      %6128 = vst.msk [vmem:[#allocation3 + $0x20] sm:$0xf] %vm3629, %v6041
      %6129 = vst.msk [vmem:[#allocation3 + $0x24] sm:$0xf] %vm3629, %v6043
      %6130 = vst.msk [vmem:[#allocation3 + $0x28] sm:$0xf] %vm3629, %v6045
      %6131 = vst.msk [vmem:[#allocation3 + $0x2c] sm:$0xf] %vm3629, %v6047
      %6132 = vst.msk [vmem:[#allocation3 + $0x30] sm:$0xf] %vm3629, %v6049
      %6133 = vst.msk [vmem:[#allocation3 + $0x34] sm:$0xf] %vm3629, %v6051
      %6134 = vst.msk [vmem:[#allocation3 + $0x38] sm:$0xf] %vm3629, %v6053
      %6135 = vst.msk [vmem:[#allocation3 + $0x3c] sm:$0xf] %vm3629, %v6055
      %6136 = vst.msk [vmem:[#allocation3 + $0x40] sm:$0xf] %vm3629, %v6057
      %6137 = vst.msk [vmem:[#allocation3 + $0x44] sm:$0xf] %vm3629, %v6059
      %6138 = vst.msk [vmem:[#allocation3 + $0x48] sm:$0xf] %vm3629, %v6061
      %6139 = vst.msk [vmem:[#allocation3 + $0x4c] sm:$0xf] %vm3629, %v6063
      %6140 = vst.msk [vmem:[#allocation3 + $0x50] sm:$0xf] %vm3629, %v6065
      %6141 = vst.msk [vmem:[#allocation3 + $0x54] sm:$0xf] %vm3629, %v6067
      %6142 = vst.msk [vmem:[#allocation3 + $0x58] sm:$0xf] %vm3629, %v6069
      %6143 = vst.msk [vmem:[#allocation3 + $0x5c] sm:$0xf] %vm3629, %v6071
      %6144 = vst.msk [vmem:[#allocation3 + $0x60] sm:$0xf] %vm3629, %v6073
      %6145 = vst.msk [vmem:[#allocation3 + $0x64] sm:$0xf] %vm3629, %v6075
      %6146 = vst.msk [vmem:[#allocation3 + $0x68] sm:$0xf] %vm3629, %v6077
      %6147 = vst.msk [vmem:[#allocation3 + $0x6c] sm:$0xf] %vm3629, %v6079
      %6148 = vst.msk [vmem:[#allocation3 + $0x70] sm:$0xf] %vm3629, %v6081
      %6149 = vst.msk [vmem:[#allocation3 + $0x74] sm:$0xf] %vm3629, %v6083
      %6150 = vst.msk [vmem:[#allocation3 + $0x78] sm:$0xf] %vm3629, %v6085
      %6151 = vst.msk [vmem:[#allocation3 + $0x7c] sm:$0xf] %vm3629, %v6087
      %v6152 = vld [vmem:[%s463 + $0x1] sm:$0xff]
      %v6153 = vld [vmem:[%s463 + $0x9] sm:$0xff]
      %v6154 = vld [vmem:[%s463 + $0x19] sm:$0xff]
      %v6155 = vld [vmem:[%s463 + $0x21] sm:$0xff]
      %v6156 = vld [vmem:[%s463 + $0x31] sm:$0xff]
      %v6157 = vld [vmem:[%s463 + $0x39] sm:$0xff]
      %v6158 = vld [vmem:[%s463 + $0x49] sm:$0xff]
      %v6159 = vld [vmem:[%s463 + $0x51] sm:$0xff]
      %v6160 = vld [vmem:[%s463 + $0x61] sm:$0xff]
      %v6161 = vld [vmem:[%s463 + $0x69] sm:$0xff]
      %v6162 = vld [vmem:[%s463 + $0x79] sm:$0xff]
      %v6163 = vld [vmem:[%s463 + $0x81] sm:$0xff]
      %v6164 = vld [vmem:[%s463 + $0x91] sm:$0xff]
      %v6165 = vld [vmem:[%s463 + $0x99] sm:$0xff]
      %v6166 = vld [vmem:[%s463 + $0xa9] sm:$0xff]
      %v6167 = vld [vmem:[%s463 + $0xb1] sm:$0xff]
      %v6168 = vld [vmem:[%s463 + $0xc1] sm:$0xff]
      %v6169 = vld [vmem:[%s463 + $0xc9] sm:$0xff]
      %v6170 = vld [vmem:[%s463 + $0xd9] sm:$0xff]
      %v6171 = vld [vmem:[%s463 + $0xe1] sm:$0xff]
      %v6172 = vld [vmem:[%s463 + $0xf1] sm:$0xff]
      %v6173 = vld [vmem:[%s463 + $0xf9] sm:$0xff]
      %v6174 = vld [vmem:[%s463 + $0x109] sm:$0xff]
      %v6175 = vld [vmem:[%s463 + $0x111] sm:$0xff]
      %v6176 = vld [vmem:[%s463 + $0x121] sm:$0xff]
      %v6177 = vld [vmem:[%s463 + $0x129] sm:$0xff]
      %v6178 = vld [vmem:[%s463 + $0x139] sm:$0xff]
      %v6179 = vld [vmem:[%s463 + $0x141] sm:$0xff]
      %v6180 = vld [vmem:[%s463 + $0x151] sm:$0xff]
      %v6181 = vld [vmem:[%s463 + $0x159] sm:$0xff]
      %v6182 = vld [vmem:[%s463 + $0x169] sm:$0xff]
      %v6183 = vld [vmem:[%s463 + $0x171] sm:$0xff]
      %v6184 = vpack.c.bf16 %v6152, %v6152
      %v6185 = vpack.c.bf16 %v6153, %v6153
      %v6186 = vpack.c.bf16 %v6154, %v6154
      %v6187 = vpack.c.bf16 %v6155, %v6155
      %v6188 = vpack.c.bf16 %v6156, %v6156
      %v6189 = vpack.c.bf16 %v6157, %v6157
      %v6190 = vpack.c.bf16 %v6158, %v6158
      %v6191 = vpack.c.bf16 %v6159, %v6159
      %v6192 = vpack.c.bf16 %v6160, %v6160
      %v6193 = vpack.c.bf16 %v6161, %v6161
      %v6194 = vpack.c.bf16 %v6162, %v6162
      %v6195 = vpack.c.bf16 %v6163, %v6163
      %v6196 = vpack.c.bf16 %v6164, %v6164
      %v6197 = vpack.c.bf16 %v6165, %v6165
      %v6198 = vpack.c.bf16 %v6166, %v6166
      %v6199 = vpack.c.bf16 %v6167, %v6167
      %v6200 = vpack.c.bf16 %v6168, %v6168
      %v6201 = vpack.c.bf16 %v6169, %v6169
      %v6202 = vpack.c.bf16 %v6170, %v6170
      %v6203 = vpack.c.bf16 %v6171, %v6171
      %v6204 = vpack.c.bf16 %v6172, %v6172
      %v6205 = vpack.c.bf16 %v6173, %v6173
      %v6206 = vpack.c.bf16 %v6174, %v6174
      %v6207 = vpack.c.bf16 %v6175, %v6175
      %v6208 = vpack.c.bf16 %v6176, %v6176
      %v6209 = vpack.c.bf16 %v6177, %v6177
      %v6210 = vpack.c.bf16 %v6178, %v6178
      %v6211 = vpack.c.bf16 %v6179, %v6179
      %v6212 = vpack.c.bf16 %v6180, %v6180
      %v6213 = vpack.c.bf16 %v6181, %v6181
      %v6214 = vpack.c.bf16 %v6182, %v6182
      %v6215 = vpack.c.bf16 %v6183, %v6183
      %6248 = vrot.lane.b32.xlu0 %v6184, 32
      %v6249 = vpop.permute.xlu0 %6248
      %6250 = vrot.lane.b32.xlu0 %v6185, 32
      %v6251 = vpop.permute.xlu0 %6250
      %6252 = vrot.lane.b32.xlu0 %v6186, 32
      %v6253 = vpop.permute.xlu0 %6252
      %6254 = vrot.lane.b32.xlu0 %v6187, 32
      %v6255 = vpop.permute.xlu0 %6254
      %6256 = vrot.lane.b32.xlu0 %v6188, 32
      %v6257 = vpop.permute.xlu0 %6256
      %6258 = vrot.lane.b32.xlu0 %v6189, 32
      %v6259 = vpop.permute.xlu0 %6258
      %6260 = vrot.lane.b32.xlu0 %v6190, 32
      %v6261 = vpop.permute.xlu0 %6260
      %6262 = vrot.lane.b32.xlu0 %v6191, 32
      %v6263 = vpop.permute.xlu0 %6262
      %6264 = vrot.lane.b32.xlu0 %v6192, 32
      %v6265 = vpop.permute.xlu0 %6264
      %6266 = vrot.lane.b32.xlu0 %v6193, 32
      %v6267 = vpop.permute.xlu0 %6266
      %6268 = vrot.lane.b32.xlu0 %v6194, 32
      %v6269 = vpop.permute.xlu0 %6268
      %6270 = vrot.lane.b32.xlu0 %v6195, 32
      %v6271 = vpop.permute.xlu0 %6270
      %6272 = vrot.lane.b32.xlu0 %v6196, 32
      %v6273 = vpop.permute.xlu0 %6272
      %6274 = vrot.lane.b32.xlu0 %v6197, 32
      %v6275 = vpop.permute.xlu0 %6274
      %6276 = vrot.lane.b32.xlu0 %v6198, 32
      %v6277 = vpop.permute.xlu0 %6276
      %6278 = vrot.lane.b32.xlu0 %v6199, 32
      %v6279 = vpop.permute.xlu0 %6278
      %6280 = vrot.lane.b32.xlu0 %v6200, 32
      %v6281 = vpop.permute.xlu0 %6280
      %6282 = vrot.lane.b32.xlu0 %v6201, 32
      %v6283 = vpop.permute.xlu0 %6282
      %6284 = vrot.lane.b32.xlu0 %v6202, 32
      %v6285 = vpop.permute.xlu0 %6284
      %6286 = vrot.lane.b32.xlu0 %v6203, 32
      %v6287 = vpop.permute.xlu0 %6286
      %6288 = vrot.lane.b32.xlu0 %v6204, 32
      %v6289 = vpop.permute.xlu0 %6288
      %6290 = vrot.lane.b32.xlu0 %v6205, 32
      %v6291 = vpop.permute.xlu0 %6290
      %6292 = vrot.lane.b32.xlu0 %v6206, 32
      %v6293 = vpop.permute.xlu0 %6292
      %6294 = vrot.lane.b32.xlu0 %v6207, 32
      %v6295 = vpop.permute.xlu0 %6294
      %6296 = vrot.lane.b32.xlu0 %v6208, 32
      %v6297 = vpop.permute.xlu0 %6296
      %6298 = vrot.lane.b32.xlu0 %v6209, 32
      %v6299 = vpop.permute.xlu0 %6298
      %6300 = vrot.lane.b32.xlu0 %v6210, 32
      %v6301 = vpop.permute.xlu0 %6300
      %6302 = vrot.lane.b32.xlu0 %v6211, 32
      %v6303 = vpop.permute.xlu0 %6302
      %6304 = vrot.lane.b32.xlu0 %v6212, 32
      %v6305 = vpop.permute.xlu0 %6304
      %6306 = vrot.lane.b32.xlu0 %v6213, 32
      %v6307 = vpop.permute.xlu0 %6306
      %6308 = vrot.lane.b32.xlu0 %v6214, 32
      %v6309 = vpop.permute.xlu0 %6308
      %6310 = vrot.lane.b32.xlu0 %v6215, 32
      %v6311 = vpop.permute.xlu0 %6310
      %6344 = vst.msk [vmem:[#allocation3] sm:$0xf] %vm3854, %v6249
      %6345 = vst.msk [vmem:[#allocation3 + $0x4] sm:$0xf] %vm3854, %v6251
      %6346 = vst.msk [vmem:[#allocation3 + $0x8] sm:$0xf] %vm3854, %v6253
      %6347 = vst.msk [vmem:[#allocation3 + $0xc] sm:$0xf] %vm3854, %v6255
      %6348 = vst.msk [vmem:[#allocation3 + $0x10] sm:$0xf] %vm3854, %v6257
      %6349 = vst.msk [vmem:[#allocation3 + $0x14] sm:$0xf] %vm3854, %v6259
      %6350 = vst.msk [vmem:[#allocation3 + $0x18] sm:$0xf] %vm3854, %v6261
      %6351 = vst.msk [vmem:[#allocation3 + $0x1c] sm:$0xf] %vm3854, %v6263
      %6352 = vst.msk [vmem:[#allocation3 + $0x20] sm:$0xf] %vm3854, %v6265
      %6353 = vst.msk [vmem:[#allocation3 + $0x24] sm:$0xf] %vm3854, %v6267
      %6354 = vst.msk [vmem:[#allocation3 + $0x28] sm:$0xf] %vm3854, %v6269
      %6355 = vst.msk [vmem:[#allocation3 + $0x2c] sm:$0xf] %vm3854, %v6271
      %6356 = vst.msk [vmem:[#allocation3 + $0x30] sm:$0xf] %vm3854, %v6273
      %6357 = vst.msk [vmem:[#allocation3 + $0x34] sm:$0xf] %vm3854, %v6275
      %6358 = vst.msk [vmem:[#allocation3 + $0x38] sm:$0xf] %vm3854, %v6277
      %6359 = vst.msk [vmem:[#allocation3 + $0x3c] sm:$0xf] %vm3854, %v6279
      %6360 = vst.msk [vmem:[#allocation3 + $0x40] sm:$0xf] %vm3854, %v6281
      %6361 = vst.msk [vmem:[#allocation3 + $0x44] sm:$0xf] %vm3854, %v6283
      %6362 = vst.msk [vmem:[#allocation3 + $0x48] sm:$0xf] %vm3854, %v6285
      %6363 = vst.msk [vmem:[#allocation3 + $0x4c] sm:$0xf] %vm3854, %v6287
      %6364 = vst.msk [vmem:[#allocation3 + $0x50] sm:$0xf] %vm3854, %v6289
      %6365 = vst.msk [vmem:[#allocation3 + $0x54] sm:$0xf] %vm3854, %v6291
      %6366 = vst.msk [vmem:[#allocation3 + $0x58] sm:$0xf] %vm3854, %v6293
      %6367 = vst.msk [vmem:[#allocation3 + $0x5c] sm:$0xf] %vm3854, %v6295
      %6368 = vst.msk [vmem:[#allocation3 + $0x60] sm:$0xf] %vm3854, %v6297
      %6369 = vst.msk [vmem:[#allocation3 + $0x64] sm:$0xf] %vm3854, %v6299
      %6370 = vst.msk [vmem:[#allocation3 + $0x68] sm:$0xf] %vm3854, %v6301
      %6371 = vst.msk [vmem:[#allocation3 + $0x6c] sm:$0xf] %vm3854, %v6303
      %6372 = vst.msk [vmem:[#allocation3 + $0x70] sm:$0xf] %vm3854, %v6305
      %6373 = vst.msk [vmem:[#allocation3 + $0x74] sm:$0xf] %vm3854, %v6307
      %6374 = vst.msk [vmem:[#allocation3 + $0x78] sm:$0xf] %vm3854, %v6309
      %6375 = vst.msk [vmem:[#allocation3 + $0x7c] sm:$0xf] %vm3854, %v6311
      %v6376 = vld [vmem:[%s463 + $0x2] sm:$0xff]
      %v6377 = vld [vmem:[%s463 + $0xa] sm:$0xff]
      %v6378 = vld [vmem:[%s463 + $0x1a] sm:$0xff]
      %v6379 = vld [vmem:[%s463 + $0x22] sm:$0xff]
      %v6380 = vld [vmem:[%s463 + $0x32] sm:$0xff]
      %v6381 = vld [vmem:[%s463 + $0x3a] sm:$0xff]
      %v6382 = vld [vmem:[%s463 + $0x4a] sm:$0xff]
      %v6383 = vld [vmem:[%s463 + $0x52] sm:$0xff]
      %v6384 = vld [vmem:[%s463 + $0x62] sm:$0xff]
      %v6385 = vld [vmem:[%s463 + $0x6a] sm:$0xff]
      %v6386 = vld [vmem:[%s463 + $0x7a] sm:$0xff]
      %v6387 = vld [vmem:[%s463 + $0x82] sm:$0xff]
      %v6388 = vld [vmem:[%s463 + $0x92] sm:$0xff]
      %v6389 = vld [vmem:[%s463 + $0x9a] sm:$0xff]
      %v6390 = vld [vmem:[%s463 + $0xaa] sm:$0xff]
      %v6391 = vld [vmem:[%s463 + $0xb2] sm:$0xff]
      %v6392 = vld [vmem:[%s463 + $0xc2] sm:$0xff]
      %v6393 = vld [vmem:[%s463 + $0xca] sm:$0xff]
      %v6394 = vld [vmem:[%s463 + $0xda] sm:$0xff]
      %v6395 = vld [vmem:[%s463 + $0xe2] sm:$0xff]
      %v6396 = vld [vmem:[%s463 + $0xf2] sm:$0xff]
      %v6397 = vld [vmem:[%s463 + $0xfa] sm:$0xff]
      %v6398 = vld [vmem:[%s463 + $0x10a] sm:$0xff]
      %v6399 = vld [vmem:[%s463 + $0x112] sm:$0xff]
      %v6400 = vld [vmem:[%s463 + $0x122] sm:$0xff]
      %v6401 = vld [vmem:[%s463 + $0x12a] sm:$0xff]
      %v6402 = vld [vmem:[%s463 + $0x13a] sm:$0xff]
      %v6403 = vld [vmem:[%s463 + $0x142] sm:$0xff]
      %v6404 = vld [vmem:[%s463 + $0x152] sm:$0xff]
      %v6405 = vld [vmem:[%s463 + $0x15a] sm:$0xff]
      %v6406 = vld [vmem:[%s463 + $0x16a] sm:$0xff]
      %v6407 = vld [vmem:[%s463 + $0x172] sm:$0xff]
      %v6408 = vpack.c.bf16 %v6376, %v6376
      %v6409 = vpack.c.bf16 %v6377, %v6377
      %v6410 = vpack.c.bf16 %v6378, %v6378
      %v6411 = vpack.c.bf16 %v6379, %v6379
      %v6412 = vpack.c.bf16 %v6380, %v6380
      %v6413 = vpack.c.bf16 %v6381, %v6381
      %v6414 = vpack.c.bf16 %v6382, %v6382
      %v6415 = vpack.c.bf16 %v6383, %v6383
      %v6416 = vpack.c.bf16 %v6384, %v6384
      %v6417 = vpack.c.bf16 %v6385, %v6385
      %v6418 = vpack.c.bf16 %v6386, %v6386
      %v6419 = vpack.c.bf16 %v6387, %v6387
      %v6420 = vpack.c.bf16 %v6388, %v6388
      %v6421 = vpack.c.bf16 %v6389, %v6389
      %v6422 = vpack.c.bf16 %v6390, %v6390
      %v6423 = vpack.c.bf16 %v6391, %v6391
      %v6424 = vpack.c.bf16 %v6392, %v6392
      %v6425 = vpack.c.bf16 %v6393, %v6393
      %v6426 = vpack.c.bf16 %v6394, %v6394
      %v6427 = vpack.c.bf16 %v6395, %v6395
      %v6428 = vpack.c.bf16 %v6396, %v6396
      %v6429 = vpack.c.bf16 %v6397, %v6397
      %v6430 = vpack.c.bf16 %v6398, %v6398
      %v6431 = vpack.c.bf16 %v6399, %v6399
      %v6432 = vpack.c.bf16 %v6400, %v6400
      %v6433 = vpack.c.bf16 %v6401, %v6401
      %v6434 = vpack.c.bf16 %v6402, %v6402
      %v6435 = vpack.c.bf16 %v6403, %v6403
      %v6436 = vpack.c.bf16 %v6404, %v6404
      %v6437 = vpack.c.bf16 %v6405, %v6405
      %v6438 = vpack.c.bf16 %v6406, %v6406
      %v6439 = vpack.c.bf16 %v6407, %v6407
      %6472 = vrot.lane.b32.xlu0 %v6408, 40
      %v6473 = vpop.permute.xlu0 %6472
      %6474 = vrot.lane.b32.xlu0 %v6409, 40
      %v6475 = vpop.permute.xlu0 %6474
      %6476 = vrot.lane.b32.xlu0 %v6410, 40
      %v6477 = vpop.permute.xlu0 %6476
      %6478 = vrot.lane.b32.xlu0 %v6411, 40
      %v6479 = vpop.permute.xlu0 %6478
      %6480 = vrot.lane.b32.xlu0 %v6412, 40
      %v6481 = vpop.permute.xlu0 %6480
      %6482 = vrot.lane.b32.xlu0 %v6413, 40
      %v6483 = vpop.permute.xlu0 %6482
      %6484 = vrot.lane.b32.xlu0 %v6414, 40
      %v6485 = vpop.permute.xlu0 %6484
      %6486 = vrot.lane.b32.xlu0 %v6415, 40
      %v6487 = vpop.permute.xlu0 %6486
      %6488 = vrot.lane.b32.xlu0 %v6416, 40
      %v6489 = vpop.permute.xlu0 %6488
      %6490 = vrot.lane.b32.xlu0 %v6417, 40
      %v6491 = vpop.permute.xlu0 %6490
      %6492 = vrot.lane.b32.xlu0 %v6418, 40
      %v6493 = vpop.permute.xlu0 %6492
      %6494 = vrot.lane.b32.xlu0 %v6419, 40
      %v6495 = vpop.permute.xlu0 %6494
      %6496 = vrot.lane.b32.xlu0 %v6420, 40
      %v6497 = vpop.permute.xlu0 %6496
      %6498 = vrot.lane.b32.xlu0 %v6421, 40
      %v6499 = vpop.permute.xlu0 %6498
      %6500 = vrot.lane.b32.xlu0 %v6422, 40
      %v6501 = vpop.permute.xlu0 %6500
      %6502 = vrot.lane.b32.xlu0 %v6423, 40
      %v6503 = vpop.permute.xlu0 %6502
      %6504 = vrot.lane.b32.xlu0 %v6424, 40
      %v6505 = vpop.permute.xlu0 %6504
      %6506 = vrot.lane.b32.xlu0 %v6425, 40
      %v6507 = vpop.permute.xlu0 %6506
      %6508 = vrot.lane.b32.xlu0 %v6426, 40
      %v6509 = vpop.permute.xlu0 %6508
      %6510 = vrot.lane.b32.xlu0 %v6427, 40
      %v6511 = vpop.permute.xlu0 %6510
      %6512 = vrot.lane.b32.xlu0 %v6428, 40
      %v6513 = vpop.permute.xlu0 %6512
      %6514 = vrot.lane.b32.xlu0 %v6429, 40
      %v6515 = vpop.permute.xlu0 %6514
      %6516 = vrot.lane.b32.xlu0 %v6430, 40
      %v6517 = vpop.permute.xlu0 %6516
      %6518 = vrot.lane.b32.xlu0 %v6431, 40
      %v6519 = vpop.permute.xlu0 %6518
      %6520 = vrot.lane.b32.xlu0 %v6432, 40
      %v6521 = vpop.permute.xlu0 %6520
      %6522 = vrot.lane.b32.xlu0 %v6433, 40
      %v6523 = vpop.permute.xlu0 %6522
      %6524 = vrot.lane.b32.xlu0 %v6434, 40
      %v6525 = vpop.permute.xlu0 %6524
      %6526 = vrot.lane.b32.xlu0 %v6435, 40
      %v6527 = vpop.permute.xlu0 %6526
      %6528 = vrot.lane.b32.xlu0 %v6436, 40
      %v6529 = vpop.permute.xlu0 %6528
      %6530 = vrot.lane.b32.xlu0 %v6437, 40
      %v6531 = vpop.permute.xlu0 %6530
      %6532 = vrot.lane.b32.xlu0 %v6438, 40
      %v6533 = vpop.permute.xlu0 %6532
      %6534 = vrot.lane.b32.xlu0 %v6439, 40
      %v6535 = vpop.permute.xlu0 %6534
      %6568 = vst.msk [vmem:[#allocation3] sm:$0xf] %vm4079, %v6473
      %6569 = vst.msk [vmem:[#allocation3 + $0x4] sm:$0xf] %vm4079, %v6475
      %6570 = vst.msk [vmem:[#allocation3 + $0x8] sm:$0xf] %vm4079, %v6477
      %6571 = vst.msk [vmem:[#allocation3 + $0xc] sm:$0xf] %vm4079, %v6479
      %6572 = vst.msk [vmem:[#allocation3 + $0x10] sm:$0xf] %vm4079, %v6481
      %6573 = vst.msk [vmem:[#allocation3 + $0x14] sm:$0xf] %vm4079, %v6483
      %6574 = vst.msk [vmem:[#allocation3 + $0x18] sm:$0xf] %vm4079, %v6485
      %6575 = vst.msk [vmem:[#allocation3 + $0x1c] sm:$0xf] %vm4079, %v6487
      %6576 = vst.msk [vmem:[#allocation3 + $0x20] sm:$0xf] %vm4079, %v6489
      %6577 = vst.msk [vmem:[#allocation3 + $0x24] sm:$0xf] %vm4079, %v6491
      %6578 = vst.msk [vmem:[#allocation3 + $0x28] sm:$0xf] %vm4079, %v6493
      %6579 = vst.msk [vmem:[#allocation3 + $0x2c] sm:$0xf] %vm4079, %v6495
      %6580 = vst.msk [vmem:[#allocation3 + $0x30] sm:$0xf] %vm4079, %v6497
      %6581 = vst.msk [vmem:[#allocation3 + $0x34] sm:$0xf] %vm4079, %v6499
      %6582 = vst.msk [vmem:[#allocation3 + $0x38] sm:$0xf] %vm4079, %v6501
      %6583 = vst.msk [vmem:[#allocation3 + $0x3c] sm:$0xf] %vm4079, %v6503
      %6584 = vst.msk [vmem:[#allocation3 + $0x40] sm:$0xf] %vm4079, %v6505
      %6585 = vst.msk [vmem:[#allocation3 + $0x44] sm:$0xf] %vm4079, %v6507
      %6586 = vst.msk [vmem:[#allocation3 + $0x48] sm:$0xf] %vm4079, %v6509
      %6587 = vst.msk [vmem:[#allocation3 + $0x4c] sm:$0xf] %vm4079, %v6511
      %6588 = vst.msk [vmem:[#allocation3 + $0x50] sm:$0xf] %vm4079, %v6513
      %6589 = vst.msk [vmem:[#allocation3 + $0x54] sm:$0xf] %vm4079, %v6515
      %6590 = vst.msk [vmem:[#allocation3 + $0x58] sm:$0xf] %vm4079, %v6517
      %6591 = vst.msk [vmem:[#allocation3 + $0x5c] sm:$0xf] %vm4079, %v6519
      %6592 = vst.msk [vmem:[#allocation3 + $0x60] sm:$0xf] %vm4079, %v6521
      %6593 = vst.msk [vmem:[#allocation3 + $0x64] sm:$0xf] %vm4079, %v6523
      %6594 = vst.msk [vmem:[#allocation3 + $0x68] sm:$0xf] %vm4079, %v6525
      %6595 = vst.msk [vmem:[#allocation3 + $0x6c] sm:$0xf] %vm4079, %v6527
      %6596 = vst.msk [vmem:[#allocation3 + $0x70] sm:$0xf] %vm4079, %v6529
      %6597 = vst.msk [vmem:[#allocation3 + $0x74] sm:$0xf] %vm4079, %v6531
      %6598 = vst.msk [vmem:[#allocation3 + $0x78] sm:$0xf] %vm4079, %v6533
      %6599 = vst.msk [vmem:[#allocation3 + $0x7c] sm:$0xf] %vm4079, %v6535
      %v6600 = vld [vmem:[%s1719] sm:$0xff]
      %v6601 = vld [vmem:[%s1719 + $0x8] sm:$0xff]
      %v6602 = vld [vmem:[%s1719 + $0x18] sm:$0xff]
      %v6603 = vld [vmem:[%s1719 + $0x20] sm:$0xff]
      %v6604 = vld [vmem:[%s1719 + $0x30] sm:$0xff]
      %v6605 = vld [vmem:[%s1719 + $0x38] sm:$0xff]
      %v6606 = vld [vmem:[%s1719 + $0x48] sm:$0xff]
      %v6607 = vld [vmem:[%s1719 + $0x50] sm:$0xff]
      %v6608 = vld [vmem:[%s1719 + $0x60] sm:$0xff]
      %v6609 = vld [vmem:[%s1719 + $0x68] sm:$0xff]
      %v6610 = vld [vmem:[%s1719 + $0x78] sm:$0xff]
      %v6611 = vld [vmem:[%s1719 + $0x80] sm:$0xff]
      %v6612 = vld [vmem:[%s1719 + $0x90] sm:$0xff]
      %v6613 = vld [vmem:[%s1719 + $0x98] sm:$0xff]
      %v6614 = vld [vmem:[%s1719 + $0xa8] sm:$0xff]
      %v6615 = vld [vmem:[%s1719 + $0xb0] sm:$0xff]
      %v6616 = vld [vmem:[%s1719 + $0xc0] sm:$0xff]
      %v6617 = vld [vmem:[%s1719 + $0xc8] sm:$0xff]
      %v6618 = vld [vmem:[%s1719 + $0xd8] sm:$0xff]
      %v6619 = vld [vmem:[%s1719 + $0xe0] sm:$0xff]
      %v6620 = vld [vmem:[%s1719 + $0xf0] sm:$0xff]
      %v6621 = vld [vmem:[%s1719 + $0xf8] sm:$0xff]
      %v6622 = vld [vmem:[%s1719 + $0x108] sm:$0xff]
      %v6623 = vld [vmem:[%s1719 + $0x110] sm:$0xff]
      %v6624 = vld [vmem:[%s1719 + $0x120] sm:$0xff]
      %v6625 = vld [vmem:[%s1719 + $0x128] sm:$0xff]
      %v6626 = vld [vmem:[%s1719 + $0x138] sm:$0xff]
      %v6627 = vld [vmem:[%s1719 + $0x140] sm:$0xff]
      %v6628 = vld [vmem:[%s1719 + $0x150] sm:$0xff]
      %v6629 = vld [vmem:[%s1719 + $0x158] sm:$0xff]
      %v6630 = vld [vmem:[%s1719 + $0x168] sm:$0xff]
      %v6631 = vld [vmem:[%s1719 + $0x170] sm:$0xff]
      %v6632 = vpack.c.bf16 %v6600, %v6600
      %v6633 = vpack.c.bf16 %v6601, %v6601
      %v6634 = vpack.c.bf16 %v6602, %v6602
      %v6635 = vpack.c.bf16 %v6603, %v6603
      %v6636 = vpack.c.bf16 %v6604, %v6604
      %v6637 = vpack.c.bf16 %v6605, %v6605
      %v6638 = vpack.c.bf16 %v6606, %v6606
      %v6639 = vpack.c.bf16 %v6607, %v6607
      %v6640 = vpack.c.bf16 %v6608, %v6608
      %v6641 = vpack.c.bf16 %v6609, %v6609
      %v6642 = vpack.c.bf16 %v6610, %v6610
      %v6643 = vpack.c.bf16 %v6611, %v6611
      %v6644 = vpack.c.bf16 %v6612, %v6612
      %v6645 = vpack.c.bf16 %v6613, %v6613
      %v6646 = vpack.c.bf16 %v6614, %v6614
      %v6647 = vpack.c.bf16 %v6615, %v6615
      %v6648 = vpack.c.bf16 %v6616, %v6616
      %v6649 = vpack.c.bf16 %v6617, %v6617
      %v6650 = vpack.c.bf16 %v6618, %v6618
      %v6651 = vpack.c.bf16 %v6619, %v6619
      %v6652 = vpack.c.bf16 %v6620, %v6620
      %v6653 = vpack.c.bf16 %v6621, %v6621
      %v6654 = vpack.c.bf16 %v6622, %v6622
      %v6655 = vpack.c.bf16 %v6623, %v6623
      %v6656 = vpack.c.bf16 %v6624, %v6624
      %v6657 = vpack.c.bf16 %v6625, %v6625
      %v6658 = vpack.c.bf16 %v6626, %v6626
      %v6659 = vpack.c.bf16 %v6627, %v6627
      %v6660 = vpack.c.bf16 %v6628, %v6628
      %v6661 = vpack.c.bf16 %v6629, %v6629
      %v6662 = vpack.c.bf16 %v6630, %v6630
      %v6663 = vpack.c.bf16 %v6631, %v6631
      %6696 = vrot.lane.b32.xlu0 %v6632, 48
      %v6697 = vpop.permute.xlu0 %6696
      %6698 = vrot.lane.b32.xlu0 %v6633, 48
      %v6699 = vpop.permute.xlu0 %6698
      %6700 = vrot.lane.b32.xlu0 %v6634, 48
      %v6701 = vpop.permute.xlu0 %6700
      %6702 = vrot.lane.b32.xlu0 %v6635, 48
      %v6703 = vpop.permute.xlu0 %6702
      %6704 = vrot.lane.b32.xlu0 %v6636, 48
      %v6705 = vpop.permute.xlu0 %6704
      %6706 = vrot.lane.b32.xlu0 %v6637, 48
      %v6707 = vpop.permute.xlu0 %6706
      %6708 = vrot.lane.b32.xlu0 %v6638, 48
      %v6709 = vpop.permute.xlu0 %6708
      %6710 = vrot.lane.b32.xlu0 %v6639, 48
      %v6711 = vpop.permute.xlu0 %6710
      %6712 = vrot.lane.b32.xlu0 %v6640, 48
      %v6713 = vpop.permute.xlu0 %6712
      %6714 = vrot.lane.b32.xlu0 %v6641, 48
      %v6715 = vpop.permute.xlu0 %6714
      %6716 = vrot.lane.b32.xlu0 %v6642, 48
      %v6717 = vpop.permute.xlu0 %6716
      %6718 = vrot.lane.b32.xlu0 %v6643, 48
      %v6719 = vpop.permute.xlu0 %6718
      %6720 = vrot.lane.b32.xlu0 %v6644, 48
      %v6721 = vpop.permute.xlu0 %6720
      %6722 = vrot.lane.b32.xlu0 %v6645, 48
      %v6723 = vpop.permute.xlu0 %6722
      %6724 = vrot.lane.b32.xlu0 %v6646, 48
      %v6725 = vpop.permute.xlu0 %6724
      %6726 = vrot.lane.b32.xlu0 %v6647, 48
      %v6727 = vpop.permute.xlu0 %6726
      %6728 = vrot.lane.b32.xlu0 %v6648, 48
      %v6729 = vpop.permute.xlu0 %6728
      %6730 = vrot.lane.b32.xlu0 %v6649, 48
      %v6731 = vpop.permute.xlu0 %6730
      %6732 = vrot.lane.b32.xlu0 %v6650, 48
      %v6733 = vpop.permute.xlu0 %6732
      %6734 = vrot.lane.b32.xlu0 %v6651, 48
      %v6735 = vpop.permute.xlu0 %6734
      %6736 = vrot.lane.b32.xlu0 %v6652, 48
      %v6737 = vpop.permute.xlu0 %6736
      %6738 = vrot.lane.b32.xlu0 %v6653, 48
      %v6739 = vpop.permute.xlu0 %6738
      %6740 = vrot.lane.b32.xlu0 %v6654, 48
      %v6741 = vpop.permute.xlu0 %6740
      %6742 = vrot.lane.b32.xlu0 %v6655, 48
      %v6743 = vpop.permute.xlu0 %6742
      %6744 = vrot.lane.b32.xlu0 %v6656, 48
      %v6745 = vpop.permute.xlu0 %6744
      %6746 = vrot.lane.b32.xlu0 %v6657, 48
      %v6747 = vpop.permute.xlu0 %6746
      %6748 = vrot.lane.b32.xlu0 %v6658, 48
      %v6749 = vpop.permute.xlu0 %6748
      %6750 = vrot.lane.b32.xlu0 %v6659, 48
      %v6751 = vpop.permute.xlu0 %6750
      %6752 = vrot.lane.b32.xlu0 %v6660, 48
      %v6753 = vpop.permute.xlu0 %6752
      %6754 = vrot.lane.b32.xlu0 %v6661, 48
      %v6755 = vpop.permute.xlu0 %6754
      %6756 = vrot.lane.b32.xlu0 %v6662, 48
      %v6757 = vpop.permute.xlu0 %6756
      %6758 = vrot.lane.b32.xlu0 %v6663, 48
      %v6759 = vpop.permute.xlu0 %6758
      %6792 = vst.msk [vmem:[#allocation3] sm:$0xf] %vm4304, %v6697
      %6793 = vst.msk [vmem:[#allocation3 + $0x4] sm:$0xf] %vm4304, %v6699
      %6794 = vst.msk [vmem:[#allocation3 + $0x8] sm:$0xf] %vm4304, %v6701
      %6795 = vst.msk [vmem:[#allocation3 + $0xc] sm:$0xf] %vm4304, %v6703
      %6796 = vst.msk [vmem:[#allocation3 + $0x10] sm:$0xf] %vm4304, %v6705
      %6797 = vst.msk [vmem:[#allocation3 + $0x14] sm:$0xf] %vm4304, %v6707
      %6798 = vst.msk [vmem:[#allocation3 + $0x18] sm:$0xf] %vm4304, %v6709
      %6799 = vst.msk [vmem:[#allocation3 + $0x1c] sm:$0xf] %vm4304, %v6711
      %6800 = vst.msk [vmem:[#allocation3 + $0x20] sm:$0xf] %vm4304, %v6713
      %6801 = vst.msk [vmem:[#allocation3 + $0x24] sm:$0xf] %vm4304, %v6715
      %6802 = vst.msk [vmem:[#allocation3 + $0x28] sm:$0xf] %vm4304, %v6717
      %6803 = vst.msk [vmem:[#allocation3 + $0x2c] sm:$0xf] %vm4304, %v6719
      %6804 = vst.msk [vmem:[#allocation3 + $0x30] sm:$0xf] %vm4304, %v6721
      %6805 = vst.msk [vmem:[#allocation3 + $0x34] sm:$0xf] %vm4304, %v6723
      %6806 = vst.msk [vmem:[#allocation3 + $0x38] sm:$0xf] %vm4304, %v6725
      %6807 = vst.msk [vmem:[#allocation3 + $0x3c] sm:$0xf] %vm4304, %v6727
      %6808 = vst.msk [vmem:[#allocation3 + $0x40] sm:$0xf] %vm4304, %v6729
      %6809 = vst.msk [vmem:[#allocation3 + $0x44] sm:$0xf] %vm4304, %v6731
      %6810 = vst.msk [vmem:[#allocation3 + $0x48] sm:$0xf] %vm4304, %v6733
      %6811 = vst.msk [vmem:[#allocation3 + $0x4c] sm:$0xf] %vm4304, %v6735
      %6812 = vst.msk [vmem:[#allocation3 + $0x50] sm:$0xf] %vm4304, %v6737
      %6813 = vst.msk [vmem:[#allocation3 + $0x54] sm:$0xf] %vm4304, %v6739
      %6814 = vst.msk [vmem:[#allocation3 + $0x58] sm:$0xf] %vm4304, %v6741
      %6815 = vst.msk [vmem:[#allocation3 + $0x5c] sm:$0xf] %vm4304, %v6743
      %6816 = vst.msk [vmem:[#allocation3 + $0x60] sm:$0xf] %vm4304, %v6745
      %6817 = vst.msk [vmem:[#allocation3 + $0x64] sm:$0xf] %vm4304, %v6747
      %6818 = vst.msk [vmem:[#allocation3 + $0x68] sm:$0xf] %vm4304, %v6749
      %6819 = vst.msk [vmem:[#allocation3 + $0x6c] sm:$0xf] %vm4304, %v6751
      %6820 = vst.msk [vmem:[#allocation3 + $0x70] sm:$0xf] %vm4304, %v6753
      %6821 = vst.msk [vmem:[#allocation3 + $0x74] sm:$0xf] %vm4304, %v6755
      %6822 = vst.msk [vmem:[#allocation3 + $0x78] sm:$0xf] %vm4304, %v6757
      %6823 = vst.msk [vmem:[#allocation3 + $0x7c] sm:$0xf] %vm4304, %v6759
      %v6824 = vld [vmem:[%s1719 + $0x1] sm:$0xff]
      %v6825 = vld [vmem:[%s1719 + $0x9] sm:$0xff]
      %v6826 = vld [vmem:[%s1719 + $0x19] sm:$0xff]
      %v6827 = vld [vmem:[%s1719 + $0x21] sm:$0xff]
      %v6828 = vld [vmem:[%s1719 + $0x31] sm:$0xff]
      %v6829 = vld [vmem:[%s1719 + $0x39] sm:$0xff]
      %v6830 = vld [vmem:[%s1719 + $0x49] sm:$0xff]
      %v6831 = vld [vmem:[%s1719 + $0x51] sm:$0xff]
      %v6832 = vld [vmem:[%s1719 + $0x61] sm:$0xff]
      %v6833 = vld [vmem:[%s1719 + $0x69] sm:$0xff]
      %v6834 = vld [vmem:[%s1719 + $0x79] sm:$0xff]
      %v6835 = vld [vmem:[%s1719 + $0x81] sm:$0xff]
      %v6836 = vld [vmem:[%s1719 + $0x91] sm:$0xff]
      %v6837 = vld [vmem:[%s1719 + $0x99] sm:$0xff]
      %v6838 = vld [vmem:[%s1719 + $0xa9] sm:$0xff]
      %v6839 = vld [vmem:[%s1719 + $0xb1] sm:$0xff]
      %v6840 = vld [vmem:[%s1719 + $0xc1] sm:$0xff]
      %v6841 = vld [vmem:[%s1719 + $0xc9] sm:$0xff]
      %v6842 = vld [vmem:[%s1719 + $0xd9] sm:$0xff]
      %v6843 = vld [vmem:[%s1719 + $0xe1] sm:$0xff]
      %v6844 = vld [vmem:[%s1719 + $0xf1] sm:$0xff]
      %v6845 = vld [vmem:[%s1719 + $0xf9] sm:$0xff]
      %v6846 = vld [vmem:[%s1719 + $0x109] sm:$0xff]
      %v6847 = vld [vmem:[%s1719 + $0x111] sm:$0xff]
      %v6848 = vld [vmem:[%s1719 + $0x121] sm:$0xff]
      %v6849 = vld [vmem:[%s1719 + $0x129] sm:$0xff]
      %v6850 = vld [vmem:[%s1719 + $0x139] sm:$0xff]
      %v6851 = vld [vmem:[%s1719 + $0x141] sm:$0xff]
      %v6852 = vld [vmem:[%s1719 + $0x151] sm:$0xff]
      %v6853 = vld [vmem:[%s1719 + $0x159] sm:$0xff]
      %v6854 = vld [vmem:[%s1719 + $0x169] sm:$0xff]
      %v6855 = vld [vmem:[%s1719 + $0x171] sm:$0xff]
      %v6856 = vpack.c.bf16 %v6824, %v6824
      %v6857 = vpack.c.bf16 %v6825, %v6825
      %v6858 = vpack.c.bf16 %v6826, %v6826
      %v6859 = vpack.c.bf16 %v6827, %v6827
      %v6860 = vpack.c.bf16 %v6828, %v6828
      %v6861 = vpack.c.bf16 %v6829, %v6829
      %v6862 = vpack.c.bf16 %v6830, %v6830
      %v6863 = vpack.c.bf16 %v6831, %v6831
      %v6864 = vpack.c.bf16 %v6832, %v6832
      %v6865 = vpack.c.bf16 %v6833, %v6833
      %v6866 = vpack.c.bf16 %v6834, %v6834
      %v6867 = vpack.c.bf16 %v6835, %v6835
      %v6868 = vpack.c.bf16 %v6836, %v6836
      %v6869 = vpack.c.bf16 %v6837, %v6837
      %v6870 = vpack.c.bf16 %v6838, %v6838
      %v6871 = vpack.c.bf16 %v6839, %v6839
      %v6872 = vpack.c.bf16 %v6840, %v6840
      %v6873 = vpack.c.bf16 %v6841, %v6841
      %v6874 = vpack.c.bf16 %v6842, %v6842
      %v6875 = vpack.c.bf16 %v6843, %v6843
      %v6876 = vpack.c.bf16 %v6844, %v6844
      %v6877 = vpack.c.bf16 %v6845, %v6845
      %v6878 = vpack.c.bf16 %v6846, %v6846
      %v6879 = vpack.c.bf16 %v6847, %v6847
      %v6880 = vpack.c.bf16 %v6848, %v6848
      %v6881 = vpack.c.bf16 %v6849, %v6849
      %v6882 = vpack.c.bf16 %v6850, %v6850
      %v6883 = vpack.c.bf16 %v6851, %v6851
      %v6884 = vpack.c.bf16 %v6852, %v6852
      %v6885 = vpack.c.bf16 %v6853, %v6853
      %v6886 = vpack.c.bf16 %v6854, %v6854
      %v6887 = vpack.c.bf16 %v6855, %v6855
      %6920 = vrot.lane.b32.xlu0 %v6856, 56
      %v6921 = vpop.permute.xlu0 %6920
      %6922 = vrot.lane.b32.xlu0 %v6857, 56
      %v6923 = vpop.permute.xlu0 %6922
      %6924 = vrot.lane.b32.xlu0 %v6858, 56
      %v6925 = vpop.permute.xlu0 %6924
      %6926 = vrot.lane.b32.xlu0 %v6859, 56
      %v6927 = vpop.permute.xlu0 %6926
      %6928 = vrot.lane.b32.xlu0 %v6860, 56
      %v6929 = vpop.permute.xlu0 %6928
      %6930 = vrot.lane.b32.xlu0 %v6861, 56
      %v6931 = vpop.permute.xlu0 %6930
      %6932 = vrot.lane.b32.xlu0 %v6862, 56
      %v6933 = vpop.permute.xlu0 %6932
      %6934 = vrot.lane.b32.xlu0 %v6863, 56
      %v6935 = vpop.permute.xlu0 %6934
      %6936 = vrot.lane.b32.xlu0 %v6864, 56
      %v6937 = vpop.permute.xlu0 %6936
      %6938 = vrot.lane.b32.xlu0 %v6865, 56
      %v6939 = vpop.permute.xlu0 %6938
      %6940 = vrot.lane.b32.xlu0 %v6866, 56
      %v6941 = vpop.permute.xlu0 %6940
      %6942 = vrot.lane.b32.xlu0 %v6867, 56
      %v6943 = vpop.permute.xlu0 %6942
      %6944 = vrot.lane.b32.xlu0 %v6868, 56
      %v6945 = vpop.permute.xlu0 %6944
      %6946 = vrot.lane.b32.xlu0 %v6869, 56
      %v6947 = vpop.permute.xlu0 %6946
      %6948 = vrot.lane.b32.xlu0 %v6870, 56
      %v6949 = vpop.permute.xlu0 %6948
      %6950 = vrot.lane.b32.xlu0 %v6871, 56
      %v6951 = vpop.permute.xlu0 %6950
      %6952 = vrot.lane.b32.xlu0 %v6872, 56
      %v6953 = vpop.permute.xlu0 %6952
      %6954 = vrot.lane.b32.xlu0 %v6873, 56
      %v6955 = vpop.permute.xlu0 %6954
      %6956 = vrot.lane.b32.xlu0 %v6874, 56
      %v6957 = vpop.permute.xlu0 %6956
      %6958 = vrot.lane.b32.xlu0 %v6875, 56
      %v6959 = vpop.permute.xlu0 %6958
      %6960 = vrot.lane.b32.xlu0 %v6876, 56
      %v6961 = vpop.permute.xlu0 %6960
      %6962 = vrot.lane.b32.xlu0 %v6877, 56
      %v6963 = vpop.permute.xlu0 %6962
      %6964 = vrot.lane.b32.xlu0 %v6878, 56
      %v6965 = vpop.permute.xlu0 %6964
      %6966 = vrot.lane.b32.xlu0 %v6879, 56
      %v6967 = vpop.permute.xlu0 %6966
      %6968 = vrot.lane.b32.xlu0 %v6880, 56
      %v6969 = vpop.permute.xlu0 %6968
      %6970 = vrot.lane.b32.xlu0 %v6881, 56
      %v6971 = vpop.permute.xlu0 %6970
      %6972 = vrot.lane.b32.xlu0 %v6882, 56
      %v6973 = vpop.permute.xlu0 %6972
      %6974 = vrot.lane.b32.xlu0 %v6883, 56
      %v6975 = vpop.permute.xlu0 %6974
      %6976 = vrot.lane.b32.xlu0 %v6884, 56
      %v6977 = vpop.permute.xlu0 %6976
      %6978 = vrot.lane.b32.xlu0 %v6885, 56
      %v6979 = vpop.permute.xlu0 %6978
      %6980 = vrot.lane.b32.xlu0 %v6886, 56
      %v6981 = vpop.permute.xlu0 %6980
      %6982 = vrot.lane.b32.xlu0 %v6887, 56
      %v6983 = vpop.permute.xlu0 %6982
      %7016 = vst.msk [vmem:[#allocation3] sm:$0xf] %vm4529, %v6921
      %7017 = vst.msk [vmem:[#allocation3 + $0x4] sm:$0xf] %vm4529, %v6923
      %7018 = vst.msk [vmem:[#allocation3 + $0x8] sm:$0xf] %vm4529, %v6925
      %7019 = vst.msk [vmem:[#allocation3 + $0xc] sm:$0xf] %vm4529, %v6927
      %7020 = vst.msk [vmem:[#allocation3 + $0x10] sm:$0xf] %vm4529, %v6929
      %7021 = vst.msk [vmem:[#allocation3 + $0x14] sm:$0xf] %vm4529, %v6931
      %7022 = vst.msk [vmem:[#allocation3 + $0x18] sm:$0xf] %vm4529, %v6933
      %7023 = vst.msk [vmem:[#allocation3 + $0x1c] sm:$0xf] %vm4529, %v6935
      %7024 = vst.msk [vmem:[#allocation3 + $0x20] sm:$0xf] %vm4529, %v6937
      %7025 = vst.msk [vmem:[#allocation3 + $0x24] sm:$0xf] %vm4529, %v6939
      %7026 = vst.msk [vmem:[#allocation3 + $0x28] sm:$0xf] %vm4529, %v6941
      %7027 = vst.msk [vmem:[#allocation3 + $0x2c] sm:$0xf] %vm4529, %v6943
      %7028 = vst.msk [vmem:[#allocation3 + $0x30] sm:$0xf] %vm4529, %v6945
      %7029 = vst.msk [vmem:[#allocation3 + $0x34] sm:$0xf] %vm4529, %v6947
      %7030 = vst.msk [vmem:[#allocation3 + $0x38] sm:$0xf] %vm4529, %v6949
      %7031 = vst.msk [vmem:[#allocation3 + $0x3c] sm:$0xf] %vm4529, %v6951
      %7032 = vst.msk [vmem:[#allocation3 + $0x40] sm:$0xf] %vm4529, %v6953
      %7033 = vst.msk [vmem:[#allocation3 + $0x44] sm:$0xf] %vm4529, %v6955
      %7034 = vst.msk [vmem:[#allocation3 + $0x48] sm:$0xf] %vm4529, %v6957
      %7035 = vst.msk [vmem:[#allocation3 + $0x4c] sm:$0xf] %vm4529, %v6959
      %7036 = vst.msk [vmem:[#allocation3 + $0x50] sm:$0xf] %vm4529, %v6961
      %7037 = vst.msk [vmem:[#allocation3 + $0x54] sm:$0xf] %vm4529, %v6963
      %7038 = vst.msk [vmem:[#allocation3 + $0x58] sm:$0xf] %vm4529, %v6965
      %7039 = vst.msk [vmem:[#allocation3 + $0x5c] sm:$0xf] %vm4529, %v6967
      %7040 = vst.msk [vmem:[#allocation3 + $0x60] sm:$0xf] %vm4529, %v6969
      %7041 = vst.msk [vmem:[#allocation3 + $0x64] sm:$0xf] %vm4529, %v6971
      %7042 = vst.msk [vmem:[#allocation3 + $0x68] sm:$0xf] %vm4529, %v6973
      %7043 = vst.msk [vmem:[#allocation3 + $0x6c] sm:$0xf] %vm4529, %v6975
      %7044 = vst.msk [vmem:[#allocation3 + $0x70] sm:$0xf] %vm4529, %v6977
      %7045 = vst.msk [vmem:[#allocation3 + $0x74] sm:$0xf] %vm4529, %v6979
      %7046 = vst.msk [vmem:[#allocation3 + $0x78] sm:$0xf] %vm4529, %v6981
      %7047 = vst.msk [vmem:[#allocation3 + $0x7c] sm:$0xf] %vm4529, %v6983
      %v7048 = vld [vmem:[%s1719 + $0x2] sm:$0xff]
      %v7049 = vld [vmem:[%s1719 + $0xa] sm:$0xff]
      %v7050 = vld [vmem:[%s1719 + $0x1a] sm:$0xff]
      %v7051 = vld [vmem:[%s1719 + $0x22] sm:$0xff]
      %v7052 = vld [vmem:[%s1719 + $0x32] sm:$0xff]
      %v7053 = vld [vmem:[%s1719 + $0x3a] sm:$0xff]
      %v7054 = vld [vmem:[%s1719 + $0x4a] sm:$0xff]
      %v7055 = vld [vmem:[%s1719 + $0x52] sm:$0xff]
      %v7056 = vld [vmem:[%s1719 + $0x62] sm:$0xff]
      %v7057 = vld [vmem:[%s1719 + $0x6a] sm:$0xff]
      %v7058 = vld [vmem:[%s1719 + $0x7a] sm:$0xff]
      %v7059 = vld [vmem:[%s1719 + $0x82] sm:$0xff]
      %v7060 = vld [vmem:[%s1719 + $0x92] sm:$0xff]
      %v7061 = vld [vmem:[%s1719 + $0x9a] sm:$0xff]
      %v7062 = vld [vmem:[%s1719 + $0xaa] sm:$0xff]
      %v7063 = vld [vmem:[%s1719 + $0xb2] sm:$0xff]
      %v7064 = vld [vmem:[%s1719 + $0xc2] sm:$0xff]
      %v7065 = vld [vmem:[%s1719 + $0xca] sm:$0xff]
      %v7066 = vld [vmem:[%s1719 + $0xda] sm:$0xff]
      %v7067 = vld [vmem:[%s1719 + $0xe2] sm:$0xff]
      %v7068 = vld [vmem:[%s1719 + $0xf2] sm:$0xff]
      %v7069 = vld [vmem:[%s1719 + $0xfa] sm:$0xff]
      %v7070 = vld [vmem:[%s1719 + $0x10a] sm:$0xff]
      %v7071 = vld [vmem:[%s1719 + $0x112] sm:$0xff]
      %v7072 = vld [vmem:[%s1719 + $0x122] sm:$0xff]
      %v7073 = vld [vmem:[%s1719 + $0x12a] sm:$0xff]
      %v7074 = vld [vmem:[%s1719 + $0x13a] sm:$0xff]
      %v7075 = vld [vmem:[%s1719 + $0x142] sm:$0xff]
      %v7076 = vld [vmem:[%s1719 + $0x152] sm:$0xff]
      %v7077 = vld [vmem:[%s1719 + $0x15a] sm:$0xff]
      %v7078 = vld [vmem:[%s1719 + $0x16a] sm:$0xff]
      %v7079 = vld [vmem:[%s1719 + $0x172] sm:$0xff]
      %v7080 = vpack.c.bf16 %v7048, %v7048
      %v7081 = vpack.c.bf16 %v7049, %v7049
      %v7082 = vpack.c.bf16 %v7050, %v7050
      %v7083 = vpack.c.bf16 %v7051, %v7051
      %v7084 = vpack.c.bf16 %v7052, %v7052
      %v7085 = vpack.c.bf16 %v7053, %v7053
      %v7086 = vpack.c.bf16 %v7054, %v7054
      %v7087 = vpack.c.bf16 %v7055, %v7055
      %v7088 = vpack.c.bf16 %v7056, %v7056
      %v7089 = vpack.c.bf16 %v7057, %v7057
      %v7090 = vpack.c.bf16 %v7058, %v7058
      %v7091 = vpack.c.bf16 %v7059, %v7059
      %v7092 = vpack.c.bf16 %v7060, %v7060
      %v7093 = vpack.c.bf16 %v7061, %v7061
      %v7094 = vpack.c.bf16 %v7062, %v7062
      %v7095 = vpack.c.bf16 %v7063, %v7063
      %v7096 = vpack.c.bf16 %v7064, %v7064
      %v7097 = vpack.c.bf16 %v7065, %v7065
      %v7098 = vpack.c.bf16 %v7066, %v7066
      %v7099 = vpack.c.bf16 %v7067, %v7067
      %v7100 = vpack.c.bf16 %v7068, %v7068
      %v7101 = vpack.c.bf16 %v7069, %v7069
      %v7102 = vpack.c.bf16 %v7070, %v7070
      %v7103 = vpack.c.bf16 %v7071, %v7071
      %v7104 = vpack.c.bf16 %v7072, %v7072
      %v7105 = vpack.c.bf16 %v7073, %v7073
      %v7106 = vpack.c.bf16 %v7074, %v7074
      %v7107 = vpack.c.bf16 %v7075, %v7075
      %v7108 = vpack.c.bf16 %v7076, %v7076
      %v7109 = vpack.c.bf16 %v7077, %v7077
      %v7110 = vpack.c.bf16 %v7078, %v7078
      %v7111 = vpack.c.bf16 %v7079, %v7079
      %7144 = vrot.lane.b32.xlu0 %v7080, 64
      %v7145 = vpop.permute.xlu0 %7144
      %7146 = vrot.lane.b32.xlu0 %v7081, 64
      %v7147 = vpop.permute.xlu0 %7146
      %7148 = vrot.lane.b32.xlu0 %v7082, 64
      %v7149 = vpop.permute.xlu0 %7148
      %7150 = vrot.lane.b32.xlu0 %v7083, 64
      %v7151 = vpop.permute.xlu0 %7150
      %7152 = vrot.lane.b32.xlu0 %v7084, 64
      %v7153 = vpop.permute.xlu0 %7152
      %7154 = vrot.lane.b32.xlu0 %v7085, 64
      %v7155 = vpop.permute.xlu0 %7154
      %7156 = vrot.lane.b32.xlu0 %v7086, 64
      %v7157 = vpop.permute.xlu0 %7156
      %7158 = vrot.lane.b32.xlu0 %v7087, 64
      %v7159 = vpop.permute.xlu0 %7158
      %7160 = vrot.lane.b32.xlu0 %v7088, 64
      %v7161 = vpop.permute.xlu0 %7160
      %7162 = vrot.lane.b32.xlu0 %v7089, 64
      %v7163 = vpop.permute.xlu0 %7162
      %7164 = vrot.lane.b32.xlu0 %v7090, 64
      %v7165 = vpop.permute.xlu0 %7164
      %7166 = vrot.lane.b32.xlu0 %v7091, 64
      %v7167 = vpop.permute.xlu0 %7166
      %7168 = vrot.lane.b32.xlu0 %v7092, 64
      %v7169 = vpop.permute.xlu0 %7168
      %7170 = vrot.lane.b32.xlu0 %v7093, 64
      %v7171 = vpop.permute.xlu0 %7170
      %7172 = vrot.lane.b32.xlu0 %v7094, 64
      %v7173 = vpop.permute.xlu0 %7172
      %7174 = vrot.lane.b32.xlu0 %v7095, 64
      %v7175 = vpop.permute.xlu0 %7174
      %7176 = vrot.lane.b32.xlu0 %v7096, 64
      %v7177 = vpop.permute.xlu0 %7176
      %7178 = vrot.lane.b32.xlu0 %v7097, 64
      %v7179 = vpop.permute.xlu0 %7178
      %7180 = vrot.lane.b32.xlu0 %v7098, 64
      %v7181 = vpop.permute.xlu0 %7180
      %7182 = vrot.lane.b32.xlu0 %v7099, 64
      %v7183 = vpop.permute.xlu0 %7182
      %7184 = vrot.lane.b32.xlu0 %v7100, 64
      %v7185 = vpop.permute.xlu0 %7184
      %7186 = vrot.lane.b32.xlu0 %v7101, 64
      %v7187 = vpop.permute.xlu0 %7186
      %7188 = vrot.lane.b32.xlu0 %v7102, 64
      %v7189 = vpop.permute.xlu0 %7188
      %7190 = vrot.lane.b32.xlu0 %v7103, 64
      %v7191 = vpop.permute.xlu0 %7190
      %7192 = vrot.lane.b32.xlu0 %v7104, 64
      %v7193 = vpop.permute.xlu0 %7192
      %7194 = vrot.lane.b32.xlu0 %v7105, 64
      %v7195 = vpop.permute.xlu0 %7194
      %7196 = vrot.lane.b32.xlu0 %v7106, 64
      %v7197 = vpop.permute.xlu0 %7196
      %7198 = vrot.lane.b32.xlu0 %v7107, 64
      %v7199 = vpop.permute.xlu0 %7198
      %7200 = vrot.lane.b32.xlu0 %v7108, 64
      %v7201 = vpop.permute.xlu0 %7200
      %7202 = vrot.lane.b32.xlu0 %v7109, 64
      %v7203 = vpop.permute.xlu0 %7202
      %7204 = vrot.lane.b32.xlu0 %v7110, 64
      %v7205 = vpop.permute.xlu0 %7204
      %7206 = vrot.lane.b32.xlu0 %v7111, 64
      %v7207 = vpop.permute.xlu0 %7206
      %7240 = vst.msk [vmem:[#allocation3] sm:$0xf] %vm4754, %v7145
      %7241 = vst.msk [vmem:[#allocation3 + $0x4] sm:$0xf] %vm4754, %v7147
      %7242 = vst.msk [vmem:[#allocation3 + $0x8] sm:$0xf] %vm4754, %v7149
      %7243 = vst.msk [vmem:[#allocation3 + $0xc] sm:$0xf] %vm4754, %v7151
      %7244 = vst.msk [vmem:[#allocation3 + $0x10] sm:$0xf] %vm4754, %v7153
      %7245 = vst.msk [vmem:[#allocation3 + $0x14] sm:$0xf] %vm4754, %v7155
      %7246 = vst.msk [vmem:[#allocation3 + $0x18] sm:$0xf] %vm4754, %v7157
      %7247 = vst.msk [vmem:[#allocation3 + $0x1c] sm:$0xf] %vm4754, %v7159
      %7248 = vst.msk [vmem:[#allocation3 + $0x20] sm:$0xf] %vm4754, %v7161
      %7249 = vst.msk [vmem:[#allocation3 + $0x24] sm:$0xf] %vm4754, %v7163
      %7250 = vst.msk [vmem:[#allocation3 + $0x28] sm:$0xf] %vm4754, %v7165
      %7251 = vst.msk [vmem:[#allocation3 + $0x2c] sm:$0xf] %vm4754, %v7167
      %7252 = vst.msk [vmem:[#allocation3 + $0x30] sm:$0xf] %vm4754, %v7169
      %7253 = vst.msk [vmem:[#allocation3 + $0x34] sm:$0xf] %vm4754, %v7171
      %7254 = vst.msk [vmem:[#allocation3 + $0x38] sm:$0xf] %vm4754, %v7173
      %7255 = vst.msk [vmem:[#allocation3 + $0x3c] sm:$0xf] %vm4754, %v7175
      %7256 = vst.msk [vmem:[#allocation3 + $0x40] sm:$0xf] %vm4754, %v7177
      %7257 = vst.msk [vmem:[#allocation3 + $0x44] sm:$0xf] %vm4754, %v7179
      %7258 = vst.msk [vmem:[#allocation3 + $0x48] sm:$0xf] %vm4754, %v7181
      %7259 = vst.msk [vmem:[#allocation3 + $0x4c] sm:$0xf] %vm4754, %v7183
      %7260 = vst.msk [vmem:[#allocation3 + $0x50] sm:$0xf] %vm4754, %v7185
      %7261 = vst.msk [vmem:[#allocation3 + $0x54] sm:$0xf] %vm4754, %v7187
      %7262 = vst.msk [vmem:[#allocation3 + $0x58] sm:$0xf] %vm4754, %v7189
      %7263 = vst.msk [vmem:[#allocation3 + $0x5c] sm:$0xf] %vm4754, %v7191
      %7264 = vst.msk [vmem:[#allocation3 + $0x60] sm:$0xf] %vm4754, %v7193
      %7265 = vst.msk [vmem:[#allocation3 + $0x64] sm:$0xf] %vm4754, %v7195
      %7266 = vst.msk [vmem:[#allocation3 + $0x68] sm:$0xf] %vm4754, %v7197
      %7267 = vst.msk [vmem:[#allocation3 + $0x6c] sm:$0xf] %vm4754, %v7199
      %7268 = vst.msk [vmem:[#allocation3 + $0x70] sm:$0xf] %vm4754, %v7201
      %7269 = vst.msk [vmem:[#allocation3 + $0x74] sm:$0xf] %vm4754, %v7203
      %7270 = vst.msk [vmem:[#allocation3 + $0x78] sm:$0xf] %vm4754, %v7205
      %7271 = vst.msk [vmem:[#allocation3 + $0x7c] sm:$0xf] %vm4754, %v7207
      %v7272 = vld [vmem:[#allocation3] sm:$0xf]
      %v7273 = vld [vmem:[#allocation3 + $0x4] sm:$0xf]
      %v7274 = vld [vmem:[#allocation3 + $0x8] sm:$0xf]
      %v7275 = vld [vmem:[#allocation3 + $0xc] sm:$0xf]
      %v7276 = vld [vmem:[#allocation3 + $0x10] sm:$0xf]
      %v7277 = vld [vmem:[#allocation3 + $0x14] sm:$0xf]
      %v7278 = vld [vmem:[#allocation3 + $0x18] sm:$0xf]
      %v7279 = vld [vmem:[#allocation3 + $0x1c] sm:$0xf]
      %v7280 = vld [vmem:[#allocation3 + $0x20] sm:$0xf]
      %v7281 = vld [vmem:[#allocation3 + $0x24] sm:$0xf]
      %v7282 = vld [vmem:[#allocation3 + $0x28] sm:$0xf]
      %v7283 = vld [vmem:[#allocation3 + $0x2c] sm:$0xf]
      %v7284 = vld [vmem:[#allocation3 + $0x30] sm:$0xf]
      %v7285 = vld [vmem:[#allocation3 + $0x34] sm:$0xf]
      %v7286 = vld [vmem:[#allocation3 + $0x38] sm:$0xf]
      %v7287 = vld [vmem:[#allocation3 + $0x3c] sm:$0xf]
      %v7288 = vld [vmem:[#allocation3 + $0x40] sm:$0xf]
      %v7289 = vld [vmem:[#allocation3 + $0x44] sm:$0xf]
      %v7290 = vld [vmem:[#allocation3 + $0x48] sm:$0xf]
      %v7291 = vld [vmem:[#allocation3 + $0x4c] sm:$0xf]
      %v7292 = vld [vmem:[#allocation3 + $0x50] sm:$0xf]
      %v7293 = vld [vmem:[#allocation3 + $0x54] sm:$0xf]
      %v7294 = vld [vmem:[#allocation3 + $0x58] sm:$0xf]
      %v7295 = vld [vmem:[#allocation3 + $0x5c] sm:$0xf]
      %v7296 = vld [vmem:[#allocation3 + $0x60] sm:$0xf]
      %v7297 = vld [vmem:[#allocation3 + $0x64] sm:$0xf]
      %v7298 = vld [vmem:[#allocation3 + $0x68] sm:$0xf]
      %v7299 = vld [vmem:[#allocation3 + $0x6c] sm:$0xf]
      %v7300 = vld [vmem:[#allocation3 + $0x70] sm:$0xf]
      %v7301 = vld [vmem:[#allocation3 + $0x74] sm:$0xf]
      %v7302 = vld [vmem:[#allocation3 + $0x78] sm:$0xf]
      %v7303 = vld [vmem:[#allocation3 + $0x7c] sm:$0xf]
      %v7336 = vunpack.c.l.b16 %v7272
      %v7337 = vunpack.c.l.b16 %v7273
      %v7338 = vunpack.c.l.b16 %v7274
      %v7339 = vunpack.c.l.b16 %v7275
      %v7340 = vunpack.c.l.b16 %v7276
      %v7341 = vunpack.c.l.b16 %v7277
      %v7342 = vunpack.c.l.b16 %v7278
      %v7343 = vunpack.c.l.b16 %v7279
      %v7344 = vunpack.c.l.b16 %v7280
      %v7345 = vunpack.c.l.b16 %v7281
      %v7346 = vunpack.c.l.b16 %v7282
      %v7347 = vunpack.c.l.b16 %v7283
      %v7348 = vunpack.c.l.b16 %v7284
      %v7349 = vunpack.c.l.b16 %v7285
      %v7350 = vunpack.c.l.b16 %v7286
      %v7351 = vunpack.c.l.b16 %v7287
      %v7352 = vunpack.c.l.b16 %v7288
      %v7353 = vunpack.c.l.b16 %v7289
      %v7354 = vunpack.c.l.b16 %v7290
      %v7355 = vunpack.c.l.b16 %v7291
      %v7356 = vunpack.c.l.b16 %v7292
      %v7357 = vunpack.c.l.b16 %v7293
      %v7358 = vunpack.c.l.b16 %v7294
      %v7359 = vunpack.c.l.b16 %v7295
      %v7360 = vunpack.c.l.b16 %v7296
      %v7361 = vunpack.c.l.b16 %v7297
      %v7362 = vunpack.c.l.b16 %v7298
      %v7363 = vunpack.c.l.b16 %v7299
      %v7364 = vunpack.c.l.b16 %v7300
      %v7365 = vunpack.c.l.b16 %v7301
      %v7366 = vunpack.c.l.b16 %v7302
      %v7367 = vunpack.c.l.b16 %v7303
      %v7368 = vpack.c.b16 %v7337, %v7336
      %v7369 = vpack.c.b16 %v7339, %v7338
      %v7370 = vpack.c.b16 %v7341, %v7340
      %v7371 = vpack.c.b16 %v7343, %v7342
      %v7372 = vpack.c.b16 %v7345, %v7344
      %v7373 = vpack.c.b16 %v7347, %v7346
      %v7374 = vpack.c.b16 %v7349, %v7348
      %v7375 = vpack.c.b16 %v7351, %v7350
      %v7376 = vpack.c.b16 %v7353, %v7352
      %v7377 = vpack.c.b16 %v7355, %v7354
      %v7378 = vpack.c.b16 %v7357, %v7356
      %v7379 = vpack.c.b16 %v7359, %v7358
      %v7380 = vpack.c.b16 %v7361, %v7360
      %v7381 = vpack.c.b16 %v7363, %v7362
      %v7382 = vpack.c.b16 %v7365, %v7364
      %v7383 = vpack.c.b16 %v7367, %v7366
      %v7393 = vunpack.c.l.b16 %v5343
      %v7394 = vunpack.c.l.b16 %v5344
      %v7395 = vunpack.c.l.b16 %v5345
      %v7396 = vunpack.c.l.b16 %v5346
      %v7397 = vunpack.c.l.b16 %v5347
      %v7398 = vunpack.c.l.b16 %v5348
      %v7399 = vunpack.c.l.b16 %v5349
      %v7400 = vunpack.c.l.b16 %v5350
      %v7401 = vunpack.c.l.b16 %v5351
      %v7402 = vpack.c.b16 %v7394, %v7393
      %v7403 = vpack.c.b16 %v7396, %v7395
      %v7404 = vpack.c.b16 %v7398, %v7397
      %v7405 = vpack.c.b16 %v7400, %v7399
      %v7406 = vpack.c.b16 %v7401, %v7401
      %v7412 = vsel %vm4926, %v7368, 0
      %v7415 = vsel %vm4926, %v7369, 0
      %v7418 = vsel %vm4926, %v7370, 0
      %v7421 = vsel %vm4926, %v7371, 0
      %v7424 = vsel %vm4926, %v7372, 0
      %v7427 = vsel %vm4926, %v7373, 0
      %v7430 = vsel %vm4926, %v7374, 0
      %v7433 = vsel %vm4926, %v7375, 0
      %v7436 = vsel %vm4926, %v7376, 0
      %v7439 = vsel %vm4926, %v7377, 0
      %v7442 = vsel %vm4926, %v7378, 0
      %v7445 = vsel %vm4926, %v7379, 0
      %v7448 = vsel %vm4926, %v7380, 0
      %v7451 = vsel %vm4926, %v7381, 0
      %v7454 = vsel %vm4926, %v7382, 0
      %v7457 = vsel %vm4926, %v7383, 0
      %v7460 = vsel %vm4975, %v7406, 0
      %7462 = vmatpush.bf16.msra.mxu0 0
      %7463 = vmatpush.bf16.msra.mxu0 0
      %7464 = vmatpush.bf16.msra.mxu0 0
      %7465 = vmatpush.bf16.msra.mxu0 %v7460
      %7466 = vmatpush.bf16.msra.mxu0 %v7405
      %7467 = vmatpush.bf16.msra.mxu0 %v7404
      %7468 = vmatpush.bf16.msra.mxu0 %v7403
      %7469 = vmatpush.bf16.msra.mxu0 %v7402
      %7470 = vmatmul.bf16.gmra.mxu0 %v7412
      %v7471 = vpop.f32.mrf.mxu0
      %v7472 = vadd.f32 0.0, %v7471
      %v7473 = vpop.f32.mrf.mxu0
      %v7474 = vadd.f32 0.0, %v7473
      %7475 = vmatmul.bf16.gmra.mxu0 %v7415
      %v7476 = vpop.f32.mrf.mxu0
      %v7477 = vadd.f32 0.0, %v7476
      %v7478 = vpop.f32.mrf.mxu0
      %v7479 = vadd.f32 0.0, %v7478
      %7480 = vmatmul.bf16.gmra.mxu0 %v7418
      %v7481 = vpop.f32.mrf.mxu0
      %v7482 = vadd.f32 0.0, %v7481
      %v7483 = vpop.f32.mrf.mxu0
      %v7484 = vadd.f32 0.0, %v7483
      %7485 = vmatmul.bf16.gmra.mxu0 %v7421
      %v7486 = vpop.f32.mrf.mxu0
      %v7487 = vadd.f32 0.0, %v7486
      %v7488 = vpop.f32.mrf.mxu0
      %v7489 = vadd.f32 0.0, %v7488
      %7490 = vmatmul.bf16.gmra.mxu0 %v7424
      %v7491 = vpop.f32.mrf.mxu0
      %v7492 = vadd.f32 0.0, %v7491
      %v7493 = vpop.f32.mrf.mxu0
      %v7494 = vadd.f32 0.0, %v7493
      %7495 = vmatmul.bf16.gmra.mxu0 %v7427
      %v7496 = vpop.f32.mrf.mxu0
      %v7497 = vadd.f32 0.0, %v7496
      %v7498 = vpop.f32.mrf.mxu0
      %v7499 = vadd.f32 0.0, %v7498
      %7500 = vmatmul.bf16.gmra.mxu0 %v7430
      %v7501 = vpop.f32.mrf.mxu0
      %v7502 = vadd.f32 0.0, %v7501
      %v7503 = vpop.f32.mrf.mxu0
      %v7504 = vadd.f32 0.0, %v7503
      %7505 = vmatmul.bf16.gmra.mxu0 %v7433
      %v7506 = vpop.f32.mrf.mxu0
      %v7507 = vadd.f32 0.0, %v7506
      %v7508 = vpop.f32.mrf.mxu0
      %v7509 = vadd.f32 0.0, %v7508
      %7510 = vmatmul.bf16.gmra.mxu0 %v7436
      %v7511 = vpop.f32.mrf.mxu0
      %v7512 = vadd.f32 0.0, %v7511
      %v7513 = vpop.f32.mrf.mxu0
      %v7514 = vadd.f32 0.0, %v7513
      %7515 = vmatmul.bf16.gmra.mxu0 %v7439
      %v7516 = vpop.f32.mrf.mxu0
      %v7517 = vadd.f32 0.0, %v7516
      %v7518 = vpop.f32.mrf.mxu0
      %v7519 = vadd.f32 0.0, %v7518
      %7520 = vmatmul.bf16.gmra.mxu0 %v7442
      %v7521 = vpop.f32.mrf.mxu0
      %v7522 = vadd.f32 0.0, %v7521
      %v7523 = vpop.f32.mrf.mxu0
      %v7524 = vadd.f32 0.0, %v7523
      %7525 = vmatmul.bf16.gmra.mxu0 %v7445
      %v7526 = vpop.f32.mrf.mxu0
      %v7527 = vadd.f32 0.0, %v7526
      %v7528 = vpop.f32.mrf.mxu0
      %v7529 = vadd.f32 0.0, %v7528
      %7530 = vmatmul.bf16.gmra.mxu0 %v7448
      %v7531 = vpop.f32.mrf.mxu0
      %v7532 = vadd.f32 0.0, %v7531
      %v7533 = vpop.f32.mrf.mxu0
      %v7534 = vadd.f32 0.0, %v7533
      %7535 = vmatmul.bf16.gmra.mxu0 %v7451
      %v7536 = vpop.f32.mrf.mxu0
      %v7537 = vadd.f32 0.0, %v7536
      %v7538 = vpop.f32.mrf.mxu0
      %v7539 = vadd.f32 0.0, %v7538
      %7540 = vmatmul.bf16.gmra.mxu0 %v7454
      %v7541 = vpop.f32.mrf.mxu0
      %v7542 = vadd.f32 0.0, %v7541
      %v7543 = vpop.f32.mrf.mxu0
      %v7544 = vadd.f32 0.0, %v7543
      %7545 = vmatmul.bf16.gmra.mxu0 %v7457
      %v7546 = vpop.f32.mrf.mxu0
      %v7547 = vadd.f32 0.0, %v7546
      %v7548 = vpop.f32.mrf.mxu0
      %v7549 = vadd.f32 0.0, %v7548
      %7550 = vdwg.mxu0
      %v7551 = vld [vmem:[%s2 + $0x4] sm:$0x1]
      %v7552 = vperm.slane %v7551, 0
      %v7553 = vmul.f32 %v7472, %v7552
      %v7554 = vmul.f32 %v7474, %v7552
      %v7555 = vmul.f32 %v7477, %v7552
      %v7556 = vmul.f32 %v7479, %v7552
      %v7557 = vmul.f32 %v7482, %v7552
      %v7558 = vmul.f32 %v7484, %v7552
      %v7559 = vmul.f32 %v7487, %v7552
      %v7560 = vmul.f32 %v7489, %v7552
      %v7561 = vmul.f32 %v7492, %v7552
      %v7562 = vmul.f32 %v7494, %v7552
      %v7563 = vmul.f32 %v7497, %v7552
      %v7564 = vmul.f32 %v7499, %v7552
      %v7565 = vmul.f32 %v7502, %v7552
      %v7566 = vmul.f32 %v7504, %v7552
      %v7567 = vmul.f32 %v7507, %v7552
      %v7568 = vmul.f32 %v7509, %v7552
      %v7569 = vmul.f32 %v7512, %v7552
      %v7570 = vmul.f32 %v7514, %v7552
      %v7571 = vmul.f32 %v7517, %v7552
      %v7572 = vmul.f32 %v7519, %v7552
      %v7573 = vmul.f32 %v7522, %v7552
      %v7574 = vmul.f32 %v7524, %v7552
      %v7575 = vmul.f32 %v7527, %v7552
      %v7576 = vmul.f32 %v7529, %v7552
      %v7577 = vmul.f32 %v7532, %v7552
      %v7578 = vmul.f32 %v7534, %v7552
      %v7579 = vmul.f32 %v7537, %v7552
      %v7580 = vmul.f32 %v7539, %v7552
      %v7581 = vmul.f32 %v7542, %v7552
      %v7582 = vmul.f32 %v7544, %v7552
      %v7583 = vmul.f32 %v7547, %v7552
      %v7584 = vmul.f32 %v7549, %v7552
      %v7585 = vld [vmem:[%s2 + $0x5] sm:$0x1]
      %v7586 = vperm.slane %v7585, 0
      %v7587 = vadd.f32 %v7553, %v7586
      %v7588 = vadd.f32 %v7554, %v7586
      %v7589 = vadd.f32 %v7555, %v7586
      %v7590 = vadd.f32 %v7556, %v7586
      %v7591 = vadd.f32 %v7557, %v7586
      %v7592 = vadd.f32 %v7558, %v7586
      %v7593 = vadd.f32 %v7559, %v7586
      %v7594 = vadd.f32 %v7560, %v7586
      %v7595 = vadd.f32 %v7561, %v7586
      %v7596 = vadd.f32 %v7562, %v7586
      %v7597 = vadd.f32 %v7563, %v7586
      %v7598 = vadd.f32 %v7564, %v7586
      %v7599 = vadd.f32 %v7565, %v7586
      %v7600 = vadd.f32 %v7566, %v7586
      %v7601 = vadd.f32 %v7567, %v7586
      %v7602 = vadd.f32 %v7568, %v7586
      %v7603 = vadd.f32 %v7569, %v7586
      %v7604 = vadd.f32 %v7570, %v7586
      %v7605 = vadd.f32 %v7571, %v7586
      %v7606 = vadd.f32 %v7572, %v7586
      %v7607 = vadd.f32 %v7573, %v7586
      %v7608 = vadd.f32 %v7574, %v7586
      %v7609 = vadd.f32 %v7575, %v7586
      %v7610 = vadd.f32 %v7576, %v7586
      %v7611 = vadd.f32 %v7577, %v7586
      %v7612 = vadd.f32 %v7578, %v7586
      %v7613 = vadd.f32 %v7579, %v7586
      %v7614 = vadd.f32 %v7580, %v7586
      %v7615 = vadd.f32 %v7581, %v7586
      %v7616 = vadd.f32 %v7582, %v7586
      %v7617 = vadd.f32 %v7583, %v7586
      %v7618 = vadd.f32 %v7584, %v7586
      %v7619 = vmax.f32 %v7587, 0.0
      %v7620 = vmax.f32 %v7588, 0.0
      %v7621 = vmax.f32 %v7589, 0.0
      %v7622 = vmax.f32 %v7590, 0.0
      %v7623 = vmax.f32 %v7591, 0.0
      %v7624 = vmax.f32 %v7592, 0.0
      %v7625 = vmax.f32 %v7593, 0.0
      %v7626 = vmax.f32 %v7594, 0.0
      %v7627 = vmax.f32 %v7595, 0.0
      %v7628 = vmax.f32 %v7596, 0.0
      %v7629 = vmax.f32 %v7597, 0.0
      %v7630 = vmax.f32 %v7598, 0.0
      %v7631 = vmax.f32 %v7599, 0.0
      %v7632 = vmax.f32 %v7600, 0.0
      %v7633 = vmax.f32 %v7601, 0.0
      %v7634 = vmax.f32 %v7602, 0.0
      %v7635 = vmax.f32 %v7603, 0.0
      %v7636 = vmax.f32 %v7604, 0.0
      %v7637 = vmax.f32 %v7605, 0.0
      %v7638 = vmax.f32 %v7606, 0.0
      %v7639 = vmax.f32 %v7607, 0.0
      %v7640 = vmax.f32 %v7608, 0.0
      %v7641 = vmax.f32 %v7609, 0.0
      %v7642 = vmax.f32 %v7610, 0.0
      %v7643 = vmax.f32 %v7611, 0.0
      %v7644 = vmax.f32 %v7612, 0.0
      %v7645 = vmax.f32 %v7613, 0.0
      %v7646 = vmax.f32 %v7614, 0.0
      %v7647 = vmax.f32 %v7615, 0.0
      %v7648 = vmax.f32 %v7616, 0.0
      %v7649 = vmax.f32 %v7617, 0.0
      %v7650 = vmax.f32 %v7618, 0.0
      %s7651 = scalar_lea.vmem %s6, 72
      %v7652 = vld [vmem:[%s7651] sm:$0xf]
      %v7653 = vld [vmem:[%s7651 + $0x4] sm:$0xf]
      %v7654 = vld [vmem:[%s7651 + $0x8] sm:$0xf]
      %v7655 = vld [vmem:[%s7651 + $0xc] sm:$0xf]
      %v7656 = vld [vmem:[%s7651 + $0x10] sm:$0xf]
      %v7657 = vld [vmem:[%s7651 + $0x14] sm:$0xf]
      %v7658 = vld [vmem:[%s7651 + $0x18] sm:$0xf]
      %v7659 = vld [vmem:[%s7651 + $0x1c] sm:$0xf]
      %v7660 = vld [vmem:[%s7651 + $0x20] sm:$0xf]
      %7661 = vst.msk [vmem:[%s463 + $0x1] sm:$0xff] %vm280, %v7619
      %7662 = vst.msk [vmem:[%s463 + $0x9] sm:$0xff] %vm280, %v7620
      %7663 = vst.msk [vmem:[%s463 + $0x19] sm:$0xff] %vm280, %v7621
      %7664 = vst.msk [vmem:[%s463 + $0x21] sm:$0xff] %vm280, %v7622
      %7665 = vst.msk [vmem:[%s463 + $0x31] sm:$0xff] %vm280, %v7623
      %7666 = vst.msk [vmem:[%s463 + $0x39] sm:$0xff] %vm280, %v7624
      %7667 = vst.msk [vmem:[%s463 + $0x49] sm:$0xff] %vm280, %v7625
      %7668 = vst.msk [vmem:[%s463 + $0x51] sm:$0xff] %vm280, %v7626
      %7669 = vst.msk [vmem:[%s463 + $0x61] sm:$0xff] %vm280, %v7627
      %7670 = vst.msk [vmem:[%s463 + $0x69] sm:$0xff] %vm280, %v7628
      %7671 = vst.msk [vmem:[%s463 + $0x79] sm:$0xff] %vm280, %v7629
      %7672 = vst.msk [vmem:[%s463 + $0x81] sm:$0xff] %vm280, %v7630
      %7673 = vst.msk [vmem:[%s463 + $0x91] sm:$0xff] %vm280, %v7631
      %7674 = vst.msk [vmem:[%s463 + $0x99] sm:$0xff] %vm280, %v7632
      %7675 = vst.msk [vmem:[%s463 + $0xa9] sm:$0xff] %vm280, %v7633
      %7676 = vst.msk [vmem:[%s463 + $0xb1] sm:$0xff] %vm280, %v7634
      %7677 = vst.msk [vmem:[%s463 + $0xc1] sm:$0xff] %vm280, %v7635
      %7678 = vst.msk [vmem:[%s463 + $0xc9] sm:$0xff] %vm280, %v7636
      %7679 = vst.msk [vmem:[%s463 + $0xd9] sm:$0xff] %vm280, %v7637
      %7680 = vst.msk [vmem:[%s463 + $0xe1] sm:$0xff] %vm280, %v7638
      %7681 = vst.msk [vmem:[%s463 + $0xf1] sm:$0xff] %vm280, %v7639
      %7682 = vst.msk [vmem:[%s463 + $0xf9] sm:$0xff] %vm280, %v7640
      %7683 = vst.msk [vmem:[%s463 + $0x109] sm:$0xff] %vm280, %v7641
      %7684 = vst.msk [vmem:[%s463 + $0x111] sm:$0xff] %vm280, %v7642
      %7685 = vst.msk [vmem:[%s463 + $0x121] sm:$0xff] %vm280, %v7643
      %7686 = vst.msk [vmem:[%s463 + $0x129] sm:$0xff] %vm280, %v7644
      %7687 = vst.msk [vmem:[%s463 + $0x139] sm:$0xff] %vm280, %v7645
      %7688 = vst.msk [vmem:[%s463 + $0x141] sm:$0xff] %vm280, %v7646
      %7689 = vst.msk [vmem:[%s463 + $0x151] sm:$0xff] %vm280, %v7647
      %7690 = vst.msk [vmem:[%s463 + $0x159] sm:$0xff] %vm280, %v7648
      %7691 = vst.msk [vmem:[%s463 + $0x169] sm:$0xff] %vm280, %v7649
      %7692 = vst.msk [vmem:[%s463 + $0x171] sm:$0xff] %vm280, %v7650
      %v7693 = vld [vmem:[#allocation2] sm:$0xff]
      %v7694 = vld [vmem:[#allocation2 + $0x8] sm:$0xff]
      %v7695 = vld [vmem:[#allocation2 + $0x18] sm:$0xff]
      %v7696 = vld [vmem:[#allocation2 + $0x20] sm:$0xff]
      %v7697 = vld [vmem:[#allocation2 + $0x30] sm:$0xff]
      %v7698 = vld [vmem:[#allocation2 + $0x38] sm:$0xff]
      %v7699 = vld [vmem:[#allocation2 + $0x48] sm:$0xff]
      %v7700 = vld [vmem:[#allocation2 + $0x50] sm:$0xff]
      %v7701 = vld [vmem:[#allocation2 + $0x60] sm:$0xff]
      %v7702 = vld [vmem:[#allocation2 + $0x68] sm:$0xff]
      %v7703 = vld [vmem:[#allocation2 + $0x78] sm:$0xff]
      %v7704 = vld [vmem:[#allocation2 + $0x80] sm:$0xff]
      %v7705 = vld [vmem:[#allocation2 + $0x90] sm:$0xff]
      %v7706 = vld [vmem:[#allocation2 + $0x98] sm:$0xff]
      %v7707 = vld [vmem:[#allocation2 + $0xa8] sm:$0xff]
      %v7708 = vld [vmem:[#allocation2 + $0xb0] sm:$0xff]
      %v7709 = vld [vmem:[#allocation2 + $0xc0] sm:$0xff]
      %v7710 = vld [vmem:[#allocation2 + $0xc8] sm:$0xff]
      %v7711 = vld [vmem:[#allocation2 + $0xd8] sm:$0xff]
      %v7712 = vld [vmem:[#allocation2 + $0xe0] sm:$0xff]
      %v7713 = vld [vmem:[#allocation2 + $0xf0] sm:$0xff]
      %v7714 = vld [vmem:[#allocation2 + $0xf8] sm:$0xff]
      %v7715 = vld [vmem:[#allocation2 + $0x108] sm:$0xff]
      %v7716 = vld [vmem:[#allocation2 + $0x110] sm:$0xff]
      %v7717 = vld [vmem:[#allocation2 + $0x120] sm:$0xff]
      %v7718 = vld [vmem:[#allocation2 + $0x128] sm:$0xff]
      %v7719 = vld [vmem:[#allocation2 + $0x138] sm:$0xff]
      %v7720 = vld [vmem:[#allocation2 + $0x140] sm:$0xff]
      %v7721 = vld [vmem:[#allocation2 + $0x150] sm:$0xff]
      %v7722 = vld [vmem:[#allocation2 + $0x158] sm:$0xff]
      %v7723 = vld [vmem:[#allocation2 + $0x168] sm:$0xff]
      %v7724 = vld [vmem:[#allocation2 + $0x170] sm:$0xff]
      %v7725 = vpack.c.bf16 %v7693, %v7693
      %v7726 = vpack.c.bf16 %v7694, %v7694
      %v7727 = vpack.c.bf16 %v7695, %v7695
      %v7728 = vpack.c.bf16 %v7696, %v7696
      %v7729 = vpack.c.bf16 %v7697, %v7697
      %v7730 = vpack.c.bf16 %v7698, %v7698
      %v7731 = vpack.c.bf16 %v7699, %v7699
      %v7732 = vpack.c.bf16 %v7700, %v7700
      %v7733 = vpack.c.bf16 %v7701, %v7701
      %v7734 = vpack.c.bf16 %v7702, %v7702
      %v7735 = vpack.c.bf16 %v7703, %v7703
      %v7736 = vpack.c.bf16 %v7704, %v7704
      %v7737 = vpack.c.bf16 %v7705, %v7705
      %v7738 = vpack.c.bf16 %v7706, %v7706
      %v7739 = vpack.c.bf16 %v7707, %v7707
      %v7740 = vpack.c.bf16 %v7708, %v7708
      %v7741 = vpack.c.bf16 %v7709, %v7709
      %v7742 = vpack.c.bf16 %v7710, %v7710
      %v7743 = vpack.c.bf16 %v7711, %v7711
      %v7744 = vpack.c.bf16 %v7712, %v7712
      %v7745 = vpack.c.bf16 %v7713, %v7713
      %v7746 = vpack.c.bf16 %v7714, %v7714
      %v7747 = vpack.c.bf16 %v7715, %v7715
      %v7748 = vpack.c.bf16 %v7716, %v7716
      %v7749 = vpack.c.bf16 %v7717, %v7717
      %v7750 = vpack.c.bf16 %v7718, %v7718
      %v7751 = vpack.c.bf16 %v7719, %v7719
      %v7752 = vpack.c.bf16 %v7720, %v7720
      %v7753 = vpack.c.bf16 %v7721, %v7721
      %v7754 = vpack.c.bf16 %v7722, %v7722
      %v7755 = vpack.c.bf16 %v7723, %v7723
      %v7756 = vpack.c.bf16 %v7724, %v7724
      %7757 = vst.msk [vmem:[#allocation3] sm:$0xf] %vm2954, %v7725
      %7758 = vst.msk [vmem:[#allocation3 + $0x4] sm:$0xf] %vm2954, %v7726
      %7759 = vst.msk [vmem:[#allocation3 + $0x8] sm:$0xf] %vm2954, %v7727
      %7760 = vst.msk [vmem:[#allocation3 + $0xc] sm:$0xf] %vm2954, %v7728
      %7761 = vst.msk [vmem:[#allocation3 + $0x10] sm:$0xf] %vm2954, %v7729
      %7762 = vst.msk [vmem:[#allocation3 + $0x14] sm:$0xf] %vm2954, %v7730
      %7763 = vst.msk [vmem:[#allocation3 + $0x18] sm:$0xf] %vm2954, %v7731
      %7764 = vst.msk [vmem:[#allocation3 + $0x1c] sm:$0xf] %vm2954, %v7732
      %7765 = vst.msk [vmem:[#allocation3 + $0x20] sm:$0xf] %vm2954, %v7733
      %7766 = vst.msk [vmem:[#allocation3 + $0x24] sm:$0xf] %vm2954, %v7734
      %7767 = vst.msk [vmem:[#allocation3 + $0x28] sm:$0xf] %vm2954, %v7735
      %7768 = vst.msk [vmem:[#allocation3 + $0x2c] sm:$0xf] %vm2954, %v7736
      %7769 = vst.msk [vmem:[#allocation3 + $0x30] sm:$0xf] %vm2954, %v7737
      %7770 = vst.msk [vmem:[#allocation3 + $0x34] sm:$0xf] %vm2954, %v7738
      %7771 = vst.msk [vmem:[#allocation3 + $0x38] sm:$0xf] %vm2954, %v7739
      %7772 = vst.msk [vmem:[#allocation3 + $0x3c] sm:$0xf] %vm2954, %v7740
      %7773 = vst.msk [vmem:[#allocation3 + $0x40] sm:$0xf] %vm2954, %v7741
      %7774 = vst.msk [vmem:[#allocation3 + $0x44] sm:$0xf] %vm2954, %v7742
      %7775 = vst.msk [vmem:[#allocation3 + $0x48] sm:$0xf] %vm2954, %v7743
      %7776 = vst.msk [vmem:[#allocation3 + $0x4c] sm:$0xf] %vm2954, %v7744
      %7777 = vst.msk [vmem:[#allocation3 + $0x50] sm:$0xf] %vm2954, %v7745
      %7778 = vst.msk [vmem:[#allocation3 + $0x54] sm:$0xf] %vm2954, %v7746
      %7779 = vst.msk [vmem:[#allocation3 + $0x58] sm:$0xf] %vm2954, %v7747
      %7780 = vst.msk [vmem:[#allocation3 + $0x5c] sm:$0xf] %vm2954, %v7748
      %7781 = vst.msk [vmem:[#allocation3 + $0x60] sm:$0xf] %vm2954, %v7749
      %7782 = vst.msk [vmem:[#allocation3 + $0x64] sm:$0xf] %vm2954, %v7750
      %7783 = vst.msk [vmem:[#allocation3 + $0x68] sm:$0xf] %vm2954, %v7751
      %7784 = vst.msk [vmem:[#allocation3 + $0x6c] sm:$0xf] %vm2954, %v7752
      %7785 = vst.msk [vmem:[#allocation3 + $0x70] sm:$0xf] %vm2954, %v7753
      %7786 = vst.msk [vmem:[#allocation3 + $0x74] sm:$0xf] %vm2954, %v7754
      %7787 = vst.msk [vmem:[#allocation3 + $0x78] sm:$0xf] %vm2954, %v7755
      %7788 = vst.msk [vmem:[#allocation3 + $0x7c] sm:$0xf] %vm2954, %v7756
      %v7789 = vld [vmem:[#allocation2 + $0x1] sm:$0xff]
      %v7790 = vld [vmem:[#allocation2 + $0x9] sm:$0xff]
      %v7791 = vld [vmem:[#allocation2 + $0x19] sm:$0xff]
      %v7792 = vld [vmem:[#allocation2 + $0x21] sm:$0xff]
      %v7793 = vld [vmem:[#allocation2 + $0x31] sm:$0xff]
      %v7794 = vld [vmem:[#allocation2 + $0x39] sm:$0xff]
      %v7795 = vld [vmem:[#allocation2 + $0x49] sm:$0xff]
      %v7796 = vld [vmem:[#allocation2 + $0x51] sm:$0xff]
      %v7797 = vld [vmem:[#allocation2 + $0x61] sm:$0xff]
      %v7798 = vld [vmem:[#allocation2 + $0x69] sm:$0xff]
      %v7799 = vld [vmem:[#allocation2 + $0x79] sm:$0xff]
      %v7800 = vld [vmem:[#allocation2 + $0x81] sm:$0xff]
      %v7801 = vld [vmem:[#allocation2 + $0x91] sm:$0xff]
      %v7802 = vld [vmem:[#allocation2 + $0x99] sm:$0xff]
      %v7803 = vld [vmem:[#allocation2 + $0xa9] sm:$0xff]
      %v7804 = vld [vmem:[#allocation2 + $0xb1] sm:$0xff]
      %v7805 = vld [vmem:[#allocation2 + $0xc1] sm:$0xff]
      %v7806 = vld [vmem:[#allocation2 + $0xc9] sm:$0xff]
      %v7807 = vld [vmem:[#allocation2 + $0xd9] sm:$0xff]
      %v7808 = vld [vmem:[#allocation2 + $0xe1] sm:$0xff]
      %v7809 = vld [vmem:[#allocation2 + $0xf1] sm:$0xff]
      %v7810 = vld [vmem:[#allocation2 + $0xf9] sm:$0xff]
      %v7811 = vld [vmem:[#allocation2 + $0x109] sm:$0xff]
      %v7812 = vld [vmem:[#allocation2 + $0x111] sm:$0xff]
      %v7813 = vld [vmem:[#allocation2 + $0x121] sm:$0xff]
      %v7814 = vld [vmem:[#allocation2 + $0x129] sm:$0xff]
      %v7815 = vld [vmem:[#allocation2 + $0x139] sm:$0xff]
      %v7816 = vld [vmem:[#allocation2 + $0x141] sm:$0xff]
      %v7817 = vld [vmem:[#allocation2 + $0x151] sm:$0xff]
      %v7818 = vld [vmem:[#allocation2 + $0x159] sm:$0xff]
      %v7819 = vld [vmem:[#allocation2 + $0x169] sm:$0xff]
      %v7820 = vld [vmem:[#allocation2 + $0x171] sm:$0xff]
      %v7821 = vpack.c.bf16 %v7789, %v7789
      %v7822 = vpack.c.bf16 %v7790, %v7790
      %v7823 = vpack.c.bf16 %v7791, %v7791
      %v7824 = vpack.c.bf16 %v7792, %v7792
      %v7825 = vpack.c.bf16 %v7793, %v7793
      %v7826 = vpack.c.bf16 %v7794, %v7794
      %v7827 = vpack.c.bf16 %v7795, %v7795
      %v7828 = vpack.c.bf16 %v7796, %v7796
      %v7829 = vpack.c.bf16 %v7797, %v7797
      %v7830 = vpack.c.bf16 %v7798, %v7798
      %v7831 = vpack.c.bf16 %v7799, %v7799
      %v7832 = vpack.c.bf16 %v7800, %v7800
      %v7833 = vpack.c.bf16 %v7801, %v7801
      %v7834 = vpack.c.bf16 %v7802, %v7802
      %v7835 = vpack.c.bf16 %v7803, %v7803
      %v7836 = vpack.c.bf16 %v7804, %v7804
      %v7837 = vpack.c.bf16 %v7805, %v7805
      %v7838 = vpack.c.bf16 %v7806, %v7806
      %v7839 = vpack.c.bf16 %v7807, %v7807
      %v7840 = vpack.c.bf16 %v7808, %v7808
      %v7841 = vpack.c.bf16 %v7809, %v7809
      %v7842 = vpack.c.bf16 %v7810, %v7810
      %v7843 = vpack.c.bf16 %v7811, %v7811
      %v7844 = vpack.c.bf16 %v7812, %v7812
      %v7845 = vpack.c.bf16 %v7813, %v7813
      %v7846 = vpack.c.bf16 %v7814, %v7814
      %v7847 = vpack.c.bf16 %v7815, %v7815
      %v7848 = vpack.c.bf16 %v7816, %v7816
      %v7849 = vpack.c.bf16 %v7817, %v7817
      %v7850 = vpack.c.bf16 %v7818, %v7818
      %v7851 = vpack.c.bf16 %v7819, %v7819
      %v7852 = vpack.c.bf16 %v7820, %v7820
      %7885 = vrot.lane.b32.xlu0 %v7821, 8
      %v7886 = vpop.permute.xlu0 %7885
      %7887 = vrot.lane.b32.xlu0 %v7822, 8
      %v7888 = vpop.permute.xlu0 %7887
      %7889 = vrot.lane.b32.xlu0 %v7823, 8
      %v7890 = vpop.permute.xlu0 %7889
      %7891 = vrot.lane.b32.xlu0 %v7824, 8
      %v7892 = vpop.permute.xlu0 %7891
      %7893 = vrot.lane.b32.xlu0 %v7825, 8
      %v7894 = vpop.permute.xlu0 %7893
      %7895 = vrot.lane.b32.xlu0 %v7826, 8
      %v7896 = vpop.permute.xlu0 %7895
      %7897 = vrot.lane.b32.xlu0 %v7827, 8
      %v7898 = vpop.permute.xlu0 %7897
      %7899 = vrot.lane.b32.xlu0 %v7828, 8
      %v7900 = vpop.permute.xlu0 %7899
      %7901 = vrot.lane.b32.xlu0 %v7829, 8
      %v7902 = vpop.permute.xlu0 %7901
      %7903 = vrot.lane.b32.xlu0 %v7830, 8
      %v7904 = vpop.permute.xlu0 %7903
      %7905 = vrot.lane.b32.xlu0 %v7831, 8
      %v7906 = vpop.permute.xlu0 %7905
      %7907 = vrot.lane.b32.xlu0 %v7832, 8
      %v7908 = vpop.permute.xlu0 %7907
      %7909 = vrot.lane.b32.xlu0 %v7833, 8
      %v7910 = vpop.permute.xlu0 %7909
      %7911 = vrot.lane.b32.xlu0 %v7834, 8
      %v7912 = vpop.permute.xlu0 %7911
      %7913 = vrot.lane.b32.xlu0 %v7835, 8
      %v7914 = vpop.permute.xlu0 %7913
      %7915 = vrot.lane.b32.xlu0 %v7836, 8
      %v7916 = vpop.permute.xlu0 %7915
      %7917 = vrot.lane.b32.xlu0 %v7837, 8
      %v7918 = vpop.permute.xlu0 %7917
      %7919 = vrot.lane.b32.xlu0 %v7838, 8
      %v7920 = vpop.permute.xlu0 %7919
      %7921 = vrot.lane.b32.xlu0 %v7839, 8
      %v7922 = vpop.permute.xlu0 %7921
      %7923 = vrot.lane.b32.xlu0 %v7840, 8
      %v7924 = vpop.permute.xlu0 %7923
      %7925 = vrot.lane.b32.xlu0 %v7841, 8
      %v7926 = vpop.permute.xlu0 %7925
      %7927 = vrot.lane.b32.xlu0 %v7842, 8
      %v7928 = vpop.permute.xlu0 %7927
      %7929 = vrot.lane.b32.xlu0 %v7843, 8
      %v7930 = vpop.permute.xlu0 %7929
      %7931 = vrot.lane.b32.xlu0 %v7844, 8
      %v7932 = vpop.permute.xlu0 %7931
      %7933 = vrot.lane.b32.xlu0 %v7845, 8
      %v7934 = vpop.permute.xlu0 %7933
      %7935 = vrot.lane.b32.xlu0 %v7846, 8
      %v7936 = vpop.permute.xlu0 %7935
      %7937 = vrot.lane.b32.xlu0 %v7847, 8
      %v7938 = vpop.permute.xlu0 %7937
      %7939 = vrot.lane.b32.xlu0 %v7848, 8
      %v7940 = vpop.permute.xlu0 %7939
      %7941 = vrot.lane.b32.xlu0 %v7849, 8
      %v7942 = vpop.permute.xlu0 %7941
      %7943 = vrot.lane.b32.xlu0 %v7850, 8
      %v7944 = vpop.permute.xlu0 %7943
      %7945 = vrot.lane.b32.xlu0 %v7851, 8
      %v7946 = vpop.permute.xlu0 %7945
      %7947 = vrot.lane.b32.xlu0 %v7852, 8
      %v7948 = vpop.permute.xlu0 %7947
      %7981 = vst.msk [vmem:[#allocation3] sm:$0xf] %vm3179, %v7886
      %7982 = vst.msk [vmem:[#allocation3 + $0x4] sm:$0xf] %vm3179, %v7888
      %7983 = vst.msk [vmem:[#allocation3 + $0x8] sm:$0xf] %vm3179, %v7890
      %7984 = vst.msk [vmem:[#allocation3 + $0xc] sm:$0xf] %vm3179, %v7892
      %7985 = vst.msk [vmem:[#allocation3 + $0x10] sm:$0xf] %vm3179, %v7894
      %7986 = vst.msk [vmem:[#allocation3 + $0x14] sm:$0xf] %vm3179, %v7896
      %7987 = vst.msk [vmem:[#allocation3 + $0x18] sm:$0xf] %vm3179, %v7898
      %7988 = vst.msk [vmem:[#allocation3 + $0x1c] sm:$0xf] %vm3179, %v7900
      %7989 = vst.msk [vmem:[#allocation3 + $0x20] sm:$0xf] %vm3179, %v7902
      %7990 = vst.msk [vmem:[#allocation3 + $0x24] sm:$0xf] %vm3179, %v7904
      %7991 = vst.msk [vmem:[#allocation3 + $0x28] sm:$0xf] %vm3179, %v7906
      %7992 = vst.msk [vmem:[#allocation3 + $0x2c] sm:$0xf] %vm3179, %v7908
      %7993 = vst.msk [vmem:[#allocation3 + $0x30] sm:$0xf] %vm3179, %v7910
      %7994 = vst.msk [vmem:[#allocation3 + $0x34] sm:$0xf] %vm3179, %v7912
      %7995 = vst.msk [vmem:[#allocation3 + $0x38] sm:$0xf] %vm3179, %v7914
      %7996 = vst.msk [vmem:[#allocation3 + $0x3c] sm:$0xf] %vm3179, %v7916
      %7997 = vst.msk [vmem:[#allocation3 + $0x40] sm:$0xf] %vm3179, %v7918
      %7998 = vst.msk [vmem:[#allocation3 + $0x44] sm:$0xf] %vm3179, %v7920
      %7999 = vst.msk [vmem:[#allocation3 + $0x48] sm:$0xf] %vm3179, %v7922
      %8000 = vst.msk [vmem:[#allocation3 + $0x4c] sm:$0xf] %vm3179, %v7924
      %8001 = vst.msk [vmem:[#allocation3 + $0x50] sm:$0xf] %vm3179, %v7926
      %8002 = vst.msk [vmem:[#allocation3 + $0x54] sm:$0xf] %vm3179, %v7928
      %8003 = vst.msk [vmem:[#allocation3 + $0x58] sm:$0xf] %vm3179, %v7930
      %8004 = vst.msk [vmem:[#allocation3 + $0x5c] sm:$0xf] %vm3179, %v7932
      %8005 = vst.msk [vmem:[#allocation3 + $0x60] sm:$0xf] %vm3179, %v7934
      %8006 = vst.msk [vmem:[#allocation3 + $0x64] sm:$0xf] %vm3179, %v7936
      %8007 = vst.msk [vmem:[#allocation3 + $0x68] sm:$0xf] %vm3179, %v7938
      %8008 = vst.msk [vmem:[#allocation3 + $0x6c] sm:$0xf] %vm3179, %v7940
      %8009 = vst.msk [vmem:[#allocation3 + $0x70] sm:$0xf] %vm3179, %v7942
      %8010 = vst.msk [vmem:[#allocation3 + $0x74] sm:$0xf] %vm3179, %v7944
      %8011 = vst.msk [vmem:[#allocation3 + $0x78] sm:$0xf] %vm3179, %v7946
      %8012 = vst.msk [vmem:[#allocation3 + $0x7c] sm:$0xf] %vm3179, %v7948
      %v8013 = vld [vmem:[#allocation2 + $0x2] sm:$0xff]
      %v8014 = vld [vmem:[#allocation2 + $0xa] sm:$0xff]
      %v8015 = vld [vmem:[#allocation2 + $0x1a] sm:$0xff]
      %v8016 = vld [vmem:[#allocation2 + $0x22] sm:$0xff]
      %v8017 = vld [vmem:[#allocation2 + $0x32] sm:$0xff]
      %v8018 = vld [vmem:[#allocation2 + $0x3a] sm:$0xff]
      %v8019 = vld [vmem:[#allocation2 + $0x4a] sm:$0xff]
      %v8020 = vld [vmem:[#allocation2 + $0x52] sm:$0xff]
      %v8021 = vld [vmem:[#allocation2 + $0x62] sm:$0xff]
      %v8022 = vld [vmem:[#allocation2 + $0x6a] sm:$0xff]
      %v8023 = vld [vmem:[#allocation2 + $0x7a] sm:$0xff]
      %v8024 = vld [vmem:[#allocation2 + $0x82] sm:$0xff]
      %v8025 = vld [vmem:[#allocation2 + $0x92] sm:$0xff]
      %v8026 = vld [vmem:[#allocation2 + $0x9a] sm:$0xff]
      %v8027 = vld [vmem:[#allocation2 + $0xaa] sm:$0xff]
      %v8028 = vld [vmem:[#allocation2 + $0xb2] sm:$0xff]
      %v8029 = vld [vmem:[#allocation2 + $0xc2] sm:$0xff]
      %v8030 = vld [vmem:[#allocation2 + $0xca] sm:$0xff]
      %v8031 = vld [vmem:[#allocation2 + $0xda] sm:$0xff]
      %v8032 = vld [vmem:[#allocation2 + $0xe2] sm:$0xff]
      %v8033 = vld [vmem:[#allocation2 + $0xf2] sm:$0xff]
      %v8034 = vld [vmem:[#allocation2 + $0xfa] sm:$0xff]
      %v8035 = vld [vmem:[#allocation2 + $0x10a] sm:$0xff]
      %v8036 = vld [vmem:[#allocation2 + $0x112] sm:$0xff]
      %v8037 = vld [vmem:[#allocation2 + $0x122] sm:$0xff]
      %v8038 = vld [vmem:[#allocation2 + $0x12a] sm:$0xff]
      %v8039 = vld [vmem:[#allocation2 + $0x13a] sm:$0xff]
      %v8040 = vld [vmem:[#allocation2 + $0x142] sm:$0xff]
      %v8041 = vld [vmem:[#allocation2 + $0x152] sm:$0xff]
      %v8042 = vld [vmem:[#allocation2 + $0x15a] sm:$0xff]
      %v8043 = vld [vmem:[#allocation2 + $0x16a] sm:$0xff]
      %v8044 = vld [vmem:[#allocation2 + $0x172] sm:$0xff]
      %v8045 = vpack.c.bf16 %v8013, %v8013
      %v8046 = vpack.c.bf16 %v8014, %v8014
      %v8047 = vpack.c.bf16 %v8015, %v8015
      %v8048 = vpack.c.bf16 %v8016, %v8016
      %v8049 = vpack.c.bf16 %v8017, %v8017
      %v8050 = vpack.c.bf16 %v8018, %v8018
      %v8051 = vpack.c.bf16 %v8019, %v8019
      %v8052 = vpack.c.bf16 %v8020, %v8020
      %v8053 = vpack.c.bf16 %v8021, %v8021
      %v8054 = vpack.c.bf16 %v8022, %v8022
      %v8055 = vpack.c.bf16 %v8023, %v8023
      %v8056 = vpack.c.bf16 %v8024, %v8024
      %v8057 = vpack.c.bf16 %v8025, %v8025
      %v8058 = vpack.c.bf16 %v8026, %v8026
      %v8059 = vpack.c.bf16 %v8027, %v8027
      %v8060 = vpack.c.bf16 %v8028, %v8028
      %v8061 = vpack.c.bf16 %v8029, %v8029
      %v8062 = vpack.c.bf16 %v8030, %v8030
      %v8063 = vpack.c.bf16 %v8031, %v8031
      %v8064 = vpack.c.bf16 %v8032, %v8032
      %v8065 = vpack.c.bf16 %v8033, %v8033
      %v8066 = vpack.c.bf16 %v8034, %v8034
      %v8067 = vpack.c.bf16 %v8035, %v8035
      %v8068 = vpack.c.bf16 %v8036, %v8036
      %v8069 = vpack.c.bf16 %v8037, %v8037
      %v8070 = vpack.c.bf16 %v8038, %v8038
      %v8071 = vpack.c.bf16 %v8039, %v8039
      %v8072 = vpack.c.bf16 %v8040, %v8040
      %v8073 = vpack.c.bf16 %v8041, %v8041
      %v8074 = vpack.c.bf16 %v8042, %v8042
      %v8075 = vpack.c.bf16 %v8043, %v8043
      %v8076 = vpack.c.bf16 %v8044, %v8044
      %8109 = vrot.lane.b32.xlu0 %v8045, 16
      %v8110 = vpop.permute.xlu0 %8109
      %8111 = vrot.lane.b32.xlu0 %v8046, 16
      %v8112 = vpop.permute.xlu0 %8111
      %8113 = vrot.lane.b32.xlu0 %v8047, 16
      %v8114 = vpop.permute.xlu0 %8113
      %8115 = vrot.lane.b32.xlu0 %v8048, 16
      %v8116 = vpop.permute.xlu0 %8115
      %8117 = vrot.lane.b32.xlu0 %v8049, 16
      %v8118 = vpop.permute.xlu0 %8117
      %8119 = vrot.lane.b32.xlu0 %v8050, 16
      %v8120 = vpop.permute.xlu0 %8119
      %8121 = vrot.lane.b32.xlu0 %v8051, 16
      %v8122 = vpop.permute.xlu0 %8121
      %8123 = vrot.lane.b32.xlu0 %v8052, 16
      %v8124 = vpop.permute.xlu0 %8123
      %8125 = vrot.lane.b32.xlu0 %v8053, 16
      %v8126 = vpop.permute.xlu0 %8125
      %8127 = vrot.lane.b32.xlu0 %v8054, 16
      %v8128 = vpop.permute.xlu0 %8127
      %8129 = vrot.lane.b32.xlu0 %v8055, 16
      %v8130 = vpop.permute.xlu0 %8129
      %8131 = vrot.lane.b32.xlu0 %v8056, 16
      %v8132 = vpop.permute.xlu0 %8131
      %8133 = vrot.lane.b32.xlu0 %v8057, 16
      %v8134 = vpop.permute.xlu0 %8133
      %8135 = vrot.lane.b32.xlu0 %v8058, 16
      %v8136 = vpop.permute.xlu0 %8135
      %8137 = vrot.lane.b32.xlu0 %v8059, 16
      %v8138 = vpop.permute.xlu0 %8137
      %8139 = vrot.lane.b32.xlu0 %v8060, 16
      %v8140 = vpop.permute.xlu0 %8139
      %8141 = vrot.lane.b32.xlu0 %v8061, 16
      %v8142 = vpop.permute.xlu0 %8141
      %8143 = vrot.lane.b32.xlu0 %v8062, 16
      %v8144 = vpop.permute.xlu0 %8143
      %8145 = vrot.lane.b32.xlu0 %v8063, 16
      %v8146 = vpop.permute.xlu0 %8145
      %8147 = vrot.lane.b32.xlu0 %v8064, 16
      %v8148 = vpop.permute.xlu0 %8147
      %8149 = vrot.lane.b32.xlu0 %v8065, 16
      %v8150 = vpop.permute.xlu0 %8149
      %8151 = vrot.lane.b32.xlu0 %v8066, 16
      %v8152 = vpop.permute.xlu0 %8151
      %8153 = vrot.lane.b32.xlu0 %v8067, 16
      %v8154 = vpop.permute.xlu0 %8153
      %8155 = vrot.lane.b32.xlu0 %v8068, 16
      %v8156 = vpop.permute.xlu0 %8155
      %8157 = vrot.lane.b32.xlu0 %v8069, 16
      %v8158 = vpop.permute.xlu0 %8157
      %8159 = vrot.lane.b32.xlu0 %v8070, 16
      %v8160 = vpop.permute.xlu0 %8159
      %8161 = vrot.lane.b32.xlu0 %v8071, 16
      %v8162 = vpop.permute.xlu0 %8161
      %8163 = vrot.lane.b32.xlu0 %v8072, 16
      %v8164 = vpop.permute.xlu0 %8163
      %8165 = vrot.lane.b32.xlu0 %v8073, 16
      %v8166 = vpop.permute.xlu0 %8165
      %8167 = vrot.lane.b32.xlu0 %v8074, 16
      %v8168 = vpop.permute.xlu0 %8167
      %8169 = vrot.lane.b32.xlu0 %v8075, 16
      %v8170 = vpop.permute.xlu0 %8169
      %8171 = vrot.lane.b32.xlu0 %v8076, 16
      %v8172 = vpop.permute.xlu0 %8171
      %8205 = vst.msk [vmem:[#allocation3] sm:$0xf] %vm3404, %v8110
      %8206 = vst.msk [vmem:[#allocation3 + $0x4] sm:$0xf] %vm3404, %v8112
      %8207 = vst.msk [vmem:[#allocation3 + $0x8] sm:$0xf] %vm3404, %v8114
      %8208 = vst.msk [vmem:[#allocation3 + $0xc] sm:$0xf] %vm3404, %v8116
      %8209 = vst.msk [vmem:[#allocation3 + $0x10] sm:$0xf] %vm3404, %v8118
      %8210 = vst.msk [vmem:[#allocation3 + $0x14] sm:$0xf] %vm3404, %v8120
      %8211 = vst.msk [vmem:[#allocation3 + $0x18] sm:$0xf] %vm3404, %v8122
      %8212 = vst.msk [vmem:[#allocation3 + $0x1c] sm:$0xf] %vm3404, %v8124
      %8213 = vst.msk [vmem:[#allocation3 + $0x20] sm:$0xf] %vm3404, %v8126
      %8214 = vst.msk [vmem:[#allocation3 + $0x24] sm:$0xf] %vm3404, %v8128
      %8215 = vst.msk [vmem:[#allocation3 + $0x28] sm:$0xf] %vm3404, %v8130
      %8216 = vst.msk [vmem:[#allocation3 + $0x2c] sm:$0xf] %vm3404, %v8132
      %8217 = vst.msk [vmem:[#allocation3 + $0x30] sm:$0xf] %vm3404, %v8134
      %8218 = vst.msk [vmem:[#allocation3 + $0x34] sm:$0xf] %vm3404, %v8136
      %8219 = vst.msk [vmem:[#allocation3 + $0x38] sm:$0xf] %vm3404, %v8138
      %8220 = vst.msk [vmem:[#allocation3 + $0x3c] sm:$0xf] %vm3404, %v8140
      %8221 = vst.msk [vmem:[#allocation3 + $0x40] sm:$0xf] %vm3404, %v8142
      %8222 = vst.msk [vmem:[#allocation3 + $0x44] sm:$0xf] %vm3404, %v8144
      %8223 = vst.msk [vmem:[#allocation3 + $0x48] sm:$0xf] %vm3404, %v8146
      %8224 = vst.msk [vmem:[#allocation3 + $0x4c] sm:$0xf] %vm3404, %v8148
      %8225 = vst.msk [vmem:[#allocation3 + $0x50] sm:$0xf] %vm3404, %v8150
      %8226 = vst.msk [vmem:[#allocation3 + $0x54] sm:$0xf] %vm3404, %v8152
      %8227 = vst.msk [vmem:[#allocation3 + $0x58] sm:$0xf] %vm3404, %v8154
      %8228 = vst.msk [vmem:[#allocation3 + $0x5c] sm:$0xf] %vm3404, %v8156
      %8229 = vst.msk [vmem:[#allocation3 + $0x60] sm:$0xf] %vm3404, %v8158
      %8230 = vst.msk [vmem:[#allocation3 + $0x64] sm:$0xf] %vm3404, %v8160
      %8231 = vst.msk [vmem:[#allocation3 + $0x68] sm:$0xf] %vm3404, %v8162
      %8232 = vst.msk [vmem:[#allocation3 + $0x6c] sm:$0xf] %vm3404, %v8164
      %8233 = vst.msk [vmem:[#allocation3 + $0x70] sm:$0xf] %vm3404, %v8166
      %8234 = vst.msk [vmem:[#allocation3 + $0x74] sm:$0xf] %vm3404, %v8168
      %8235 = vst.msk [vmem:[#allocation3 + $0x78] sm:$0xf] %vm3404, %v8170
      %8236 = vst.msk [vmem:[#allocation3 + $0x7c] sm:$0xf] %vm3404, %v8172
      %v8237 = vld [vmem:[%s463] sm:$0xff]
      %v8238 = vld [vmem:[%s463 + $0x8] sm:$0xff]
      %v8239 = vld [vmem:[%s463 + $0x18] sm:$0xff]
      %v8240 = vld [vmem:[%s463 + $0x20] sm:$0xff]
      %v8241 = vld [vmem:[%s463 + $0x30] sm:$0xff]
      %v8242 = vld [vmem:[%s463 + $0x38] sm:$0xff]
      %v8243 = vld [vmem:[%s463 + $0x48] sm:$0xff]
      %v8244 = vld [vmem:[%s463 + $0x50] sm:$0xff]
      %v8245 = vld [vmem:[%s463 + $0x60] sm:$0xff]
      %v8246 = vld [vmem:[%s463 + $0x68] sm:$0xff]
      %v8247 = vld [vmem:[%s463 + $0x78] sm:$0xff]
      %v8248 = vld [vmem:[%s463 + $0x80] sm:$0xff]
      %v8249 = vld [vmem:[%s463 + $0x90] sm:$0xff]
      %v8250 = vld [vmem:[%s463 + $0x98] sm:$0xff]
      %v8251 = vld [vmem:[%s463 + $0xa8] sm:$0xff]
      %v8252 = vld [vmem:[%s463 + $0xb0] sm:$0xff]
      %v8253 = vld [vmem:[%s463 + $0xc0] sm:$0xff]
      %v8254 = vld [vmem:[%s463 + $0xc8] sm:$0xff]
      %v8255 = vld [vmem:[%s463 + $0xd8] sm:$0xff]
      %v8256 = vld [vmem:[%s463 + $0xe0] sm:$0xff]
      %v8257 = vld [vmem:[%s463 + $0xf0] sm:$0xff]
      %v8258 = vld [vmem:[%s463 + $0xf8] sm:$0xff]
      %v8259 = vld [vmem:[%s463 + $0x108] sm:$0xff]
      %v8260 = vld [vmem:[%s463 + $0x110] sm:$0xff]
      %v8261 = vld [vmem:[%s463 + $0x120] sm:$0xff]
      %v8262 = vld [vmem:[%s463 + $0x128] sm:$0xff]
      %v8263 = vld [vmem:[%s463 + $0x138] sm:$0xff]
      %v8264 = vld [vmem:[%s463 + $0x140] sm:$0xff]
      %v8265 = vld [vmem:[%s463 + $0x150] sm:$0xff]
      %v8266 = vld [vmem:[%s463 + $0x158] sm:$0xff]
      %v8267 = vld [vmem:[%s463 + $0x168] sm:$0xff]
      %v8268 = vld [vmem:[%s463 + $0x170] sm:$0xff]
      %v8269 = vpack.c.bf16 %v8237, %v8237
      %v8270 = vpack.c.bf16 %v8238, %v8238
      %v8271 = vpack.c.bf16 %v8239, %v8239
      %v8272 = vpack.c.bf16 %v8240, %v8240
      %v8273 = vpack.c.bf16 %v8241, %v8241
      %v8274 = vpack.c.bf16 %v8242, %v8242
      %v8275 = vpack.c.bf16 %v8243, %v8243
      %v8276 = vpack.c.bf16 %v8244, %v8244
      %v8277 = vpack.c.bf16 %v8245, %v8245
      %v8278 = vpack.c.bf16 %v8246, %v8246
      %v8279 = vpack.c.bf16 %v8247, %v8247
      %v8280 = vpack.c.bf16 %v8248, %v8248
      %v8281 = vpack.c.bf16 %v8249, %v8249
      %v8282 = vpack.c.bf16 %v8250, %v8250
      %v8283 = vpack.c.bf16 %v8251, %v8251
      %v8284 = vpack.c.bf16 %v8252, %v8252
      %v8285 = vpack.c.bf16 %v8253, %v8253
      %v8286 = vpack.c.bf16 %v8254, %v8254
      %v8287 = vpack.c.bf16 %v8255, %v8255
      %v8288 = vpack.c.bf16 %v8256, %v8256
      %v8289 = vpack.c.bf16 %v8257, %v8257
      %v8290 = vpack.c.bf16 %v8258, %v8258
      %v8291 = vpack.c.bf16 %v8259, %v8259
      %v8292 = vpack.c.bf16 %v8260, %v8260
      %v8293 = vpack.c.bf16 %v8261, %v8261
      %v8294 = vpack.c.bf16 %v8262, %v8262
      %v8295 = vpack.c.bf16 %v8263, %v8263
      %v8296 = vpack.c.bf16 %v8264, %v8264
      %v8297 = vpack.c.bf16 %v8265, %v8265
      %v8298 = vpack.c.bf16 %v8266, %v8266
      %v8299 = vpack.c.bf16 %v8267, %v8267
      %v8300 = vpack.c.bf16 %v8268, %v8268
      %8333 = vrot.lane.b32.xlu0 %v8269, 24
      %v8334 = vpop.permute.xlu0 %8333
      %8335 = vrot.lane.b32.xlu0 %v8270, 24
      %v8336 = vpop.permute.xlu0 %8335
      %8337 = vrot.lane.b32.xlu0 %v8271, 24
      %v8338 = vpop.permute.xlu0 %8337
      %8339 = vrot.lane.b32.xlu0 %v8272, 24
      %v8340 = vpop.permute.xlu0 %8339
      %8341 = vrot.lane.b32.xlu0 %v8273, 24
      %v8342 = vpop.permute.xlu0 %8341
      %8343 = vrot.lane.b32.xlu0 %v8274, 24
      %v8344 = vpop.permute.xlu0 %8343
      %8345 = vrot.lane.b32.xlu0 %v8275, 24
      %v8346 = vpop.permute.xlu0 %8345
      %8347 = vrot.lane.b32.xlu0 %v8276, 24
      %v8348 = vpop.permute.xlu0 %8347
      %8349 = vrot.lane.b32.xlu0 %v8277, 24
      %v8350 = vpop.permute.xlu0 %8349
      %8351 = vrot.lane.b32.xlu0 %v8278, 24
      %v8352 = vpop.permute.xlu0 %8351
      %8353 = vrot.lane.b32.xlu0 %v8279, 24
      %v8354 = vpop.permute.xlu0 %8353
      %8355 = vrot.lane.b32.xlu0 %v8280, 24
      %v8356 = vpop.permute.xlu0 %8355
      %8357 = vrot.lane.b32.xlu0 %v8281, 24
      %v8358 = vpop.permute.xlu0 %8357
      %8359 = vrot.lane.b32.xlu0 %v8282, 24
      %v8360 = vpop.permute.xlu0 %8359
      %8361 = vrot.lane.b32.xlu0 %v8283, 24
      %v8362 = vpop.permute.xlu0 %8361
      %8363 = vrot.lane.b32.xlu0 %v8284, 24
      %v8364 = vpop.permute.xlu0 %8363
      %8365 = vrot.lane.b32.xlu0 %v8285, 24
      %v8366 = vpop.permute.xlu0 %8365
      %8367 = vrot.lane.b32.xlu0 %v8286, 24
      %v8368 = vpop.permute.xlu0 %8367
      %8369 = vrot.lane.b32.xlu0 %v8287, 24
      %v8370 = vpop.permute.xlu0 %8369
      %8371 = vrot.lane.b32.xlu0 %v8288, 24
      %v8372 = vpop.permute.xlu0 %8371
      %8373 = vrot.lane.b32.xlu0 %v8289, 24
      %v8374 = vpop.permute.xlu0 %8373
      %8375 = vrot.lane.b32.xlu0 %v8290, 24
      %v8376 = vpop.permute.xlu0 %8375
      %8377 = vrot.lane.b32.xlu0 %v8291, 24
      %v8378 = vpop.permute.xlu0 %8377
      %8379 = vrot.lane.b32.xlu0 %v8292, 24
      %v8380 = vpop.permute.xlu0 %8379
      %8381 = vrot.lane.b32.xlu0 %v8293, 24
      %v8382 = vpop.permute.xlu0 %8381
      %8383 = vrot.lane.b32.xlu0 %v8294, 24
      %v8384 = vpop.permute.xlu0 %8383
      %8385 = vrot.lane.b32.xlu0 %v8295, 24
      %v8386 = vpop.permute.xlu0 %8385
      %8387 = vrot.lane.b32.xlu0 %v8296, 24
      %v8388 = vpop.permute.xlu0 %8387
      %8389 = vrot.lane.b32.xlu0 %v8297, 24
      %v8390 = vpop.permute.xlu0 %8389
      %8391 = vrot.lane.b32.xlu0 %v8298, 24
      %v8392 = vpop.permute.xlu0 %8391
      %8393 = vrot.lane.b32.xlu0 %v8299, 24
      %v8394 = vpop.permute.xlu0 %8393
      %8395 = vrot.lane.b32.xlu0 %v8300, 24
      %v8396 = vpop.permute.xlu0 %8395
      %8429 = vst.msk [vmem:[#allocation3] sm:$0xf] %vm3629, %v8334
      %8430 = vst.msk [vmem:[#allocation3 + $0x4] sm:$0xf] %vm3629, %v8336
      %8431 = vst.msk [vmem:[#allocation3 + $0x8] sm:$0xf] %vm3629, %v8338
      %8432 = vst.msk [vmem:[#allocation3 + $0xc] sm:$0xf] %vm3629, %v8340
      %8433 = vst.msk [vmem:[#allocation3 + $0x10] sm:$0xf] %vm3629, %v8342
      %8434 = vst.msk [vmem:[#allocation3 + $0x14] sm:$0xf] %vm3629, %v8344
      %8435 = vst.msk [vmem:[#allocation3 + $0x18] sm:$0xf] %vm3629, %v8346
      %8436 = vst.msk [vmem:[#allocation3 + $0x1c] sm:$0xf] %vm3629, %v8348
      %8437 = vst.msk [vmem:[#allocation3 + $0x20] sm:$0xf] %vm3629, %v8350
      %8438 = vst.msk [vmem:[#allocation3 + $0x24] sm:$0xf] %vm3629, %v8352
      %8439 = vst.msk [vmem:[#allocation3 + $0x28] sm:$0xf] %vm3629, %v8354
      %8440 = vst.msk [vmem:[#allocation3 + $0x2c] sm:$0xf] %vm3629, %v8356
      %8441 = vst.msk [vmem:[#allocation3 + $0x30] sm:$0xf] %vm3629, %v8358
      %8442 = vst.msk [vmem:[#allocation3 + $0x34] sm:$0xf] %vm3629, %v8360
      %8443 = vst.msk [vmem:[#allocation3 + $0x38] sm:$0xf] %vm3629, %v8362
      %8444 = vst.msk [vmem:[#allocation3 + $0x3c] sm:$0xf] %vm3629, %v8364
      %8445 = vst.msk [vmem:[#allocation3 + $0x40] sm:$0xf] %vm3629, %v8366
      %8446 = vst.msk [vmem:[#allocation3 + $0x44] sm:$0xf] %vm3629, %v8368
      %8447 = vst.msk [vmem:[#allocation3 + $0x48] sm:$0xf] %vm3629, %v8370
      %8448 = vst.msk [vmem:[#allocation3 + $0x4c] sm:$0xf] %vm3629, %v8372
      %8449 = vst.msk [vmem:[#allocation3 + $0x50] sm:$0xf] %vm3629, %v8374
      %8450 = vst.msk [vmem:[#allocation3 + $0x54] sm:$0xf] %vm3629, %v8376
      %8451 = vst.msk [vmem:[#allocation3 + $0x58] sm:$0xf] %vm3629, %v8378
      %8452 = vst.msk [vmem:[#allocation3 + $0x5c] sm:$0xf] %vm3629, %v8380
      %8453 = vst.msk [vmem:[#allocation3 + $0x60] sm:$0xf] %vm3629, %v8382
      %8454 = vst.msk [vmem:[#allocation3 + $0x64] sm:$0xf] %vm3629, %v8384
      %8455 = vst.msk [vmem:[#allocation3 + $0x68] sm:$0xf] %vm3629, %v8386
      %8456 = vst.msk [vmem:[#allocation3 + $0x6c] sm:$0xf] %vm3629, %v8388
      %8457 = vst.msk [vmem:[#allocation3 + $0x70] sm:$0xf] %vm3629, %v8390
      %8458 = vst.msk [vmem:[#allocation3 + $0x74] sm:$0xf] %vm3629, %v8392
      %8459 = vst.msk [vmem:[#allocation3 + $0x78] sm:$0xf] %vm3629, %v8394
      %8460 = vst.msk [vmem:[#allocation3 + $0x7c] sm:$0xf] %vm3629, %v8396
      %v8461 = vld [vmem:[%s463 + $0x1] sm:$0xff]
      %v8462 = vld [vmem:[%s463 + $0x9] sm:$0xff]
      %v8463 = vld [vmem:[%s463 + $0x19] sm:$0xff]
      %v8464 = vld [vmem:[%s463 + $0x21] sm:$0xff]
      %v8465 = vld [vmem:[%s463 + $0x31] sm:$0xff]
      %v8466 = vld [vmem:[%s463 + $0x39] sm:$0xff]
      %v8467 = vld [vmem:[%s463 + $0x49] sm:$0xff]
      %v8468 = vld [vmem:[%s463 + $0x51] sm:$0xff]
      %v8469 = vld [vmem:[%s463 + $0x61] sm:$0xff]
      %v8470 = vld [vmem:[%s463 + $0x69] sm:$0xff]
      %v8471 = vld [vmem:[%s463 + $0x79] sm:$0xff]
      %v8472 = vld [vmem:[%s463 + $0x81] sm:$0xff]
      %v8473 = vld [vmem:[%s463 + $0x91] sm:$0xff]
      %v8474 = vld [vmem:[%s463 + $0x99] sm:$0xff]
      %v8475 = vld [vmem:[%s463 + $0xa9] sm:$0xff]
      %v8476 = vld [vmem:[%s463 + $0xb1] sm:$0xff]
      %v8477 = vld [vmem:[%s463 + $0xc1] sm:$0xff]
      %v8478 = vld [vmem:[%s463 + $0xc9] sm:$0xff]
      %v8479 = vld [vmem:[%s463 + $0xd9] sm:$0xff]
      %v8480 = vld [vmem:[%s463 + $0xe1] sm:$0xff]
      %v8481 = vld [vmem:[%s463 + $0xf1] sm:$0xff]
      %v8482 = vld [vmem:[%s463 + $0xf9] sm:$0xff]
      %v8483 = vld [vmem:[%s463 + $0x109] sm:$0xff]
      %v8484 = vld [vmem:[%s463 + $0x111] sm:$0xff]
      %v8485 = vld [vmem:[%s463 + $0x121] sm:$0xff]
      %v8486 = vld [vmem:[%s463 + $0x129] sm:$0xff]
      %v8487 = vld [vmem:[%s463 + $0x139] sm:$0xff]
      %v8488 = vld [vmem:[%s463 + $0x141] sm:$0xff]
      %v8489 = vld [vmem:[%s463 + $0x151] sm:$0xff]
      %v8490 = vld [vmem:[%s463 + $0x159] sm:$0xff]
      %v8491 = vld [vmem:[%s463 + $0x169] sm:$0xff]
      %v8492 = vld [vmem:[%s463 + $0x171] sm:$0xff]
      %v8493 = vpack.c.bf16 %v8461, %v8461
      %v8494 = vpack.c.bf16 %v8462, %v8462
      %v8495 = vpack.c.bf16 %v8463, %v8463
      %v8496 = vpack.c.bf16 %v8464, %v8464
      %v8497 = vpack.c.bf16 %v8465, %v8465
      %v8498 = vpack.c.bf16 %v8466, %v8466
      %v8499 = vpack.c.bf16 %v8467, %v8467
      %v8500 = vpack.c.bf16 %v8468, %v8468
      %v8501 = vpack.c.bf16 %v8469, %v8469
      %v8502 = vpack.c.bf16 %v8470, %v8470
      %v8503 = vpack.c.bf16 %v8471, %v8471
      %v8504 = vpack.c.bf16 %v8472, %v8472
      %v8505 = vpack.c.bf16 %v8473, %v8473
      %v8506 = vpack.c.bf16 %v8474, %v8474
      %v8507 = vpack.c.bf16 %v8475, %v8475
      %v8508 = vpack.c.bf16 %v8476, %v8476
      %v8509 = vpack.c.bf16 %v8477, %v8477
      %v8510 = vpack.c.bf16 %v8478, %v8478
      %v8511 = vpack.c.bf16 %v8479, %v8479
      %v8512 = vpack.c.bf16 %v8480, %v8480
      %v8513 = vpack.c.bf16 %v8481, %v8481
      %v8514 = vpack.c.bf16 %v8482, %v8482
      %v8515 = vpack.c.bf16 %v8483, %v8483
      %v8516 = vpack.c.bf16 %v8484, %v8484
      %v8517 = vpack.c.bf16 %v8485, %v8485
      %v8518 = vpack.c.bf16 %v8486, %v8486
      %v8519 = vpack.c.bf16 %v8487, %v8487
      %v8520 = vpack.c.bf16 %v8488, %v8488
      %v8521 = vpack.c.bf16 %v8489, %v8489
      %v8522 = vpack.c.bf16 %v8490, %v8490
      %v8523 = vpack.c.bf16 %v8491, %v8491
      %v8524 = vpack.c.bf16 %v8492, %v8492
      %8557 = vrot.lane.b32.xlu0 %v8493, 32
      %v8558 = vpop.permute.xlu0 %8557
      %8559 = vrot.lane.b32.xlu0 %v8494, 32
      %v8560 = vpop.permute.xlu0 %8559
      %8561 = vrot.lane.b32.xlu0 %v8495, 32
      %v8562 = vpop.permute.xlu0 %8561
      %8563 = vrot.lane.b32.xlu0 %v8496, 32
      %v8564 = vpop.permute.xlu0 %8563
      %8565 = vrot.lane.b32.xlu0 %v8497, 32
      %v8566 = vpop.permute.xlu0 %8565
      %8567 = vrot.lane.b32.xlu0 %v8498, 32
      %v8568 = vpop.permute.xlu0 %8567
      %8569 = vrot.lane.b32.xlu0 %v8499, 32
      %v8570 = vpop.permute.xlu0 %8569
      %8571 = vrot.lane.b32.xlu0 %v8500, 32
      %v8572 = vpop.permute.xlu0 %8571
      %8573 = vrot.lane.b32.xlu0 %v8501, 32
      %v8574 = vpop.permute.xlu0 %8573
      %8575 = vrot.lane.b32.xlu0 %v8502, 32
      %v8576 = vpop.permute.xlu0 %8575
      %8577 = vrot.lane.b32.xlu0 %v8503, 32
      %v8578 = vpop.permute.xlu0 %8577
      %8579 = vrot.lane.b32.xlu0 %v8504, 32
      %v8580 = vpop.permute.xlu0 %8579
      %8581 = vrot.lane.b32.xlu0 %v8505, 32
      %v8582 = vpop.permute.xlu0 %8581
      %8583 = vrot.lane.b32.xlu0 %v8506, 32
      %v8584 = vpop.permute.xlu0 %8583
      %8585 = vrot.lane.b32.xlu0 %v8507, 32
      %v8586 = vpop.permute.xlu0 %8585
      %8587 = vrot.lane.b32.xlu0 %v8508, 32
      %v8588 = vpop.permute.xlu0 %8587
      %8589 = vrot.lane.b32.xlu0 %v8509, 32
      %v8590 = vpop.permute.xlu0 %8589
      %8591 = vrot.lane.b32.xlu0 %v8510, 32
      %v8592 = vpop.permute.xlu0 %8591
      %8593 = vrot.lane.b32.xlu0 %v8511, 32
      %v8594 = vpop.permute.xlu0 %8593
      %8595 = vrot.lane.b32.xlu0 %v8512, 32
      %v8596 = vpop.permute.xlu0 %8595
      %8597 = vrot.lane.b32.xlu0 %v8513, 32
      %v8598 = vpop.permute.xlu0 %8597
      %8599 = vrot.lane.b32.xlu0 %v8514, 32
      %v8600 = vpop.permute.xlu0 %8599
      %8601 = vrot.lane.b32.xlu0 %v8515, 32
      %v8602 = vpop.permute.xlu0 %8601
      %8603 = vrot.lane.b32.xlu0 %v8516, 32
      %v8604 = vpop.permute.xlu0 %8603
      %8605 = vrot.lane.b32.xlu0 %v8517, 32
      %v8606 = vpop.permute.xlu0 %8605
      %8607 = vrot.lane.b32.xlu0 %v8518, 32
      %v8608 = vpop.permute.xlu0 %8607
      %8609 = vrot.lane.b32.xlu0 %v8519, 32
      %v8610 = vpop.permute.xlu0 %8609
      %8611 = vrot.lane.b32.xlu0 %v8520, 32
      %v8612 = vpop.permute.xlu0 %8611
      %8613 = vrot.lane.b32.xlu0 %v8521, 32
      %v8614 = vpop.permute.xlu0 %8613
      %8615 = vrot.lane.b32.xlu0 %v8522, 32
      %v8616 = vpop.permute.xlu0 %8615
      %8617 = vrot.lane.b32.xlu0 %v8523, 32
      %v8618 = vpop.permute.xlu0 %8617
      %8619 = vrot.lane.b32.xlu0 %v8524, 32
      %v8620 = vpop.permute.xlu0 %8619
      %8653 = vst.msk [vmem:[#allocation3] sm:$0xf] %vm3854, %v8558
      %8654 = vst.msk [vmem:[#allocation3 + $0x4] sm:$0xf] %vm3854, %v8560
      %8655 = vst.msk [vmem:[#allocation3 + $0x8] sm:$0xf] %vm3854, %v8562
      %8656 = vst.msk [vmem:[#allocation3 + $0xc] sm:$0xf] %vm3854, %v8564
      %8657 = vst.msk [vmem:[#allocation3 + $0x10] sm:$0xf] %vm3854, %v8566
      %8658 = vst.msk [vmem:[#allocation3 + $0x14] sm:$0xf] %vm3854, %v8568
      %8659 = vst.msk [vmem:[#allocation3 + $0x18] sm:$0xf] %vm3854, %v8570
      %8660 = vst.msk [vmem:[#allocation3 + $0x1c] sm:$0xf] %vm3854, %v8572
      %8661 = vst.msk [vmem:[#allocation3 + $0x20] sm:$0xf] %vm3854, %v8574
      %8662 = vst.msk [vmem:[#allocation3 + $0x24] sm:$0xf] %vm3854, %v8576
      %8663 = vst.msk [vmem:[#allocation3 + $0x28] sm:$0xf] %vm3854, %v8578
      %8664 = vst.msk [vmem:[#allocation3 + $0x2c] sm:$0xf] %vm3854, %v8580
      %8665 = vst.msk [vmem:[#allocation3 + $0x30] sm:$0xf] %vm3854, %v8582
      %8666 = vst.msk [vmem:[#allocation3 + $0x34] sm:$0xf] %vm3854, %v8584
      %8667 = vst.msk [vmem:[#allocation3 + $0x38] sm:$0xf] %vm3854, %v8586
      %8668 = vst.msk [vmem:[#allocation3 + $0x3c] sm:$0xf] %vm3854, %v8588
      %8669 = vst.msk [vmem:[#allocation3 + $0x40] sm:$0xf] %vm3854, %v8590
      %8670 = vst.msk [vmem:[#allocation3 + $0x44] sm:$0xf] %vm3854, %v8592
      %8671 = vst.msk [vmem:[#allocation3 + $0x48] sm:$0xf] %vm3854, %v8594
      %8672 = vst.msk [vmem:[#allocation3 + $0x4c] sm:$0xf] %vm3854, %v8596
      %8673 = vst.msk [vmem:[#allocation3 + $0x50] sm:$0xf] %vm3854, %v8598
      %8674 = vst.msk [vmem:[#allocation3 + $0x54] sm:$0xf] %vm3854, %v8600
      %8675 = vst.msk [vmem:[#allocation3 + $0x58] sm:$0xf] %vm3854, %v8602
      %8676 = vst.msk [vmem:[#allocation3 + $0x5c] sm:$0xf] %vm3854, %v8604
      %8677 = vst.msk [vmem:[#allocation3 + $0x60] sm:$0xf] %vm3854, %v8606
      %8678 = vst.msk [vmem:[#allocation3 + $0x64] sm:$0xf] %vm3854, %v8608
      %8679 = vst.msk [vmem:[#allocation3 + $0x68] sm:$0xf] %vm3854, %v8610
      %8680 = vst.msk [vmem:[#allocation3 + $0x6c] sm:$0xf] %vm3854, %v8612
      %8681 = vst.msk [vmem:[#allocation3 + $0x70] sm:$0xf] %vm3854, %v8614
      %8682 = vst.msk [vmem:[#allocation3 + $0x74] sm:$0xf] %vm3854, %v8616
      %8683 = vst.msk [vmem:[#allocation3 + $0x78] sm:$0xf] %vm3854, %v8618
      %8684 = vst.msk [vmem:[#allocation3 + $0x7c] sm:$0xf] %vm3854, %v8620
      %v8685 = vld [vmem:[%s463 + $0x2] sm:$0xff]
      %v8686 = vld [vmem:[%s463 + $0xa] sm:$0xff]
      %v8687 = vld [vmem:[%s463 + $0x1a] sm:$0xff]
      %v8688 = vld [vmem:[%s463 + $0x22] sm:$0xff]
      %v8689 = vld [vmem:[%s463 + $0x32] sm:$0xff]
      %v8690 = vld [vmem:[%s463 + $0x3a] sm:$0xff]
      %v8691 = vld [vmem:[%s463 + $0x4a] sm:$0xff]
      %v8692 = vld [vmem:[%s463 + $0x52] sm:$0xff]
      %v8693 = vld [vmem:[%s463 + $0x62] sm:$0xff]
      %v8694 = vld [vmem:[%s463 + $0x6a] sm:$0xff]
      %v8695 = vld [vmem:[%s463 + $0x7a] sm:$0xff]
      %v8696 = vld [vmem:[%s463 + $0x82] sm:$0xff]
      %v8697 = vld [vmem:[%s463 + $0x92] sm:$0xff]
      %v8698 = vld [vmem:[%s463 + $0x9a] sm:$0xff]
      %v8699 = vld [vmem:[%s463 + $0xaa] sm:$0xff]
      %v8700 = vld [vmem:[%s463 + $0xb2] sm:$0xff]
      %v8701 = vld [vmem:[%s463 + $0xc2] sm:$0xff]
      %v8702 = vld [vmem:[%s463 + $0xca] sm:$0xff]
      %v8703 = vld [vmem:[%s463 + $0xda] sm:$0xff]
      %v8704 = vld [vmem:[%s463 + $0xe2] sm:$0xff]
      %v8705 = vld [vmem:[%s463 + $0xf2] sm:$0xff]
      %v8706 = vld [vmem:[%s463 + $0xfa] sm:$0xff]
      %v8707 = vld [vmem:[%s463 + $0x10a] sm:$0xff]
      %v8708 = vld [vmem:[%s463 + $0x112] sm:$0xff]
      %v8709 = vld [vmem:[%s463 + $0x122] sm:$0xff]
      %v8710 = vld [vmem:[%s463 + $0x12a] sm:$0xff]
      %v8711 = vld [vmem:[%s463 + $0x13a] sm:$0xff]
      %v8712 = vld [vmem:[%s463 + $0x142] sm:$0xff]
      %v8713 = vld [vmem:[%s463 + $0x152] sm:$0xff]
      %v8714 = vld [vmem:[%s463 + $0x15a] sm:$0xff]
      %v8715 = vld [vmem:[%s463 + $0x16a] sm:$0xff]
      %v8716 = vld [vmem:[%s463 + $0x172] sm:$0xff]
      %v8717 = vpack.c.bf16 %v8685, %v8685
      %v8718 = vpack.c.bf16 %v8686, %v8686
      %v8719 = vpack.c.bf16 %v8687, %v8687
      %v8720 = vpack.c.bf16 %v8688, %v8688
      %v8721 = vpack.c.bf16 %v8689, %v8689
      %v8722 = vpack.c.bf16 %v8690, %v8690
      %v8723 = vpack.c.bf16 %v8691, %v8691
      %v8724 = vpack.c.bf16 %v8692, %v8692
      %v8725 = vpack.c.bf16 %v8693, %v8693
      %v8726 = vpack.c.bf16 %v8694, %v8694
      %v8727 = vpack.c.bf16 %v8695, %v8695
      %v8728 = vpack.c.bf16 %v8696, %v8696
      %v8729 = vpack.c.bf16 %v8697, %v8697
      %v8730 = vpack.c.bf16 %v8698, %v8698
      %v8731 = vpack.c.bf16 %v8699, %v8699
      %v8732 = vpack.c.bf16 %v8700, %v8700
      %v8733 = vpack.c.bf16 %v8701, %v8701
      %v8734 = vpack.c.bf16 %v8702, %v8702
      %v8735 = vpack.c.bf16 %v8703, %v8703
      %v8736 = vpack.c.bf16 %v8704, %v8704
      %v8737 = vpack.c.bf16 %v8705, %v8705
      %v8738 = vpack.c.bf16 %v8706, %v8706
      %v8739 = vpack.c.bf16 %v8707, %v8707
      %v8740 = vpack.c.bf16 %v8708, %v8708
      %v8741 = vpack.c.bf16 %v8709, %v8709
      %v8742 = vpack.c.bf16 %v8710, %v8710
      %v8743 = vpack.c.bf16 %v8711, %v8711
      %v8744 = vpack.c.bf16 %v8712, %v8712
      %v8745 = vpack.c.bf16 %v8713, %v8713
      %v8746 = vpack.c.bf16 %v8714, %v8714
      %v8747 = vpack.c.bf16 %v8715, %v8715
      %v8748 = vpack.c.bf16 %v8716, %v8716
      %8781 = vrot.lane.b32.xlu0 %v8717, 40
      %v8782 = vpop.permute.xlu0 %8781
      %8783 = vrot.lane.b32.xlu0 %v8718, 40
      %v8784 = vpop.permute.xlu0 %8783
      %8785 = vrot.lane.b32.xlu0 %v8719, 40
      %v8786 = vpop.permute.xlu0 %8785
      %8787 = vrot.lane.b32.xlu0 %v8720, 40
      %v8788 = vpop.permute.xlu0 %8787
      %8789 = vrot.lane.b32.xlu0 %v8721, 40
      %v8790 = vpop.permute.xlu0 %8789
      %8791 = vrot.lane.b32.xlu0 %v8722, 40
      %v8792 = vpop.permute.xlu0 %8791
      %8793 = vrot.lane.b32.xlu0 %v8723, 40
      %v8794 = vpop.permute.xlu0 %8793
      %8795 = vrot.lane.b32.xlu0 %v8724, 40
      %v8796 = vpop.permute.xlu0 %8795
      %8797 = vrot.lane.b32.xlu0 %v8725, 40
      %v8798 = vpop.permute.xlu0 %8797
      %8799 = vrot.lane.b32.xlu0 %v8726, 40
      %v8800 = vpop.permute.xlu0 %8799
      %8801 = vrot.lane.b32.xlu0 %v8727, 40
      %v8802 = vpop.permute.xlu0 %8801
      %8803 = vrot.lane.b32.xlu0 %v8728, 40
      %v8804 = vpop.permute.xlu0 %8803
      %8805 = vrot.lane.b32.xlu0 %v8729, 40
      %v8806 = vpop.permute.xlu0 %8805
      %8807 = vrot.lane.b32.xlu0 %v8730, 40
      %v8808 = vpop.permute.xlu0 %8807
      %8809 = vrot.lane.b32.xlu0 %v8731, 40
      %v8810 = vpop.permute.xlu0 %8809
      %8811 = vrot.lane.b32.xlu0 %v8732, 40
      %v8812 = vpop.permute.xlu0 %8811
      %8813 = vrot.lane.b32.xlu0 %v8733, 40
      %v8814 = vpop.permute.xlu0 %8813
      %8815 = vrot.lane.b32.xlu0 %v8734, 40
      %v8816 = vpop.permute.xlu0 %8815
      %8817 = vrot.lane.b32.xlu0 %v8735, 40
      %v8818 = vpop.permute.xlu0 %8817
      %8819 = vrot.lane.b32.xlu0 %v8736, 40
      %v8820 = vpop.permute.xlu0 %8819
      %8821 = vrot.lane.b32.xlu0 %v8737, 40
      %v8822 = vpop.permute.xlu0 %8821
      %8823 = vrot.lane.b32.xlu0 %v8738, 40
      %v8824 = vpop.permute.xlu0 %8823
      %8825 = vrot.lane.b32.xlu0 %v8739, 40
      %v8826 = vpop.permute.xlu0 %8825
      %8827 = vrot.lane.b32.xlu0 %v8740, 40
      %v8828 = vpop.permute.xlu0 %8827
      %8829 = vrot.lane.b32.xlu0 %v8741, 40
      %v8830 = vpop.permute.xlu0 %8829
      %8831 = vrot.lane.b32.xlu0 %v8742, 40
      %v8832 = vpop.permute.xlu0 %8831
      %8833 = vrot.lane.b32.xlu0 %v8743, 40
      %v8834 = vpop.permute.xlu0 %8833
      %8835 = vrot.lane.b32.xlu0 %v8744, 40
      %v8836 = vpop.permute.xlu0 %8835
      %8837 = vrot.lane.b32.xlu0 %v8745, 40
      %v8838 = vpop.permute.xlu0 %8837
      %8839 = vrot.lane.b32.xlu0 %v8746, 40
      %v8840 = vpop.permute.xlu0 %8839
      %8841 = vrot.lane.b32.xlu0 %v8747, 40
      %v8842 = vpop.permute.xlu0 %8841
      %8843 = vrot.lane.b32.xlu0 %v8748, 40
      %v8844 = vpop.permute.xlu0 %8843
      %8877 = vst.msk [vmem:[#allocation3] sm:$0xf] %vm4079, %v8782
      %8878 = vst.msk [vmem:[#allocation3 + $0x4] sm:$0xf] %vm4079, %v8784
      %8879 = vst.msk [vmem:[#allocation3 + $0x8] sm:$0xf] %vm4079, %v8786
      %8880 = vst.msk [vmem:[#allocation3 + $0xc] sm:$0xf] %vm4079, %v8788
      %8881 = vst.msk [vmem:[#allocation3 + $0x10] sm:$0xf] %vm4079, %v8790
      %8882 = vst.msk [vmem:[#allocation3 + $0x14] sm:$0xf] %vm4079, %v8792
      %8883 = vst.msk [vmem:[#allocation3 + $0x18] sm:$0xf] %vm4079, %v8794
      %8884 = vst.msk [vmem:[#allocation3 + $0x1c] sm:$0xf] %vm4079, %v8796
      %8885 = vst.msk [vmem:[#allocation3 + $0x20] sm:$0xf] %vm4079, %v8798
      %8886 = vst.msk [vmem:[#allocation3 + $0x24] sm:$0xf] %vm4079, %v8800
      %8887 = vst.msk [vmem:[#allocation3 + $0x28] sm:$0xf] %vm4079, %v8802
      %8888 = vst.msk [vmem:[#allocation3 + $0x2c] sm:$0xf] %vm4079, %v8804
      %8889 = vst.msk [vmem:[#allocation3 + $0x30] sm:$0xf] %vm4079, %v8806
      %8890 = vst.msk [vmem:[#allocation3 + $0x34] sm:$0xf] %vm4079, %v8808
      %8891 = vst.msk [vmem:[#allocation3 + $0x38] sm:$0xf] %vm4079, %v8810
      %8892 = vst.msk [vmem:[#allocation3 + $0x3c] sm:$0xf] %vm4079, %v8812
      %8893 = vst.msk [vmem:[#allocation3 + $0x40] sm:$0xf] %vm4079, %v8814
      %8894 = vst.msk [vmem:[#allocation3 + $0x44] sm:$0xf] %vm4079, %v8816
      %8895 = vst.msk [vmem:[#allocation3 + $0x48] sm:$0xf] %vm4079, %v8818
      %8896 = vst.msk [vmem:[#allocation3 + $0x4c] sm:$0xf] %vm4079, %v8820
      %8897 = vst.msk [vmem:[#allocation3 + $0x50] sm:$0xf] %vm4079, %v8822
      %8898 = vst.msk [vmem:[#allocation3 + $0x54] sm:$0xf] %vm4079, %v8824
      %8899 = vst.msk [vmem:[#allocation3 + $0x58] sm:$0xf] %vm4079, %v8826
      %8900 = vst.msk [vmem:[#allocation3 + $0x5c] sm:$0xf] %vm4079, %v8828
      %8901 = vst.msk [vmem:[#allocation3 + $0x60] sm:$0xf] %vm4079, %v8830
      %8902 = vst.msk [vmem:[#allocation3 + $0x64] sm:$0xf] %vm4079, %v8832
      %8903 = vst.msk [vmem:[#allocation3 + $0x68] sm:$0xf] %vm4079, %v8834
      %8904 = vst.msk [vmem:[#allocation3 + $0x6c] sm:$0xf] %vm4079, %v8836
      %8905 = vst.msk [vmem:[#allocation3 + $0x70] sm:$0xf] %vm4079, %v8838
      %8906 = vst.msk [vmem:[#allocation3 + $0x74] sm:$0xf] %vm4079, %v8840
      %8907 = vst.msk [vmem:[#allocation3 + $0x78] sm:$0xf] %vm4079, %v8842
      %8908 = vst.msk [vmem:[#allocation3 + $0x7c] sm:$0xf] %vm4079, %v8844
      %v8909 = vld [vmem:[%s1719] sm:$0xff]
      %v8910 = vld [vmem:[%s1719 + $0x8] sm:$0xff]
      %v8911 = vld [vmem:[%s1719 + $0x18] sm:$0xff]
      %v8912 = vld [vmem:[%s1719 + $0x20] sm:$0xff]
      %v8913 = vld [vmem:[%s1719 + $0x30] sm:$0xff]
      %v8914 = vld [vmem:[%s1719 + $0x38] sm:$0xff]
      %v8915 = vld [vmem:[%s1719 + $0x48] sm:$0xff]
      %v8916 = vld [vmem:[%s1719 + $0x50] sm:$0xff]
      %v8917 = vld [vmem:[%s1719 + $0x60] sm:$0xff]
      %v8918 = vld [vmem:[%s1719 + $0x68] sm:$0xff]
      %v8919 = vld [vmem:[%s1719 + $0x78] sm:$0xff]
      %v8920 = vld [vmem:[%s1719 + $0x80] sm:$0xff]
      %v8921 = vld [vmem:[%s1719 + $0x90] sm:$0xff]
      %v8922 = vld [vmem:[%s1719 + $0x98] sm:$0xff]
      %v8923 = vld [vmem:[%s1719 + $0xa8] sm:$0xff]
      %v8924 = vld [vmem:[%s1719 + $0xb0] sm:$0xff]
      %v8925 = vld [vmem:[%s1719 + $0xc0] sm:$0xff]
      %v8926 = vld [vmem:[%s1719 + $0xc8] sm:$0xff]
      %v8927 = vld [vmem:[%s1719 + $0xd8] sm:$0xff]
      %v8928 = vld [vmem:[%s1719 + $0xe0] sm:$0xff]
      %v8929 = vld [vmem:[%s1719 + $0xf0] sm:$0xff]
      %v8930 = vld [vmem:[%s1719 + $0xf8] sm:$0xff]
      %v8931 = vld [vmem:[%s1719 + $0x108] sm:$0xff]
      %v8932 = vld [vmem:[%s1719 + $0x110] sm:$0xff]
      %v8933 = vld [vmem:[%s1719 + $0x120] sm:$0xff]
      %v8934 = vld [vmem:[%s1719 + $0x128] sm:$0xff]
      %v8935 = vld [vmem:[%s1719 + $0x138] sm:$0xff]
      %v8936 = vld [vmem:[%s1719 + $0x140] sm:$0xff]
      %v8937 = vld [vmem:[%s1719 + $0x150] sm:$0xff]
      %v8938 = vld [vmem:[%s1719 + $0x158] sm:$0xff]
      %v8939 = vld [vmem:[%s1719 + $0x168] sm:$0xff]
      %v8940 = vld [vmem:[%s1719 + $0x170] sm:$0xff]
      %v8941 = vpack.c.bf16 %v8909, %v8909
      %v8942 = vpack.c.bf16 %v8910, %v8910
      %v8943 = vpack.c.bf16 %v8911, %v8911
      %v8944 = vpack.c.bf16 %v8912, %v8912
      %v8945 = vpack.c.bf16 %v8913, %v8913
      %v8946 = vpack.c.bf16 %v8914, %v8914
      %v8947 = vpack.c.bf16 %v8915, %v8915
      %v8948 = vpack.c.bf16 %v8916, %v8916
      %v8949 = vpack.c.bf16 %v8917, %v8917
      %v8950 = vpack.c.bf16 %v8918, %v8918
      %v8951 = vpack.c.bf16 %v8919, %v8919
      %v8952 = vpack.c.bf16 %v8920, %v8920
      %v8953 = vpack.c.bf16 %v8921, %v8921
      %v8954 = vpack.c.bf16 %v8922, %v8922
      %v8955 = vpack.c.bf16 %v8923, %v8923
      %v8956 = vpack.c.bf16 %v8924, %v8924
      %v8957 = vpack.c.bf16 %v8925, %v8925
      %v8958 = vpack.c.bf16 %v8926, %v8926
      %v8959 = vpack.c.bf16 %v8927, %v8927
      %v8960 = vpack.c.bf16 %v8928, %v8928
      %v8961 = vpack.c.bf16 %v8929, %v8929
      %v8962 = vpack.c.bf16 %v8930, %v8930
      %v8963 = vpack.c.bf16 %v8931, %v8931
      %v8964 = vpack.c.bf16 %v8932, %v8932
      %v8965 = vpack.c.bf16 %v8933, %v8933
      %v8966 = vpack.c.bf16 %v8934, %v8934
      %v8967 = vpack.c.bf16 %v8935, %v8935
      %v8968 = vpack.c.bf16 %v8936, %v8936
      %v8969 = vpack.c.bf16 %v8937, %v8937
      %v8970 = vpack.c.bf16 %v8938, %v8938
      %v8971 = vpack.c.bf16 %v8939, %v8939
      %v8972 = vpack.c.bf16 %v8940, %v8940
      %9005 = vrot.lane.b32.xlu0 %v8941, 48
      %v9006 = vpop.permute.xlu0 %9005
      %9007 = vrot.lane.b32.xlu0 %v8942, 48
      %v9008 = vpop.permute.xlu0 %9007
      %9009 = vrot.lane.b32.xlu0 %v8943, 48
      %v9010 = vpop.permute.xlu0 %9009
      %9011 = vrot.lane.b32.xlu0 %v8944, 48
      %v9012 = vpop.permute.xlu0 %9011
      %9013 = vrot.lane.b32.xlu0 %v8945, 48
      %v9014 = vpop.permute.xlu0 %9013
      %9015 = vrot.lane.b32.xlu0 %v8946, 48
      %v9016 = vpop.permute.xlu0 %9015
      %9017 = vrot.lane.b32.xlu0 %v8947, 48
      %v9018 = vpop.permute.xlu0 %9017
      %9019 = vrot.lane.b32.xlu0 %v8948, 48
      %v9020 = vpop.permute.xlu0 %9019
      %9021 = vrot.lane.b32.xlu0 %v8949, 48
      %v9022 = vpop.permute.xlu0 %9021
      %9023 = vrot.lane.b32.xlu0 %v8950, 48
      %v9024 = vpop.permute.xlu0 %9023
      %9025 = vrot.lane.b32.xlu0 %v8951, 48
      %v9026 = vpop.permute.xlu0 %9025
      %9027 = vrot.lane.b32.xlu0 %v8952, 48
      %v9028 = vpop.permute.xlu0 %9027
      %9029 = vrot.lane.b32.xlu0 %v8953, 48
      %v9030 = vpop.permute.xlu0 %9029
      %9031 = vrot.lane.b32.xlu0 %v8954, 48
      %v9032 = vpop.permute.xlu0 %9031
      %9033 = vrot.lane.b32.xlu0 %v8955, 48
      %v9034 = vpop.permute.xlu0 %9033
      %9035 = vrot.lane.b32.xlu0 %v8956, 48
      %v9036 = vpop.permute.xlu0 %9035
      %9037 = vrot.lane.b32.xlu0 %v8957, 48
      %v9038 = vpop.permute.xlu0 %9037
      %9039 = vrot.lane.b32.xlu0 %v8958, 48
      %v9040 = vpop.permute.xlu0 %9039
      %9041 = vrot.lane.b32.xlu0 %v8959, 48
      %v9042 = vpop.permute.xlu0 %9041
      %9043 = vrot.lane.b32.xlu0 %v8960, 48
      %v9044 = vpop.permute.xlu0 %9043
      %9045 = vrot.lane.b32.xlu0 %v8961, 48
      %v9046 = vpop.permute.xlu0 %9045
      %9047 = vrot.lane.b32.xlu0 %v8962, 48
      %v9048 = vpop.permute.xlu0 %9047
      %9049 = vrot.lane.b32.xlu0 %v8963, 48
      %v9050 = vpop.permute.xlu0 %9049
      %9051 = vrot.lane.b32.xlu0 %v8964, 48
      %v9052 = vpop.permute.xlu0 %9051
      %9053 = vrot.lane.b32.xlu0 %v8965, 48
      %v9054 = vpop.permute.xlu0 %9053
      %9055 = vrot.lane.b32.xlu0 %v8966, 48
      %v9056 = vpop.permute.xlu0 %9055
      %9057 = vrot.lane.b32.xlu0 %v8967, 48
      %v9058 = vpop.permute.xlu0 %9057
      %9059 = vrot.lane.b32.xlu0 %v8968, 48
      %v9060 = vpop.permute.xlu0 %9059
      %9061 = vrot.lane.b32.xlu0 %v8969, 48
      %v9062 = vpop.permute.xlu0 %9061
      %9063 = vrot.lane.b32.xlu0 %v8970, 48
      %v9064 = vpop.permute.xlu0 %9063
      %9065 = vrot.lane.b32.xlu0 %v8971, 48
      %v9066 = vpop.permute.xlu0 %9065
      %9067 = vrot.lane.b32.xlu0 %v8972, 48
      %v9068 = vpop.permute.xlu0 %9067
      %9101 = vst.msk [vmem:[#allocation3] sm:$0xf] %vm4304, %v9006
      %9102 = vst.msk [vmem:[#allocation3 + $0x4] sm:$0xf] %vm4304, %v9008
      %9103 = vst.msk [vmem:[#allocation3 + $0x8] sm:$0xf] %vm4304, %v9010
      %9104 = vst.msk [vmem:[#allocation3 + $0xc] sm:$0xf] %vm4304, %v9012
      %9105 = vst.msk [vmem:[#allocation3 + $0x10] sm:$0xf] %vm4304, %v9014
      %9106 = vst.msk [vmem:[#allocation3 + $0x14] sm:$0xf] %vm4304, %v9016
      %9107 = vst.msk [vmem:[#allocation3 + $0x18] sm:$0xf] %vm4304, %v9018
      %9108 = vst.msk [vmem:[#allocation3 + $0x1c] sm:$0xf] %vm4304, %v9020
      %9109 = vst.msk [vmem:[#allocation3 + $0x20] sm:$0xf] %vm4304, %v9022
      %9110 = vst.msk [vmem:[#allocation3 + $0x24] sm:$0xf] %vm4304, %v9024
      %9111 = vst.msk [vmem:[#allocation3 + $0x28] sm:$0xf] %vm4304, %v9026
      %9112 = vst.msk [vmem:[#allocation3 + $0x2c] sm:$0xf] %vm4304, %v9028
      %9113 = vst.msk [vmem:[#allocation3 + $0x30] sm:$0xf] %vm4304, %v9030
      %9114 = vst.msk [vmem:[#allocation3 + $0x34] sm:$0xf] %vm4304, %v9032
      %9115 = vst.msk [vmem:[#allocation3 + $0x38] sm:$0xf] %vm4304, %v9034
      %9116 = vst.msk [vmem:[#allocation3 + $0x3c] sm:$0xf] %vm4304, %v9036
      %9117 = vst.msk [vmem:[#allocation3 + $0x40] sm:$0xf] %vm4304, %v9038
      %9118 = vst.msk [vmem:[#allocation3 + $0x44] sm:$0xf] %vm4304, %v9040
      %9119 = vst.msk [vmem:[#allocation3 + $0x48] sm:$0xf] %vm4304, %v9042
      %9120 = vst.msk [vmem:[#allocation3 + $0x4c] sm:$0xf] %vm4304, %v9044
      %9121 = vst.msk [vmem:[#allocation3 + $0x50] sm:$0xf] %vm4304, %v9046
      %9122 = vst.msk [vmem:[#allocation3 + $0x54] sm:$0xf] %vm4304, %v9048
      %9123 = vst.msk [vmem:[#allocation3 + $0x58] sm:$0xf] %vm4304, %v9050
      %9124 = vst.msk [vmem:[#allocation3 + $0x5c] sm:$0xf] %vm4304, %v9052
      %9125 = vst.msk [vmem:[#allocation3 + $0x60] sm:$0xf] %vm4304, %v9054
      %9126 = vst.msk [vmem:[#allocation3 + $0x64] sm:$0xf] %vm4304, %v9056
      %9127 = vst.msk [vmem:[#allocation3 + $0x68] sm:$0xf] %vm4304, %v9058
      %9128 = vst.msk [vmem:[#allocation3 + $0x6c] sm:$0xf] %vm4304, %v9060
      %9129 = vst.msk [vmem:[#allocation3 + $0x70] sm:$0xf] %vm4304, %v9062
      %9130 = vst.msk [vmem:[#allocation3 + $0x74] sm:$0xf] %vm4304, %v9064
      %9131 = vst.msk [vmem:[#allocation3 + $0x78] sm:$0xf] %vm4304, %v9066
      %9132 = vst.msk [vmem:[#allocation3 + $0x7c] sm:$0xf] %vm4304, %v9068
      %v9133 = vld [vmem:[%s1719 + $0x1] sm:$0xff]
      %v9134 = vld [vmem:[%s1719 + $0x9] sm:$0xff]
      %v9135 = vld [vmem:[%s1719 + $0x19] sm:$0xff]
      %v9136 = vld [vmem:[%s1719 + $0x21] sm:$0xff]
      %v9137 = vld [vmem:[%s1719 + $0x31] sm:$0xff]
      %v9138 = vld [vmem:[%s1719 + $0x39] sm:$0xff]
      %v9139 = vld [vmem:[%s1719 + $0x49] sm:$0xff]
      %v9140 = vld [vmem:[%s1719 + $0x51] sm:$0xff]
      %v9141 = vld [vmem:[%s1719 + $0x61] sm:$0xff]
      %v9142 = vld [vmem:[%s1719 + $0x69] sm:$0xff]
      %v9143 = vld [vmem:[%s1719 + $0x79] sm:$0xff]
      %v9144 = vld [vmem:[%s1719 + $0x81] sm:$0xff]
      %v9145 = vld [vmem:[%s1719 + $0x91] sm:$0xff]
      %v9146 = vld [vmem:[%s1719 + $0x99] sm:$0xff]
      %v9147 = vld [vmem:[%s1719 + $0xa9] sm:$0xff]
      %v9148 = vld [vmem:[%s1719 + $0xb1] sm:$0xff]
      %v9149 = vld [vmem:[%s1719 + $0xc1] sm:$0xff]
      %v9150 = vld [vmem:[%s1719 + $0xc9] sm:$0xff]
      %v9151 = vld [vmem:[%s1719 + $0xd9] sm:$0xff]
      %v9152 = vld [vmem:[%s1719 + $0xe1] sm:$0xff]
      %v9153 = vld [vmem:[%s1719 + $0xf1] sm:$0xff]
      %v9154 = vld [vmem:[%s1719 + $0xf9] sm:$0xff]
      %v9155 = vld [vmem:[%s1719 + $0x109] sm:$0xff]
      %v9156 = vld [vmem:[%s1719 + $0x111] sm:$0xff]
      %v9157 = vld [vmem:[%s1719 + $0x121] sm:$0xff]
      %v9158 = vld [vmem:[%s1719 + $0x129] sm:$0xff]
      %v9159 = vld [vmem:[%s1719 + $0x139] sm:$0xff]
      %v9160 = vld [vmem:[%s1719 + $0x141] sm:$0xff]
      %v9161 = vld [vmem:[%s1719 + $0x151] sm:$0xff]
      %v9162 = vld [vmem:[%s1719 + $0x159] sm:$0xff]
      %v9163 = vld [vmem:[%s1719 + $0x169] sm:$0xff]
      %v9164 = vld [vmem:[%s1719 + $0x171] sm:$0xff]
      %v9165 = vpack.c.bf16 %v9133, %v9133
      %v9166 = vpack.c.bf16 %v9134, %v9134
      %v9167 = vpack.c.bf16 %v9135, %v9135
      %v9168 = vpack.c.bf16 %v9136, %v9136
      %v9169 = vpack.c.bf16 %v9137, %v9137
      %v9170 = vpack.c.bf16 %v9138, %v9138
      %v9171 = vpack.c.bf16 %v9139, %v9139
      %v9172 = vpack.c.bf16 %v9140, %v9140
      %v9173 = vpack.c.bf16 %v9141, %v9141
      %v9174 = vpack.c.bf16 %v9142, %v9142
      %v9175 = vpack.c.bf16 %v9143, %v9143
      %v9176 = vpack.c.bf16 %v9144, %v9144
      %v9177 = vpack.c.bf16 %v9145, %v9145
      %v9178 = vpack.c.bf16 %v9146, %v9146
      %v9179 = vpack.c.bf16 %v9147, %v9147
      %v9180 = vpack.c.bf16 %v9148, %v9148
      %v9181 = vpack.c.bf16 %v9149, %v9149
      %v9182 = vpack.c.bf16 %v9150, %v9150
      %v9183 = vpack.c.bf16 %v9151, %v9151
      %v9184 = vpack.c.bf16 %v9152, %v9152
      %v9185 = vpack.c.bf16 %v9153, %v9153
      %v9186 = vpack.c.bf16 %v9154, %v9154
      %v9187 = vpack.c.bf16 %v9155, %v9155
      %v9188 = vpack.c.bf16 %v9156, %v9156
      %v9189 = vpack.c.bf16 %v9157, %v9157
      %v9190 = vpack.c.bf16 %v9158, %v9158
      %v9191 = vpack.c.bf16 %v9159, %v9159
      %v9192 = vpack.c.bf16 %v9160, %v9160
      %v9193 = vpack.c.bf16 %v9161, %v9161
      %v9194 = vpack.c.bf16 %v9162, %v9162
      %v9195 = vpack.c.bf16 %v9163, %v9163
      %v9196 = vpack.c.bf16 %v9164, %v9164
      %9229 = vrot.lane.b32.xlu0 %v9165, 56
      %v9230 = vpop.permute.xlu0 %9229
      %9231 = vrot.lane.b32.xlu0 %v9166, 56
      %v9232 = vpop.permute.xlu0 %9231
      %9233 = vrot.lane.b32.xlu0 %v9167, 56
      %v9234 = vpop.permute.xlu0 %9233
      %9235 = vrot.lane.b32.xlu0 %v9168, 56
      %v9236 = vpop.permute.xlu0 %9235
      %9237 = vrot.lane.b32.xlu0 %v9169, 56
      %v9238 = vpop.permute.xlu0 %9237
      %9239 = vrot.lane.b32.xlu0 %v9170, 56
      %v9240 = vpop.permute.xlu0 %9239
      %9241 = vrot.lane.b32.xlu0 %v9171, 56
      %v9242 = vpop.permute.xlu0 %9241
      %9243 = vrot.lane.b32.xlu0 %v9172, 56
      %v9244 = vpop.permute.xlu0 %9243
      %9245 = vrot.lane.b32.xlu0 %v9173, 56
      %v9246 = vpop.permute.xlu0 %9245
      %9247 = vrot.lane.b32.xlu0 %v9174, 56
      %v9248 = vpop.permute.xlu0 %9247
      %9249 = vrot.lane.b32.xlu0 %v9175, 56
      %v9250 = vpop.permute.xlu0 %9249
      %9251 = vrot.lane.b32.xlu0 %v9176, 56
      %v9252 = vpop.permute.xlu0 %9251
      %9253 = vrot.lane.b32.xlu0 %v9177, 56
      %v9254 = vpop.permute.xlu0 %9253
      %9255 = vrot.lane.b32.xlu0 %v9178, 56
      %v9256 = vpop.permute.xlu0 %9255
      %9257 = vrot.lane.b32.xlu0 %v9179, 56
      %v9258 = vpop.permute.xlu0 %9257
      %9259 = vrot.lane.b32.xlu0 %v9180, 56
      %v9260 = vpop.permute.xlu0 %9259
      %9261 = vrot.lane.b32.xlu0 %v9181, 56
      %v9262 = vpop.permute.xlu0 %9261
      %9263 = vrot.lane.b32.xlu0 %v9182, 56
      %v9264 = vpop.permute.xlu0 %9263
      %9265 = vrot.lane.b32.xlu0 %v9183, 56
      %v9266 = vpop.permute.xlu0 %9265
      %9267 = vrot.lane.b32.xlu0 %v9184, 56
      %v9268 = vpop.permute.xlu0 %9267
      %9269 = vrot.lane.b32.xlu0 %v9185, 56
      %v9270 = vpop.permute.xlu0 %9269
      %9271 = vrot.lane.b32.xlu0 %v9186, 56
      %v9272 = vpop.permute.xlu0 %9271
      %9273 = vrot.lane.b32.xlu0 %v9187, 56
      %v9274 = vpop.permute.xlu0 %9273
      %9275 = vrot.lane.b32.xlu0 %v9188, 56
      %v9276 = vpop.permute.xlu0 %9275
      %9277 = vrot.lane.b32.xlu0 %v9189, 56
      %v9278 = vpop.permute.xlu0 %9277
      %9279 = vrot.lane.b32.xlu0 %v9190, 56
      %v9280 = vpop.permute.xlu0 %9279
      %9281 = vrot.lane.b32.xlu0 %v9191, 56
      %v9282 = vpop.permute.xlu0 %9281
      %9283 = vrot.lane.b32.xlu0 %v9192, 56
      %v9284 = vpop.permute.xlu0 %9283
      %9285 = vrot.lane.b32.xlu0 %v9193, 56
      %v9286 = vpop.permute.xlu0 %9285
      %9287 = vrot.lane.b32.xlu0 %v9194, 56
      %v9288 = vpop.permute.xlu0 %9287
      %9289 = vrot.lane.b32.xlu0 %v9195, 56
      %v9290 = vpop.permute.xlu0 %9289
      %9291 = vrot.lane.b32.xlu0 %v9196, 56
      %v9292 = vpop.permute.xlu0 %9291
      %9325 = vst.msk [vmem:[#allocation3] sm:$0xf] %vm4529, %v9230
      %9326 = vst.msk [vmem:[#allocation3 + $0x4] sm:$0xf] %vm4529, %v9232
      %9327 = vst.msk [vmem:[#allocation3 + $0x8] sm:$0xf] %vm4529, %v9234
      %9328 = vst.msk [vmem:[#allocation3 + $0xc] sm:$0xf] %vm4529, %v9236
      %9329 = vst.msk [vmem:[#allocation3 + $0x10] sm:$0xf] %vm4529, %v9238
      %9330 = vst.msk [vmem:[#allocation3 + $0x14] sm:$0xf] %vm4529, %v9240
      %9331 = vst.msk [vmem:[#allocation3 + $0x18] sm:$0xf] %vm4529, %v9242
      %9332 = vst.msk [vmem:[#allocation3 + $0x1c] sm:$0xf] %vm4529, %v9244
      %9333 = vst.msk [vmem:[#allocation3 + $0x20] sm:$0xf] %vm4529, %v9246
      %9334 = vst.msk [vmem:[#allocation3 + $0x24] sm:$0xf] %vm4529, %v9248
      %9335 = vst.msk [vmem:[#allocation3 + $0x28] sm:$0xf] %vm4529, %v9250
      %9336 = vst.msk [vmem:[#allocation3 + $0x2c] sm:$0xf] %vm4529, %v9252
      %9337 = vst.msk [vmem:[#allocation3 + $0x30] sm:$0xf] %vm4529, %v9254
      %9338 = vst.msk [vmem:[#allocation3 + $0x34] sm:$0xf] %vm4529, %v9256
      %9339 = vst.msk [vmem:[#allocation3 + $0x38] sm:$0xf] %vm4529, %v9258
      %9340 = vst.msk [vmem:[#allocation3 + $0x3c] sm:$0xf] %vm4529, %v9260
      %9341 = vst.msk [vmem:[#allocation3 + $0x40] sm:$0xf] %vm4529, %v9262
      %9342 = vst.msk [vmem:[#allocation3 + $0x44] sm:$0xf] %vm4529, %v9264
      %9343 = vst.msk [vmem:[#allocation3 + $0x48] sm:$0xf] %vm4529, %v9266
      %9344 = vst.msk [vmem:[#allocation3 + $0x4c] sm:$0xf] %vm4529, %v9268
      %9345 = vst.msk [vmem:[#allocation3 + $0x50] sm:$0xf] %vm4529, %v9270
      %9346 = vst.msk [vmem:[#allocation3 + $0x54] sm:$0xf] %vm4529, %v9272
      %9347 = vst.msk [vmem:[#allocation3 + $0x58] sm:$0xf] %vm4529, %v9274
      %9348 = vst.msk [vmem:[#allocation3 + $0x5c] sm:$0xf] %vm4529, %v9276
      %9349 = vst.msk [vmem:[#allocation3 + $0x60] sm:$0xf] %vm4529, %v9278
      %9350 = vst.msk [vmem:[#allocation3 + $0x64] sm:$0xf] %vm4529, %v9280
      %9351 = vst.msk [vmem:[#allocation3 + $0x68] sm:$0xf] %vm4529, %v9282
      %9352 = vst.msk [vmem:[#allocation3 + $0x6c] sm:$0xf] %vm4529, %v9284
      %9353 = vst.msk [vmem:[#allocation3 + $0x70] sm:$0xf] %vm4529, %v9286
      %9354 = vst.msk [vmem:[#allocation3 + $0x74] sm:$0xf] %vm4529, %v9288
      %9355 = vst.msk [vmem:[#allocation3 + $0x78] sm:$0xf] %vm4529, %v9290
      %9356 = vst.msk [vmem:[#allocation3 + $0x7c] sm:$0xf] %vm4529, %v9292
      %v9357 = vld [vmem:[%s1719 + $0x2] sm:$0xff]
      %v9358 = vld [vmem:[%s1719 + $0xa] sm:$0xff]
      %v9359 = vld [vmem:[%s1719 + $0x1a] sm:$0xff]
      %v9360 = vld [vmem:[%s1719 + $0x22] sm:$0xff]
      %v9361 = vld [vmem:[%s1719 + $0x32] sm:$0xff]
      %v9362 = vld [vmem:[%s1719 + $0x3a] sm:$0xff]
      %v9363 = vld [vmem:[%s1719 + $0x4a] sm:$0xff]
      %v9364 = vld [vmem:[%s1719 + $0x52] sm:$0xff]
      %v9365 = vld [vmem:[%s1719 + $0x62] sm:$0xff]
      %v9366 = vld [vmem:[%s1719 + $0x6a] sm:$0xff]
      %v9367 = vld [vmem:[%s1719 + $0x7a] sm:$0xff]
      %v9368 = vld [vmem:[%s1719 + $0x82] sm:$0xff]
      %v9369 = vld [vmem:[%s1719 + $0x92] sm:$0xff]
      %v9370 = vld [vmem:[%s1719 + $0x9a] sm:$0xff]
      %v9371 = vld [vmem:[%s1719 + $0xaa] sm:$0xff]
      %v9372 = vld [vmem:[%s1719 + $0xb2] sm:$0xff]
      %v9373 = vld [vmem:[%s1719 + $0xc2] sm:$0xff]
      %v9374 = vld [vmem:[%s1719 + $0xca] sm:$0xff]
      %v9375 = vld [vmem:[%s1719 + $0xda] sm:$0xff]
      %v9376 = vld [vmem:[%s1719 + $0xe2] sm:$0xff]
      %v9377 = vld [vmem:[%s1719 + $0xf2] sm:$0xff]
      %v9378 = vld [vmem:[%s1719 + $0xfa] sm:$0xff]
      %v9379 = vld [vmem:[%s1719 + $0x10a] sm:$0xff]
      %v9380 = vld [vmem:[%s1719 + $0x112] sm:$0xff]
      %v9381 = vld [vmem:[%s1719 + $0x122] sm:$0xff]
      %v9382 = vld [vmem:[%s1719 + $0x12a] sm:$0xff]
      %v9383 = vld [vmem:[%s1719 + $0x13a] sm:$0xff]
      %v9384 = vld [vmem:[%s1719 + $0x142] sm:$0xff]
      %v9385 = vld [vmem:[%s1719 + $0x152] sm:$0xff]
      %v9386 = vld [vmem:[%s1719 + $0x15a] sm:$0xff]
      %v9387 = vld [vmem:[%s1719 + $0x16a] sm:$0xff]
      %v9388 = vld [vmem:[%s1719 + $0x172] sm:$0xff]
      %v9389 = vpack.c.bf16 %v9357, %v9357
      %v9390 = vpack.c.bf16 %v9358, %v9358
      %v9391 = vpack.c.bf16 %v9359, %v9359
      %v9392 = vpack.c.bf16 %v9360, %v9360
      %v9393 = vpack.c.bf16 %v9361, %v9361
      %v9394 = vpack.c.bf16 %v9362, %v9362
      %v9395 = vpack.c.bf16 %v9363, %v9363
      %v9396 = vpack.c.bf16 %v9364, %v9364
      %v9397 = vpack.c.bf16 %v9365, %v9365
      %v9398 = vpack.c.bf16 %v9366, %v9366
      %v9399 = vpack.c.bf16 %v9367, %v9367
      %v9400 = vpack.c.bf16 %v9368, %v9368
      %v9401 = vpack.c.bf16 %v9369, %v9369
      %v9402 = vpack.c.bf16 %v9370, %v9370
      %v9403 = vpack.c.bf16 %v9371, %v9371
      %v9404 = vpack.c.bf16 %v9372, %v9372
      %v9405 = vpack.c.bf16 %v9373, %v9373
      %v9406 = vpack.c.bf16 %v9374, %v9374
      %v9407 = vpack.c.bf16 %v9375, %v9375
      %v9408 = vpack.c.bf16 %v9376, %v9376
      %v9409 = vpack.c.bf16 %v9377, %v9377
      %v9410 = vpack.c.bf16 %v9378, %v9378
      %v9411 = vpack.c.bf16 %v9379, %v9379
      %v9412 = vpack.c.bf16 %v9380, %v9380
      %v9413 = vpack.c.bf16 %v9381, %v9381
      %v9414 = vpack.c.bf16 %v9382, %v9382
      %v9415 = vpack.c.bf16 %v9383, %v9383
      %v9416 = vpack.c.bf16 %v9384, %v9384
      %v9417 = vpack.c.bf16 %v9385, %v9385
      %v9418 = vpack.c.bf16 %v9386, %v9386
      %v9419 = vpack.c.bf16 %v9387, %v9387
      %v9420 = vpack.c.bf16 %v9388, %v9388
      %9453 = vrot.lane.b32.xlu0 %v9389, 64
      %v9454 = vpop.permute.xlu0 %9453
      %9455 = vrot.lane.b32.xlu0 %v9390, 64
      %v9456 = vpop.permute.xlu0 %9455
      %9457 = vrot.lane.b32.xlu0 %v9391, 64
      %v9458 = vpop.permute.xlu0 %9457
      %9459 = vrot.lane.b32.xlu0 %v9392, 64
      %v9460 = vpop.permute.xlu0 %9459
      %9461 = vrot.lane.b32.xlu0 %v9393, 64
      %v9462 = vpop.permute.xlu0 %9461
      %9463 = vrot.lane.b32.xlu0 %v9394, 64
      %v9464 = vpop.permute.xlu0 %9463
      %9465 = vrot.lane.b32.xlu0 %v9395, 64
      %v9466 = vpop.permute.xlu0 %9465
      %9467 = vrot.lane.b32.xlu0 %v9396, 64
      %v9468 = vpop.permute.xlu0 %9467
      %9469 = vrot.lane.b32.xlu0 %v9397, 64
      %v9470 = vpop.permute.xlu0 %9469
      %9471 = vrot.lane.b32.xlu0 %v9398, 64
      %v9472 = vpop.permute.xlu0 %9471
      %9473 = vrot.lane.b32.xlu0 %v9399, 64
      %v9474 = vpop.permute.xlu0 %9473
      %9475 = vrot.lane.b32.xlu0 %v9400, 64
      %v9476 = vpop.permute.xlu0 %9475
      %9477 = vrot.lane.b32.xlu0 %v9401, 64
      %v9478 = vpop.permute.xlu0 %9477
      %9479 = vrot.lane.b32.xlu0 %v9402, 64
      %v9480 = vpop.permute.xlu0 %9479
      %9481 = vrot.lane.b32.xlu0 %v9403, 64
      %v9482 = vpop.permute.xlu0 %9481
      %9483 = vrot.lane.b32.xlu0 %v9404, 64
      %v9484 = vpop.permute.xlu0 %9483
      %9485 = vrot.lane.b32.xlu0 %v9405, 64
      %v9486 = vpop.permute.xlu0 %9485
      %9487 = vrot.lane.b32.xlu0 %v9406, 64
      %v9488 = vpop.permute.xlu0 %9487
      %9489 = vrot.lane.b32.xlu0 %v9407, 64
      %v9490 = vpop.permute.xlu0 %9489
      %9491 = vrot.lane.b32.xlu0 %v9408, 64
      %v9492 = vpop.permute.xlu0 %9491
      %9493 = vrot.lane.b32.xlu0 %v9409, 64
      %v9494 = vpop.permute.xlu0 %9493
      %9495 = vrot.lane.b32.xlu0 %v9410, 64
      %v9496 = vpop.permute.xlu0 %9495
      %9497 = vrot.lane.b32.xlu0 %v9411, 64
      %v9498 = vpop.permute.xlu0 %9497
      %9499 = vrot.lane.b32.xlu0 %v9412, 64
      %v9500 = vpop.permute.xlu0 %9499
      %9501 = vrot.lane.b32.xlu0 %v9413, 64
      %v9502 = vpop.permute.xlu0 %9501
      %9503 = vrot.lane.b32.xlu0 %v9414, 64
      %v9504 = vpop.permute.xlu0 %9503
      %9505 = vrot.lane.b32.xlu0 %v9415, 64
      %v9506 = vpop.permute.xlu0 %9505
      %9507 = vrot.lane.b32.xlu0 %v9416, 64
      %v9508 = vpop.permute.xlu0 %9507
      %9509 = vrot.lane.b32.xlu0 %v9417, 64
      %v9510 = vpop.permute.xlu0 %9509
      %9511 = vrot.lane.b32.xlu0 %v9418, 64
      %v9512 = vpop.permute.xlu0 %9511
      %9513 = vrot.lane.b32.xlu0 %v9419, 64
      %v9514 = vpop.permute.xlu0 %9513
      %9515 = vrot.lane.b32.xlu0 %v9420, 64
      %v9516 = vpop.permute.xlu0 %9515
      %9549 = vst.msk [vmem:[#allocation3] sm:$0xf] %vm4754, %v9454
      %9550 = vst.msk [vmem:[#allocation3 + $0x4] sm:$0xf] %vm4754, %v9456
      %9551 = vst.msk [vmem:[#allocation3 + $0x8] sm:$0xf] %vm4754, %v9458
      %9552 = vst.msk [vmem:[#allocation3 + $0xc] sm:$0xf] %vm4754, %v9460
      %9553 = vst.msk [vmem:[#allocation3 + $0x10] sm:$0xf] %vm4754, %v9462
      %9554 = vst.msk [vmem:[#allocation3 + $0x14] sm:$0xf] %vm4754, %v9464
      %9555 = vst.msk [vmem:[#allocation3 + $0x18] sm:$0xf] %vm4754, %v9466
      %9556 = vst.msk [vmem:[#allocation3 + $0x1c] sm:$0xf] %vm4754, %v9468
      %9557 = vst.msk [vmem:[#allocation3 + $0x20] sm:$0xf] %vm4754, %v9470
      %9558 = vst.msk [vmem:[#allocation3 + $0x24] sm:$0xf] %vm4754, %v9472
      %9559 = vst.msk [vmem:[#allocation3 + $0x28] sm:$0xf] %vm4754, %v9474
      %9560 = vst.msk [vmem:[#allocation3 + $0x2c] sm:$0xf] %vm4754, %v9476
      %9561 = vst.msk [vmem:[#allocation3 + $0x30] sm:$0xf] %vm4754, %v9478
      %9562 = vst.msk [vmem:[#allocation3 + $0x34] sm:$0xf] %vm4754, %v9480
      %9563 = vst.msk [vmem:[#allocation3 + $0x38] sm:$0xf] %vm4754, %v9482
      %9564 = vst.msk [vmem:[#allocation3 + $0x3c] sm:$0xf] %vm4754, %v9484
      %9565 = vst.msk [vmem:[#allocation3 + $0x40] sm:$0xf] %vm4754, %v9486
      %9566 = vst.msk [vmem:[#allocation3 + $0x44] sm:$0xf] %vm4754, %v9488
      %9567 = vst.msk [vmem:[#allocation3 + $0x48] sm:$0xf] %vm4754, %v9490
      %9568 = vst.msk [vmem:[#allocation3 + $0x4c] sm:$0xf] %vm4754, %v9492
      %9569 = vst.msk [vmem:[#allocation3 + $0x50] sm:$0xf] %vm4754, %v9494
      %9570 = vst.msk [vmem:[#allocation3 + $0x54] sm:$0xf] %vm4754, %v9496
      %9571 = vst.msk [vmem:[#allocation3 + $0x58] sm:$0xf] %vm4754, %v9498
      %9572 = vst.msk [vmem:[#allocation3 + $0x5c] sm:$0xf] %vm4754, %v9500
      %9573 = vst.msk [vmem:[#allocation3 + $0x60] sm:$0xf] %vm4754, %v9502
      %9574 = vst.msk [vmem:[#allocation3 + $0x64] sm:$0xf] %vm4754, %v9504
      %9575 = vst.msk [vmem:[#allocation3 + $0x68] sm:$0xf] %vm4754, %v9506
      %9576 = vst.msk [vmem:[#allocation3 + $0x6c] sm:$0xf] %vm4754, %v9508
      %9577 = vst.msk [vmem:[#allocation3 + $0x70] sm:$0xf] %vm4754, %v9510
      %9578 = vst.msk [vmem:[#allocation3 + $0x74] sm:$0xf] %vm4754, %v9512
      %9579 = vst.msk [vmem:[#allocation3 + $0x78] sm:$0xf] %vm4754, %v9514
      %9580 = vst.msk [vmem:[#allocation3 + $0x7c] sm:$0xf] %vm4754, %v9516
      %v9581 = vld [vmem:[#allocation3] sm:$0xf]
      %v9582 = vld [vmem:[#allocation3 + $0x4] sm:$0xf]
      %v9583 = vld [vmem:[#allocation3 + $0x8] sm:$0xf]
      %v9584 = vld [vmem:[#allocation3 + $0xc] sm:$0xf]
      %v9585 = vld [vmem:[#allocation3 + $0x10] sm:$0xf]
      %v9586 = vld [vmem:[#allocation3 + $0x14] sm:$0xf]
      %v9587 = vld [vmem:[#allocation3 + $0x18] sm:$0xf]
      %v9588 = vld [vmem:[#allocation3 + $0x1c] sm:$0xf]
      %v9589 = vld [vmem:[#allocation3 + $0x20] sm:$0xf]
      %v9590 = vld [vmem:[#allocation3 + $0x24] sm:$0xf]
      %v9591 = vld [vmem:[#allocation3 + $0x28] sm:$0xf]
      %v9592 = vld [vmem:[#allocation3 + $0x2c] sm:$0xf]
      %v9593 = vld [vmem:[#allocation3 + $0x30] sm:$0xf]
      %v9594 = vld [vmem:[#allocation3 + $0x34] sm:$0xf]
      %v9595 = vld [vmem:[#allocation3 + $0x38] sm:$0xf]
      %v9596 = vld [vmem:[#allocation3 + $0x3c] sm:$0xf]
      %v9597 = vld [vmem:[#allocation3 + $0x40] sm:$0xf]
      %v9598 = vld [vmem:[#allocation3 + $0x44] sm:$0xf]
      %v9599 = vld [vmem:[#allocation3 + $0x48] sm:$0xf]
      %v9600 = vld [vmem:[#allocation3 + $0x4c] sm:$0xf]
      %v9601 = vld [vmem:[#allocation3 + $0x50] sm:$0xf]
      %v9602 = vld [vmem:[#allocation3 + $0x54] sm:$0xf]
      %v9603 = vld [vmem:[#allocation3 + $0x58] sm:$0xf]
      %v9604 = vld [vmem:[#allocation3 + $0x5c] sm:$0xf]
      %v9605 = vld [vmem:[#allocation3 + $0x60] sm:$0xf]
      %v9606 = vld [vmem:[#allocation3 + $0x64] sm:$0xf]
      %v9607 = vld [vmem:[#allocation3 + $0x68] sm:$0xf]
      %v9608 = vld [vmem:[#allocation3 + $0x6c] sm:$0xf]
      %v9609 = vld [vmem:[#allocation3 + $0x70] sm:$0xf]
      %v9610 = vld [vmem:[#allocation3 + $0x74] sm:$0xf]
      %v9611 = vld [vmem:[#allocation3 + $0x78] sm:$0xf]
      %v9612 = vld [vmem:[#allocation3 + $0x7c] sm:$0xf]
      %v9645 = vunpack.c.l.b16 %v9581
      %v9646 = vunpack.c.l.b16 %v9582
      %v9647 = vunpack.c.l.b16 %v9583
      %v9648 = vunpack.c.l.b16 %v9584
      %v9649 = vunpack.c.l.b16 %v9585
      %v9650 = vunpack.c.l.b16 %v9586
      %v9651 = vunpack.c.l.b16 %v9587
      %v9652 = vunpack.c.l.b16 %v9588
      %v9653 = vunpack.c.l.b16 %v9589
      %v9654 = vunpack.c.l.b16 %v9590
      %v9655 = vunpack.c.l.b16 %v9591
      %v9656 = vunpack.c.l.b16 %v9592
      %v9657 = vunpack.c.l.b16 %v9593
      %v9658 = vunpack.c.l.b16 %v9594
      %v9659 = vunpack.c.l.b16 %v9595
      %v9660 = vunpack.c.l.b16 %v9596
      %v9661 = vunpack.c.l.b16 %v9597
      %v9662 = vunpack.c.l.b16 %v9598
      %v9663 = vunpack.c.l.b16 %v9599
      %v9664 = vunpack.c.l.b16 %v9600
      %v9665 = vunpack.c.l.b16 %v9601
      %v9666 = vunpack.c.l.b16 %v9602
      %v9667 = vunpack.c.l.b16 %v9603
      %v9668 = vunpack.c.l.b16 %v9604
      %v9669 = vunpack.c.l.b16 %v9605
      %v9670 = vunpack.c.l.b16 %v9606
      %v9671 = vunpack.c.l.b16 %v9607
      %v9672 = vunpack.c.l.b16 %v9608
      %v9673 = vunpack.c.l.b16 %v9609
      %v9674 = vunpack.c.l.b16 %v9610
      %v9675 = vunpack.c.l.b16 %v9611
      %v9676 = vunpack.c.l.b16 %v9612
      %v9677 = vpack.c.b16 %v9646, %v9645
      %v9678 = vpack.c.b16 %v9648, %v9647
      %v9679 = vpack.c.b16 %v9650, %v9649
      %v9680 = vpack.c.b16 %v9652, %v9651
      %v9681 = vpack.c.b16 %v9654, %v9653
      %v9682 = vpack.c.b16 %v9656, %v9655
      %v9683 = vpack.c.b16 %v9658, %v9657
      %v9684 = vpack.c.b16 %v9660, %v9659
      %v9685 = vpack.c.b16 %v9662, %v9661
      %v9686 = vpack.c.b16 %v9664, %v9663
      %v9687 = vpack.c.b16 %v9666, %v9665
      %v9688 = vpack.c.b16 %v9668, %v9667
      %v9689 = vpack.c.b16 %v9670, %v9669
      %v9690 = vpack.c.b16 %v9672, %v9671
      %v9691 = vpack.c.b16 %v9674, %v9673
      %v9692 = vpack.c.b16 %v9676, %v9675
      %v9702 = vunpack.c.l.b16 %v7652
      %v9703 = vunpack.c.l.b16 %v7653
      %v9704 = vunpack.c.l.b16 %v7654
      %v9705 = vunpack.c.l.b16 %v7655
      %v9706 = vunpack.c.l.b16 %v7656
      %v9707 = vunpack.c.l.b16 %v7657
      %v9708 = vunpack.c.l.b16 %v7658
      %v9709 = vunpack.c.l.b16 %v7659
      %v9710 = vunpack.c.l.b16 %v7660
      %v9711 = vpack.c.b16 %v9703, %v9702
      %v9712 = vpack.c.b16 %v9705, %v9704
      %v9713 = vpack.c.b16 %v9707, %v9706
      %v9714 = vpack.c.b16 %v9709, %v9708
      %v9715 = vpack.c.b16 %v9710, %v9710
      %v9721 = vsel %vm4926, %v9677, 0
      %v9724 = vsel %vm4926, %v9678, 0
      %v9727 = vsel %vm4926, %v9679, 0
      %v9730 = vsel %vm4926, %v9680, 0
      %v9733 = vsel %vm4926, %v9681, 0
      %v9736 = vsel %vm4926, %v9682, 0
      %v9739 = vsel %vm4926, %v9683, 0
      %v9742 = vsel %vm4926, %v9684, 0
      %v9745 = vsel %vm4926, %v9685, 0
      %v9748 = vsel %vm4926, %v9686, 0
      %v9751 = vsel %vm4926, %v9687, 0
      %v9754 = vsel %vm4926, %v9688, 0
      %v9757 = vsel %vm4926, %v9689, 0
      %v9760 = vsel %vm4926, %v9690, 0
      %v9763 = vsel %vm4926, %v9691, 0
      %v9766 = vsel %vm4926, %v9692, 0
      %v9769 = vsel %vm4975, %v9715, 0
      %9771 = vmatpush.bf16.msra.mxu0 0
      %9772 = vmatpush.bf16.msra.mxu0 0
      %9773 = vmatpush.bf16.msra.mxu0 0
      %9774 = vmatpush.bf16.msra.mxu0 %v9769
      %9775 = vmatpush.bf16.msra.mxu0 %v9714
      %9776 = vmatpush.bf16.msra.mxu0 %v9713
      %9777 = vmatpush.bf16.msra.mxu0 %v9712
      %9778 = vmatpush.bf16.msra.mxu0 %v9711
      %9779 = vmatmul.bf16.gmra.mxu0 %v9721
      %v9780 = vpop.f32.mrf.mxu0
      %v9781 = vadd.f32 0.0, %v9780
      %v9782 = vpop.f32.mrf.mxu0
      %v9783 = vadd.f32 0.0, %v9782
      %9784 = vmatmul.bf16.gmra.mxu0 %v9724
      %v9785 = vpop.f32.mrf.mxu0
      %v9786 = vadd.f32 0.0, %v9785
      %v9787 = vpop.f32.mrf.mxu0
      %v9788 = vadd.f32 0.0, %v9787
      %9789 = vmatmul.bf16.gmra.mxu0 %v9727
      %v9790 = vpop.f32.mrf.mxu0
      %v9791 = vadd.f32 0.0, %v9790
      %v9792 = vpop.f32.mrf.mxu0
      %v9793 = vadd.f32 0.0, %v9792
      %9794 = vmatmul.bf16.gmra.mxu0 %v9730
      %v9795 = vpop.f32.mrf.mxu0
      %v9796 = vadd.f32 0.0, %v9795
      %v9797 = vpop.f32.mrf.mxu0
      %v9798 = vadd.f32 0.0, %v9797
      %9799 = vmatmul.bf16.gmra.mxu0 %v9733
      %v9800 = vpop.f32.mrf.mxu0
      %v9801 = vadd.f32 0.0, %v9800
      %v9802 = vpop.f32.mrf.mxu0
      %v9803 = vadd.f32 0.0, %v9802
      %9804 = vmatmul.bf16.gmra.mxu0 %v9736
      %v9805 = vpop.f32.mrf.mxu0
      %v9806 = vadd.f32 0.0, %v9805
      %v9807 = vpop.f32.mrf.mxu0
      %v9808 = vadd.f32 0.0, %v9807
      %9809 = vmatmul.bf16.gmra.mxu0 %v9739
      %v9810 = vpop.f32.mrf.mxu0
      %v9811 = vadd.f32 0.0, %v9810
      %v9812 = vpop.f32.mrf.mxu0
      %v9813 = vadd.f32 0.0, %v9812
      %9814 = vmatmul.bf16.gmra.mxu0 %v9742
      %v9815 = vpop.f32.mrf.mxu0
      %v9816 = vadd.f32 0.0, %v9815
      %v9817 = vpop.f32.mrf.mxu0
      %v9818 = vadd.f32 0.0, %v9817
      %9819 = vmatmul.bf16.gmra.mxu0 %v9745
      %v9820 = vpop.f32.mrf.mxu0
      %v9821 = vadd.f32 0.0, %v9820
      %v9822 = vpop.f32.mrf.mxu0
      %v9823 = vadd.f32 0.0, %v9822
      %9824 = vmatmul.bf16.gmra.mxu0 %v9748
      %v9825 = vpop.f32.mrf.mxu0
      %v9826 = vadd.f32 0.0, %v9825
      %v9827 = vpop.f32.mrf.mxu0
      %v9828 = vadd.f32 0.0, %v9827
      %9829 = vmatmul.bf16.gmra.mxu0 %v9751
      %v9830 = vpop.f32.mrf.mxu0
      %v9831 = vadd.f32 0.0, %v9830
      %v9832 = vpop.f32.mrf.mxu0
      %v9833 = vadd.f32 0.0, %v9832
      %9834 = vmatmul.bf16.gmra.mxu0 %v9754
      %v9835 = vpop.f32.mrf.mxu0
      %v9836 = vadd.f32 0.0, %v9835
      %v9837 = vpop.f32.mrf.mxu0
      %v9838 = vadd.f32 0.0, %v9837
      %9839 = vmatmul.bf16.gmra.mxu0 %v9757
      %v9840 = vpop.f32.mrf.mxu0
      %v9841 = vadd.f32 0.0, %v9840
      %v9842 = vpop.f32.mrf.mxu0
      %v9843 = vadd.f32 0.0, %v9842
      %9844 = vmatmul.bf16.gmra.mxu0 %v9760
      %v9845 = vpop.f32.mrf.mxu0
      %v9846 = vadd.f32 0.0, %v9845
      %v9847 = vpop.f32.mrf.mxu0
      %v9848 = vadd.f32 0.0, %v9847
      %9849 = vmatmul.bf16.gmra.mxu0 %v9763
      %v9850 = vpop.f32.mrf.mxu0
      %v9851 = vadd.f32 0.0, %v9850
      %v9852 = vpop.f32.mrf.mxu0
      %v9853 = vadd.f32 0.0, %v9852
      %9854 = vmatmul.bf16.gmra.mxu0 %v9766
      %v9855 = vpop.f32.mrf.mxu0
      %v9856 = vadd.f32 0.0, %v9855
      %v9857 = vpop.f32.mrf.mxu0
      %v9858 = vadd.f32 0.0, %v9857
      %9859 = vdwg.mxu0
      %v9860 = vadd.f32 %v5210, %v9781
      %v9861 = vadd.f32 %v5211, %v9783
      %v9862 = vadd.f32 %v5212, %v9786
      %v9863 = vadd.f32 %v5213, %v9788
      %v9864 = vadd.f32 %v5214, %v9791
      %v9865 = vadd.f32 %v5215, %v9793
      %v9866 = vadd.f32 %v5216, %v9796
      %v9867 = vadd.f32 %v5217, %v9798
      %v9868 = vadd.f32 %v5218, %v9801
      %v9869 = vadd.f32 %v5219, %v9803
      %v9870 = vadd.f32 %v5220, %v9806
      %v9871 = vadd.f32 %v5221, %v9808
      %v9872 = vadd.f32 %v5222, %v9811
      %v9873 = vadd.f32 %v5223, %v9813
      %v9874 = vadd.f32 %v5224, %v9816
      %v9875 = vadd.f32 %v5225, %v9818
      %v9876 = vadd.f32 %v5226, %v9821
      %v9877 = vadd.f32 %v5227, %v9823
      %v9878 = vadd.f32 %v5228, %v9826
      %v9879 = vadd.f32 %v5229, %v9828
      %v9880 = vadd.f32 %v5230, %v9831
      %v9881 = vadd.f32 %v5231, %v9833
      %v9882 = vadd.f32 %v5232, %v9836
      %v9883 = vadd.f32 %v5233, %v9838
      %v9884 = vadd.f32 %v5234, %v9841
      %v9885 = vadd.f32 %v5235, %v9843
      %v9886 = vadd.f32 %v5236, %v9846
      %v9887 = vadd.f32 %v5237, %v9848
      %v9888 = vadd.f32 %v5238, %v9851
      %v9889 = vadd.f32 %v5239, %v9853
      %v9890 = vadd.f32 %v5240, %v9856
      %v9891 = vadd.f32 %v5241, %v9858
      %v9892 = vld [vmem:[%s3 + $0x1] sm:$0x1]
      %v9893 = vperm.slane %v9892, 0
      %v9894 = vadd.f32 %v9860, %v9893
      %v9895 = vadd.f32 %v9861, %v9893
      %v9896 = vadd.f32 %v9862, %v9893
      %v9897 = vadd.f32 %v9863, %v9893
      %v9898 = vadd.f32 %v9864, %v9893
      %v9899 = vadd.f32 %v9865, %v9893
      %v9900 = vadd.f32 %v9866, %v9893
      %v9901 = vadd.f32 %v9867, %v9893
      %v9902 = vadd.f32 %v9868, %v9893
      %v9903 = vadd.f32 %v9869, %v9893
      %v9904 = vadd.f32 %v9870, %v9893
      %v9905 = vadd.f32 %v9871, %v9893
      %v9906 = vadd.f32 %v9872, %v9893
      %v9907 = vadd.f32 %v9873, %v9893
      %v9908 = vadd.f32 %v9874, %v9893
      %v9909 = vadd.f32 %v9875, %v9893
      %v9910 = vadd.f32 %v9876, %v9893
      %v9911 = vadd.f32 %v9877, %v9893
      %v9912 = vadd.f32 %v9878, %v9893
      %v9913 = vadd.f32 %v9879, %v9893
      %v9914 = vadd.f32 %v9880, %v9893
      %v9915 = vadd.f32 %v9881, %v9893
      %v9916 = vadd.f32 %v9882, %v9893
      %v9917 = vadd.f32 %v9883, %v9893
      %v9918 = vadd.f32 %v9884, %v9893
      %v9919 = vadd.f32 %v9885, %v9893
      %v9920 = vadd.f32 %v9886, %v9893
      %v9921 = vadd.f32 %v9887, %v9893
      %v9922 = vadd.f32 %v9888, %v9893
      %v9923 = vadd.f32 %v9889, %v9893
      %v9924 = vadd.f32 %v9890, %v9893
      %v9925 = vadd.f32 %v9891, %v9893
      %9926 = vst.msk [vmem:[%s278] sm:$0xff] %vm280, %v9894
      %9927 = vst.msk [vmem:[%s278 + $0x8] sm:$0xff] %vm280, %v9895
      %9928 = vst.msk [vmem:[%s278 + $0x10] sm:$0xff] %vm280, %v9896
      %9929 = vst.msk [vmem:[%s278 + $0x18] sm:$0xff] %vm280, %v9897
      %9930 = vst.msk [vmem:[%s278 + $0x20] sm:$0xff] %vm280, %v9898
      %9931 = vst.msk [vmem:[%s278 + $0x28] sm:$0xff] %vm280, %v9899
      %9932 = vst.msk [vmem:[%s278 + $0x30] sm:$0xff] %vm280, %v9900
      %9933 = vst.msk [vmem:[%s278 + $0x38] sm:$0xff] %vm280, %v9901
      %9934 = vst.msk [vmem:[%s278 + $0x40] sm:$0xff] %vm280, %v9902
      %9935 = vst.msk [vmem:[%s278 + $0x48] sm:$0xff] %vm280, %v9903
      %9936 = vst.msk [vmem:[%s278 + $0x50] sm:$0xff] %vm280, %v9904
      %9937 = vst.msk [vmem:[%s278 + $0x58] sm:$0xff] %vm280, %v9905
      %9938 = vst.msk [vmem:[%s278 + $0x60] sm:$0xff] %vm280, %v9906
      %9939 = vst.msk [vmem:[%s278 + $0x68] sm:$0xff] %vm280, %v9907
      %9940 = vst.msk [vmem:[%s278 + $0x70] sm:$0xff] %vm280, %v9908
      %9941 = vst.msk [vmem:[%s278 + $0x78] sm:$0xff] %vm280, %v9909
      %9942 = vst.msk [vmem:[%s278 + $0x80] sm:$0xff] %vm280, %v9910
      %9943 = vst.msk [vmem:[%s278 + $0x88] sm:$0xff] %vm280, %v9911
      %9944 = vst.msk [vmem:[%s278 + $0x90] sm:$0xff] %vm280, %v9912
      %9945 = vst.msk [vmem:[%s278 + $0x98] sm:$0xff] %vm280, %v9913
      %9946 = vst.msk [vmem:[%s278 + $0xa0] sm:$0xff] %vm280, %v9914
      %9947 = vst.msk [vmem:[%s278 + $0xa8] sm:$0xff] %vm280, %v9915
      %9948 = vst.msk [vmem:[%s278 + $0xb0] sm:$0xff] %vm280, %v9916
      %9949 = vst.msk [vmem:[%s278 + $0xb8] sm:$0xff] %vm280, %v9917
      %9950 = vst.msk [vmem:[%s278 + $0xc0] sm:$0xff] %vm280, %v9918
      %9951 = vst.msk [vmem:[%s278 + $0xc8] sm:$0xff] %vm280, %v9919
      %9952 = vst.msk [vmem:[%s278 + $0xd0] sm:$0xff] %vm280, %v9920
      %9953 = vst.msk [vmem:[%s278 + $0xd8] sm:$0xff] %vm280, %v9921
      %9954 = vst.msk [vmem:[%s278 + $0xe0] sm:$0xff] %vm280, %v9922
      %9955 = vst.msk [vmem:[%s278 + $0xe8] sm:$0xff] %vm280, %v9923
      %9956 = vst.msk [vmem:[%s278 + $0xf0] sm:$0xff] %vm280, %v9924
      %9957 = vst.msk [vmem:[%s278 + $0xf8] sm:$0xff] %vm280, %v9925
      %p9958 = scmp.lt.s32.totalorder %s18, 1
      %s9959 = scalar_select %p9958, %s18, 1
      %s9960 = smul.addr %s9959, 32
      %s9961 = smul.addr %s9960, 8
      %s9962 = scalar_lea.vmem %s7, %s9961
      // Predicated region
      $region49: #{tpu_custom_call.1} parent=47 // pred_check
        %p9963 = pneg %p188
      $region50: #{tpu_custom_call.1} parent=47 // pred_check_branch
        %9965 = sbr.rel (%p9963) target = $region52
      $region51: #{tpu_custom_call.1} parent=47 // pred_region
        _
      $region52: #{tpu_custom_call.1} parent=47 // pred_fallthru
        _
    $region48: #{tpu_custom_call.1} parent=5 // pred_fallthru
      _
    %p9966 = scmp.le.s32.totalorder 2, %s13
    // Predicated region
    $region53: #{tpu_custom_call.1} parent=5 // pred_check
      %p9967 = pneg %p9966
    $region54: #{tpu_custom_call.1} parent=5 // pred_check_branch
      %9969 = sbr.rel (%p9967) target = $region56
    $region55: #{tpu_custom_call.1} parent=5 // pred_region
      %s9970 = ssub.s32 %s13, 2
      // Predicated region
      $region57: #{tpu_custom_call.1} parent=55 // pred_check
        %p9971 = pneg %p194
      $region58: #{tpu_custom_call.1} parent=55 // pred_check_branch
        %9973 = sbr.rel (%p9971) target = $region60
      $region59: #{tpu_custom_call.1} parent=55 // pred_region
        %p9974 = scmp.lt.s32.totalorder %s19, 1
        %s9975 = scalar_select %p9974, %s19, 1
        %s9976 = smul.addr %s9975, 32
        %s9977 = smul.addr %s9976, 8
        %s9978 = scalar_lea.vmem %s7, %s9977
      $region60: #{tpu_custom_call.1} parent=55 // pred_fallthru
        _
    $region56: #{tpu_custom_call.1} parent=5 // pred_fallthru
      _
  $region6: #{tpu_custom_call.1} parent=0 // loop_footer
    %s17 = sadd.s32 1, %s13
  $region7: #{tpu_custom_call.1} parent=0 // loop_footer_branch
    %12 = sbr.rel target = $region3
  $region8: #{tpu_custom_call.1} parent=0 // loop_exit
    _

</llo_original>
